<compile_context>
chip_gen: v6e
topology: v6e:2x2x1
jax: 0.10.0
libtpu: 0.0.40
codegen_flags: <defaults>
</compile_context>

<pallas_src>
import jax
import jax.numpy as jnp
from jax import lax
from jax.experimental import pallas as pl
from jax.experimental.pallas import tpu as pltpu

EPS = 1e-5
# Scoped-VMEM cap: safe on v5e/v6e/v7x; on v5e/v6e this (and the per-step
# block-batch B) can be raised toward 64-96 MiB for bigger DMA bursts.
VMEM_LIMIT_BYTES = 32 * 1024 * 1024


def _round_up(v, m):
    return (v + m - 1) // m * m


def _pick_block(total, bytes_per_item, max_block, byte_budget):
    """Largest divisor of `total` (<= max_block) whose block fits byte_budget."""
    for cand in range(min(total, max_block), 0, -1):
        if total % cand == 0 and cand * bytes_per_item <= byte_budget:
            return cand
    return 1


def _conv3x3_padded(xpad, w_ref, H, W, Cin):
    """3x3 conv on a zero-padded (H+2, >=W+2, Cin) bf16 map -> f32 (H*W, Cout).

    w_ref: (9*Cin, Cout) bf16, tap-major layout (row (dy*3+dx)*Cin + ci).
    """
    if Cin >= 128:
        # Lane-aligned concat offsets -> one deep-K im2col matmul.
        cols = [xpad[dy:dy + H, dx:dx + W, :].reshape(H * W, Cin)
                for dy in range(3) for dx in range(3)]
        patches = jnp.concatenate(cols, axis=-1)
        return jnp.dot(patches, w_ref[...], preferred_element_type=jnp.float32)
    # Cin < 128: concat offsets would be lane-misaligned -> 9 accumulating
    # matmuls with f32 accumulation (no concat).
    acc = None
    for dy in range(3):
        for dx in range(3):
            t = dy * 3 + dx
            patch = xpad[dy:dy + H, dx:dx + W, :].reshape(H * W, Cin)
            w_tap = w_ref[t * Cin:(t + 1) * Cin, :]
            part = jnp.dot(patch, w_tap, preferred_element_type=jnp.float32)
            acc = part if acc is None else acc + part
    return acc


# ---------------- pass 1: conv1 + bn1 partial stats ----------------
def conv1_stats_kernel(x_ref, w_ref, c1_ref, stats_ref, xpad_ref):
    # x_ref    : (B, H, W, Ci)   bf16  unpadded input block
    # w_ref    : (9*Ci, Co)      bf16  conv1 weights (tap-major)
    # c1_ref   : (B, H*W, Co)    bf16  raw conv1 output
    # stats_ref: (1, 2, Co)      f32   per-core [sum; sumsq] accumulator
    # xpad_ref : (H+2, Wp, Ci)   bf16  scratch with persistent zero halo
    n = pl.program_id(1)
    B, H, W, Ci = x_ref.shape
    Co = c1_ref.shape[-1]

    @pl.when(n == 0)
    def _():
        # Zero once: only the interior is overwritten per step, so the halo
        # (and the right sublane padding) stay zero for the whole grid.
        xpad_ref[...] = jnp.zeros_like(xpad_ref)
        stats_ref[...] = jnp.zeros_like(stats_ref)

    ssum = jnp.zeros((1, Co), jnp.float32)
    ssq = jnp.zeros((1, Co), jnp.float32)
    for b in range(B):
        xpad_ref[1:H + 1, 1:W + 1, :] = x_ref[b]
        out = _conv3x3_padded(xpad_ref[...], w_ref, H, W, Ci)   # (H*W, Co) f32
        c1_ref[b] = out.astype(c1_ref.dtype)
        ssum += jnp.sum(out, axis=0, keepdims=True)
        ssq += jnp.sum(out * out, axis=0, keepdims=True)
    # Per-core accumulator block (indexed by the parallel core axis) -> no race.
    stats_ref[...] += jnp.concatenate([ssum, ssq], axis=0).reshape(stats_ref.shape)


# ---------------- pass 2: bn1 + relu + conv2 + bn2 partial stats ----------------
def bn1_conv2_stats_kernel(c1_ref, s1_ref, b1_ref, w_ref, c2_ref, stats_ref,
                           ypad_ref):
    # c1_ref   : (B, H*W, Co) bf16 ; s1/b1: (1, Co) f32 folded BN1 scale/shift
    # w_ref    : (9*Co, Co)   bf16 ; c2_ref: (B, H*W, Co) bf16
    # stats_ref: (1, 2, Co)   f32 per-core accumulator
    # ypad_ref : (H+2, Wp, Co) bf16 scratch with persistent zero halo
    n = pl.program_id(1)
    B, HW, Co = c1_ref.shape
    Hp = ypad_ref.shape[0]
    H = Hp - 2
    W = HW // H

    @pl.when(n == 0)
    def _():
        ypad_ref[...] = jnp.zeros_like(ypad_ref)
        stats_ref[...] = jnp.zeros_like(stats_ref)

    ssum = jnp.zeros((1, Co), jnp.float32)
    ssq = jnp.zeros((1, Co), jnp.float32)
    for b in range(B):
        y = jnp.maximum(c1_ref[b].astype(jnp.float32) * s1_ref[...] + b1_ref[...],
                        0.0)                                    # bn1 + relu, f32
        ypad_ref[1:H + 1, 1:W + 1, :] = y.reshape(H, W, Co).astype(ypad_ref.dtype)
        out = _conv3x3_padded(ypad_ref[...], w_ref, H, W, Co)   # (H*W, Co) f32
        c2_ref[b] = out.astype(c2_ref.dtype)
        ssum += jnp.sum(out, axis=0, keepdims=True)
        ssq += jnp.sum(out * out, axis=0, keepdims=True)
    stats_ref[...] += jnp.concatenate([ssum, ssq], axis=0).reshape(stats_ref.shape)


# ---------------- pass 3: bn2 + residual add + relu (lane-dense) ----------------
def bn2_add_relu_kernel(c2_ref, s2_ref, b2_ref, id_ref, o_ref):
    # c2_ref/id_ref : (B3, H*W*Co) bf16 flattened slabs (full 128-lane vst/vld)
    # s2/b2         : (1, H*W*Co)  f32  pre-broadcast (channel-minor) scale/shift
    # o_ref         : (B3, H*W*Co) f32
    y = c2_ref[...].astype(jnp.float32) * s2_ref[...] + b2_ref[...]
    o_ref[...] = jnp.maximum(y + id_ref[...].astype(jnp.float32), 0.0).astype(
        o_ref.dtype)


def _bn_scale_shift(stats, gamma, beta, count):
    """Fold training-mode BN (biased variance) into y*scale + shift, f32."""
    mean = stats[0] / count
    var = stats[1] / count - mean * mean
    scale = gamma * lax.rsqrt(var + EPS)
    shift = beta - mean * scale
    return (scale.reshape(1, -1).astype(jnp.float32),
            shift.reshape(1, -1).astype(jnp.float32))


def basic_block_forward(x_nchw, params):
    """BasicBlock forward. x_nchw: (N, C, H, W) float32 -> (N, C, H, W) float32."""
    w1, g1, b1, w2, g2, b2 = params
    N, Ci, H, W = x_nchw.shape
    Co = w1.shape[0]
    assert Ci == Co, "downsample=None requires inplanes == planes"
    HW = H * W
    count = float(N * HW)
    Wp = _round_up(W + 2, 8)                 # sublane-aligned halo scratch width

    # Layout plumbing: NCHW -> NHWC (channels on lanes), bf16 for the MXU.
    # The same bf16 tensor is reused as the residual stream in pass 3.
    x_bf16 = jnp.transpose(x_nchw, (0, 2, 3, 1)).astype(jnp.bfloat16)

    # (Cout, Cin, 3, 3) -> (ky, kx, Cin, Cout) -> (9*Cin, Cout) tap-major, bf16.
    w1k = jnp.transpose(w1, (2, 3, 1, 0)).reshape(9 * Ci, Co).astype(jnp.bfloat16)
    w2k = jnp.transpose(w2, (2, 3, 1, 0)).reshape(9 * Co, Co).astype(jnp.bfloat16)

    # Grid: (core-parallel split of the batch, batch-blocked "arbitrary" axis).
    NC = 2 if (N % 2 == 0 and N >= 2) else 1      # v7x megacore split; harmless elsewhere
    per_core = N // NC
    bytes_per_sample = HW * Co * 2                # one bf16 activation block
    B = _pick_block(per_core, bytes_per_sample, max_block=8,
                    byte_budget=2 * 1024 * 1024)
    steps = per_core // B

    # ---- pass 1: conv1 (+ bn1 sum / sum-of-squares, per-core accumulators) ----
    c1, stats1_pc = pl.pallas_call(
        conv1_stats_kernel,
        out_shape=(jax.ShapeDtypeStruct((N, HW, Co), jnp.bfloat16),
                   jax.ShapeDtypeStruct((NC, 2, Co), jnp.float32)),
        grid=(NC, steps),
        in_specs=[
            pl.BlockSpec((B, H, W, Ci), lambda c, n: (c * steps + n, 0, 0, 0)),
            pl.BlockSpec((9 * Ci, Co), lambda c, n: (0, 0)),
        ],
        out_specs=(
            pl.BlockSpec((B, HW, Co), lambda c, n: (c * steps + n, 0, 0)),
            pl.BlockSpec((1, 2, Co), lambda c, n: (c, 0, 0)),   # per-core accumulator
        ),
        scratch_shapes=[pltpu.VMEM((H + 2, Wp, Ci), jnp.bfloat16)],
        compiler_params=pltpu.CompilerParams(
            dimension_semantics=("parallel", "arbitrary"),
            vmem_limit_bytes=VMEM_LIMIT_BYTES),
    )(x_bf16, w1k)

    scale1, shift1 = _bn_scale_shift(stats1_pc.sum(axis=0), g1, b1, count)

    # ---- pass 2: bn1 + relu + conv2 (+ bn2 stats, per-core accumulators) ----
    c2, stats2_pc = pl.pallas_call(
        bn1_conv2_stats_kernel,
        out_shape=(jax.ShapeDtypeStruct((N, HW, Co), jnp.bfloat16),
                   jax.ShapeDtypeStruct((NC, 2, Co), jnp.float32)),
        grid=(NC, steps),
        in_specs=[
            pl.BlockSpec((B, HW, Co), lambda c, n: (c * steps + n, 0, 0)),
            pl.BlockSpec((1, Co), lambda c, n: (0, 0)),
            pl.BlockSpec((1, Co), lambda c, n: (0, 0)),
            pl.BlockSpec((9 * Co, Co), lambda c, n: (0, 0)),
        ],
        out_specs=(
            pl.BlockSpec((B, HW, Co), lambda c, n: (c * steps + n, 0, 0)),
            pl.BlockSpec((1, 2, Co), lambda c, n: (c, 0, 0)),
        ),
        scratch_shapes=[pltpu.VMEM((H + 2, Wp, Co), jnp.bfloat16)],
        compiler_params=pltpu.CompilerParams(
            dimension_semantics=("parallel", "arbitrary"),
            vmem_limit_bytes=VMEM_LIMIT_BYTES),
    )(c1, scale1, shift1, w2k)

    scale2, shift2 = _bn_scale_shift(stats2_pc.sum(axis=0), g2, b2, count)

    # ---- pass 3: bn2 + residual + relu on lane-dense flattened slabs ----
    c2_flat = c2.reshape(N, HW * Co)               # contiguous -> free reshape
    id_flat = x_bf16.reshape(N, HW * Ci)           # reuse bf16 residual stream
    # Pre-broadcast per-channel scale/shift to the channel-minor flat layout
    # (tiny table, resident in VMEM across the whole grid).
    s2_full = jnp.tile(scale2, (1, HW))            # (1, HW*Co) f32
    b2_full = jnp.tile(shift2, (1, HW))

    B3 = _pick_block(N, HW * Co * 4, max_block=8, byte_budget=4 * 1024 * 1024)
    out_flat = pl.pallas_call(
        bn2_add_relu_kernel,
        out_shape=jax.ShapeDtypeStruct((N, HW * Co), jnp.float32),
        grid=(N // B3,),
        in_specs=[
            pl.BlockSpec((B3, HW * Co), lambda n: (n, 0)),
            pl.BlockSpec((1, HW * Co), lambda n: (0, 0)),
            pl.BlockSpec((1, HW * Co), lambda n: (0, 0)),
            pl.BlockSpec((B3, HW * Ci), lambda n: (n, 0)),
        ],
        out_specs=pl.BlockSpec((B3, HW * Co), lambda n: (n, 0)),
        compiler_params=pltpu.CompilerParams(
            dimension_semantics=("parallel",),
            vmem_limit_bytes=VMEM_LIMIT_BYTES),
    )(c2_flat, s2_full, b2_full, id_flat)

    out = out_flat.reshape(N, H, W, Co)
    return jnp.transpose(out, (0, 3, 1, 2))


def reference_forward(x_nchw, params):
    """Pure-JAX f32 reference of the same forward (sanity check)."""
    w1, g1, b1, w2, g2, b2 = params

    def conv(x, w):
        return lax.conv_general_dilated(
            x, w, window_strides=(1, 1), padding=((1, 1), (1, 1)),
            dimension_numbers=("NCHW", "OIHW", "NCHW"))

    def bn(x, g, b):
        m = jnp.mean(x, axis=(0, 2, 3), keepdims=True)
        v = jnp.mean((x - m) ** 2, axis=(0, 2, 3), keepdims=True)
        return ((x - m) * lax.rsqrt(v + EPS)
                * g.reshape(1, -1, 1, 1) + b.reshape(1, -1, 1, 1))

    out = jax.nn.relu(bn(conv(x_nchw, w1), g1, b1))
    out = bn(conv(out, w2), g2, b2)
    return jax.nn.relu(out + x_nchw)


if __name__ == "__main__":
    key = jax.random.PRNGKey(0)
    N, C, H, W = 2, 4, 16, 16      # inplanes = planes = 4, stride = 1
    k1, k2, k3, k4, k5, k6, k7 = jax.random.split(key, 7)

    # Deterministic kaiming-style init for conv weights; perturbed BN affine.
    std = (2.0 / (C * 3 * 3)) ** 0.5
    w1 = jax.random.normal(k1, (C, C, 3, 3), jnp.float32) * std
    w2 = jax.random.normal(k2, (C, C, 3, 3), jnp.float32) * std
    g1 = 1.0 + 0.1 * jax.random.normal(k3, (C,), jnp.float32)
    b1 = 0.1 * jax.random.normal(k4, (C,), jnp.float32)
    g2 = 1.0 + 0.1 * jax.random.normal(k5, (C,), jnp.float32)
    b2 = 0.1 * jax.random.normal(k6, (C,), jnp.float32)
    x = jax.random.normal(k7, (N, C, H, W), jnp.float32)
    params = (w1, g1, b1, w2, g2, b2)

    fwd = jax.jit(basic_block_forward)
    out = jax.block_until_ready(fwd(x, params))

    ref = reference_forward(x, params)
    assert out.shape == ref.shape == (N, C, H, W)
    # Tolerance accounts for bf16 MXU inputs, bf16 inter-pass activations, and
    # the bf16 residual stream versus the pure-f32 reference; genuine indexing
    # or BN-statistics bugs produce O(1) errors, far above this bound.
    max_err = float(jnp.max(jnp.abs(out - ref)))
    if max_err > 1e-1:
        raise AssertionError(f"kernel/reference mismatch, max abs err = {max_err}")

    print("KERNEL_OK")
</pallas_src>

<mosaic_0001>
module attributes {stable_mosaic.version = 11 : i64} {
  func.func @bn1_conv2_stats_kernel(%arg0: i32, %arg1: i32, %arg2: memref<1x256x4xbf16, #tpu.memory_space<vmem>>, %arg3: memref<1x4xf32, #tpu.memory_space<vmem>>, %arg4: memref<1x4xf32, #tpu.memory_space<vmem>>, %arg5: memref<36x4xbf16, #tpu.memory_space<vmem>>, %arg6: memref<1x256x4xbf16, #tpu.memory_space<vmem>>, %arg7: memref<1x2x4xf32, #tpu.memory_space<vmem>>, %arg8: memref<18x24x4xbf16, #tpu.memory_space<vmem>>) attributes {dimension_semantics = [#tpu.dimension_semantics<parallel>, #tpu.dimension_semantics<arbitrary>], iteration_bounds = array<i64: 2, 1>, scalar_prefetch = 0 : i64, scratch_operands = 1 : i64, tpu.core_type = #tpu.core_type<tc>, window_params = [{transform_indices = @transform_0, window_bounds = array<i64: 1, 256, 4>}, {pipeline_mode = #tpu.pipeline_mode<synchronous>, transform_indices = @transform_1, window_bounds = array<i64: 1, 4>}, {pipeline_mode = #tpu.pipeline_mode<synchronous>, transform_indices = @transform_2, window_bounds = array<i64: 1, 4>}, {pipeline_mode = #tpu.pipeline_mode<synchronous>, transform_indices = @transform_3, window_bounds = array<i64: 36, 4>}, {transform_indices = @transform_4, window_bounds = array<i64: 1, 256, 4>}, {transform_indices = @transform_5, window_bounds = array<i64: 1, 2, 4>}]} {
    %c0_i32 = arith.constant 0 : i32
    %0 = arith.cmpi eq, %arg1, %c0_i32 : i32
    %1 = arith.extui %0 : i1 to i32
    %c0_i32_0 = arith.constant 0 : i32
    %2 = arith.cmpi ne, %1, %c0_i32_0 : i32
    scf.if %2 {
      %cst_44 = arith.constant 0.000000e+00 : bf16
      %80 = vector.broadcast %cst_44 : bf16 to vector<18x24x4xbf16>
      %c0_45 = arith.constant 0 : index
      %c0_46 = arith.constant 0 : index
      %c0_47 = arith.constant 0 : index
      %81 = vector.load %arg8[%c0_45, %c0_46, %c0_47] : memref<18x24x4xbf16, #tpu.memory_space<vmem>>, vector<18x24x4xbf16>
      tpu.vector_store %arg8[%c0_45, %c0_46, %c0_47], %80 {strides = array<i32>} : memref<18x24x4xbf16, #tpu.memory_space<vmem>>, vector<18x24x4xbf16>,
      %cst_48 = arith.constant 0.000000e+00 : f32
      %82 = vector.broadcast %cst_48 : f32 to vector<1x2x4xf32>
      %c0_49 = arith.constant 0 : index
      %c0_50 = arith.constant 0 : index
      %c0_51 = arith.constant 0 : index
      %83 = vector.load %arg7[%c0_49, %c0_50, %c0_51] : memref<1x2x4xf32, #tpu.memory_space<vmem>>, vector<1x2x4xf32>
      tpu.vector_store %arg7[%c0_49, %c0_50, %c0_51], %82 {strides = array<i32>} : memref<1x2x4xf32, #tpu.memory_space<vmem>>, vector<1x2x4xf32>,
    } else {
    }
    %cst = arith.constant 0.000000e+00 : f32
    %3 = vector.broadcast %cst : f32 to vector<1x4xf32>
    %cst_1 = arith.constant 0.000000e+00 : f32
    %4 = vector.broadcast %cst_1 : f32 to vector<1x4xf32>
    %c0 = arith.constant 0 : index
    %c0_2 = arith.constant 0 : index
    %c0_3 = arith.constant 0 : index
    %5 = vector.load %arg2[%c0, %c0_2, %c0_3] : memref<1x256x4xbf16, #tpu.memory_space<vmem>>, vector<1x256x4xbf16>
    %6 = vector.shape_cast %5 : vector<1x256x4xbf16> to vector<256x4xbf16>
    %7 = arith.extf %6 : vector<256x4xbf16> to vector<256x4xf32>
    %c0_4 = arith.constant 0 : index
    %c0_5 = arith.constant 0 : index
    %8 = vector.load %arg3[%c0_4, %c0_5] : memref<1x4xf32, #tpu.memory_space<vmem>>, vector<1x4xf32>
    %9 = vector.broadcast %8 : vector<1x4xf32> to vector<256x4xf32>
    %10 = arith.mulf %7, %9 : vector<256x4xf32>
    %c0_6 = arith.constant 0 : index
    %c0_7 = arith.constant 0 : index
    %11 = vector.load %arg4[%c0_6, %c0_7] : memref<1x4xf32, #tpu.memory_space<vmem>>, vector<1x4xf32>
    %12 = vector.broadcast %11 : vector<1x4xf32> to vector<256x4xf32>
    %13 = arith.addf %10, %12 : vector<256x4xf32>
    %cst_8 = arith.constant 0.000000e+00 : f32
    %14 = vector.broadcast %cst_8 : f32 to vector<256x4xf32>
    %15 = arith.maximumf %13, %14 : vector<256x4xf32>
    %16 = vector.shape_cast %15 : vector<256x4xf32> to vector<16x16x4xf32>
    %17 = arith.truncf %16 : vector<16x16x4xf32> to vector<16x16x4xbf16>
    %c1 = arith.constant 1 : index
    %c1_9 = arith.constant 1 : index
    %c0_10 = arith.constant 0 : index
    %18 = vector.load %arg8[%c1, %c1_9, %c0_10] : memref<18x24x4xbf16, #tpu.memory_space<vmem>>, vector<16x16x4xbf16>
    tpu.vector_store %arg8[%c1, %c1_9, %c0_10], %17 {strides = array<i32>} : memref<18x24x4xbf16, #tpu.memory_space<vmem>>, vector<16x16x4xbf16>,
    %c0_11 = arith.constant 0 : index
    %c0_12 = arith.constant 0 : index
    %c0_13 = arith.constant 0 : index
    %19 = vector.load %arg8[%c0_11, %c0_12, %c0_13] : memref<18x24x4xbf16, #tpu.memory_space<vmem>>, vector<18x24x4xbf16>
    %20 = vector.extract_strided_slice %19 {offsets = [0, 0, 0], sizes = [16, 16, 4], strides = [1, 1, 1]} : vector<18x24x4xbf16> to vector<16x16x4xbf16>
    %21 = vector.shape_cast %20 : vector<16x16x4xbf16> to vector<256x4xbf16>
    %c0_14 = arith.constant 0 : index
    %c0_15 = arith.constant 0 : index
    %22 = vector.load %arg5[%c0_14, %c0_15] : memref<36x4xbf16, #tpu.memory_space<vmem>>, vector<4x4xbf16>
    %cst_16 = arith.constant dense<0.000000e+00> : vector<256x4xf32>
    %23 = tpu.matmul %21, %22, %cst_16 {dimension_numbers = #tpu.dot_dimension_numbers<[1], [0], [0], [1], [0, 0, 1, 1], [], []>} : vector<256x4xbf16>, vector<4x4xbf16>, vector<256x4xf32> -> vector<256x4xf32>
    %24 = vector.extract_strided_slice %19 {offsets = [0, 1, 0], sizes = [16, 16, 4], strides = [1, 1, 1]} : vector<18x24x4xbf16> to vector<16x16x4xbf16>
    %25 = vector.shape_cast %24 : vector<16x16x4xbf16> to vector<256x4xbf16>
    %c4 = arith.constant 4 : index
    %c0_17 = arith.constant 0 : index
    %26 = vector.load %arg5[%c4, %c0_17] : memref<36x4xbf16, #tpu.memory_space<vmem>>, vector<4x4xbf16>
    %cst_18 = arith.constant dense<0.000000e+00> : vector<256x4xf32>
    %27 = tpu.matmul %25, %26, %cst_18 {dimension_numbers = #tpu.dot_dimension_numbers<[1], [0], [0], [1], [0, 0, 1, 1], [], []>} : vector<256x4xbf16>, vector<4x4xbf16>, vector<256x4xf32> -> vector<256x4xf32>
    %28 = arith.addf %23, %27 : vector<256x4xf32>
    %29 = vector.extract_strided_slice %19 {offsets = [0, 2, 0], sizes = [16, 16, 4], strides = [1, 1, 1]} : vector<18x24x4xbf16> to vector<16x16x4xbf16>
    %30 = vector.shape_cast %29 : vector<16x16x4xbf16> to vector<256x4xbf16>
    %c8 = arith.constant 8 : index
    %c0_19 = arith.constant 0 : index
    %31 = vector.load %arg5[%c8, %c0_19] : memref<36x4xbf16, #tpu.memory_space<vmem>>, vector<4x4xbf16>
    %cst_20 = arith.constant dense<0.000000e+00> : vector<256x4xf32>
    %32 = tpu.matmul %30, %31, %cst_20 {dimension_numbers = #tpu.dot_dimension_numbers<[1], [0], [0], [1], [0, 0, 1, 1], [], []>} : vector<256x4xbf16>, vector<4x4xbf16>, vector<256x4xf32> -> vector<256x4xf32>
    %33 = arith.addf %28, %32 : vector<256x4xf32>
    %34 = vector.extract_strided_slice %19 {offsets = [1, 0, 0], sizes = [16, 16, 4], strides = [1, 1, 1]} : vector<18x24x4xbf16> to vector<16x16x4xbf16>
    %35 = vector.shape_cast %34 : vector<16x16x4xbf16> to vector<256x4xbf16>
    %c12 = arith.constant 12 : index
    %c0_21 = arith.constant 0 : index
    %36 = vector.load %arg5[%c12, %c0_21] : memref<36x4xbf16, #tpu.memory_space<vmem>>, vector<4x4xbf16>
    %cst_22 = arith.constant dense<0.000000e+00> : vector<256x4xf32>
    %37 = tpu.matmul %35, %36, %cst_22 {dimension_numbers = #tpu.dot_dimension_numbers<[1], [0], [0], [1], [0, 0, 1, 1], [], []>} : vector<256x4xbf16>, vector<4x4xbf16>, vector<256x4xf32> -> vector<256x4xf32>
    %38 = arith.addf %33, %37 : vector<256x4xf32>
    %39 = vector.extract_strided_slice %19 {offsets = [1, 1, 0], sizes = [16, 16, 4], strides = [1, 1, 1]} : vector<18x24x4xbf16> to vector<16x16x4xbf16>
    %40 = vector.shape_cast %39 : vector<16x16x4xbf16> to vector<256x4xbf16>
    %c16 = arith.constant 16 : index
    %c0_23 = arith.constant 0 : index
    %41 = vector.load %arg5[%c16, %c0_23] : memref<36x4xbf16, #tpu.memory_space<vmem>>, vector<4x4xbf16>
    %cst_24 = arith.constant dense<0.000000e+00> : vector<256x4xf32>
    %42 = tpu.matmul %40, %41, %cst_24 {dimension_numbers = #tpu.dot_dimension_numbers<[1], [0], [0], [1], [0, 0, 1, 1], [], []>} : vector<256x4xbf16>, vector<4x4xbf16>, vector<256x4xf32> -> vector<256x4xf32>
    %43 = arith.addf %38, %42 : vector<256x4xf32>
    %44 = vector.extract_strided_slice %19 {offsets = [1, 2, 0], sizes = [16, 16, 4], strides = [1, 1, 1]} : vector<18x24x4xbf16> to vector<16x16x4xbf16>
    %45 = vector.shape_cast %44 : vector<16x16x4xbf16> to vector<256x4xbf16>
    %c20 = arith.constant 20 : index
    %c0_25 = arith.constant 0 : index
    %46 = vector.load %arg5[%c20, %c0_25] : memref<36x4xbf16, #tpu.memory_space<vmem>>, vector<4x4xbf16>
    %cst_26 = arith.constant dense<0.000000e+00> : vector<256x4xf32>
    %47 = tpu.matmul %45, %46, %cst_26 {dimension_numbers = #tpu.dot_dimension_numbers<[1], [0], [0], [1], [0, 0, 1, 1], [], []>} : vector<256x4xbf16>, vector<4x4xbf16>, vector<256x4xf32> -> vector<256x4xf32>
    %48 = arith.addf %43, %47 : vector<256x4xf32>
    %49 = vector.extract_strided_slice %19 {offsets = [2, 0, 0], sizes = [16, 16, 4], strides = [1, 1, 1]} : vector<18x24x4xbf16> to vector<16x16x4xbf16>
    %50 = vector.shape_cast %49 : vector<16x16x4xbf16> to vector<256x4xbf16>
    %c24 = arith.constant 24 : index
    %c0_27 = arith.constant 0 : index
    %51 = vector.load %arg5[%c24, %c0_27] : memref<36x4xbf16, #tpu.memory_space<vmem>>, vector<4x4xbf16>
    %cst_28 = arith.constant dense<0.000000e+00> : vector<256x4xf32>
    %52 = tpu.matmul %50, %51, %cst_28 {dimension_numbers = #tpu.dot_dimension_numbers<[1], [0], [0], [1], [0, 0, 1, 1], [], []>} : vector<256x4xbf16>, vector<4x4xbf16>, vector<256x4xf32> -> vector<256x4xf32>
    %53 = arith.addf %48, %52 : vector<256x4xf32>
    %54 = vector.extract_strided_slice %19 {offsets = [2, 1, 0], sizes = [16, 16, 4], strides = [1, 1, 1]} : vector<18x24x4xbf16> to vector<16x16x4xbf16>
    %55 = vector.shape_cast %54 : vector<16x16x4xbf16> to vector<256x4xbf16>
    %c28 = arith.constant 28 : index
    %c0_29 = arith.constant 0 : index
    %56 = vector.load %arg5[%c28, %c0_29] : memref<36x4xbf16, #tpu.memory_space<vmem>>, vector<4x4xbf16>
    %cst_30 = arith.constant dense<0.000000e+00> : vector<256x4xf32>
    %57 = tpu.matmul %55, %56, %cst_30 {dimension_numbers = #tpu.dot_dimension_numbers<[1], [0], [0], [1], [0, 0, 1, 1], [], []>} : vector<256x4xbf16>, vector<4x4xbf16>, vector<256x4xf32> -> vector<256x4xf32>
    %58 = arith.addf %53, %57 : vector<256x4xf32>
    %59 = vector.extract_strided_slice %19 {offsets = [2, 2, 0], sizes = [16, 16, 4], strides = [1, 1, 1]} : vector<18x24x4xbf16> to vector<16x16x4xbf16>
    %60 = vector.shape_cast %59 : vector<16x16x4xbf16> to vector<256x4xbf16>
    %c32 = arith.constant 32 : index
    %c0_31 = arith.constant 0 : index
    %61 = vector.load %arg5[%c32, %c0_31] : memref<36x4xbf16, #tpu.memory_space<vmem>>, vector<4x4xbf16>
    %cst_32 = arith.constant dense<0.000000e+00> : vector<256x4xf32>
    %62 = tpu.matmul %60, %61, %cst_32 {dimension_numbers = #tpu.dot_dimension_numbers<[1], [0], [0], [1], [0, 0, 1, 1], [], []>} : vector<256x4xbf16>, vector<4x4xbf16>, vector<256x4xf32> -> vector<256x4xf32>
    %63 = arith.addf %58, %62 : vector<256x4xf32>
    %64 = arith.truncf %63 : vector<256x4xf32> to vector<256x4xbf16>
    %c0_33 = arith.constant 0 : index
    %c0_34 = arith.constant 0 : index
    %c0_35 = arith.constant 0 : index
    %65 = vector.load %arg6[%c0_33, %c0_34, %c0_35] : memref<1x256x4xbf16, #tpu.memory_space<vmem>>, vector<1x256x4xbf16>
    %66 = vector.shape_cast %65 : vector<1x256x4xbf16> to vector<256x4xbf16>
    %67 = vector.shape_cast %64 : vector<256x4xbf16> to vector<1x256x4xbf16>
    tpu.vector_store %arg6[%c0_33, %c0_34, %c0_35], %67 {strides = array<i32>} : memref<1x256x4xbf16, #tpu.memory_space<vmem>>, vector<1x256x4xbf16>,
    %cst_36 = arith.constant dense<0.000000e+00> : vector<4xf32>
    %68 = vector.multi_reduction <add>, %63, %cst_36 [0] : vector<256x4xf32> to vector<4xf32>
    %69 = vector.shape_cast %68 : vector<4xf32> to vector<1x4xf32>
    %70 = arith.addf %3, %69 : vector<1x4xf32>
    %71 = arith.mulf %63, %63 : vector<256x4xf32>
    %cst_37 = arith.constant dense<0.000000e+00> : vector<4xf32>
    %72 = vector.multi_reduction <add>, %71, %cst_37 [0] : vector<256x4xf32> to vector<4xf32>
    %73 = vector.shape_cast %72 : vector<4xf32> to vector<1x4xf32>
    %74 = arith.addf %4, %73 : vector<1x4xf32>
    %c0_38 = arith.constant 0 : index
    %c0_39 = arith.constant 0 : index
    %c0_40 = arith.constant 0 : index
    %75 = vector.load %arg7[%c0_38, %c0_39, %c0_40] : memref<1x2x4xf32, #tpu.memory_space<vmem>>, vector<1x2x4xf32>
    %76 = tpu.concatenate %70, %74 in 0 : vector<1x4xf32>, vector<1x4xf32> -> vector<2x4xf32>
    %77 = vector.shape_cast %76 : vector<2x4xf32> to vector<1x2x4xf32>
    %78 = arith.addf %75, %77 : vector<1x2x4xf32>
    %c0_41 = arith.constant 0 : index
    %c0_42 = arith.constant 0 : index
    %c0_43 = arith.constant 0 : index
    %79 = vector.load %arg7[%c0_41, %c0_42, %c0_43] : memref<1x2x4xf32, #tpu.memory_space<vmem>>, vector<1x2x4xf32>
    tpu.vector_store %arg7[%c0_41, %c0_42, %c0_43], %78 {strides = array<i32>} : memref<1x2x4xf32, #tpu.memory_space<vmem>>, vector<1x2x4xf32>,
    return
  }
  func.func @transform_0(%arg0: i32, %arg1: i32) -> (i32, i32, i32) {
    %c1_i32 = arith.constant 1 : i32
    %0 = arith.muli %arg0, %c1_i32 : i32
    %1 = arith.addi %0, %arg1 : i32
    %c0_i32 = arith.constant 0 : i32
    %c0_i32_0 = arith.constant 0 : i32
    %c0_i32_1 = arith.constant 0 : i32
    return %1, %c0_i32, %c0_i32_0 : i32, i32, i32
  }
  func.func @transform_1(%arg0: i32, %arg1: i32) -> (i32, i32) {
    %c0_i32 = arith.constant 0 : i32
    %c0_i32_0 = arith.constant 0 : i32
    %c0_i32_1 = arith.constant 0 : i32
    return %c0_i32, %c0_i32_0 : i32, i32
  }
  func.func @transform_2(%arg0: i32, %arg1: i32) -> (i32, i32) {
    %c0_i32 = arith.constant 0 : i32
    %c0_i32_0 = arith.constant 0 : i32
    %c0_i32_1 = arith.constant 0 : i32
    return %c0_i32, %c0_i32_0 : i32, i32
  }
  func.func @transform_3(%arg0: i32, %arg1: i32) -> (i32, i32) {
    %c0_i32 = arith.constant 0 : i32
    %c0_i32_0 = arith.constant 0 : i32
    %c0_i32_1 = arith.constant 0 : i32
    return %c0_i32, %c0_i32_0 : i32, i32
  }
  func.func @transform_4(%arg0: i32, %arg1: i32) -> (i32, i32, i32) {
    %c1_i32 = arith.constant 1 : i32
    %0 = arith.muli %arg0, %c1_i32 : i32
    %1 = arith.addi %0, %arg1 : i32
    %c0_i32 = arith.constant 0 : i32
    %c0_i32_0 = arith.constant 0 : i32
    %c0_i32_1 = arith.constant 0 : i32
    return %1, %c0_i32, %c0_i32_0 : i32, i32, i32
  }
  func.func @transform_5(%arg0: i32, %arg1: i32) -> (i32, i32, i32) {
    %c0_i32 = arith.constant 0 : i32
    %c0_i32_0 = arith.constant 0 : i32
    %c0_i32_1 = arith.constant 0 : i32
    return %arg0, %c0_i32, %c0_i32_0 : i32, i32, i32
  }
}

module attributes {stable_mosaic.version = 11 : i64} {
  func.func @conv1_stats_kernel(%arg0: i32, %arg1: i32, %arg2: memref<1x16x16x4xbf16, #tpu.memory_space<vmem>>, %arg3: memref<36x4xbf16, #tpu.memory_space<vmem>>, %arg4: memref<1x256x4xbf16, #tpu.memory_space<vmem>>, %arg5: memref<1x2x4xf32, #tpu.memory_space<vmem>>, %arg6: memref<18x24x4xbf16, #tpu.memory_space<vmem>>) attributes {dimension_semantics = [#tpu.dimension_semantics<parallel>, #tpu.dimension_semantics<arbitrary>], iteration_bounds = array<i64: 2, 1>, scalar_prefetch = 0 : i64, scratch_operands = 1 : i64, tpu.core_type = #tpu.core_type<tc>, window_params = [{transform_indices = @transform_0, window_bounds = array<i64: 1, 16, 16, 4>}, {pipeline_mode = #tpu.pipeline_mode<synchronous>, transform_indices = @transform_1, window_bounds = array<i64: 36, 4>}, {transform_indices = @transform_2, window_bounds = array<i64: 1, 256, 4>}, {transform_indices = @transform_3, window_bounds = array<i64: 1, 2, 4>}]} {
    %c0_i32 = arith.constant 0 : i32
    %0 = arith.cmpi eq, %arg1, %c0_i32 : i32
    %1 = arith.extui %0 : i1 to i32
    %c0_i32_0 = arith.constant 0 : i32
    %2 = arith.cmpi ne, %1, %c0_i32_0 : i32
    scf.if %2 {
      %cst_40 = arith.constant 0.000000e+00 : bf16
      %69 = vector.broadcast %cst_40 : bf16 to vector<18x24x4xbf16>
      %c0_41 = arith.constant 0 : index
      %c0_42 = arith.constant 0 : index
      %c0_43 = arith.constant 0 : index
      %70 = vector.load %arg6[%c0_41, %c0_42, %c0_43] : memref<18x24x4xbf16, #tpu.memory_space<vmem>>, vector<18x24x4xbf16>
      tpu.vector_store %arg6[%c0_41, %c0_42, %c0_43], %69 {strides = array<i32>} : memref<18x24x4xbf16, #tpu.memory_space<vmem>>, vector<18x24x4xbf16>,
      %cst_44 = arith.constant 0.000000e+00 : f32
      %71 = vector.broadcast %cst_44 : f32 to vector<1x2x4xf32>
      %c0_45 = arith.constant 0 : index
      %c0_46 = arith.constant 0 : index
      %c0_47 = arith.constant 0 : index
      %72 = vector.load %arg5[%c0_45, %c0_46, %c0_47] : memref<1x2x4xf32, #tpu.memory_space<vmem>>, vector<1x2x4xf32>
      tpu.vector_store %arg5[%c0_45, %c0_46, %c0_47], %71 {strides = array<i32>} : memref<1x2x4xf32, #tpu.memory_space<vmem>>, vector<1x2x4xf32>,
    } else {
    }
    %cst = arith.constant 0.000000e+00 : f32
    %3 = vector.broadcast %cst : f32 to vector<1x4xf32>
    %cst_1 = arith.constant 0.000000e+00 : f32
    %4 = vector.broadcast %cst_1 : f32 to vector<1x4xf32>
    %c0 = arith.constant 0 : index
    %c0_2 = arith.constant 0 : index
    %c0_3 = arith.constant 0 : index
    %c0_4 = arith.constant 0 : index
    %5 = vector.load %arg2[%c0, %c0_2, %c0_3, %c0_4] : memref<1x16x16x4xbf16, #tpu.memory_space<vmem>>, vector<1x16x16x4xbf16>
    %6 = vector.shape_cast %5 : vector<1x16x16x4xbf16> to vector<16x16x4xbf16>
    %c1 = arith.constant 1 : index
    %c1_5 = arith.constant 1 : index
    %c0_6 = arith.constant 0 : index
    %7 = vector.load %arg6[%c1, %c1_5, %c0_6] : memref<18x24x4xbf16, #tpu.memory_space<vmem>>, vector<16x16x4xbf16>
    tpu.vector_store %arg6[%c1, %c1_5, %c0_6], %6 {strides = array<i32>} : memref<18x24x4xbf16, #tpu.memory_space<vmem>>, vector<16x16x4xbf16>,
    %c0_7 = arith.constant 0 : index
    %c0_8 = arith.constant 0 : index
    %c0_9 = arith.constant 0 : index
    %8 = vector.load %arg6[%c0_7, %c0_8, %c0_9] : memref<18x24x4xbf16, #tpu.memory_space<vmem>>, vector<18x24x4xbf16>
    %9 = vector.extract_strided_slice %8 {offsets = [0, 0, 0], sizes = [16, 16, 4], strides = [1, 1, 1]} : vector<18x24x4xbf16> to vector<16x16x4xbf16>
    %10 = vector.shape_cast %9 : vector<16x16x4xbf16> to vector<256x4xbf16>
    %c0_10 = arith.constant 0 : index
    %c0_11 = arith.constant 0 : index
    %11 = vector.load %arg3[%c0_10, %c0_11] : memref<36x4xbf16, #tpu.memory_space<vmem>>, vector<4x4xbf16>
    %cst_12 = arith.constant dense<0.000000e+00> : vector<256x4xf32>
    %12 = tpu.matmul %10, %11, %cst_12 {dimension_numbers = #tpu.dot_dimension_numbers<[1], [0], [0], [1], [0, 0, 1, 1], [], []>} : vector<256x4xbf16>, vector<4x4xbf16>, vector<256x4xf32> -> vector<256x4xf32>
    %13 = vector.extract_strided_slice %8 {offsets = [0, 1, 0], sizes = [16, 16, 4], strides = [1, 1, 1]} : vector<18x24x4xbf16> to vector<16x16x4xbf16>
    %14 = vector.shape_cast %13 : vector<16x16x4xbf16> to vector<256x4xbf16>
    %c4 = arith.constant 4 : index
    %c0_13 = arith.constant 0 : index
    %15 = vector.load %arg3[%c4, %c0_13] : memref<36x4xbf16, #tpu.memory_space<vmem>>, vector<4x4xbf16>
    %cst_14 = arith.constant dense<0.000000e+00> : vector<256x4xf32>
    %16 = tpu.matmul %14, %15, %cst_14 {dimension_numbers = #tpu.dot_dimension_numbers<[1], [0], [0], [1], [0, 0, 1, 1], [], []>} : vector<256x4xbf16>, vector<4x4xbf16>, vector<256x4xf32> -> vector<256x4xf32>
    %17 = arith.addf %12, %16 : vector<256x4xf32>
    %18 = vector.extract_strided_slice %8 {offsets = [0, 2, 0], sizes = [16, 16, 4], strides = [1, 1, 1]} : vector<18x24x4xbf16> to vector<16x16x4xbf16>
    %19 = vector.shape_cast %18 : vector<16x16x4xbf16> to vector<256x4xbf16>
    %c8 = arith.constant 8 : index
    %c0_15 = arith.constant 0 : index
    %20 = vector.load %arg3[%c8, %c0_15] : memref<36x4xbf16, #tpu.memory_space<vmem>>, vector<4x4xbf16>
    %cst_16 = arith.constant dense<0.000000e+00> : vector<256x4xf32>
    %21 = tpu.matmul %19, %20, %cst_16 {dimension_numbers = #tpu.dot_dimension_numbers<[1], [0], [0], [1], [0, 0, 1, 1], [], []>} : vector<256x4xbf16>, vector<4x4xbf16>, vector<256x4xf32> -> vector<256x4xf32>
    %22 = arith.addf %17, %21 : vector<256x4xf32>
    %23 = vector.extract_strided_slice %8 {offsets = [1, 0, 0], sizes = [16, 16, 4], strides = [1, 1, 1]} : vector<18x24x4xbf16> to vector<16x16x4xbf16>
    %24 = vector.shape_cast %23 : vector<16x16x4xbf16> to vector<256x4xbf16>
    %c12 = arith.constant 12 : index
    %c0_17 = arith.constant 0 : index
    %25 = vector.load %arg3[%c12, %c0_17] : memref<36x4xbf16, #tpu.memory_space<vmem>>, vector<4x4xbf16>
    %cst_18 = arith.constant dense<0.000000e+00> : vector<256x4xf32>
    %26 = tpu.matmul %24, %25, %cst_18 {dimension_numbers = #tpu.dot_dimension_numbers<[1], [0], [0], [1], [0, 0, 1, 1], [], []>} : vector<256x4xbf16>, vector<4x4xbf16>, vector<256x4xf32> -> vector<256x4xf32>
    %27 = arith.addf %22, %26 : vector<256x4xf32>
    %28 = vector.extract_strided_slice %8 {offsets = [1, 1, 0], sizes = [16, 16, 4], strides = [1, 1, 1]} : vector<18x24x4xbf16> to vector<16x16x4xbf16>
    %29 = vector.shape_cast %28 : vector<16x16x4xbf16> to vector<256x4xbf16>
    %c16 = arith.constant 16 : index
    %c0_19 = arith.constant 0 : index
    %30 = vector.load %arg3[%c16, %c0_19] : memref<36x4xbf16, #tpu.memory_space<vmem>>, vector<4x4xbf16>
    %cst_20 = arith.constant dense<0.000000e+00> : vector<256x4xf32>
    %31 = tpu.matmul %29, %30, %cst_20 {dimension_numbers = #tpu.dot_dimension_numbers<[1], [0], [0], [1], [0, 0, 1, 1], [], []>} : vector<256x4xbf16>, vector<4x4xbf16>, vector<256x4xf32> -> vector<256x4xf32>
    %32 = arith.addf %27, %31 : vector<256x4xf32>
    %33 = vector.extract_strided_slice %8 {offsets = [1, 2, 0], sizes = [16, 16, 4], strides = [1, 1, 1]} : vector<18x24x4xbf16> to vector<16x16x4xbf16>
    %34 = vector.shape_cast %33 : vector<16x16x4xbf16> to vector<256x4xbf16>
    %c20 = arith.constant 20 : index
    %c0_21 = arith.constant 0 : index
    %35 = vector.load %arg3[%c20, %c0_21] : memref<36x4xbf16, #tpu.memory_space<vmem>>, vector<4x4xbf16>
    %cst_22 = arith.constant dense<0.000000e+00> : vector<256x4xf32>
    %36 = tpu.matmul %34, %35, %cst_22 {dimension_numbers = #tpu.dot_dimension_numbers<[1], [0], [0], [1], [0, 0, 1, 1], [], []>} : vector<256x4xbf16>, vector<4x4xbf16>, vector<256x4xf32> -> vector<256x4xf32>
    %37 = arith.addf %32, %36 : vector<256x4xf32>
    %38 = vector.extract_strided_slice %8 {offsets = [2, 0, 0], sizes = [16, 16, 4], strides = [1, 1, 1]} : vector<18x24x4xbf16> to vector<16x16x4xbf16>
    %39 = vector.shape_cast %38 : vector<16x16x4xbf16> to vector<256x4xbf16>
    %c24 = arith.constant 24 : index
    %c0_23 = arith.constant 0 : index
    %40 = vector.load %arg3[%c24, %c0_23] : memref<36x4xbf16, #tpu.memory_space<vmem>>, vector<4x4xbf16>
    %cst_24 = arith.constant dense<0.000000e+00> : vector<256x4xf32>
    %41 = tpu.matmul %39, %40, %cst_24 {dimension_numbers = #tpu.dot_dimension_numbers<[1], [0], [0], [1], [0, 0, 1, 1], [], []>} : vector<256x4xbf16>, vector<4x4xbf16>, vector<256x4xf32> -> vector<256x4xf32>
    %42 = arith.addf %37, %41 : vector<256x4xf32>
    %43 = vector.extract_strided_slice %8 {offsets = [2, 1, 0], sizes = [16, 16, 4], strides = [1, 1, 1]} : vector<18x24x4xbf16> to vector<16x16x4xbf16>
    %44 = vector.shape_cast %43 : vector<16x16x4xbf16> to vector<256x4xbf16>
    %c28 = arith.constant 28 : index
    %c0_25 = arith.constant 0 : index
    %45 = vector.load %arg3[%c28, %c0_25] : memref<36x4xbf16, #tpu.memory_space<vmem>>, vector<4x4xbf16>
    %cst_26 = arith.constant dense<0.000000e+00> : vector<256x4xf32>
    %46 = tpu.matmul %44, %45, %cst_26 {dimension_numbers = #tpu.dot_dimension_numbers<[1], [0], [0], [1], [0, 0, 1, 1], [], []>} : vector<256x4xbf16>, vector<4x4xbf16>, vector<256x4xf32> -> vector<256x4xf32>
    %47 = arith.addf %42, %46 : vector<256x4xf32>
    %48 = vector.extract_strided_slice %8 {offsets = [2, 2, 0], sizes = [16, 16, 4], strides = [1, 1, 1]} : vector<18x24x4xbf16> to vector<16x16x4xbf16>
    %49 = vector.shape_cast %48 : vector<16x16x4xbf16> to vector<256x4xbf16>
    %c32 = arith.constant 32 : index
    %c0_27 = arith.constant 0 : index
    %50 = vector.load %arg3[%c32, %c0_27] : memref<36x4xbf16, #tpu.memory_space<vmem>>, vector<4x4xbf16>
    %cst_28 = arith.constant dense<0.000000e+00> : vector<256x4xf32>
    %51 = tpu.matmul %49, %50, %cst_28 {dimension_numbers = #tpu.dot_dimension_numbers<[1], [0], [0], [1], [0, 0, 1, 1], [], []>} : vector<256x4xbf16>, vector<4x4xbf16>, vector<256x4xf32> -> vector<256x4xf32>
    %52 = arith.addf %47, %51 : vector<256x4xf32>
    %53 = arith.truncf %52 : vector<256x4xf32> to vector<256x4xbf16>
    %c0_29 = arith.constant 0 : index
    %c0_30 = arith.constant 0 : index
    %c0_31 = arith.constant 0 : index
    %54 = vector.load %arg4[%c0_29, %c0_30, %c0_31] : memref<1x256x4xbf16, #tpu.memory_space<vmem>>, vector<1x256x4xbf16>
    %55 = vector.shape_cast %54 : vector<1x256x4xbf16> to vector<256x4xbf16>
    %56 = vector.shape_cast %53 : vector<256x4xbf16> to vector<1x256x4xbf16>
    tpu.vector_store %arg4[%c0_29, %c0_30, %c0_31], %56 {strides = array<i32>} : memref<1x256x4xbf16, #tpu.memory_space<vmem>>, vector<1x256x4xbf16>,
    %cst_32 = arith.constant dense<0.000000e+00> : vector<4xf32>
    %57 = vector.multi_reduction <add>, %52, %cst_32 [0] : vector<256x4xf32> to vector<4xf32>
    %58 = vector.shape_cast %57 : vector<4xf32> to vector<1x4xf32>
    %59 = arith.addf %3, %58 : vector<1x4xf32>
    %60 = arith.mulf %52, %52 : vector<256x4xf32>
    %cst_33 = arith.constant dense<0.000000e+00> : vector<4xf32>
    %61 = vector.multi_reduction <add>, %60, %cst_33 [0] : vector<256x4xf32> to vector<4xf32>
    %62 = vector.shape_cast %61 : vector<4xf32> to vector<1x4xf32>
    %63 = arith.addf %4, %62 : vector<1x4xf32>
    %c0_34 = arith.constant 0 : index
    %c0_35 = arith.constant 0 : index
    %c0_36 = arith.constant 0 : index
    %64 = vector.load %arg5[%c0_34, %c0_35, %c0_36] : memref<1x2x4xf32, #tpu.memory_space<vmem>>, vector<1x2x4xf32>
    %65 = tpu.concatenate %59, %63 in 0 : vector<1x4xf32>, vector<1x4xf32> -> vector<2x4xf32>
    %66 = vector.shape_cast %65 : vector<2x4xf32> to vector<1x2x4xf32>
    %67 = arith.addf %64, %66 : vector<1x2x4xf32>
    %c0_37 = arith.constant 0 : index
    %c0_38 = arith.constant 0 : index
    %c0_39 = arith.constant 0 : index
    %68 = vector.load %arg5[%c0_37, %c0_38, %c0_39] : memref<1x2x4xf32, #tpu.memory_space<vmem>>, vector<1x2x4xf32>
    tpu.vector_store %arg5[%c0_37, %c0_38, %c0_39], %67 {strides = array<i32>} : memref<1x2x4xf32, #tpu.memory_space<vmem>>, vector<1x2x4xf32>,
    return
  }
  func.func @transform_0(%arg0: i32, %arg1: i32) -> (i32, i32, i32, i32) {
    %c1_i32 = arith.constant 1 : i32
    %0 = arith.muli %arg0, %c1_i32 : i32
    %1 = arith.addi %0, %arg1 : i32
    %c0_i32 = arith.constant 0 : i32
    %c0_i32_0 = arith.constant 0 : i32
    %c0_i32_1 = arith.constant 0 : i32
    %c0_i32_2 = arith.constant 0 : i32
    return %1, %c0_i32, %c0_i32_0, %c0_i32_1 : i32, i32, i32, i32
  }
  func.func @transform_1(%arg0: i32, %arg1: i32) -> (i32, i32) {
    %c0_i32 = arith.constant 0 : i32
    %c0_i32_0 = arith.constant 0 : i32
    %c0_i32_1 = arith.constant 0 : i32
    return %c0_i32, %c0_i32_0 : i32, i32
  }
  func.func @transform_2(%arg0: i32, %arg1: i32) -> (i32, i32, i32) {
    %c1_i32 = arith.constant 1 : i32
    %0 = arith.muli %arg0, %c1_i32 : i32
    %1 = arith.addi %0, %arg1 : i32
    %c0_i32 = arith.constant 0 : i32
    %c0_i32_0 = arith.constant 0 : i32
    %c0_i32_1 = arith.constant 0 : i32
    return %1, %c0_i32, %c0_i32_0 : i32, i32, i32
  }
  func.func @transform_3(%arg0: i32, %arg1: i32) -> (i32, i32, i32) {
    %c0_i32 = arith.constant 0 : i32
    %c0_i32_0 = arith.constant 0 : i32
    %c0_i32_1 = arith.constant 0 : i32
    return %arg0, %c0_i32, %c0_i32_0 : i32, i32, i32
  }
}

module attributes {stable_mosaic.version = 11 : i64} {
  func.func @bn2_add_relu_kernel(%arg0: i32, %arg1: memref<2x1024xbf16, #tpu.memory_space<vmem>>, %arg2: memref<1x1024xf32, #tpu.memory_space<vmem>>, %arg3: memref<1x1024xf32, #tpu.memory_space<vmem>>, %arg4: memref<2x1024xbf16, #tpu.memory_space<vmem>>, %arg5: memref<2x1024xf32, #tpu.memory_space<vmem>>) attributes {dimension_semantics = [#tpu.dimension_semantics<parallel>], iteration_bounds = array<i64: 1>, scalar_prefetch = 0 : i64, scratch_operands = 0 : i64, tpu.core_type = #tpu.core_type<tc>, window_params = [{transform_indices = @transform_0, window_bounds = array<i64: 2, 1024>}, {pipeline_mode = #tpu.pipeline_mode<synchronous>, transform_indices = @transform_1, window_bounds = array<i64: 1, 1024>}, {pipeline_mode = #tpu.pipeline_mode<synchronous>, transform_indices = @transform_2, window_bounds = array<i64: 1, 1024>}, {transform_indices = @transform_3, window_bounds = array<i64: 2, 1024>}, {transform_indices = @transform_4, window_bounds = array<i64: 2, 1024>}]} {
    %c0 = arith.constant 0 : index
    %c0_0 = arith.constant 0 : index
    %0 = vector.load %arg1[%c0, %c0_0] : memref<2x1024xbf16, #tpu.memory_space<vmem>>, vector<2x1024xbf16>
    %1 = arith.extf %0 : vector<2x1024xbf16> to vector<2x1024xf32>
    %c0_1 = arith.constant 0 : index
    %c0_2 = arith.constant 0 : index
    %2 = vector.load %arg2[%c0_1, %c0_2] : memref<1x1024xf32, #tpu.memory_space<vmem>>, vector<1x1024xf32>
    %3 = vector.broadcast %2 : vector<1x1024xf32> to vector<2x1024xf32>
    %4 = arith.mulf %1, %3 : vector<2x1024xf32>
    %c0_3 = arith.constant 0 : index
    %c0_4 = arith.constant 0 : index
    %5 = vector.load %arg3[%c0_3, %c0_4] : memref<1x1024xf32, #tpu.memory_space<vmem>>, vector<1x1024xf32>
    %6 = vector.broadcast %5 : vector<1x1024xf32> to vector<2x1024xf32>
    %7 = arith.addf %4, %6 : vector<2x1024xf32>
    %c0_5 = arith.constant 0 : index
    %c0_6 = arith.constant 0 : index
    %8 = vector.load %arg4[%c0_5, %c0_6] : memref<2x1024xbf16, #tpu.memory_space<vmem>>, vector<2x1024xbf16>
    %9 = arith.extf %8 : vector<2x1024xbf16> to vector<2x1024xf32>
    %10 = arith.addf %7, %9 : vector<2x1024xf32>
    %cst = arith.constant 0.000000e+00 : f32
    %11 = vector.broadcast %cst : f32 to vector<2x1024xf32>
    %12 = arith.maximumf %10, %11 : vector<2x1024xf32>
    %c0_7 = arith.constant 0 : index
    %c0_8 = arith.constant 0 : index
    %13 = vector.load %arg5[%c0_7, %c0_8] : memref<2x1024xf32, #tpu.memory_space<vmem>>, vector<2x1024xf32>
    tpu.vector_store %arg5[%c0_7, %c0_8], %12 {strides = array<i32>} : memref<2x1024xf32, #tpu.memory_space<vmem>>, vector<2x1024xf32>,
    return
  }
  func.func @transform_0(%arg0: i32) -> (i32, i32) {
    %c0_i32 = arith.constant 0 : i32
    %c0_i32_0 = arith.constant 0 : i32
    return %arg0, %c0_i32 : i32, i32
  }
  func.func @transform_1(%arg0: i32) -> (i32, i32) {
    %c0_i32 = arith.constant 0 : i32
    %c0_i32_0 = arith.constant 0 : i32
    %c0_i32_1 = arith.constant 0 : i32
    return %c0_i32, %c0_i32_0 : i32, i32
  }
  func.func @transform_2(%arg0: i32) -> (i32, i32) {
    %c0_i32 = arith.constant 0 : i32
    %c0_i32_0 = arith.constant 0 : i32
    %c0_i32_1 = arith.constant 0 : i32
    return %c0_i32, %c0_i32_0 : i32, i32
  }
  func.func @transform_3(%arg0: i32) -> (i32, i32) {
    %c0_i32 = arith.constant 0 : i32
    %c0_i32_0 = arith.constant 0 : i32
    return %arg0, %c0_i32 : i32, i32
  }
  func.func @transform_4(%arg0: i32) -> (i32, i32) {
    %c0_i32 = arith.constant 0 : i32
    %c0_i32_0 = arith.constant 0 : i32
    return %arg0, %c0_i32 : i32, i32
  }
}

</mosaic_0001>

<llo_original>
// kernel: basic_block_forward.5
$region0: #{basic_block_forward.5}
  #allocation0 [shape = 'u32[]', space=smem, size = 0x4, offset = 0x4, fixed_abs, tag = 'smem constant byte address 0x4 - core index']
  #allocation1 [shape = 'u32[144,128]{1,0:T(1,128)}', space=vmem, size = 0x12000, scoped, tag = 'internal scratch']
  %s0 = inlined_call_operand.vmem [shape: bf16[2,1024], index: 0, kind: input, shape index: {}]
  %s1 = inlined_call_operand.vmem [shape: f32[1,1024], index: 1, kind: input, shape index: {}]
  %s2 = inlined_call_operand.vmem [shape: f32[1,1024], index: 2, kind: input, shape index: {}]
  %s3 = inlined_call_operand.vmem [shape: bf16[2,1024], index: 3, kind: input, shape index: {}]
  %s4 = inlined_call_operand.vmem [shape: f32[2,1024], index: 4, kind: output, shape index: {}]
  %s5 = sld [smem:[#allocation0]]
  $region26: #{basic_block_forward.5} parent=0
    _
  %s7 = ssub.s32 1, %s5
  %s8 = scalar_select 0, %s7, %s5
  // Predicated region
  $region2: #{basic_block_forward.5} parent=0 // pred_check
    _
  $region3: #{basic_block_forward.5} parent=0 // pred_check_branch
    %10 = sbr.rel (0) target = $region5
  $region4: #{basic_block_forward.5} parent=0 // pred_region
    _
  $region5: #{basic_block_forward.5} parent=0 // pred_fallthru
    _
  // Predicated region
  $region6: #{basic_block_forward.5} parent=0 // pred_check
    _
  $region7: #{basic_block_forward.5} parent=0 // pred_check_branch
    %12 = sbr.rel (0) target = $region9
  $region8: #{basic_block_forward.5} parent=0 // pred_region
    _
  $region9: #{basic_block_forward.5} parent=0 // pred_fallthru
    _
  // Predicated region
  $region10: #{basic_block_forward.5} parent=0 // pred_check
    _
  $region11: #{basic_block_forward.5} parent=0 // pred_check_branch
    %14 = sbr.rel (0) target = $region13
  $region12: #{basic_block_forward.5} parent=0 // pred_region
    _
  $region13: #{basic_block_forward.5} parent=0 // pred_fallthru
    _
  // Predicated region
  $region14: #{basic_block_forward.5} parent=0 // pred_check
    _
  $region15: #{basic_block_forward.5} parent=0 // pred_check_branch
    %16 = sbr.rel (0) target = $region17
  $region16: #{basic_block_forward.5} parent=0 // pred_region
    _
  $region17: #{basic_block_forward.5} parent=0 // pred_fallthru
    _
  %v17 = vld [vmem:[%s0] sm:$0xff]
  %v18 = vunpack.c.l.bf16 %v17
  %v19 = vunpack.c.h.bf16 %v17
  %v20 = vld [vmem:[%s1] sm:$0xff]
  %v22 = vlaneseq
  %v23 = vshrl.u32 %v22, 7
  %v24 = vsub.s32 0, %v23
  %v25 = vrot.slane %v20, %v24
  %v26 = vlaneseq
  %v27 = vshrl.u32 %v26, 7
  %v28 = vsub.s32 1, %v27
  %v29 = vrot.slane %v20, %v28
  %v30 = vlaneseq
  %v31 = vshrl.u32 %v30, 7
  %v32 = vsub.s32 2, %v31
  %v33 = vrot.slane %v20, %v32
  %v34 = vlaneseq
  %v35 = vshrl.u32 %v34, 7
  %v36 = vsub.s32 3, %v35
  %v37 = vrot.slane %v20, %v36
  %v38 = vlaneseq
  %v39 = vshrl.u32 %v38, 7
  %v40 = vsub.s32 4, %v39
  %v41 = vrot.slane %v20, %v40
  %v42 = vlaneseq
  %v43 = vshrl.u32 %v42, 7
  %v44 = vsub.s32 5, %v43
  %v45 = vrot.slane %v20, %v44
  %v46 = vlaneseq
  %v47 = vshrl.u32 %v46, 7
  %v48 = vsub.s32 6, %v47
  %v49 = vrot.slane %v20, %v48
  %v50 = vlaneseq
  %v51 = vshrl.u32 %v50, 7
  %v52 = vsub.s32 7, %v51
  %v53 = vrot.slane %v20, %v52
  %v54 = vcombine.low %v25, %v29
  %v55 = vcombine.low %v33, %v37
  %v57 = vunpack.c.l.s4 1983009808
  %v58 = vunpack.c.0.s8 %v57
  %v59 = vlaneseq
  %v60 = vshrl.u32 %v59, 7
  %v61 = vsub.s32 %v58, %v60
  %v62 = vrot.slane %v54, %v61
  %v64 = vunpack.c.l.s4 1983009808
  %v65 = vunpack.c.0.s8 %v64
  %v66 = vlaneseq
  %v67 = vshrl.u32 %v66, 7
  %v68 = vsub.s32 %v65, %v67
  %v69 = vrot.slane %v55, %v68
  %v70 = vcombine.low %v62, %v69
  %v71 = vcombine.low %v41, %v45
  %v72 = vcombine.low %v49, %v53
  %v74 = vunpack.c.l.s4 1983009808
  %v75 = vunpack.c.0.s8 %v74
  %v76 = vlaneseq
  %v77 = vshrl.u32 %v76, 7
  %v78 = vsub.s32 %v75, %v77
  %v79 = vrot.slane %v71, %v78
  %v81 = vunpack.c.l.s4 1983009808
  %v82 = vunpack.c.0.s8 %v81
  %v83 = vlaneseq
  %v84 = vshrl.u32 %v83, 7
  %v85 = vsub.s32 %v82, %v84
  %v86 = vrot.slane %v72, %v85
  %v87 = vcombine.low %v79, %v86
  %v90 = vmul.f32 %v18, %v70
  %v91 = vmul.f32 %v19, %v87
  %v92 = vld [vmem:[%s2] sm:$0xff]
  %v94 = vlaneseq
  %v95 = vshrl.u32 %v94, 7
  %v96 = vsub.s32 0, %v95
  %v97 = vrot.slane %v92, %v96
  %v98 = vlaneseq
  %v99 = vshrl.u32 %v98, 7
  %v100 = vsub.s32 1, %v99
  %v101 = vrot.slane %v92, %v100
  %v102 = vlaneseq
  %v103 = vshrl.u32 %v102, 7
  %v104 = vsub.s32 2, %v103
  %v105 = vrot.slane %v92, %v104
  %v106 = vlaneseq
  %v107 = vshrl.u32 %v106, 7
  %v108 = vsub.s32 3, %v107
  %v109 = vrot.slane %v92, %v108
  %v110 = vlaneseq
  %v111 = vshrl.u32 %v110, 7
  %v112 = vsub.s32 4, %v111
  %v113 = vrot.slane %v92, %v112
  %v114 = vlaneseq
  %v115 = vshrl.u32 %v114, 7
  %v116 = vsub.s32 5, %v115
  %v117 = vrot.slane %v92, %v116
  %v118 = vlaneseq
  %v119 = vshrl.u32 %v118, 7
  %v120 = vsub.s32 6, %v119
  %v121 = vrot.slane %v92, %v120
  %v122 = vlaneseq
  %v123 = vshrl.u32 %v122, 7
  %v124 = vsub.s32 7, %v123
  %v125 = vrot.slane %v92, %v124
  %v126 = vcombine.low %v97, %v101
  %v127 = vcombine.low %v105, %v109
  %v129 = vunpack.c.l.s4 1983009808
  %v130 = vunpack.c.0.s8 %v129
  %v131 = vlaneseq
  %v132 = vshrl.u32 %v131, 7
  %v133 = vsub.s32 %v130, %v132
  %v134 = vrot.slane %v126, %v133
  %v136 = vunpack.c.l.s4 1983009808
  %v137 = vunpack.c.0.s8 %v136
  %v138 = vlaneseq
  %v139 = vshrl.u32 %v138, 7
  %v140 = vsub.s32 %v137, %v139
  %v141 = vrot.slane %v127, %v140
  %v142 = vcombine.low %v134, %v141
  %v143 = vcombine.low %v113, %v117
  %v144 = vcombine.low %v121, %v125
  %v146 = vunpack.c.l.s4 1983009808
  %v147 = vunpack.c.0.s8 %v146
  %v148 = vlaneseq
  %v149 = vshrl.u32 %v148, 7
  %v150 = vsub.s32 %v147, %v149
  %v151 = vrot.slane %v143, %v150
  %v153 = vunpack.c.l.s4 1983009808
  %v154 = vunpack.c.0.s8 %v153
  %v155 = vlaneseq
  %v156 = vshrl.u32 %v155, 7
  %v157 = vsub.s32 %v154, %v156
  %v158 = vrot.slane %v144, %v157
  %v159 = vcombine.low %v151, %v158
  %v162 = vadd.f32 %v90, %v142
  %v163 = vadd.f32 %v91, %v159
  %v164 = vld [vmem:[%s3] sm:$0xff]
  %v165 = vunpack.c.l.bf16 %v164
  %v166 = vunpack.c.h.bf16 %v164
  %v167 = vadd.f32 %v162, %v165
  %v168 = vadd.f32 %v163, %v166
  %v169 = vmax.f32 %v167, 0.0
  %v170 = vmax.f32 %v168, 0.0
  %171 = vst [vmem:[%s4] sm:$0xff] %v169
  %172 = vst [vmem:[%s4 + $0x8] sm:$0xff] %v170
  // Predicated region
  $region18: #{basic_block_forward.5} parent=0 // pred_check
    _
  $region19: #{basic_block_forward.5} parent=0 // pred_check_branch
    %174 = sbr.rel (0) target = $region21
  $region20: #{basic_block_forward.5} parent=0 // pred_region
    _
  $region21: #{basic_block_forward.5} parent=0 // pred_fallthru
    _
  // Predicated region
  $region22: #{basic_block_forward.5} parent=0 // pred_check
    _
  $region23: #{basic_block_forward.5} parent=0 // pred_check_branch
    %176 = sbr.rel (0) target = $region25
  $region24: #{basic_block_forward.5} parent=0 // pred_region
    _
  $region25: #{basic_block_forward.5} parent=0 // pred_fallthru
    _

// kernel: basic_block_forward.3
$region0: #{basic_block_forward.3}
  #allocation0 [shape = 'u32[]', space=smem, size = 0x4, offset = 0x4, fixed_abs, tag = 'smem constant byte address 0x4 - core index']
  #allocation1 [shape = 'u32[144,128]{1,0:T(1,128)}', space=vmem, size = 0x12000, scoped, tag = 'internal scratch']
  #allocation2 [shape = 'bf16[18,24,4]{2,1,0:T(8,128)(2,1)}', space=vmem, size = 0x1b000, scoped, tag = 'scratch operand']
  %s0 = inlined_call_operand.vmem [shape: bf16[2,16,16,4], index: 0, kind: input, shape index: {}]
  %s1 = inlined_call_operand.vmem [shape: bf16[36,4], index: 1, kind: input, shape index: {}]
  %s2 = inlined_call_operand.vmem [shape: bf16[2,256,4], index: 2, kind: output, shape index: {0}]
  %s3 = inlined_call_operand.vmem [shape: f32[2,2,4], index: 3, kind: output, shape index: {1}]
  %4 = xla_tuple %s2, %s3
  %s5 = sld [smem:[#allocation0]]
  $region53: #{basic_block_forward.3} parent=0
    _
  %s7 = ssub.s32 1, %s5
  %s8 = scalar_select 0, %s7, %s5
  loop: start=0, step=1, limit=4
  $region2: #{basic_block_forward.3} parent=0 // loop_pre_header
    _
  $region3: #{basic_block_forward.3} parent=0 // loop_header
    %s10 = sphi 0, %s14
    %p11 = scmp.ge.s32.totalorder %s10, 4
    %s17 = sphi 0, %s29
    %s18 = sphi 0, %s25
    %s19 = sphi 0, %s17
    %s20 = sphi 0, %s18
    %s21 = sphi 0, %s19
    %s22 = sphi 0, %s20
    %s34 = sphi 0, %s36
    %s37 = sphi 0, %s34
    %s38 = sphi 0, %s37
    %s54 = sphi 0, %s38
    %s58 = sphi 0, %s58
    %s60 = sphi 0, %s58
    %s61 = sphi 0, %s60
    %s75 = sphi 0, %s61
    %s83 = sphi 0, %s85
    %s86 = sphi 0, %s83
    %s87 = sphi 0, %s86
    %s103 = sphi 0, %s87
    %s109 = sphi 0, %s111
    %s112 = sphi 0, %s109
    %s113 = sphi 0, %s112
    %s129 = sphi 0, %s113
  $region4: #{basic_block_forward.3} parent=0 // loop_header_branch
    %13 = sbr.rel (%p11) target = $region8
  $region5: #{basic_block_forward.3} parent=0 // loop_body
    %s15 = ssub.s32 %s10, 1
    %s16 = ssub.s32 %s10, 2
    %s23 = sadd.s32 1, %s18
    %p24 = scmp.ge.s32.totalorder %s23, 1
    %s25 = scalar_select %p24, 0, %s23
    %s26 = sadd.s32 1, %s17
    %s27 = scalar_select %p24, %s26, %s17
    %p28 = scmp.ge.s32.totalorder %s27, 2
    %s29 = scalar_select %p28, 0, %s27
    %s30 = sadd.s32 %s17, %s18
    %s31 = sadd.s32 %s29, %s25
    %s32 = ssub.s32 %s30, %s31
    %p33 = scmp.eq.s32.totalorder %s32, 0
    %s35 = sadd.s32 %s34, 1
    %s36 = scalar_select %p33, %s34, %s35
    %p39 = pneg %p33
    %p40 = scmp.eq.s32.totalorder %s10, 1
    %p41 = por %p39, %p40
    %p42 = scmp.ne.s32.totalorder %s34, %s37
    %p43 = scmp.eq.s32.totalorder %s10, 0
    %p44 = por %p42, %p43
    %p45 = scmp.ne.s32.totalorder %s34, %s37
    %p46 = scmp.eq.s32.totalorder %s15, 1
    %p47 = por %p45, %p46
    %p48 = scmp.ne.s32.totalorder %s37, %s38
    %p49 = scmp.eq.s32.totalorder %s15, 0
    %p50 = por %p48, %p49
    %p51 = scmp.ne.s32.totalorder %s37, %s38
    %p52 = scmp.eq.s32.totalorder %s16, 1
    %p53 = por %p51, %p52
    %p55 = scmp.ne.s32.totalorder %s38, %s54
    %p56 = scmp.eq.s32.totalorder %s16, 0
    %p57 = por %p55, %p56
    %s59 = sadd.s32 %s58, 1
    %p62 = scmp.eq.s32.totalorder %s10, 1
    %p63 = scmp.ne.s32.totalorder %s58, %s60
    %p64 = scmp.eq.s32.totalorder %s10, 0
    %p65 = por %p63, %p64
    %p66 = scmp.ne.s32.totalorder %s58, %s60
    %p67 = scmp.eq.s32.totalorder %s15, 1
    %p68 = por %p66, %p67
    %p69 = scmp.ne.s32.totalorder %s60, %s61
    %p70 = scmp.eq.s32.totalorder %s15, 0
    %p71 = por %p69, %p70
    %p72 = scmp.ne.s32.totalorder %s60, %s61
    %p73 = scmp.eq.s32.totalorder %s16, 1
    %p74 = por %p72, %p73
    %p76 = scmp.ne.s32.totalorder %s61, %s75
    %p77 = scmp.eq.s32.totalorder %s16, 0
    %p78 = por %p76, %p77
    %s79 = sadd.s32 %s17, %s18
    %s80 = sadd.s32 %s29, %s25
    %s81 = ssub.s32 %s79, %s80
    %p82 = scmp.eq.s32.totalorder %s81, 0
    %s84 = sadd.s32 %s83, 1
    %s85 = scalar_select %p82, %s83, %s84
    %p88 = pneg %p82
    %p89 = scmp.eq.s32.totalorder %s10, 1
    %p90 = por %p88, %p89
    %p91 = scmp.ne.s32.totalorder %s83, %s86
    %p92 = scmp.eq.s32.totalorder %s10, 0
    %p93 = por %p91, %p92
    %p94 = scmp.ne.s32.totalorder %s83, %s86
    %p95 = scmp.eq.s32.totalorder %s15, 1
    %p96 = por %p94, %p95
    %p97 = scmp.ne.s32.totalorder %s86, %s87
    %p98 = scmp.eq.s32.totalorder %s15, 0
    %p99 = por %p97, %p98
    %p100 = scmp.ne.s32.totalorder %s86, %s87
    %p101 = scmp.eq.s32.totalorder %s16, 1
    %p102 = por %p100, %p101
    %p104 = scmp.ne.s32.totalorder %s87, %s103
    %p105 = scmp.eq.s32.totalorder %s16, 0
    %p106 = por %p104, %p105
    %s107 = ssub.s32 %s17, %s29
    %p108 = scmp.eq.s32.totalorder %s107, 0
    %s110 = sadd.s32 %s109, 1
    %s111 = scalar_select %p108, %s109, %s110
    %p114 = pneg %p108
    %p115 = scmp.eq.s32.totalorder %s10, 1
    %p116 = por %p114, %p115
    %p117 = scmp.ne.s32.totalorder %s109, %s112
    %p118 = scmp.eq.s32.totalorder %s10, 0
    %p119 = por %p117, %p118
    %p120 = scmp.ne.s32.totalorder %s109, %s112
    %p121 = scmp.eq.s32.totalorder %s15, 1
    %p122 = por %p120, %p121
    %p123 = scmp.ne.s32.totalorder %s112, %s113
    %p124 = scmp.eq.s32.totalorder %s15, 0
    %p125 = por %p123, %p124
    %p126 = scmp.ne.s32.totalorder %s112, %s113
    %p127 = scmp.eq.s32.totalorder %s16, 1
    %p128 = por %p126, %p127
    %p130 = scmp.ne.s32.totalorder %s113, %s129
    %p131 = scmp.eq.s32.totalorder %s16, 0
    %p132 = por %p130, %p131
    %p133 = scmp.le.s32.totalorder 1, %s10
    %p134 = scmp.lt.s32.totalorder %s10, 3
    %p135 = pnand %p133, %p134
    %p136 = pneg %p135
    // Predicated region
    $region9: #{basic_block_forward.3} parent=5 // pred_check
      _
    $region10: #{basic_block_forward.3} parent=5 // pred_check_branch
      %138 = sbr.rel (%p135) target = $region12
    $region11: #{basic_block_forward.3} parent=5 // pred_region
      %s139 = ssub.s32 %s10, 1
      // Predicated region
      $region13: #{basic_block_forward.3} parent=11 // pred_check
        %p140 = pneg %p71
      $region14: #{basic_block_forward.3} parent=11 // pred_check_branch
        %142 = sbr.rel (%p140) target = $region16
      $region15: #{basic_block_forward.3} parent=11 // pred_region
        _
      $region16: #{basic_block_forward.3} parent=11 // pred_fallthru
        _
    $region12: #{basic_block_forward.3} parent=5 // pred_fallthru
      _
    %p143 = scmp.lt.s32.totalorder %s10, 2
    // Predicated region
    $region17: #{basic_block_forward.3} parent=5 // pred_check
      %p144 = pneg %p143
    $region18: #{basic_block_forward.3} parent=5 // pred_check_branch
      %146 = sbr.rel (%p144) target = $region20
    $region19: #{basic_block_forward.3} parent=5 // pred_region
      // Predicated region
      $region21: #{basic_block_forward.3} parent=19 // pred_check
        %p147 = pneg %p44
      $region22: #{basic_block_forward.3} parent=19 // pred_check_branch
        %149 = sbr.rel (%p147) target = $region24
      $region23: #{basic_block_forward.3} parent=19 // pred_region
        %s150 = sadd.s32 %s17, %s18
        %p151 = scmp.lt.s32.totalorder %s150, 1
        %s152 = scalar_select %p151, %s150, 1
        %s153 = smul.addr %s152, 32
        %s154 = smul.addr %s153, 4
        %s155 = scalar_lea.vmem %s0, %s154
        %s156 = sadd.s32 %s17, %s18
      $region24: #{basic_block_forward.3} parent=19 // pred_fallthru
        _
    $region20: #{basic_block_forward.3} parent=5 // pred_fallthru
      _
    %p157 = scmp.le.s32.totalorder 1, %s10
    %p158 = scmp.lt.s32.totalorder %s10, 3
    %p159 = pnand %p157, %p158
    %p160 = pneg %p159
    // Predicated region
    $region25: #{basic_block_forward.3} parent=5 // pred_check
      _
    $region26: #{basic_block_forward.3} parent=5 // pred_check_branch
      %162 = sbr.rel (%p159) target = $region28
    $region27: #{basic_block_forward.3} parent=5 // pred_region
      %s163 = ssub.s32 %s10, 1
      %s164 = sadd.s32 %s19, %s20
      %p165 = scmp.lt.s32.totalorder %s164, 1
      %s166 = scalar_select %p165, %s164, 1
      %s167 = smul.addr %s166, 32
      %s168 = smul.addr %s167, 4
      %s169 = scalar_lea.vmem %s0, %s168
      %p170 = pneg %p50
      %p171 = pneg %p47
      %p172 = pneg %p71
      %p173 = pneg %p68
      %p174 = pneg %p99
      %p175 = pneg %p96
      %s176 = sadd.s32 %s19, %s20
      %p177 = scmp.lt.s32.totalorder %s176, 1
      %s178 = scalar_select %p177, %s176, 1
      %s179 = smul.addr %s178, 32
      %s180 = smul.addr %s179, 4
      %s181 = scalar_lea.vmem %s2, %s180
      %p182 = pneg %p125
      %p183 = pneg %p122
      %p184 = scmp.lt.s32.totalorder %s19, 1
      %s185 = scalar_select %p184, %s19, 1
      %s186 = smul.addr %s185, 2
      %s187 = scalar_lea.vmem %s3, %s186
      %s188 = sadd.s32 %s19, %s20
      %p189 = scmp.lt.s32.totalorder %s188, 1
      %s190 = scalar_select %p189, %s188, 1
      %s191 = smul.addr %s190, 32
      %s192 = smul.addr %s191, 4
      %s193 = scalar_lea.vmem %s0, %s192
      %s194 = sadd.s32 %s19, %s20
      %s195 = sadd.s32 %s19, %s20
      %p196 = scmp.lt.s32.totalorder %s195, 1
      %s197 = scalar_select %p196, %s195, 1
      %s198 = smul.addr %s197, 32
      %s199 = smul.addr %s198, 4
      %s200 = scalar_lea.vmem %s2, %s199
      %s201 = sadd.s32 %s19, %s20
      %p202 = scmp.lt.s32.totalorder %s19, 1
      %s203 = scalar_select %p202, %s19, 1
      %s204 = smul.addr %s203, 2
      %s205 = scalar_lea.vmem %s3, %s204
      %p207 = scmp.eq.s32.totalorder %s20, 0
      // Predicated region
      $region29: #{basic_block_forward.3} parent=27 // pred_check
        %p208 = pneg %p207
      $region30: #{basic_block_forward.3} parent=27 // pred_check_branch
        %210 = sbr.rel (%p208) target = $region32
      $region31: #{basic_block_forward.3} parent=27 // pred_region
        %vm211 = vcmask 27648
        %212 = vst.msk [vmem:[#allocation2] sm:$0xf] %vm211, 0
        %213 = vst.msk [vmem:[#allocation2 + $0x4] sm:$0xf] %vm211, 0
        %214 = vst.msk [vmem:[#allocation2 + $0x8] sm:$0xf] %vm211, 0
        %215 = vst.msk [vmem:[#allocation2 + $0xc] sm:$0xf] %vm211, 0
        %216 = vst.msk [vmem:[#allocation2 + $0x10] sm:$0xf] %vm211, 0
        %217 = vst.msk [vmem:[#allocation2 + $0x14] sm:$0xf] %vm211, 0
        %218 = vst.msk [vmem:[#allocation2 + $0x18] sm:$0xf] %vm211, 0
        %219 = vst.msk [vmem:[#allocation2 + $0x1c] sm:$0xf] %vm211, 0
        %220 = vst.msk [vmem:[#allocation2 + $0x20] sm:$0xf] %vm211, 0
        %221 = vst.msk [vmem:[#allocation2 + $0x24] sm:$0xf] %vm211, 0
        %222 = vst.msk [vmem:[#allocation2 + $0x28] sm:$0xf] %vm211, 0
        %223 = vst.msk [vmem:[#allocation2 + $0x2c] sm:$0xf] %vm211, 0
        %224 = vst.msk [vmem:[#allocation2 + $0x30] sm:$0xf] %vm211, 0
        %225 = vst.msk [vmem:[#allocation2 + $0x34] sm:$0xf] %vm211, 0
        %226 = vst.msk [vmem:[#allocation2 + $0x38] sm:$0xf] %vm211, 0
        %227 = vst.msk [vmem:[#allocation2 + $0x3c] sm:$0xf] %vm211, 0
        %228 = vst.msk [vmem:[#allocation2 + $0x40] sm:$0xf] %vm211, 0
        %229 = vst.msk [vmem:[#allocation2 + $0x44] sm:$0xf] %vm211, 0
        %230 = vst.msk [vmem:[#allocation2 + $0x48] sm:$0xf] %vm211, 0
        %231 = vst.msk [vmem:[#allocation2 + $0x4c] sm:$0xf] %vm211, 0
        %232 = vst.msk [vmem:[#allocation2 + $0x50] sm:$0xf] %vm211, 0
        %233 = vst.msk [vmem:[#allocation2 + $0x54] sm:$0xf] %vm211, 0
        %234 = vst.msk [vmem:[#allocation2 + $0x58] sm:$0xf] %vm211, 0
        %235 = vst.msk [vmem:[#allocation2 + $0x5c] sm:$0xf] %vm211, 0
        %236 = vst.msk [vmem:[#allocation2 + $0x60] sm:$0xf] %vm211, 0
        %237 = vst.msk [vmem:[#allocation2 + $0x64] sm:$0xf] %vm211, 0
        %238 = vst.msk [vmem:[#allocation2 + $0x68] sm:$0xf] %vm211, 0
        %239 = vst.msk [vmem:[#allocation2 + $0x6c] sm:$0xf] %vm211, 0
        %240 = vst.msk [vmem:[#allocation2 + $0x70] sm:$0xf] %vm211, 0
        %241 = vst.msk [vmem:[#allocation2 + $0x74] sm:$0xf] %vm211, 0
        %242 = vst.msk [vmem:[#allocation2 + $0x78] sm:$0xf] %vm211, 0
        %243 = vst.msk [vmem:[#allocation2 + $0x7c] sm:$0xf] %vm211, 0
        %244 = vst.msk [vmem:[#allocation2 + $0x80] sm:$0xf] %vm211, 0
        %245 = vst.msk [vmem:[#allocation2 + $0x84] sm:$0xf] %vm211, 0
        %246 = vst.msk [vmem:[#allocation2 + $0x88] sm:$0xf] %vm211, 0
        %247 = vst.msk [vmem:[#allocation2 + $0x8c] sm:$0xf] %vm211, 0
        %248 = vst.msk [vmem:[#allocation2 + $0x90] sm:$0xf] %vm211, 0
        %249 = vst.msk [vmem:[#allocation2 + $0x94] sm:$0xf] %vm211, 0
        %250 = vst.msk [vmem:[#allocation2 + $0x98] sm:$0xf] %vm211, 0
        %251 = vst.msk [vmem:[#allocation2 + $0x9c] sm:$0xf] %vm211, 0
        %252 = vst.msk [vmem:[#allocation2 + $0xa0] sm:$0xf] %vm211, 0
        %253 = vst.msk [vmem:[#allocation2 + $0xa4] sm:$0xf] %vm211, 0
        %254 = vst.msk [vmem:[#allocation2 + $0xa8] sm:$0xf] %vm211, 0
        %255 = vst.msk [vmem:[#allocation2 + $0xac] sm:$0xf] %vm211, 0
        %256 = vst.msk [vmem:[#allocation2 + $0xb0] sm:$0xf] %vm211, 0
        %257 = vst.msk [vmem:[#allocation2 + $0xb4] sm:$0xf] %vm211, 0
        %258 = vst.msk [vmem:[#allocation2 + $0xb8] sm:$0xf] %vm211, 0
        %259 = vst.msk [vmem:[#allocation2 + $0xbc] sm:$0xf] %vm211, 0
        %260 = vst.msk [vmem:[#allocation2 + $0xc0] sm:$0xf] %vm211, 0
        %261 = vst.msk [vmem:[#allocation2 + $0xc4] sm:$0xf] %vm211, 0
        %262 = vst.msk [vmem:[#allocation2 + $0xc8] sm:$0xf] %vm211, 0
        %263 = vst.msk [vmem:[#allocation2 + $0xcc] sm:$0xf] %vm211, 0
        %264 = vst.msk [vmem:[#allocation2 + $0xd0] sm:$0xf] %vm211, 0
        %265 = vst.msk [vmem:[#allocation2 + $0xd4] sm:$0xf] %vm211, 0
        %vm266 = vcmask 25600
        %267 = vst.msk [vmem:[%s205] sm:$0x3] %vm266, 0.0
      $region32: #{basic_block_forward.3} parent=27 // pred_fallthru
        _
      %v268 = vld [vmem:[%s193] sm:$0xf]
      %v269 = vld [vmem:[%s193 + $0x4] sm:$0xf]
      %v270 = vld [vmem:[%s193 + $0x8] sm:$0xf]
      %v271 = vld [vmem:[%s193 + $0xc] sm:$0xf]
      %v272 = vld [vmem:[%s193 + $0x10] sm:$0xf]
      %v273 = vld [vmem:[%s193 + $0x14] sm:$0xf]
      %v274 = vld [vmem:[%s193 + $0x18] sm:$0xf]
      %v275 = vld [vmem:[%s193 + $0x1c] sm:$0xf]
      %v276 = vld [vmem:[%s193 + $0x20] sm:$0xf]
      %v277 = vld [vmem:[%s193 + $0x24] sm:$0xf]
      %v278 = vld [vmem:[%s193 + $0x28] sm:$0xf]
      %v279 = vld [vmem:[%s193 + $0x2c] sm:$0xf]
      %v280 = vld [vmem:[%s193 + $0x30] sm:$0xf]
      %v281 = vld [vmem:[%s193 + $0x34] sm:$0xf]
      %v282 = vld [vmem:[%s193 + $0x38] sm:$0xf]
      %v283 = vld [vmem:[%s193 + $0x3c] sm:$0xf]
      %v284 = vld [vmem:[%s193 + $0x40] sm:$0xf]
      %v285 = vld [vmem:[%s193 + $0x44] sm:$0xf]
      %v286 = vld [vmem:[%s193 + $0x48] sm:$0xf]
      %v287 = vld [vmem:[%s193 + $0x4c] sm:$0xf]
      %v288 = vld [vmem:[%s193 + $0x50] sm:$0xf]
      %v289 = vld [vmem:[%s193 + $0x54] sm:$0xf]
      %v290 = vld [vmem:[%s193 + $0x58] sm:$0xf]
      %v291 = vld [vmem:[%s193 + $0x5c] sm:$0xf]
      %v292 = vld [vmem:[%s193 + $0x60] sm:$0xf]
      %v293 = vld [vmem:[%s193 + $0x64] sm:$0xf]
      %v294 = vld [vmem:[%s193 + $0x68] sm:$0xf]
      %v295 = vld [vmem:[%s193 + $0x6c] sm:$0xf]
      %v296 = vld [vmem:[%s193 + $0x70] sm:$0xf]
      %v297 = vld [vmem:[%s193 + $0x74] sm:$0xf]
      %v298 = vld [vmem:[%s193 + $0x78] sm:$0xf]
      %v299 = vld [vmem:[%s193 + $0x7c] sm:$0xf]
      %vm300 = vsmask.f32 256
      %vm301 = vsmask.f32 4368
      %vm302 = vmor %vm300, %vm301
      %v304 = vshrl.u32 %v268, 16
      %v306 = vrot.slane %v304, 7
      %v307 = vshll.u32 %v268, 16
      %v309 = vor.u32 %v306, %v307
      %v310 = vrot.slane %v306, 4
      %v312 = vshrl.u32 %v269, 16
      %v314 = vrot.slane %v312, 7
      %v315 = vshll.u32 %v269, 16
      %v317 = vor.u32 %v314, %v315
      %v318 = vsel %vm302, %v310, %v317
      %v319 = vrot.slane %v314, 4
      %v321 = vshrl.u32 %v270, 16
      %v323 = vrot.slane %v321, 7
      %v324 = vshll.u32 %v270, 16
      %v326 = vor.u32 %v323, %v324
      %v327 = vrot.slane %v323, 4
      %v329 = vshrl.u32 %v271, 16
      %v331 = vrot.slane %v329, 7
      %v332 = vshll.u32 %v271, 16
      %v334 = vor.u32 %v331, %v332
      %v335 = vsel %vm302, %v327, %v334
      %v336 = vrot.slane %v331, 4
      %v338 = vshrl.u32 %v272, 16
      %v340 = vrot.slane %v338, 7
      %v341 = vshll.u32 %v272, 16
      %v343 = vor.u32 %v340, %v341
      %v344 = vrot.slane %v340, 4
      %v346 = vshrl.u32 %v273, 16
      %v348 = vrot.slane %v346, 7
      %v349 = vshll.u32 %v273, 16
      %v351 = vor.u32 %v348, %v349
      %v352 = vsel %vm302, %v344, %v351
      %v353 = vrot.slane %v348, 4
      %v355 = vshrl.u32 %v274, 16
      %v357 = vrot.slane %v355, 7
      %v358 = vshll.u32 %v274, 16
      %v360 = vor.u32 %v357, %v358
      %v361 = vrot.slane %v357, 4
      %v363 = vshrl.u32 %v275, 16
      %v365 = vrot.slane %v363, 7
      %v366 = vshll.u32 %v275, 16
      %v368 = vor.u32 %v365, %v366
      %v369 = vsel %vm302, %v361, %v368
      %v370 = vrot.slane %v365, 4
      %v372 = vshrl.u32 %v276, 16
      %v374 = vrot.slane %v372, 7
      %v375 = vshll.u32 %v276, 16
      %v377 = vor.u32 %v374, %v375
      %v378 = vrot.slane %v374, 4
      %v380 = vshrl.u32 %v277, 16
      %v382 = vrot.slane %v380, 7
      %v383 = vshll.u32 %v277, 16
      %v385 = vor.u32 %v382, %v383
      %v386 = vsel %vm302, %v378, %v385
      %v387 = vrot.slane %v382, 4
      %v389 = vshrl.u32 %v278, 16
      %v391 = vrot.slane %v389, 7
      %v392 = vshll.u32 %v278, 16
      %v394 = vor.u32 %v391, %v392
      %v395 = vrot.slane %v391, 4
      %v397 = vshrl.u32 %v279, 16
      %v399 = vrot.slane %v397, 7
      %v400 = vshll.u32 %v279, 16
      %v402 = vor.u32 %v399, %v400
      %v403 = vsel %vm302, %v395, %v402
      %v404 = vrot.slane %v399, 4
      %v406 = vshrl.u32 %v280, 16
      %v408 = vrot.slane %v406, 7
      %v409 = vshll.u32 %v280, 16
      %v411 = vor.u32 %v408, %v409
      %v412 = vrot.slane %v408, 4
      %v414 = vshrl.u32 %v281, 16
      %v416 = vrot.slane %v414, 7
      %v417 = vshll.u32 %v281, 16
      %v419 = vor.u32 %v416, %v417
      %v420 = vsel %vm302, %v412, %v419
      %v421 = vrot.slane %v416, 4
      %v423 = vshrl.u32 %v282, 16
      %v425 = vrot.slane %v423, 7
      %v426 = vshll.u32 %v282, 16
      %v428 = vor.u32 %v425, %v426
      %v429 = vrot.slane %v425, 4
      %v431 = vshrl.u32 %v283, 16
      %v433 = vrot.slane %v431, 7
      %v434 = vshll.u32 %v283, 16
      %v436 = vor.u32 %v433, %v434
      %v437 = vsel %vm302, %v429, %v436
      %v438 = vrot.slane %v433, 4
      %v440 = vshrl.u32 %v284, 16
      %v442 = vrot.slane %v440, 7
      %v443 = vshll.u32 %v284, 16
      %v445 = vor.u32 %v442, %v443
      %v446 = vrot.slane %v442, 4
      %v448 = vshrl.u32 %v285, 16
      %v450 = vrot.slane %v448, 7
      %v451 = vshll.u32 %v285, 16
      %v453 = vor.u32 %v450, %v451
      %v454 = vsel %vm302, %v446, %v453
      %v455 = vrot.slane %v450, 4
      %v457 = vshrl.u32 %v286, 16
      %v459 = vrot.slane %v457, 7
      %v460 = vshll.u32 %v286, 16
      %v462 = vor.u32 %v459, %v460
      %v463 = vrot.slane %v459, 4
      %v465 = vshrl.u32 %v287, 16
      %v467 = vrot.slane %v465, 7
      %v468 = vshll.u32 %v287, 16
      %v470 = vor.u32 %v467, %v468
      %v471 = vsel %vm302, %v463, %v470
      %v472 = vrot.slane %v467, 4
      %v474 = vshrl.u32 %v288, 16
      %v476 = vrot.slane %v474, 7
      %v477 = vshll.u32 %v288, 16
      %v479 = vor.u32 %v476, %v477
      %v480 = vrot.slane %v476, 4
      %v482 = vshrl.u32 %v289, 16
      %v484 = vrot.slane %v482, 7
      %v485 = vshll.u32 %v289, 16
      %v487 = vor.u32 %v484, %v485
      %v488 = vsel %vm302, %v480, %v487
      %v489 = vrot.slane %v484, 4
      %v491 = vshrl.u32 %v290, 16
      %v493 = vrot.slane %v491, 7
      %v494 = vshll.u32 %v290, 16
      %v496 = vor.u32 %v493, %v494
      %v497 = vrot.slane %v493, 4
      %v499 = vshrl.u32 %v291, 16
      %v501 = vrot.slane %v499, 7
      %v502 = vshll.u32 %v291, 16
      %v504 = vor.u32 %v501, %v502
      %v505 = vsel %vm302, %v497, %v504
      %v506 = vrot.slane %v501, 4
      %v508 = vshrl.u32 %v292, 16
      %v510 = vrot.slane %v508, 7
      %v511 = vshll.u32 %v292, 16
      %v513 = vor.u32 %v510, %v511
      %v514 = vrot.slane %v510, 4
      %v516 = vshrl.u32 %v293, 16
      %v518 = vrot.slane %v516, 7
      %v519 = vshll.u32 %v293, 16
      %v521 = vor.u32 %v518, %v519
      %v522 = vsel %vm302, %v514, %v521
      %v523 = vrot.slane %v518, 4
      %v525 = vshrl.u32 %v294, 16
      %v527 = vrot.slane %v525, 7
      %v528 = vshll.u32 %v294, 16
      %v530 = vor.u32 %v527, %v528
      %v531 = vrot.slane %v527, 4
      %v533 = vshrl.u32 %v295, 16
      %v535 = vrot.slane %v533, 7
      %v536 = vshll.u32 %v295, 16
      %v538 = vor.u32 %v535, %v536
      %v539 = vsel %vm302, %v531, %v538
      %v540 = vrot.slane %v535, 4
      %v542 = vshrl.u32 %v296, 16
      %v544 = vrot.slane %v542, 7
      %v545 = vshll.u32 %v296, 16
      %v547 = vor.u32 %v544, %v545
      %v548 = vrot.slane %v544, 4
      %v550 = vshrl.u32 %v297, 16
      %v552 = vrot.slane %v550, 7
      %v553 = vshll.u32 %v297, 16
      %v555 = vor.u32 %v552, %v553
      %v556 = vsel %vm302, %v548, %v555
      %v557 = vrot.slane %v552, 4
      %v559 = vshrl.u32 %v298, 16
      %v561 = vrot.slane %v559, 7
      %v562 = vshll.u32 %v298, 16
      %v564 = vor.u32 %v561, %v562
      %v565 = vrot.slane %v561, 4
      %v567 = vshrl.u32 %v299, 16
      %v569 = vrot.slane %v567, 7
      %v570 = vshll.u32 %v299, 16
      %v572 = vor.u32 %v569, %v570
      %v573 = vsel %vm302, %v565, %v572
      %v574 = vrot.slane %v569, 4
      %s623 = scalar_lea.vmem [#allocation2], 12
      %vm624 = vcmask 27648
      %vm625 = vsmask.f32 7938
      %vm626 = vmand %vm624, %vm625
      %v627 = vld [vmem:[%s623] sm:$0xf]
      %v628 = vsel %vm626, %v309, %v627
      %629 = vst [vmem:[%s623] sm:$0xf] %v628
      %vm630 = vcmask 27648
      %631 = vst.msk [vmem:[%s623 + $0x4] sm:$0xf] %vm630, %v318
      %vm632 = vcmask 24576
      %vm633 = vmand %vm632, %vm300
      %v634 = vld [vmem:[%s623 + $0x8] sm:$0x1]
      %v635 = vsel %vm633, %v319, %v634
      %636 = vst [vmem:[%s623 + $0x8] sm:$0x1] %v635
      %v637 = vld [vmem:[%s623 + $0xc] sm:$0xf]
      %v638 = vsel %vm626, %v326, %v637
      %639 = vst [vmem:[%s623 + $0xc] sm:$0xf] %v638
      %640 = vst.msk [vmem:[%s623 + $0x10] sm:$0xf] %vm630, %v335
      %v641 = vld [vmem:[%s623 + $0x14] sm:$0x1]
      %v642 = vsel %vm633, %v336, %v641
      %643 = vst [vmem:[%s623 + $0x14] sm:$0x1] %v642
      %v644 = vld [vmem:[%s623 + $0x18] sm:$0xf]
      %v645 = vsel %vm626, %v343, %v644
      %646 = vst [vmem:[%s623 + $0x18] sm:$0xf] %v645
      %647 = vst.msk [vmem:[%s623 + $0x1c] sm:$0xf] %vm630, %v352
      %v648 = vld [vmem:[%s623 + $0x20] sm:$0x1]
      %v649 = vsel %vm633, %v353, %v648
      %650 = vst [vmem:[%s623 + $0x20] sm:$0x1] %v649
      %v651 = vld [vmem:[%s623 + $0x24] sm:$0xf]
      %v652 = vsel %vm626, %v360, %v651
      %653 = vst [vmem:[%s623 + $0x24] sm:$0xf] %v652
      %654 = vst.msk [vmem:[%s623 + $0x28] sm:$0xf] %vm630, %v369
      %v655 = vld [vmem:[%s623 + $0x2c] sm:$0x1]
      %v656 = vsel %vm633, %v370, %v655
      %657 = vst [vmem:[%s623 + $0x2c] sm:$0x1] %v656
      %v658 = vld [vmem:[%s623 + $0x30] sm:$0xf]
      %v659 = vsel %vm626, %v377, %v658
      %660 = vst [vmem:[%s623 + $0x30] sm:$0xf] %v659
      %661 = vst.msk [vmem:[%s623 + $0x34] sm:$0xf] %vm630, %v386
      %v662 = vld [vmem:[%s623 + $0x38] sm:$0x1]
      %v663 = vsel %vm633, %v387, %v662
      %664 = vst [vmem:[%s623 + $0x38] sm:$0x1] %v663
      %v665 = vld [vmem:[%s623 + $0x3c] sm:$0xf]
      %v666 = vsel %vm626, %v394, %v665
      %667 = vst [vmem:[%s623 + $0x3c] sm:$0xf] %v666
      %668 = vst.msk [vmem:[%s623 + $0x40] sm:$0xf] %vm630, %v403
      %v669 = vld [vmem:[%s623 + $0x44] sm:$0x1]
      %v670 = vsel %vm633, %v404, %v669
      %671 = vst [vmem:[%s623 + $0x44] sm:$0x1] %v670
      %v672 = vld [vmem:[%s623 + $0x48] sm:$0xf]
      %v673 = vsel %vm626, %v411, %v672
      %674 = vst [vmem:[%s623 + $0x48] sm:$0xf] %v673
      %675 = vst.msk [vmem:[%s623 + $0x4c] sm:$0xf] %vm630, %v420
      %v676 = vld [vmem:[%s623 + $0x50] sm:$0x1]
      %v677 = vsel %vm633, %v421, %v676
      %678 = vst [vmem:[%s623 + $0x50] sm:$0x1] %v677
      %v679 = vld [vmem:[%s623 + $0x54] sm:$0xf]
      %v680 = vsel %vm626, %v428, %v679
      %681 = vst [vmem:[%s623 + $0x54] sm:$0xf] %v680
      %682 = vst.msk [vmem:[%s623 + $0x58] sm:$0xf] %vm630, %v437
      %v683 = vld [vmem:[%s623 + $0x5c] sm:$0x1]
      %v684 = vsel %vm633, %v438, %v683
      %685 = vst [vmem:[%s623 + $0x5c] sm:$0x1] %v684
      %v686 = vld [vmem:[%s623 + $0x60] sm:$0xf]
      %v687 = vsel %vm626, %v445, %v686
      %688 = vst [vmem:[%s623 + $0x60] sm:$0xf] %v687
      %689 = vst.msk [vmem:[%s623 + $0x64] sm:$0xf] %vm630, %v454
      %v690 = vld [vmem:[%s623 + $0x68] sm:$0x1]
      %v691 = vsel %vm633, %v455, %v690
      %692 = vst [vmem:[%s623 + $0x68] sm:$0x1] %v691
      %v693 = vld [vmem:[%s623 + $0x6c] sm:$0xf]
      %v694 = vsel %vm626, %v462, %v693
      %695 = vst [vmem:[%s623 + $0x6c] sm:$0xf] %v694
      %696 = vst.msk [vmem:[%s623 + $0x70] sm:$0xf] %vm630, %v471
      %v697 = vld [vmem:[%s623 + $0x74] sm:$0x1]
      %v698 = vsel %vm633, %v472, %v697
      %699 = vst [vmem:[%s623 + $0x74] sm:$0x1] %v698
      %v700 = vld [vmem:[%s623 + $0x78] sm:$0xf]
      %v701 = vsel %vm626, %v479, %v700
      %702 = vst [vmem:[%s623 + $0x78] sm:$0xf] %v701
      %703 = vst.msk [vmem:[%s623 + $0x7c] sm:$0xf] %vm630, %v488
      %v704 = vld [vmem:[%s623 + $0x80] sm:$0x1]
      %v705 = vsel %vm633, %v489, %v704
      %706 = vst [vmem:[%s623 + $0x80] sm:$0x1] %v705
      %v707 = vld [vmem:[%s623 + $0x84] sm:$0xf]
      %v708 = vsel %vm626, %v496, %v707
      %709 = vst [vmem:[%s623 + $0x84] sm:$0xf] %v708
      %710 = vst.msk [vmem:[%s623 + $0x88] sm:$0xf] %vm630, %v505
      %v711 = vld [vmem:[%s623 + $0x8c] sm:$0x1]
      %v712 = vsel %vm633, %v506, %v711
      %713 = vst [vmem:[%s623 + $0x8c] sm:$0x1] %v712
      %v714 = vld [vmem:[%s623 + $0x90] sm:$0xf]
      %v715 = vsel %vm626, %v513, %v714
      %716 = vst [vmem:[%s623 + $0x90] sm:$0xf] %v715
      %717 = vst.msk [vmem:[%s623 + $0x94] sm:$0xf] %vm630, %v522
      %v718 = vld [vmem:[%s623 + $0x98] sm:$0x1]
      %v719 = vsel %vm633, %v523, %v718
      %720 = vst [vmem:[%s623 + $0x98] sm:$0x1] %v719
      %v721 = vld [vmem:[%s623 + $0x9c] sm:$0xf]
      %v722 = vsel %vm626, %v530, %v721
      %723 = vst [vmem:[%s623 + $0x9c] sm:$0xf] %v722
      %724 = vst.msk [vmem:[%s623 + $0xa0] sm:$0xf] %vm630, %v539
      %v725 = vld [vmem:[%s623 + $0xa4] sm:$0x1]
      %v726 = vsel %vm633, %v540, %v725
      %727 = vst [vmem:[%s623 + $0xa4] sm:$0x1] %v726
      %v728 = vld [vmem:[%s623 + $0xa8] sm:$0xf]
      %v729 = vsel %vm626, %v547, %v728
      %730 = vst [vmem:[%s623 + $0xa8] sm:$0xf] %v729
      %731 = vst.msk [vmem:[%s623 + $0xac] sm:$0xf] %vm630, %v556
      %v732 = vld [vmem:[%s623 + $0xb0] sm:$0x1]
      %v733 = vsel %vm633, %v557, %v732
      %734 = vst [vmem:[%s623 + $0xb0] sm:$0x1] %v733
      %v735 = vld [vmem:[%s623 + $0xb4] sm:$0xf]
      %v736 = vsel %vm626, %v564, %v735
      %737 = vst [vmem:[%s623 + $0xb4] sm:$0xf] %v736
      %738 = vst.msk [vmem:[%s623 + $0xb8] sm:$0xf] %vm630, %v573
      %v739 = vld [vmem:[%s623 + $0xbc] sm:$0x1]
      %v740 = vsel %vm633, %v574, %v739
      %741 = vst [vmem:[%s623 + $0xbc] sm:$0x1] %v740
      %v742 = vld [vmem:[#allocation2] sm:$0xf]
      %v743 = vld [vmem:[#allocation2 + $0x4] sm:$0xf]
      %v744 = vld [vmem:[#allocation2 + $0x8] sm:$0xf]
      %v745 = vld [vmem:[#allocation2 + $0xc] sm:$0xf]
      %v746 = vld [vmem:[#allocation2 + $0x10] sm:$0xf]
      %v747 = vld [vmem:[#allocation2 + $0x14] sm:$0xf]
      %v748 = vld [vmem:[#allocation2 + $0x18] sm:$0xf]
      %v749 = vld [vmem:[#allocation2 + $0x1c] sm:$0xf]
      %v750 = vld [vmem:[#allocation2 + $0x20] sm:$0xf]
      %v751 = vld [vmem:[#allocation2 + $0x24] sm:$0xf]
      %v752 = vld [vmem:[#allocation2 + $0x28] sm:$0xf]
      %v753 = vld [vmem:[#allocation2 + $0x2c] sm:$0xf]
      %v754 = vld [vmem:[#allocation2 + $0x30] sm:$0xf]
      %v755 = vld [vmem:[#allocation2 + $0x34] sm:$0xf]
      %v756 = vld [vmem:[#allocation2 + $0x38] sm:$0xf]
      %v757 = vld [vmem:[#allocation2 + $0x3c] sm:$0xf]
      %v758 = vld [vmem:[#allocation2 + $0x40] sm:$0xf]
      %v759 = vld [vmem:[#allocation2 + $0x44] sm:$0xf]
      %v760 = vld [vmem:[#allocation2 + $0x48] sm:$0xf]
      %v761 = vld [vmem:[#allocation2 + $0x4c] sm:$0xf]
      %v762 = vld [vmem:[#allocation2 + $0x50] sm:$0xf]
      %v763 = vld [vmem:[#allocation2 + $0x54] sm:$0xf]
      %v764 = vld [vmem:[#allocation2 + $0x58] sm:$0xf]
      %v765 = vld [vmem:[#allocation2 + $0x5c] sm:$0xf]
      %v766 = vld [vmem:[#allocation2 + $0x60] sm:$0xf]
      %v767 = vld [vmem:[#allocation2 + $0x64] sm:$0xf]
      %v768 = vld [vmem:[#allocation2 + $0x68] sm:$0xf]
      %v769 = vld [vmem:[#allocation2 + $0x6c] sm:$0xf]
      %v770 = vld [vmem:[#allocation2 + $0x70] sm:$0xf]
      %v771 = vld [vmem:[#allocation2 + $0x74] sm:$0xf]
      %v772 = vld [vmem:[#allocation2 + $0x78] sm:$0xf]
      %v773 = vld [vmem:[#allocation2 + $0x7c] sm:$0xf]
      %v774 = vld [vmem:[#allocation2 + $0x80] sm:$0xf]
      %v775 = vld [vmem:[#allocation2 + $0x84] sm:$0xf]
      %v776 = vld [vmem:[#allocation2 + $0x88] sm:$0xf]
      %v777 = vld [vmem:[#allocation2 + $0x8c] sm:$0xf]
      %v778 = vld [vmem:[#allocation2 + $0x90] sm:$0xf]
      %v779 = vld [vmem:[#allocation2 + $0x94] sm:$0xf]
      %v780 = vld [vmem:[#allocation2 + $0x98] sm:$0xf]
      %v781 = vld [vmem:[#allocation2 + $0x9c] sm:$0xf]
      %v782 = vld [vmem:[#allocation2 + $0xa0] sm:$0xf]
      %v783 = vld [vmem:[#allocation2 + $0xa4] sm:$0xf]
      %v784 = vld [vmem:[#allocation2 + $0xa8] sm:$0xf]
      %v785 = vld [vmem:[#allocation2 + $0xac] sm:$0xf]
      %v786 = vld [vmem:[#allocation2 + $0xb0] sm:$0xf]
      %v787 = vld [vmem:[#allocation2 + $0xb4] sm:$0xf]
      %v788 = vld [vmem:[#allocation2 + $0xb8] sm:$0xf]
      %v789 = vld [vmem:[#allocation2 + $0xbc] sm:$0xf]
      %v790 = vld [vmem:[#allocation2 + $0xc0] sm:$0xf]
      %v791 = vld [vmem:[#allocation2 + $0xc4] sm:$0xf]
      %v792 = vld [vmem:[#allocation2 + $0xc8] sm:$0xf]
      %v793 = vld [vmem:[#allocation2 + $0xcc] sm:$0xf]
      %v794 = vld [vmem:[#allocation2 + $0xd0] sm:$0xf]
      %v795 = vld [vmem:[#allocation2 + $0xd4] sm:$0xf]
      %v796 = vld [vmem:[%s1] sm:$0x3]
      %vm797 = vsmask.f32 3328
      %vm798 = vsmask.f32 7440
      %vm799 = vmor %vm797, %vm798
      %v801 = vshrl.u32 %v742, 16
      %v803 = vrot.slane %v801, 4
      %v804 = vshll.u32 %v742, 16
      %v806 = vrot.slane %v804, 5
      %v807 = vor.u32 %v803, %v806
      %v808 = vrot.slane %v807, 4
      %v810 = vshll.u32 %v743, 16
      %v812 = vrot.slane %v810, 5
      %v813 = vsel %vm799, %v808, %v812
      %v814 = vshrl.u32 %v743, 16
      %v816 = vrot.slane %v814, 4
      %v817 = vor.u32 %v816, %v812
      %v818 = vrot.slane %v817, 4
      %v820 = vshll.u32 %v744, 16
      %v822 = vrot.slane %v820, 5
      %v823 = vsel %vm799, %v818, %v822
      %v825 = vshrl.u32 %v745, 16
      %v827 = vrot.slane %v825, 4
      %v828 = vshll.u32 %v745, 16
      %v830 = vrot.slane %v828, 5
      %v831 = vor.u32 %v827, %v830
      %v832 = vrot.slane %v831, 4
      %v834 = vshll.u32 %v746, 16
      %v836 = vrot.slane %v834, 5
      %v837 = vsel %vm799, %v832, %v836
      %v838 = vshrl.u32 %v746, 16
      %v840 = vrot.slane %v838, 4
      %v841 = vor.u32 %v840, %v836
      %v842 = vrot.slane %v841, 4
      %v844 = vshll.u32 %v747, 16
      %v846 = vrot.slane %v844, 5
      %v847 = vsel %vm799, %v842, %v846
      %v849 = vshrl.u32 %v748, 16
      %v851 = vrot.slane %v849, 4
      %v852 = vshll.u32 %v748, 16
      %v854 = vrot.slane %v852, 5
      %v855 = vor.u32 %v851, %v854
      %v856 = vrot.slane %v855, 4
      %v858 = vshll.u32 %v749, 16
      %v860 = vrot.slane %v858, 5
      %v861 = vsel %vm799, %v856, %v860
      %v862 = vshrl.u32 %v749, 16
      %v864 = vrot.slane %v862, 4
      %v865 = vor.u32 %v864, %v860
      %v866 = vrot.slane %v865, 4
      %v868 = vshll.u32 %v750, 16
      %v870 = vrot.slane %v868, 5
      %v871 = vsel %vm799, %v866, %v870
      %v873 = vshrl.u32 %v751, 16
      %v875 = vrot.slane %v873, 4
      %v876 = vshll.u32 %v751, 16
      %v878 = vrot.slane %v876, 5
      %v879 = vor.u32 %v875, %v878
      %v880 = vrot.slane %v879, 4
      %v882 = vshll.u32 %v752, 16
      %v884 = vrot.slane %v882, 5
      %v885 = vsel %vm799, %v880, %v884
      %v886 = vshrl.u32 %v752, 16
      %v888 = vrot.slane %v886, 4
      %v889 = vor.u32 %v888, %v884
      %v890 = vrot.slane %v889, 4
      %v892 = vshll.u32 %v753, 16
      %v894 = vrot.slane %v892, 5
      %v895 = vsel %vm799, %v890, %v894
      %v897 = vshrl.u32 %v754, 16
      %v899 = vrot.slane %v897, 4
      %v900 = vshll.u32 %v754, 16
      %v902 = vrot.slane %v900, 5
      %v903 = vor.u32 %v899, %v902
      %v904 = vrot.slane %v903, 4
      %v906 = vshll.u32 %v755, 16
      %v908 = vrot.slane %v906, 5
      %v909 = vsel %vm799, %v904, %v908
      %v910 = vshrl.u32 %v755, 16
      %v912 = vrot.slane %v910, 4
      %v913 = vor.u32 %v912, %v908
      %v914 = vrot.slane %v913, 4
      %v916 = vshll.u32 %v756, 16
      %v918 = vrot.slane %v916, 5
      %v919 = vsel %vm799, %v914, %v918
      %v921 = vshrl.u32 %v757, 16
      %v923 = vrot.slane %v921, 4
      %v924 = vshll.u32 %v757, 16
      %v926 = vrot.slane %v924, 5
      %v927 = vor.u32 %v923, %v926
      %v928 = vrot.slane %v927, 4
      %v930 = vshll.u32 %v758, 16
      %v932 = vrot.slane %v930, 5
      %v933 = vsel %vm799, %v928, %v932
      %v934 = vshrl.u32 %v758, 16
      %v936 = vrot.slane %v934, 4
      %v937 = vor.u32 %v936, %v932
      %v938 = vrot.slane %v937, 4
      %v940 = vshll.u32 %v759, 16
      %v942 = vrot.slane %v940, 5
      %v943 = vsel %vm799, %v938, %v942
      %v945 = vshrl.u32 %v760, 16
      %v947 = vrot.slane %v945, 4
      %v948 = vshll.u32 %v760, 16
      %v950 = vrot.slane %v948, 5
      %v951 = vor.u32 %v947, %v950
      %v952 = vrot.slane %v951, 4
      %v954 = vshll.u32 %v761, 16
      %v956 = vrot.slane %v954, 5
      %v957 = vsel %vm799, %v952, %v956
      %v958 = vshrl.u32 %v761, 16
      %v960 = vrot.slane %v958, 4
      %v961 = vor.u32 %v960, %v956
      %v962 = vrot.slane %v961, 4
      %v964 = vshll.u32 %v762, 16
      %v966 = vrot.slane %v964, 5
      %v967 = vsel %vm799, %v962, %v966
      %v969 = vshrl.u32 %v763, 16
      %v971 = vrot.slane %v969, 4
      %v972 = vshll.u32 %v763, 16
      %v974 = vrot.slane %v972, 5
      %v975 = vor.u32 %v971, %v974
      %v976 = vrot.slane %v975, 4
      %v978 = vshll.u32 %v764, 16
      %v980 = vrot.slane %v978, 5
      %v981 = vsel %vm799, %v976, %v980
      %v982 = vshrl.u32 %v764, 16
      %v984 = vrot.slane %v982, 4
      %v985 = vor.u32 %v984, %v980
      %v986 = vrot.slane %v985, 4
      %v988 = vshll.u32 %v765, 16
      %v990 = vrot.slane %v988, 5
      %v991 = vsel %vm799, %v986, %v990
      %v993 = vshrl.u32 %v766, 16
      %v995 = vrot.slane %v993, 4
      %v996 = vshll.u32 %v766, 16
      %v998 = vrot.slane %v996, 5
      %v999 = vor.u32 %v995, %v998
      %v1000 = vrot.slane %v999, 4
      %v1002 = vshll.u32 %v767, 16
      %v1004 = vrot.slane %v1002, 5
      %v1005 = vsel %vm799, %v1000, %v1004
      %v1006 = vshrl.u32 %v767, 16
      %v1008 = vrot.slane %v1006, 4
      %v1009 = vor.u32 %v1008, %v1004
      %v1010 = vrot.slane %v1009, 4
      %v1012 = vshll.u32 %v768, 16
      %v1014 = vrot.slane %v1012, 5
      %v1015 = vsel %vm799, %v1010, %v1014
      %v1017 = vshrl.u32 %v769, 16
      %v1019 = vrot.slane %v1017, 4
      %v1020 = vshll.u32 %v769, 16
      %v1022 = vrot.slane %v1020, 5
      %v1023 = vor.u32 %v1019, %v1022
      %v1024 = vrot.slane %v1023, 4
      %v1026 = vshll.u32 %v770, 16
      %v1028 = vrot.slane %v1026, 5
      %v1029 = vsel %vm799, %v1024, %v1028
      %v1030 = vshrl.u32 %v770, 16
      %v1032 = vrot.slane %v1030, 4
      %v1033 = vor.u32 %v1032, %v1028
      %v1034 = vrot.slane %v1033, 4
      %v1036 = vshll.u32 %v771, 16
      %v1038 = vrot.slane %v1036, 5
      %v1039 = vsel %vm799, %v1034, %v1038
      %v1041 = vshrl.u32 %v772, 16
      %v1043 = vrot.slane %v1041, 4
      %v1044 = vshll.u32 %v772, 16
      %v1046 = vrot.slane %v1044, 5
      %v1047 = vor.u32 %v1043, %v1046
      %v1048 = vrot.slane %v1047, 4
      %v1050 = vshll.u32 %v773, 16
      %v1052 = vrot.slane %v1050, 5
      %v1053 = vsel %vm799, %v1048, %v1052
      %v1054 = vshrl.u32 %v773, 16
      %v1056 = vrot.slane %v1054, 4
      %v1057 = vor.u32 %v1056, %v1052
      %v1058 = vrot.slane %v1057, 4
      %v1060 = vshll.u32 %v774, 16
      %v1062 = vrot.slane %v1060, 5
      %v1063 = vsel %vm799, %v1058, %v1062
      %v1065 = vshrl.u32 %v775, 16
      %v1067 = vrot.slane %v1065, 4
      %v1068 = vshll.u32 %v775, 16
      %v1070 = vrot.slane %v1068, 5
      %v1071 = vor.u32 %v1067, %v1070
      %v1072 = vrot.slane %v1071, 4
      %v1074 = vshll.u32 %v776, 16
      %v1076 = vrot.slane %v1074, 5
      %v1077 = vsel %vm799, %v1072, %v1076
      %v1078 = vshrl.u32 %v776, 16
      %v1080 = vrot.slane %v1078, 4
      %v1081 = vor.u32 %v1080, %v1076
      %v1082 = vrot.slane %v1081, 4
      %v1084 = vshll.u32 %v777, 16
      %v1086 = vrot.slane %v1084, 5
      %v1087 = vsel %vm799, %v1082, %v1086
      %v1089 = vshrl.u32 %v778, 16
      %v1091 = vrot.slane %v1089, 4
      %v1092 = vshll.u32 %v778, 16
      %v1094 = vrot.slane %v1092, 5
      %v1095 = vor.u32 %v1091, %v1094
      %v1096 = vrot.slane %v1095, 4
      %v1098 = vshll.u32 %v779, 16
      %v1100 = vrot.slane %v1098, 5
      %v1101 = vsel %vm799, %v1096, %v1100
      %v1102 = vshrl.u32 %v779, 16
      %v1104 = vrot.slane %v1102, 4
      %v1105 = vor.u32 %v1104, %v1100
      %v1106 = vrot.slane %v1105, 4
      %v1108 = vshll.u32 %v780, 16
      %v1110 = vrot.slane %v1108, 5
      %v1111 = vsel %vm799, %v1106, %v1110
      %v1113 = vshrl.u32 %v781, 16
      %v1115 = vrot.slane %v1113, 4
      %v1116 = vshll.u32 %v781, 16
      %v1118 = vrot.slane %v1116, 5
      %v1119 = vor.u32 %v1115, %v1118
      %v1120 = vrot.slane %v1119, 4
      %v1122 = vshll.u32 %v782, 16
      %v1124 = vrot.slane %v1122, 5
      %v1125 = vsel %vm799, %v1120, %v1124
      %v1126 = vshrl.u32 %v782, 16
      %v1128 = vrot.slane %v1126, 4
      %v1129 = vor.u32 %v1128, %v1124
      %v1130 = vrot.slane %v1129, 4
      %v1132 = vshll.u32 %v783, 16
      %v1134 = vrot.slane %v1132, 5
      %v1135 = vsel %vm799, %v1130, %v1134
      %v1137 = vshrl.u32 %v784, 16
      %v1139 = vrot.slane %v1137, 4
      %v1140 = vshll.u32 %v784, 16
      %v1142 = vrot.slane %v1140, 5
      %v1143 = vor.u32 %v1139, %v1142
      %v1144 = vrot.slane %v1143, 4
      %v1146 = vshll.u32 %v785, 16
      %v1148 = vrot.slane %v1146, 5
      %v1149 = vsel %vm799, %v1144, %v1148
      %v1150 = vshrl.u32 %v785, 16
      %v1152 = vrot.slane %v1150, 4
      %v1153 = vor.u32 %v1152, %v1148
      %v1154 = vrot.slane %v1153, 4
      %v1156 = vshll.u32 %v786, 16
      %v1158 = vrot.slane %v1156, 5
      %v1159 = vsel %vm799, %v1154, %v1158
      %v1161 = vshrl.u32 %v787, 16
      %v1163 = vrot.slane %v1161, 4
      %v1164 = vshll.u32 %v787, 16
      %v1166 = vrot.slane %v1164, 5
      %v1167 = vor.u32 %v1163, %v1166
      %v1168 = vrot.slane %v1167, 4
      %v1170 = vshll.u32 %v788, 16
      %v1172 = vrot.slane %v1170, 5
      %v1173 = vsel %vm799, %v1168, %v1172
      %v1174 = vshrl.u32 %v788, 16
      %v1176 = vrot.slane %v1174, 4
      %v1177 = vor.u32 %v1176, %v1172
      %v1178 = vrot.slane %v1177, 4
      %v1180 = vshll.u32 %v789, 16
      %v1182 = vrot.slane %v1180, 5
      %v1183 = vsel %vm799, %v1178, %v1182
      %v1184 = vld [vmem:[%s1] sm:$0xc]
      %v1185 = vunpack.c.l.b16 %v813
      %v1186 = vunpack.c.l.b16 %v823
      %v1187 = vunpack.c.l.b16 %v837
      %v1188 = vunpack.c.l.b16 %v847
      %v1189 = vunpack.c.l.b16 %v861
      %v1190 = vunpack.c.l.b16 %v871
      %v1191 = vunpack.c.l.b16 %v885
      %v1192 = vunpack.c.l.b16 %v895
      %v1193 = vunpack.c.l.b16 %v909
      %v1194 = vunpack.c.l.b16 %v919
      %v1195 = vunpack.c.l.b16 %v933
      %v1196 = vunpack.c.l.b16 %v943
      %v1197 = vunpack.c.l.b16 %v957
      %v1198 = vunpack.c.l.b16 %v967
      %v1199 = vunpack.c.l.b16 %v981
      %v1200 = vunpack.c.l.b16 %v991
      %v1201 = vunpack.c.l.b16 %v1005
      %v1202 = vunpack.c.l.b16 %v1015
      %v1203 = vunpack.c.l.b16 %v1029
      %v1204 = vunpack.c.l.b16 %v1039
      %v1205 = vunpack.c.l.b16 %v1053
      %v1206 = vunpack.c.l.b16 %v1063
      %v1207 = vunpack.c.l.b16 %v1077
      %v1208 = vunpack.c.l.b16 %v1087
      %v1209 = vunpack.c.l.b16 %v1101
      %v1210 = vunpack.c.l.b16 %v1111
      %v1211 = vunpack.c.l.b16 %v1125
      %v1212 = vunpack.c.l.b16 %v1135
      %v1213 = vunpack.c.l.b16 %v1149
      %v1214 = vunpack.c.l.b16 %v1159
      %v1215 = vunpack.c.l.b16 %v1173
      %v1216 = vunpack.c.l.b16 %v1183
      %v1217 = vpack.c.b16 %v1186, %v1185
      %v1218 = vpack.c.b16 %v1188, %v1187
      %v1219 = vpack.c.b16 %v1190, %v1189
      %v1220 = vpack.c.b16 %v1192, %v1191
      %v1221 = vpack.c.b16 %v1194, %v1193
      %v1222 = vpack.c.b16 %v1196, %v1195
      %v1223 = vpack.c.b16 %v1198, %v1197
      %v1224 = vpack.c.b16 %v1200, %v1199
      %v1225 = vpack.c.b16 %v1202, %v1201
      %v1226 = vpack.c.b16 %v1204, %v1203
      %v1227 = vpack.c.b16 %v1206, %v1205
      %v1228 = vpack.c.b16 %v1208, %v1207
      %v1229 = vpack.c.b16 %v1210, %v1209
      %v1230 = vpack.c.b16 %v1212, %v1211
      %v1231 = vpack.c.b16 %v1214, %v1213
      %v1232 = vpack.c.b16 %v1216, %v1215
      %v1234 = vunpack.c.l.b16 %v1184
      %v1235 = vpack.c.b16 %v1234, %v1234
      %v1236 = vrot.slane %v1235, 2
      %vm1237 = vcmask 31744
      %v1239 = vsel %vm1237, %v1217, 0
      %v1242 = vsel %vm1237, %v1218, 0
      %v1245 = vsel %vm1237, %v1219, 0
      %v1248 = vsel %vm1237, %v1220, 0
      %v1251 = vsel %vm1237, %v1221, 0
      %v1254 = vsel %vm1237, %v1222, 0
      %v1257 = vsel %vm1237, %v1223, 0
      %v1260 = vsel %vm1237, %v1224, 0
      %v1263 = vsel %vm1237, %v1225, 0
      %v1266 = vsel %vm1237, %v1226, 0
      %v1269 = vsel %vm1237, %v1227, 0
      %v1272 = vsel %vm1237, %v1228, 0
      %v1275 = vsel %vm1237, %v1229, 0
      %v1278 = vsel %vm1237, %v1230, 0
      %v1281 = vsel %vm1237, %v1231, 0
      %v1284 = vsel %vm1237, %v1232, 0
      %vm1286 = vcmask 1041408
      %v1288 = vsel %vm1286, %v1236, 0
      %1290 = vmatprep.subr.bf16.mxu0 0
      %1291 = vmatpush1.bf16.msra.mxu0 0
      %1292 = vmatprep.subr.bf16.mxu0 0
      %1293 = vmatpush1.bf16.msra.mxu0 0
      %1294 = vmatprep.subr.bf16.mxu0 0
      %1295 = vmatpush1.bf16.msra.mxu0 0
      %1296 = vmatprep.subr.bf16.mxu0 0
      %1297 = vmatpush1.bf16.msra.mxu0 0
      %1298 = vmatprep.subr.bf16.mxu0 0
      %1299 = vmatpush1.bf16.msra.mxu0 0
      %1300 = vmatprep.subr.bf16.mxu0 0
      %1301 = vmatpush1.bf16.msra.mxu0 0
      %1302 = vmatprep.subr.bf16.mxu0 0
      %1303 = vmatpush1.bf16.msra.mxu0 0
      %1304 = vmatprep.subr.bf16.mxu0 0
      %1305 = vmatpush1.bf16.msra.mxu0 %v1288
      %1306 = vmatprep.subr.bf16.mxu0 0
      %1307 = vmatpush2.bf16.msra.mxu0 0
      %1308 = vmatprep.subr.bf16.mxu0 0
      %1309 = vmatpush2.bf16.msra.mxu0 0
      %1310 = vmatprep.subr.bf16.mxu0 0
      %1311 = vmatpush2.bf16.msra.mxu0 0
      %1312 = vmatprep.subr.bf16.mxu0 0
      %1313 = vmatpush2.bf16.msra.mxu0 0
      %1314 = vmatprep.subr.bf16.mxu0 0
      %1315 = vmatpush2.bf16.msra.mxu0 0
      %1316 = vmatprep.subr.bf16.mxu0 0
      %1317 = vmatpush2.bf16.msra.mxu0 0
      %1318 = vmatprep.subr.bf16.mxu0 0
      %1319 = vmatpush2.bf16.msra.mxu0 0
      %1320 = vmatprep.subr.bf16.mxu0 0
      %1321 = vmatpush2.bf16.msra.mxu0 0
      %1322 = vmatprep.mubr.bf16.mxu0 0
      %1323 = vmatmul.mubr.bf16.gmra.mxu0 %v1239
      %v1324 = vpop.f32.mrf.mxu0
      %v1325 = vadd.f32 0.0, %v1324
      %v1326 = vpop.f32.mrf.mxu0
      %v1327 = vpop.f32.mrf.mxu0
      %v1328 = vadd.f32 0.0, %v1327
      %v1329 = vpop.f32.mrf.mxu0
      %1330 = vmatprep.mubr.bf16.mxu0 0
      %1331 = vmatmul.mubr.bf16.gmra.mxu0 %v1242
      %v1332 = vpop.f32.mrf.mxu0
      %v1333 = vadd.f32 0.0, %v1332
      %v1334 = vpop.f32.mrf.mxu0
      %v1335 = vpop.f32.mrf.mxu0
      %v1336 = vadd.f32 0.0, %v1335
      %v1337 = vpop.f32.mrf.mxu0
      %1338 = vmatprep.mubr.bf16.mxu0 0
      %1339 = vmatmul.mubr.bf16.gmra.mxu0 %v1245
      %v1340 = vpop.f32.mrf.mxu0
      %v1341 = vadd.f32 0.0, %v1340
      %v1342 = vpop.f32.mrf.mxu0
      %v1343 = vpop.f32.mrf.mxu0
      %v1344 = vadd.f32 0.0, %v1343
      %v1345 = vpop.f32.mrf.mxu0
      %1346 = vmatprep.mubr.bf16.mxu0 0
      %1347 = vmatmul.mubr.bf16.gmra.mxu0 %v1248
      %v1348 = vpop.f32.mrf.mxu0
      %v1349 = vadd.f32 0.0, %v1348
      %v1350 = vpop.f32.mrf.mxu0
      %v1351 = vpop.f32.mrf.mxu0
      %v1352 = vadd.f32 0.0, %v1351
      %v1353 = vpop.f32.mrf.mxu0
      %1354 = vmatprep.mubr.bf16.mxu0 0
      %1355 = vmatmul.mubr.bf16.gmra.mxu0 %v1251
      %v1356 = vpop.f32.mrf.mxu0
      %v1357 = vadd.f32 0.0, %v1356
      %v1358 = vpop.f32.mrf.mxu0
      %v1359 = vpop.f32.mrf.mxu0
      %v1360 = vadd.f32 0.0, %v1359
      %v1361 = vpop.f32.mrf.mxu0
      %1362 = vmatprep.mubr.bf16.mxu0 0
      %1363 = vmatmul.mubr.bf16.gmra.mxu0 %v1254
      %v1364 = vpop.f32.mrf.mxu0
      %v1365 = vadd.f32 0.0, %v1364
      %v1366 = vpop.f32.mrf.mxu0
      %v1367 = vpop.f32.mrf.mxu0
      %v1368 = vadd.f32 0.0, %v1367
      %v1369 = vpop.f32.mrf.mxu0
      %1370 = vmatprep.mubr.bf16.mxu0 0
      %1371 = vmatmul.mubr.bf16.gmra.mxu0 %v1257
      %v1372 = vpop.f32.mrf.mxu0
      %v1373 = vadd.f32 0.0, %v1372
      %v1374 = vpop.f32.mrf.mxu0
      %v1375 = vpop.f32.mrf.mxu0
      %v1376 = vadd.f32 0.0, %v1375
      %v1377 = vpop.f32.mrf.mxu0
      %1378 = vmatprep.mubr.bf16.mxu0 0
      %1379 = vmatmul.mubr.bf16.gmra.mxu0 %v1260
      %v1380 = vpop.f32.mrf.mxu0
      %v1381 = vadd.f32 0.0, %v1380
      %v1382 = vpop.f32.mrf.mxu0
      %v1383 = vpop.f32.mrf.mxu0
      %v1384 = vadd.f32 0.0, %v1383
      %v1385 = vpop.f32.mrf.mxu0
      %1386 = vmatprep.mubr.bf16.mxu0 0
      %1387 = vmatmul.mubr.bf16.gmra.mxu0 %v1263
      %v1388 = vpop.f32.mrf.mxu0
      %v1389 = vadd.f32 0.0, %v1388
      %v1390 = vpop.f32.mrf.mxu0
      %v1391 = vpop.f32.mrf.mxu0
      %v1392 = vadd.f32 0.0, %v1391
      %v1393 = vpop.f32.mrf.mxu0
      %1394 = vmatprep.mubr.bf16.mxu0 0
      %1395 = vmatmul.mubr.bf16.gmra.mxu0 %v1266
      %v1396 = vpop.f32.mrf.mxu0
      %v1397 = vadd.f32 0.0, %v1396
      %v1398 = vpop.f32.mrf.mxu0
      %v1399 = vpop.f32.mrf.mxu0
      %v1400 = vadd.f32 0.0, %v1399
      %v1401 = vpop.f32.mrf.mxu0
      %1402 = vmatprep.mubr.bf16.mxu0 0
      %1403 = vmatmul.mubr.bf16.gmra.mxu0 %v1269
      %v1404 = vpop.f32.mrf.mxu0
      %v1405 = vadd.f32 0.0, %v1404
      %v1406 = vpop.f32.mrf.mxu0
      %v1407 = vpop.f32.mrf.mxu0
      %v1408 = vadd.f32 0.0, %v1407
      %v1409 = vpop.f32.mrf.mxu0
      %1410 = vmatprep.mubr.bf16.mxu0 0
      %1411 = vmatmul.mubr.bf16.gmra.mxu0 %v1272
      %v1412 = vpop.f32.mrf.mxu0
      %v1413 = vadd.f32 0.0, %v1412
      %v1414 = vpop.f32.mrf.mxu0
      %v1415 = vpop.f32.mrf.mxu0
      %v1416 = vadd.f32 0.0, %v1415
      %v1417 = vpop.f32.mrf.mxu0
      %1418 = vmatprep.mubr.bf16.mxu0 0
      %1419 = vmatmul.mubr.bf16.gmra.mxu0 %v1275
      %v1420 = vpop.f32.mrf.mxu0
      %v1421 = vadd.f32 0.0, %v1420
      %v1422 = vpop.f32.mrf.mxu0
      %v1423 = vpop.f32.mrf.mxu0
      %v1424 = vadd.f32 0.0, %v1423
      %v1425 = vpop.f32.mrf.mxu0
      %1426 = vmatprep.mubr.bf16.mxu0 0
      %1427 = vmatmul.mubr.bf16.gmra.mxu0 %v1278
      %v1428 = vpop.f32.mrf.mxu0
      %v1429 = vadd.f32 0.0, %v1428
      %v1430 = vpop.f32.mrf.mxu0
      %v1431 = vpop.f32.mrf.mxu0
      %v1432 = vadd.f32 0.0, %v1431
      %v1433 = vpop.f32.mrf.mxu0
      %1434 = vmatprep.mubr.bf16.mxu0 0
      %1435 = vmatmul.mubr.bf16.gmra.mxu0 %v1281
      %v1436 = vpop.f32.mrf.mxu0
      %v1437 = vadd.f32 0.0, %v1436
      %v1438 = vpop.f32.mrf.mxu0
      %v1439 = vpop.f32.mrf.mxu0
      %v1440 = vadd.f32 0.0, %v1439
      %v1441 = vpop.f32.mrf.mxu0
      %1442 = vmatprep.mubr.bf16.mxu0 0
      %1443 = vmatmul.mubr.bf16.gmra.mxu0 %v1284
      %v1444 = vpop.f32.mrf.mxu0
      %v1445 = vadd.f32 0.0, %v1444
      %v1446 = vpop.f32.mrf.mxu0
      %v1447 = vpop.f32.mrf.mxu0
      %v1448 = vadd.f32 0.0, %v1447
      %v1449 = vpop.f32.mrf.mxu0
      %1450 = vdwg.mxu0
      %v1483 = vunpack.c.l.b16 %v742
      %v1484 = vunpack.c.l.b16 %v743
      %v1485 = vunpack.c.l.b16 %v745
      %v1486 = vunpack.c.l.b16 %v746
      %v1487 = vunpack.c.l.b16 %v748
      %v1488 = vunpack.c.l.b16 %v749
      %v1489 = vunpack.c.l.b16 %v751
      %v1490 = vunpack.c.l.b16 %v752
      %v1491 = vunpack.c.l.b16 %v754
      %v1492 = vunpack.c.l.b16 %v755
      %v1493 = vunpack.c.l.b16 %v757
      %v1494 = vunpack.c.l.b16 %v758
      %v1495 = vunpack.c.l.b16 %v760
      %v1496 = vunpack.c.l.b16 %v761
      %v1497 = vunpack.c.l.b16 %v763
      %v1498 = vunpack.c.l.b16 %v764
      %v1499 = vunpack.c.l.b16 %v766
      %v1500 = vunpack.c.l.b16 %v767
      %v1501 = vunpack.c.l.b16 %v769
      %v1502 = vunpack.c.l.b16 %v770
      %v1503 = vunpack.c.l.b16 %v772
      %v1504 = vunpack.c.l.b16 %v773
      %v1505 = vunpack.c.l.b16 %v775
      %v1506 = vunpack.c.l.b16 %v776
      %v1507 = vunpack.c.l.b16 %v778
      %v1508 = vunpack.c.l.b16 %v779
      %v1509 = vunpack.c.l.b16 %v781
      %v1510 = vunpack.c.l.b16 %v782
      %v1511 = vunpack.c.l.b16 %v784
      %v1512 = vunpack.c.l.b16 %v785
      %v1513 = vunpack.c.l.b16 %v787
      %v1514 = vunpack.c.l.b16 %v788
      %v1515 = vpack.c.b16 %v1484, %v1483
      %v1516 = vpack.c.b16 %v1486, %v1485
      %v1517 = vpack.c.b16 %v1488, %v1487
      %v1518 = vpack.c.b16 %v1490, %v1489
      %v1519 = vpack.c.b16 %v1492, %v1491
      %v1520 = vpack.c.b16 %v1494, %v1493
      %v1521 = vpack.c.b16 %v1496, %v1495
      %v1522 = vpack.c.b16 %v1498, %v1497
      %v1523 = vpack.c.b16 %v1500, %v1499
      %v1524 = vpack.c.b16 %v1502, %v1501
      %v1525 = vpack.c.b16 %v1504, %v1503
      %v1526 = vpack.c.b16 %v1506, %v1505
      %v1527 = vpack.c.b16 %v1508, %v1507
      %v1528 = vpack.c.b16 %v1510, %v1509
      %v1529 = vpack.c.b16 %v1512, %v1511
      %v1530 = vpack.c.b16 %v1514, %v1513
      %v1532 = vsel %vm1237, %v1515, 0
      %v1535 = vsel %vm1237, %v1516, 0
      %v1538 = vsel %vm1237, %v1517, 0
      %v1541 = vsel %vm1237, %v1518, 0
      %v1544 = vsel %vm1237, %v1519, 0
      %v1547 = vsel %vm1237, %v1520, 0
      %v1550 = vsel %vm1237, %v1521, 0
      %v1553 = vsel %vm1237, %v1522, 0
      %v1556 = vsel %vm1237, %v1523, 0
      %v1559 = vsel %vm1237, %v1524, 0
      %v1562 = vsel %vm1237, %v1525, 0
      %v1565 = vsel %vm1237, %v1526, 0
      %v1568 = vsel %vm1237, %v1527, 0
      %v1571 = vsel %vm1237, %v1528, 0
      %v1574 = vsel %vm1237, %v1529, 0
      %v1577 = vsel %vm1237, %v1530, 0
      %v1580 = vsel %vm1286, %v796, 0
      %1582 = vmatprep.subr.bf16.mxu0 0
      %1583 = vmatpush1.bf16.msra.mxu0 0
      %1584 = vmatprep.subr.bf16.mxu0 0
      %1585 = vmatpush1.bf16.msra.mxu0 0
      %1586 = vmatprep.subr.bf16.mxu0 0
      %1587 = vmatpush1.bf16.msra.mxu0 0
      %1588 = vmatprep.subr.bf16.mxu0 0
      %1589 = vmatpush1.bf16.msra.mxu0 0
      %1590 = vmatprep.subr.bf16.mxu0 0
      %1591 = vmatpush1.bf16.msra.mxu0 0
      %1592 = vmatprep.subr.bf16.mxu0 0
      %1593 = vmatpush1.bf16.msra.mxu0 0
      %1594 = vmatprep.subr.bf16.mxu0 0
      %1595 = vmatpush1.bf16.msra.mxu0 0
      %1596 = vmatprep.subr.bf16.mxu0 0
      %1597 = vmatpush1.bf16.msra.mxu0 %v1580
      %1598 = vmatprep.subr.bf16.mxu0 0
      %1599 = vmatpush2.bf16.msra.mxu0 0
      %1600 = vmatprep.subr.bf16.mxu0 0
      %1601 = vmatpush2.bf16.msra.mxu0 0
      %1602 = vmatprep.subr.bf16.mxu0 0
      %1603 = vmatpush2.bf16.msra.mxu0 0
      %1604 = vmatprep.subr.bf16.mxu0 0
      %1605 = vmatpush2.bf16.msra.mxu0 0
      %1606 = vmatprep.subr.bf16.mxu0 0
      %1607 = vmatpush2.bf16.msra.mxu0 0
      %1608 = vmatprep.subr.bf16.mxu0 0
      %1609 = vmatpush2.bf16.msra.mxu0 0
      %1610 = vmatprep.subr.bf16.mxu0 0
      %1611 = vmatpush2.bf16.msra.mxu0 0
      %1612 = vmatprep.subr.bf16.mxu0 0
      %1613 = vmatpush2.bf16.msra.mxu0 0
      %1614 = vmatprep.mubr.bf16.mxu0 0
      %1615 = vmatmul.mubr.bf16.gmra.mxu0 %v1532
      %v1616 = vpop.f32.mrf.mxu0
      %v1617 = vadd.f32 %v1325, %v1616
      %v1618 = vpop.f32.mrf.mxu0
      %v1619 = vpop.f32.mrf.mxu0
      %v1620 = vadd.f32 %v1328, %v1619
      %v1621 = vpop.f32.mrf.mxu0
      %1622 = vmatprep.mubr.bf16.mxu0 0
      %1623 = vmatmul.mubr.bf16.gmra.mxu0 %v1535
      %v1624 = vpop.f32.mrf.mxu0
      %v1625 = vadd.f32 %v1333, %v1624
      %v1626 = vpop.f32.mrf.mxu0
      %v1627 = vpop.f32.mrf.mxu0
      %v1628 = vadd.f32 %v1336, %v1627
      %v1629 = vpop.f32.mrf.mxu0
      %1630 = vmatprep.mubr.bf16.mxu0 0
      %1631 = vmatmul.mubr.bf16.gmra.mxu0 %v1538
      %v1632 = vpop.f32.mrf.mxu0
      %v1633 = vadd.f32 %v1341, %v1632
      %v1634 = vpop.f32.mrf.mxu0
      %v1635 = vpop.f32.mrf.mxu0
      %v1636 = vadd.f32 %v1344, %v1635
      %v1637 = vpop.f32.mrf.mxu0
      %1638 = vmatprep.mubr.bf16.mxu0 0
      %1639 = vmatmul.mubr.bf16.gmra.mxu0 %v1541
      %v1640 = vpop.f32.mrf.mxu0
      %v1641 = vadd.f32 %v1349, %v1640
      %v1642 = vpop.f32.mrf.mxu0
      %v1643 = vpop.f32.mrf.mxu0
      %v1644 = vadd.f32 %v1352, %v1643
      %v1645 = vpop.f32.mrf.mxu0
      %1646 = vmatprep.mubr.bf16.mxu0 0
      %1647 = vmatmul.mubr.bf16.gmra.mxu0 %v1544
      %v1648 = vpop.f32.mrf.mxu0
      %v1649 = vadd.f32 %v1357, %v1648
      %v1650 = vpop.f32.mrf.mxu0
      %v1651 = vpop.f32.mrf.mxu0
      %v1652 = vadd.f32 %v1360, %v1651
      %v1653 = vpop.f32.mrf.mxu0
      %1654 = vmatprep.mubr.bf16.mxu0 0
      %1655 = vmatmul.mubr.bf16.gmra.mxu0 %v1547
      %v1656 = vpop.f32.mrf.mxu0
      %v1657 = vadd.f32 %v1365, %v1656
      %v1658 = vpop.f32.mrf.mxu0
      %v1659 = vpop.f32.mrf.mxu0
      %v1660 = vadd.f32 %v1368, %v1659
      %v1661 = vpop.f32.mrf.mxu0
      %1662 = vmatprep.mubr.bf16.mxu0 0
      %1663 = vmatmul.mubr.bf16.gmra.mxu0 %v1550
      %v1664 = vpop.f32.mrf.mxu0
      %v1665 = vadd.f32 %v1373, %v1664
      %v1666 = vpop.f32.mrf.mxu0
      %v1667 = vpop.f32.mrf.mxu0
      %v1668 = vadd.f32 %v1376, %v1667
      %v1669 = vpop.f32.mrf.mxu0
      %1670 = vmatprep.mubr.bf16.mxu0 0
      %1671 = vmatmul.mubr.bf16.gmra.mxu0 %v1553
      %v1672 = vpop.f32.mrf.mxu0
      %v1673 = vadd.f32 %v1381, %v1672
      %v1674 = vpop.f32.mrf.mxu0
      %v1675 = vpop.f32.mrf.mxu0
      %v1676 = vadd.f32 %v1384, %v1675
      %v1677 = vpop.f32.mrf.mxu0
      %1678 = vmatprep.mubr.bf16.mxu0 0
      %1679 = vmatmul.mubr.bf16.gmra.mxu0 %v1556
      %v1680 = vpop.f32.mrf.mxu0
      %v1681 = vadd.f32 %v1389, %v1680
      %v1682 = vpop.f32.mrf.mxu0
      %v1683 = vpop.f32.mrf.mxu0
      %v1684 = vadd.f32 %v1392, %v1683
      %v1685 = vpop.f32.mrf.mxu0
      %1686 = vmatprep.mubr.bf16.mxu0 0
      %1687 = vmatmul.mubr.bf16.gmra.mxu0 %v1559
      %v1688 = vpop.f32.mrf.mxu0
      %v1689 = vadd.f32 %v1397, %v1688
      %v1690 = vpop.f32.mrf.mxu0
      %v1691 = vpop.f32.mrf.mxu0
      %v1692 = vadd.f32 %v1400, %v1691
      %v1693 = vpop.f32.mrf.mxu0
      %1694 = vmatprep.mubr.bf16.mxu0 0
      %1695 = vmatmul.mubr.bf16.gmra.mxu0 %v1562
      %v1696 = vpop.f32.mrf.mxu0
      %v1697 = vadd.f32 %v1405, %v1696
      %v1698 = vpop.f32.mrf.mxu0
      %v1699 = vpop.f32.mrf.mxu0
      %v1700 = vadd.f32 %v1408, %v1699
      %v1701 = vpop.f32.mrf.mxu0
      %1702 = vmatprep.mubr.bf16.mxu0 0
      %1703 = vmatmul.mubr.bf16.gmra.mxu0 %v1565
      %v1704 = vpop.f32.mrf.mxu0
      %v1705 = vadd.f32 %v1413, %v1704
      %v1706 = vpop.f32.mrf.mxu0
      %v1707 = vpop.f32.mrf.mxu0
      %v1708 = vadd.f32 %v1416, %v1707
      %v1709 = vpop.f32.mrf.mxu0
      %1710 = vmatprep.mubr.bf16.mxu0 0
      %1711 = vmatmul.mubr.bf16.gmra.mxu0 %v1568
      %v1712 = vpop.f32.mrf.mxu0
      %v1713 = vadd.f32 %v1421, %v1712
      %v1714 = vpop.f32.mrf.mxu0
      %v1715 = vpop.f32.mrf.mxu0
      %v1716 = vadd.f32 %v1424, %v1715
      %v1717 = vpop.f32.mrf.mxu0
      %1718 = vmatprep.mubr.bf16.mxu0 0
      %1719 = vmatmul.mubr.bf16.gmra.mxu0 %v1571
      %v1720 = vpop.f32.mrf.mxu0
      %v1721 = vadd.f32 %v1429, %v1720
      %v1722 = vpop.f32.mrf.mxu0
      %v1723 = vpop.f32.mrf.mxu0
      %v1724 = vadd.f32 %v1432, %v1723
      %v1725 = vpop.f32.mrf.mxu0
      %1726 = vmatprep.mubr.bf16.mxu0 0
      %1727 = vmatmul.mubr.bf16.gmra.mxu0 %v1574
      %v1728 = vpop.f32.mrf.mxu0
      %v1729 = vadd.f32 %v1437, %v1728
      %v1730 = vpop.f32.mrf.mxu0
      %v1731 = vpop.f32.mrf.mxu0
      %v1732 = vadd.f32 %v1440, %v1731
      %v1733 = vpop.f32.mrf.mxu0
      %1734 = vmatprep.mubr.bf16.mxu0 0
      %1735 = vmatmul.mubr.bf16.gmra.mxu0 %v1577
      %v1736 = vpop.f32.mrf.mxu0
      %v1737 = vadd.f32 %v1445, %v1736
      %v1738 = vpop.f32.mrf.mxu0
      %v1739 = vpop.f32.mrf.mxu0
      %v1740 = vadd.f32 %v1448, %v1739
      %v1741 = vpop.f32.mrf.mxu0
      %1742 = vdwg.mxu0
      %vm1759 = vcmask 1042432
      %vm1760 = vcmask 1046532
      %vm1761 = vmor %vm1759, %vm1760
      %v1762 = vrot.slane %v742, 5
      %v1763 = vrot.slane %v1762, 4
      %v1764 = vrot.slane %v743, 5
      %v1765 = vsel %vm1761, %v1763, %v1764
      %v1766 = vrot.slane %v1764, 4
      %v1767 = vrot.slane %v744, 5
      %v1768 = vsel %vm1761, %v1766, %v1767
      %v1769 = vrot.slane %v745, 5
      %v1770 = vrot.slane %v1769, 4
      %v1771 = vrot.slane %v746, 5
      %v1772 = vsel %vm1761, %v1770, %v1771
      %v1773 = vrot.slane %v1771, 4
      %v1774 = vrot.slane %v747, 5
      %v1775 = vsel %vm1761, %v1773, %v1774
      %v1776 = vrot.slane %v748, 5
      %v1777 = vrot.slane %v1776, 4
      %v1778 = vrot.slane %v749, 5
      %v1779 = vsel %vm1761, %v1777, %v1778
      %v1780 = vrot.slane %v1778, 4
      %v1781 = vrot.slane %v750, 5
      %v1782 = vsel %vm1761, %v1780, %v1781
      %v1783 = vrot.slane %v751, 5
      %v1784 = vrot.slane %v1783, 4
      %v1785 = vrot.slane %v752, 5
      %v1786 = vsel %vm1761, %v1784, %v1785
      %v1787 = vrot.slane %v1785, 4
      %v1788 = vrot.slane %v753, 5
      %v1789 = vsel %vm1761, %v1787, %v1788
      %v1790 = vrot.slane %v754, 5
      %v1791 = vrot.slane %v1790, 4
      %v1792 = vrot.slane %v755, 5
      %v1793 = vsel %vm1761, %v1791, %v1792
      %v1794 = vrot.slane %v1792, 4
      %v1795 = vrot.slane %v756, 5
      %v1796 = vsel %vm1761, %v1794, %v1795
      %v1797 = vrot.slane %v757, 5
      %v1798 = vrot.slane %v1797, 4
      %v1799 = vrot.slane %v758, 5
      %v1800 = vsel %vm1761, %v1798, %v1799
      %v1801 = vrot.slane %v1799, 4
      %v1802 = vrot.slane %v759, 5
      %v1803 = vsel %vm1761, %v1801, %v1802
      %v1804 = vrot.slane %v760, 5
      %v1805 = vrot.slane %v1804, 4
      %v1806 = vrot.slane %v761, 5
      %v1807 = vsel %vm1761, %v1805, %v1806
      %v1808 = vrot.slane %v1806, 4
      %v1809 = vrot.slane %v762, 5
      %v1810 = vsel %vm1761, %v1808, %v1809
      %v1811 = vrot.slane %v763, 5
      %v1812 = vrot.slane %v1811, 4
      %v1813 = vrot.slane %v764, 5
      %v1814 = vsel %vm1761, %v1812, %v1813
      %v1815 = vrot.slane %v1813, 4
      %v1816 = vrot.slane %v765, 5
      %v1817 = vsel %vm1761, %v1815, %v1816
      %v1818 = vrot.slane %v766, 5
      %v1819 = vrot.slane %v1818, 4
      %v1820 = vrot.slane %v767, 5
      %v1821 = vsel %vm1761, %v1819, %v1820
      %v1822 = vrot.slane %v1820, 4
      %v1823 = vrot.slane %v768, 5
      %v1824 = vsel %vm1761, %v1822, %v1823
      %v1825 = vrot.slane %v769, 5
      %v1826 = vrot.slane %v1825, 4
      %v1827 = vrot.slane %v770, 5
      %v1828 = vsel %vm1761, %v1826, %v1827
      %v1829 = vrot.slane %v1827, 4
      %v1830 = vrot.slane %v771, 5
      %v1831 = vsel %vm1761, %v1829, %v1830
      %v1832 = vrot.slane %v772, 5
      %v1833 = vrot.slane %v1832, 4
      %v1834 = vrot.slane %v773, 5
      %v1835 = vsel %vm1761, %v1833, %v1834
      %v1836 = vrot.slane %v1834, 4
      %v1837 = vrot.slane %v774, 5
      %v1838 = vsel %vm1761, %v1836, %v1837
      %v1839 = vrot.slane %v775, 5
      %v1840 = vrot.slane %v1839, 4
      %v1841 = vrot.slane %v776, 5
      %v1842 = vsel %vm1761, %v1840, %v1841
      %v1843 = vrot.slane %v1841, 4
      %v1844 = vrot.slane %v777, 5
      %v1845 = vsel %vm1761, %v1843, %v1844
      %v1846 = vrot.slane %v778, 5
      %v1847 = vrot.slane %v1846, 4
      %v1848 = vrot.slane %v779, 5
      %v1849 = vsel %vm1761, %v1847, %v1848
      %v1850 = vrot.slane %v1848, 4
      %v1851 = vrot.slane %v780, 5
      %v1852 = vsel %vm1761, %v1850, %v1851
      %v1853 = vrot.slane %v781, 5
      %v1854 = vrot.slane %v1853, 4
      %v1855 = vrot.slane %v782, 5
      %v1856 = vsel %vm1761, %v1854, %v1855
      %v1857 = vrot.slane %v1855, 4
      %v1858 = vrot.slane %v783, 5
      %v1859 = vsel %vm1761, %v1857, %v1858
      %v1860 = vrot.slane %v784, 5
      %v1861 = vrot.slane %v1860, 4
      %v1862 = vrot.slane %v785, 5
      %v1863 = vsel %vm1761, %v1861, %v1862
      %v1864 = vrot.slane %v1862, 4
      %v1865 = vrot.slane %v786, 5
      %v1866 = vsel %vm1761, %v1864, %v1865
      %v1867 = vrot.slane %v787, 5
      %v1868 = vrot.slane %v1867, 4
      %v1869 = vrot.slane %v788, 5
      %v1870 = vsel %vm1761, %v1868, %v1869
      %v1871 = vrot.slane %v1869, 4
      %v1872 = vrot.slane %v789, 5
      %v1873 = vsel %vm1761, %v1871, %v1872
      %v1874 = vld [vmem:[%s1 + $0x4] sm:$0x3]
      %v1875 = vunpack.c.l.b16 %v1765
      %v1876 = vunpack.c.l.b16 %v1768
      %v1877 = vunpack.c.l.b16 %v1772
      %v1878 = vunpack.c.l.b16 %v1775
      %v1879 = vunpack.c.l.b16 %v1779
      %v1880 = vunpack.c.l.b16 %v1782
      %v1881 = vunpack.c.l.b16 %v1786
      %v1882 = vunpack.c.l.b16 %v1789
      %v1883 = vunpack.c.l.b16 %v1793
      %v1884 = vunpack.c.l.b16 %v1796
      %v1885 = vunpack.c.l.b16 %v1800
      %v1886 = vunpack.c.l.b16 %v1803
      %v1887 = vunpack.c.l.b16 %v1807
      %v1888 = vunpack.c.l.b16 %v1810
      %v1889 = vunpack.c.l.b16 %v1814
      %v1890 = vunpack.c.l.b16 %v1817
      %v1891 = vunpack.c.l.b16 %v1821
      %v1892 = vunpack.c.l.b16 %v1824
      %v1893 = vunpack.c.l.b16 %v1828
      %v1894 = vunpack.c.l.b16 %v1831
      %v1895 = vunpack.c.l.b16 %v1835
      %v1896 = vunpack.c.l.b16 %v1838
      %v1897 = vunpack.c.l.b16 %v1842
      %v1898 = vunpack.c.l.b16 %v1845
      %v1899 = vunpack.c.l.b16 %v1849
      %v1900 = vunpack.c.l.b16 %v1852
      %v1901 = vunpack.c.l.b16 %v1856
      %v1902 = vunpack.c.l.b16 %v1859
      %v1903 = vunpack.c.l.b16 %v1863
      %v1904 = vunpack.c.l.b16 %v1866
      %v1905 = vunpack.c.l.b16 %v1870
      %v1906 = vunpack.c.l.b16 %v1873
      %v1907 = vpack.c.b16 %v1876, %v1875
      %v1908 = vpack.c.b16 %v1878, %v1877
      %v1909 = vpack.c.b16 %v1880, %v1879
      %v1910 = vpack.c.b16 %v1882, %v1881
      %v1911 = vpack.c.b16 %v1884, %v1883
      %v1912 = vpack.c.b16 %v1886, %v1885
      %v1913 = vpack.c.b16 %v1888, %v1887
      %v1914 = vpack.c.b16 %v1890, %v1889
      %v1915 = vpack.c.b16 %v1892, %v1891
      %v1916 = vpack.c.b16 %v1894, %v1893
      %v1917 = vpack.c.b16 %v1896, %v1895
      %v1918 = vpack.c.b16 %v1898, %v1897
      %v1919 = vpack.c.b16 %v1900, %v1899
      %v1920 = vpack.c.b16 %v1902, %v1901
      %v1921 = vpack.c.b16 %v1904, %v1903
      %v1922 = vpack.c.b16 %v1906, %v1905
      %v1924 = vsel %vm1237, %v1907, 0
      %v1927 = vsel %vm1237, %v1908, 0
      %v1930 = vsel %vm1237, %v1909, 0
      %v1933 = vsel %vm1237, %v1910, 0
      %v1936 = vsel %vm1237, %v1911, 0
      %v1939 = vsel %vm1237, %v1912, 0
      %v1942 = vsel %vm1237, %v1913, 0
      %v1945 = vsel %vm1237, %v1914, 0
      %v1948 = vsel %vm1237, %v1915, 0
      %v1951 = vsel %vm1237, %v1916, 0
      %v1954 = vsel %vm1237, %v1917, 0
      %v1957 = vsel %vm1237, %v1918, 0
      %v1960 = vsel %vm1237, %v1919, 0
      %v1963 = vsel %vm1237, %v1920, 0
      %v1966 = vsel %vm1237, %v1921, 0
      %v1969 = vsel %vm1237, %v1922, 0
      %v1972 = vsel %vm1286, %v1874, 0
      %1974 = vmatprep.subr.bf16.mxu0 0
      %1975 = vmatpush1.bf16.msra.mxu0 0
      %1976 = vmatprep.subr.bf16.mxu0 0
      %1977 = vmatpush1.bf16.msra.mxu0 0
      %1978 = vmatprep.subr.bf16.mxu0 0
      %1979 = vmatpush1.bf16.msra.mxu0 0
      %1980 = vmatprep.subr.bf16.mxu0 0
      %1981 = vmatpush1.bf16.msra.mxu0 0
      %1982 = vmatprep.subr.bf16.mxu0 0
      %1983 = vmatpush1.bf16.msra.mxu0 0
      %1984 = vmatprep.subr.bf16.mxu0 0
      %1985 = vmatpush1.bf16.msra.mxu0 0
      %1986 = vmatprep.subr.bf16.mxu0 0
      %1987 = vmatpush1.bf16.msra.mxu0 0
      %1988 = vmatprep.subr.bf16.mxu0 0
      %1989 = vmatpush1.bf16.msra.mxu0 %v1972
      %1990 = vmatprep.subr.bf16.mxu0 0
      %1991 = vmatpush2.bf16.msra.mxu0 0
      %1992 = vmatprep.subr.bf16.mxu0 0
      %1993 = vmatpush2.bf16.msra.mxu0 0
      %1994 = vmatprep.subr.bf16.mxu0 0
      %1995 = vmatpush2.bf16.msra.mxu0 0
      %1996 = vmatprep.subr.bf16.mxu0 0
      %1997 = vmatpush2.bf16.msra.mxu0 0
      %1998 = vmatprep.subr.bf16.mxu0 0
      %1999 = vmatpush2.bf16.msra.mxu0 0
      %2000 = vmatprep.subr.bf16.mxu0 0
      %2001 = vmatpush2.bf16.msra.mxu0 0
      %2002 = vmatprep.subr.bf16.mxu0 0
      %2003 = vmatpush2.bf16.msra.mxu0 0
      %2004 = vmatprep.subr.bf16.mxu0 0
      %2005 = vmatpush2.bf16.msra.mxu0 0
      %2006 = vmatprep.mubr.bf16.mxu0 0
      %2007 = vmatmul.mubr.bf16.gmra.mxu0 %v1924
      %v2008 = vpop.f32.mrf.mxu0
      %v2009 = vadd.f32 0.0, %v2008
      %v2010 = vpop.f32.mrf.mxu0
      %v2011 = vpop.f32.mrf.mxu0
      %v2012 = vadd.f32 0.0, %v2011
      %v2013 = vpop.f32.mrf.mxu0
      %2014 = vmatprep.mubr.bf16.mxu0 0
      %2015 = vmatmul.mubr.bf16.gmra.mxu0 %v1927
      %v2016 = vpop.f32.mrf.mxu0
      %v2017 = vadd.f32 0.0, %v2016
      %v2018 = vpop.f32.mrf.mxu0
      %v2019 = vpop.f32.mrf.mxu0
      %v2020 = vadd.f32 0.0, %v2019
      %v2021 = vpop.f32.mrf.mxu0
      %2022 = vmatprep.mubr.bf16.mxu0 0
      %2023 = vmatmul.mubr.bf16.gmra.mxu0 %v1930
      %v2024 = vpop.f32.mrf.mxu0
      %v2025 = vadd.f32 0.0, %v2024
      %v2026 = vpop.f32.mrf.mxu0
      %v2027 = vpop.f32.mrf.mxu0
      %v2028 = vadd.f32 0.0, %v2027
      %v2029 = vpop.f32.mrf.mxu0
      %2030 = vmatprep.mubr.bf16.mxu0 0
      %2031 = vmatmul.mubr.bf16.gmra.mxu0 %v1933
      %v2032 = vpop.f32.mrf.mxu0
      %v2033 = vadd.f32 0.0, %v2032
      %v2034 = vpop.f32.mrf.mxu0
      %v2035 = vpop.f32.mrf.mxu0
      %v2036 = vadd.f32 0.0, %v2035
      %v2037 = vpop.f32.mrf.mxu0
      %2038 = vmatprep.mubr.bf16.mxu0 0
      %2039 = vmatmul.mubr.bf16.gmra.mxu0 %v1936
      %v2040 = vpop.f32.mrf.mxu0
      %v2041 = vadd.f32 0.0, %v2040
      %v2042 = vpop.f32.mrf.mxu0
      %v2043 = vpop.f32.mrf.mxu0
      %v2044 = vadd.f32 0.0, %v2043
      %v2045 = vpop.f32.mrf.mxu0
      %2046 = vmatprep.mubr.bf16.mxu0 0
      %2047 = vmatmul.mubr.bf16.gmra.mxu0 %v1939
      %v2048 = vpop.f32.mrf.mxu0
      %v2049 = vadd.f32 0.0, %v2048
      %v2050 = vpop.f32.mrf.mxu0
      %v2051 = vpop.f32.mrf.mxu0
      %v2052 = vadd.f32 0.0, %v2051
      %v2053 = vpop.f32.mrf.mxu0
      %2054 = vmatprep.mubr.bf16.mxu0 0
      %2055 = vmatmul.mubr.bf16.gmra.mxu0 %v1942
      %v2056 = vpop.f32.mrf.mxu0
      %v2057 = vadd.f32 0.0, %v2056
      %v2058 = vpop.f32.mrf.mxu0
      %v2059 = vpop.f32.mrf.mxu0
      %v2060 = vadd.f32 0.0, %v2059
      %v2061 = vpop.f32.mrf.mxu0
      %2062 = vmatprep.mubr.bf16.mxu0 0
      %2063 = vmatmul.mubr.bf16.gmra.mxu0 %v1945
      %v2064 = vpop.f32.mrf.mxu0
      %v2065 = vadd.f32 0.0, %v2064
      %v2066 = vpop.f32.mrf.mxu0
      %v2067 = vpop.f32.mrf.mxu0
      %v2068 = vadd.f32 0.0, %v2067
      %v2069 = vpop.f32.mrf.mxu0
      %2070 = vmatprep.mubr.bf16.mxu0 0
      %2071 = vmatmul.mubr.bf16.gmra.mxu0 %v1948
      %v2072 = vpop.f32.mrf.mxu0
      %v2073 = vadd.f32 0.0, %v2072
      %v2074 = vpop.f32.mrf.mxu0
      %v2075 = vpop.f32.mrf.mxu0
      %v2076 = vadd.f32 0.0, %v2075
      %v2077 = vpop.f32.mrf.mxu0
      %2078 = vmatprep.mubr.bf16.mxu0 0
      %2079 = vmatmul.mubr.bf16.gmra.mxu0 %v1951
      %v2080 = vpop.f32.mrf.mxu0
      %v2081 = vadd.f32 0.0, %v2080
      %v2082 = vpop.f32.mrf.mxu0
      %v2083 = vpop.f32.mrf.mxu0
      %v2084 = vadd.f32 0.0, %v2083
      %v2085 = vpop.f32.mrf.mxu0
      %2086 = vmatprep.mubr.bf16.mxu0 0
      %2087 = vmatmul.mubr.bf16.gmra.mxu0 %v1954
      %v2088 = vpop.f32.mrf.mxu0
      %v2089 = vadd.f32 0.0, %v2088
      %v2090 = vpop.f32.mrf.mxu0
      %v2091 = vpop.f32.mrf.mxu0
      %v2092 = vadd.f32 0.0, %v2091
      %v2093 = vpop.f32.mrf.mxu0
      %2094 = vmatprep.mubr.bf16.mxu0 0
      %2095 = vmatmul.mubr.bf16.gmra.mxu0 %v1957
      %v2096 = vpop.f32.mrf.mxu0
      %v2097 = vadd.f32 0.0, %v2096
      %v2098 = vpop.f32.mrf.mxu0
      %v2099 = vpop.f32.mrf.mxu0
      %v2100 = vadd.f32 0.0, %v2099
      %v2101 = vpop.f32.mrf.mxu0
      %2102 = vmatprep.mubr.bf16.mxu0 0
      %2103 = vmatmul.mubr.bf16.gmra.mxu0 %v1960
      %v2104 = vpop.f32.mrf.mxu0
      %v2105 = vadd.f32 0.0, %v2104
      %v2106 = vpop.f32.mrf.mxu0
      %v2107 = vpop.f32.mrf.mxu0
      %v2108 = vadd.f32 0.0, %v2107
      %v2109 = vpop.f32.mrf.mxu0
      %2110 = vmatprep.mubr.bf16.mxu0 0
      %2111 = vmatmul.mubr.bf16.gmra.mxu0 %v1963
      %v2112 = vpop.f32.mrf.mxu0
      %v2113 = vadd.f32 0.0, %v2112
      %v2114 = vpop.f32.mrf.mxu0
      %v2115 = vpop.f32.mrf.mxu0
      %v2116 = vadd.f32 0.0, %v2115
      %v2117 = vpop.f32.mrf.mxu0
      %2118 = vmatprep.mubr.bf16.mxu0 0
      %2119 = vmatmul.mubr.bf16.gmra.mxu0 %v1966
      %v2120 = vpop.f32.mrf.mxu0
      %v2121 = vadd.f32 0.0, %v2120
      %v2122 = vpop.f32.mrf.mxu0
      %v2123 = vpop.f32.mrf.mxu0
      %v2124 = vadd.f32 0.0, %v2123
      %v2125 = vpop.f32.mrf.mxu0
      %2126 = vmatprep.mubr.bf16.mxu0 0
      %2127 = vmatmul.mubr.bf16.gmra.mxu0 %v1969
      %v2128 = vpop.f32.mrf.mxu0
      %v2129 = vadd.f32 0.0, %v2128
      %v2130 = vpop.f32.mrf.mxu0
      %v2131 = vpop.f32.mrf.mxu0
      %v2132 = vadd.f32 0.0, %v2131
      %v2133 = vpop.f32.mrf.mxu0
      %2134 = vdwg.mxu0
      %v2135 = vadd.f32 %v1617, %v2009
      %v2136 = vadd.f32 %v1620, %v2012
      %v2137 = vadd.f32 %v1625, %v2017
      %v2138 = vadd.f32 %v1628, %v2020
      %v2139 = vadd.f32 %v1633, %v2025
      %v2140 = vadd.f32 %v1636, %v2028
      %v2141 = vadd.f32 %v1641, %v2033
      %v2142 = vadd.f32 %v1644, %v2036
      %v2143 = vadd.f32 %v1649, %v2041
      %v2144 = vadd.f32 %v1652, %v2044
      %v2145 = vadd.f32 %v1657, %v2049
      %v2146 = vadd.f32 %v1660, %v2052
      %v2147 = vadd.f32 %v1665, %v2057
      %v2148 = vadd.f32 %v1668, %v2060
      %v2149 = vadd.f32 %v1673, %v2065
      %v2150 = vadd.f32 %v1676, %v2068
      %v2151 = vadd.f32 %v1681, %v2073
      %v2152 = vadd.f32 %v1684, %v2076
      %v2153 = vadd.f32 %v1689, %v2081
      %v2154 = vadd.f32 %v1692, %v2084
      %v2155 = vadd.f32 %v1697, %v2089
      %v2156 = vadd.f32 %v1700, %v2092
      %v2157 = vadd.f32 %v1705, %v2097
      %v2158 = vadd.f32 %v1708, %v2100
      %v2159 = vadd.f32 %v1713, %v2105
      %v2160 = vadd.f32 %v1716, %v2108
      %v2161 = vadd.f32 %v1721, %v2113
      %v2162 = vadd.f32 %v1724, %v2116
      %v2163 = vadd.f32 %v1729, %v2121
      %v2164 = vadd.f32 %v1732, %v2124
      %v2165 = vadd.f32 %v1737, %v2129
      %v2166 = vadd.f32 %v1740, %v2132
      %v2167 = vld [vmem:[%s1 + $0x4] sm:$0xc]
      %v2170 = vunpack.c.l.b16 %v790
      %v2171 = vunpack.c.l.b16 %v791
      %v2172 = vpack.c.b16 %v2171, %v2170
      %v2174 = vunpack.c.l.b16 %v2167
      %v2175 = vpack.c.b16 %v2174, %v2174
      %v2176 = vrot.slane %v2175, 2
      %v2178 = vsel %vm1237, %v2172, 0
      %v2181 = vsel %vm1286, %v2176, 0
      %2183 = vmatprep.subr.bf16.mxu0 0
      %2184 = vmatpush1.bf16.msra.mxu0 0
      %2185 = vmatprep.subr.bf16.mxu0 0
      %2186 = vmatpush1.bf16.msra.mxu0 0
      %2187 = vmatprep.subr.bf16.mxu0 0
      %2188 = vmatpush1.bf16.msra.mxu0 0
      %2189 = vmatprep.subr.bf16.mxu0 0
      %2190 = vmatpush1.bf16.msra.mxu0 0
      %2191 = vmatprep.subr.bf16.mxu0 0
      %2192 = vmatpush1.bf16.msra.mxu0 0
      %2193 = vmatprep.subr.bf16.mxu0 0
      %2194 = vmatpush1.bf16.msra.mxu0 0
      %2195 = vmatprep.subr.bf16.mxu0 0
      %2196 = vmatpush1.bf16.msra.mxu0 0
      %2197 = vmatprep.subr.bf16.mxu0 0
      %2198 = vmatpush1.bf16.msra.mxu0 %v2181
      %2199 = vmatprep.subr.bf16.mxu0 0
      %2200 = vmatpush2.bf16.msra.mxu0 0
      %2201 = vmatprep.subr.bf16.mxu0 0
      %2202 = vmatpush2.bf16.msra.mxu0 0
      %2203 = vmatprep.subr.bf16.mxu0 0
      %2204 = vmatpush2.bf16.msra.mxu0 0
      %2205 = vmatprep.subr.bf16.mxu0 0
      %2206 = vmatpush2.bf16.msra.mxu0 0
      %2207 = vmatprep.subr.bf16.mxu0 0
      %2208 = vmatpush2.bf16.msra.mxu0 0
      %2209 = vmatprep.subr.bf16.mxu0 0
      %2210 = vmatpush2.bf16.msra.mxu0 0
      %2211 = vmatprep.subr.bf16.mxu0 0
      %2212 = vmatpush2.bf16.msra.mxu0 0
      %2213 = vmatprep.subr.bf16.mxu0 0
      %2214 = vmatpush2.bf16.msra.mxu0 0
      %2215 = vmatprep.mubr.bf16.mxu0 0
      %2216 = vmatmul.mubr.bf16.gmra.mxu0 %v1535
      %v2217 = vpop.f32.mrf.mxu0
      %v2218 = vadd.f32 0.0, %v2217
      %v2219 = vpop.f32.mrf.mxu0
      %v2220 = vpop.f32.mrf.mxu0
      %v2221 = vadd.f32 0.0, %v2220
      %v2222 = vpop.f32.mrf.mxu0
      %2223 = vmatprep.mubr.bf16.mxu0 0
      %2224 = vmatmul.mubr.bf16.gmra.mxu0 %v1538
      %v2225 = vpop.f32.mrf.mxu0
      %v2226 = vadd.f32 0.0, %v2225
      %v2227 = vpop.f32.mrf.mxu0
      %v2228 = vpop.f32.mrf.mxu0
      %v2229 = vadd.f32 0.0, %v2228
      %v2230 = vpop.f32.mrf.mxu0
      %2231 = vmatprep.mubr.bf16.mxu0 0
      %2232 = vmatmul.mubr.bf16.gmra.mxu0 %v1541
      %v2233 = vpop.f32.mrf.mxu0
      %v2234 = vadd.f32 0.0, %v2233
      %v2235 = vpop.f32.mrf.mxu0
      %v2236 = vpop.f32.mrf.mxu0
      %v2237 = vadd.f32 0.0, %v2236
      %v2238 = vpop.f32.mrf.mxu0
      %2239 = vmatprep.mubr.bf16.mxu0 0
      %2240 = vmatmul.mubr.bf16.gmra.mxu0 %v1544
      %v2241 = vpop.f32.mrf.mxu0
      %v2242 = vadd.f32 0.0, %v2241
      %v2243 = vpop.f32.mrf.mxu0
      %v2244 = vpop.f32.mrf.mxu0
      %v2245 = vadd.f32 0.0, %v2244
      %v2246 = vpop.f32.mrf.mxu0
      %2247 = vmatprep.mubr.bf16.mxu0 0
      %2248 = vmatmul.mubr.bf16.gmra.mxu0 %v1547
      %v2249 = vpop.f32.mrf.mxu0
      %v2250 = vadd.f32 0.0, %v2249
      %v2251 = vpop.f32.mrf.mxu0
      %v2252 = vpop.f32.mrf.mxu0
      %v2253 = vadd.f32 0.0, %v2252
      %v2254 = vpop.f32.mrf.mxu0
      %2255 = vmatprep.mubr.bf16.mxu0 0
      %2256 = vmatmul.mubr.bf16.gmra.mxu0 %v1550
      %v2257 = vpop.f32.mrf.mxu0
      %v2258 = vadd.f32 0.0, %v2257
      %v2259 = vpop.f32.mrf.mxu0
      %v2260 = vpop.f32.mrf.mxu0
      %v2261 = vadd.f32 0.0, %v2260
      %v2262 = vpop.f32.mrf.mxu0
      %2263 = vmatprep.mubr.bf16.mxu0 0
      %2264 = vmatmul.mubr.bf16.gmra.mxu0 %v1553
      %v2265 = vpop.f32.mrf.mxu0
      %v2266 = vadd.f32 0.0, %v2265
      %v2267 = vpop.f32.mrf.mxu0
      %v2268 = vpop.f32.mrf.mxu0
      %v2269 = vadd.f32 0.0, %v2268
      %v2270 = vpop.f32.mrf.mxu0
      %2271 = vmatprep.mubr.bf16.mxu0 0
      %2272 = vmatmul.mubr.bf16.gmra.mxu0 %v1556
      %v2273 = vpop.f32.mrf.mxu0
      %v2274 = vadd.f32 0.0, %v2273
      %v2275 = vpop.f32.mrf.mxu0
      %v2276 = vpop.f32.mrf.mxu0
      %v2277 = vadd.f32 0.0, %v2276
      %v2278 = vpop.f32.mrf.mxu0
      %2279 = vmatprep.mubr.bf16.mxu0 0
      %2280 = vmatmul.mubr.bf16.gmra.mxu0 %v1559
      %v2281 = vpop.f32.mrf.mxu0
      %v2282 = vadd.f32 0.0, %v2281
      %v2283 = vpop.f32.mrf.mxu0
      %v2284 = vpop.f32.mrf.mxu0
      %v2285 = vadd.f32 0.0, %v2284
      %v2286 = vpop.f32.mrf.mxu0
      %2287 = vmatprep.mubr.bf16.mxu0 0
      %2288 = vmatmul.mubr.bf16.gmra.mxu0 %v1562
      %v2289 = vpop.f32.mrf.mxu0
      %v2290 = vadd.f32 0.0, %v2289
      %v2291 = vpop.f32.mrf.mxu0
      %v2292 = vpop.f32.mrf.mxu0
      %v2293 = vadd.f32 0.0, %v2292
      %v2294 = vpop.f32.mrf.mxu0
      %2295 = vmatprep.mubr.bf16.mxu0 0
      %2296 = vmatmul.mubr.bf16.gmra.mxu0 %v1565
      %v2297 = vpop.f32.mrf.mxu0
      %v2298 = vadd.f32 0.0, %v2297
      %v2299 = vpop.f32.mrf.mxu0
      %v2300 = vpop.f32.mrf.mxu0
      %v2301 = vadd.f32 0.0, %v2300
      %v2302 = vpop.f32.mrf.mxu0
      %2303 = vmatprep.mubr.bf16.mxu0 0
      %2304 = vmatmul.mubr.bf16.gmra.mxu0 %v1568
      %v2305 = vpop.f32.mrf.mxu0
      %v2306 = vadd.f32 0.0, %v2305
      %v2307 = vpop.f32.mrf.mxu0
      %v2308 = vpop.f32.mrf.mxu0
      %v2309 = vadd.f32 0.0, %v2308
      %v2310 = vpop.f32.mrf.mxu0
      %2311 = vmatprep.mubr.bf16.mxu0 0
      %2312 = vmatmul.mubr.bf16.gmra.mxu0 %v1571
      %v2313 = vpop.f32.mrf.mxu0
      %v2314 = vadd.f32 0.0, %v2313
      %v2315 = vpop.f32.mrf.mxu0
      %v2316 = vpop.f32.mrf.mxu0
      %v2317 = vadd.f32 0.0, %v2316
      %v2318 = vpop.f32.mrf.mxu0
      %2319 = vmatprep.mubr.bf16.mxu0 0
      %2320 = vmatmul.mubr.bf16.gmra.mxu0 %v1574
      %v2321 = vpop.f32.mrf.mxu0
      %v2322 = vadd.f32 0.0, %v2321
      %v2323 = vpop.f32.mrf.mxu0
      %v2324 = vpop.f32.mrf.mxu0
      %v2325 = vadd.f32 0.0, %v2324
      %v2326 = vpop.f32.mrf.mxu0
      %2327 = vmatprep.mubr.bf16.mxu0 0
      %2328 = vmatmul.mubr.bf16.gmra.mxu0 %v1577
      %v2329 = vpop.f32.mrf.mxu0
      %v2330 = vadd.f32 0.0, %v2329
      %v2331 = vpop.f32.mrf.mxu0
      %v2332 = vpop.f32.mrf.mxu0
      %v2333 = vadd.f32 0.0, %v2332
      %v2334 = vpop.f32.mrf.mxu0
      %2335 = vmatprep.mubr.bf16.mxu0 0
      %2336 = vmatmul.mubr.bf16.gmra.mxu0 %v2178
      %v2337 = vpop.f32.mrf.mxu0
      %v2338 = vadd.f32 0.0, %v2337
      %v2339 = vpop.f32.mrf.mxu0
      %v2340 = vpop.f32.mrf.mxu0
      %v2341 = vadd.f32 0.0, %v2340
      %v2342 = vpop.f32.mrf.mxu0
      %2343 = vdwg.mxu0
      %v2344 = vadd.f32 %v2135, %v2218
      %v2345 = vadd.f32 %v2136, %v2221
      %v2346 = vadd.f32 %v2137, %v2226
      %v2347 = vadd.f32 %v2138, %v2229
      %v2348 = vadd.f32 %v2139, %v2234
      %v2349 = vadd.f32 %v2140, %v2237
      %v2350 = vadd.f32 %v2141, %v2242
      %v2351 = vadd.f32 %v2142, %v2245
      %v2352 = vadd.f32 %v2143, %v2250
      %v2353 = vadd.f32 %v2144, %v2253
      %v2354 = vadd.f32 %v2145, %v2258
      %v2355 = vadd.f32 %v2146, %v2261
      %v2356 = vadd.f32 %v2147, %v2266
      %v2357 = vadd.f32 %v2148, %v2269
      %v2358 = vadd.f32 %v2149, %v2274
      %v2359 = vadd.f32 %v2150, %v2277
      %v2360 = vadd.f32 %v2151, %v2282
      %v2361 = vadd.f32 %v2152, %v2285
      %v2362 = vadd.f32 %v2153, %v2290
      %v2363 = vadd.f32 %v2154, %v2293
      %v2364 = vadd.f32 %v2155, %v2298
      %v2365 = vadd.f32 %v2156, %v2301
      %v2366 = vadd.f32 %v2157, %v2306
      %v2367 = vadd.f32 %v2158, %v2309
      %v2368 = vadd.f32 %v2159, %v2314
      %v2369 = vadd.f32 %v2160, %v2317
      %v2370 = vadd.f32 %v2161, %v2322
      %v2371 = vadd.f32 %v2162, %v2325
      %v2372 = vadd.f32 %v2163, %v2330
      %v2373 = vadd.f32 %v2164, %v2333
      %v2374 = vadd.f32 %v2165, %v2338
      %v2375 = vadd.f32 %v2166, %v2341
      %v2377 = vshrl.u32 %v790, 16
      %v2379 = vrot.slane %v2377, 4
      %v2380 = vshll.u32 %v790, 16
      %v2382 = vrot.slane %v2380, 5
      %v2383 = vor.u32 %v2379, %v2382
      %v2384 = vrot.slane %v2383, 4
      %v2386 = vshll.u32 %v791, 16
      %v2388 = vrot.slane %v2386, 5
      %v2389 = vsel %vm799, %v2384, %v2388
      %v2390 = vshrl.u32 %v791, 16
      %v2392 = vrot.slane %v2390, 4
      %v2393 = vor.u32 %v2392, %v2388
      %v2394 = vrot.slane %v2393, 4
      %v2396 = vshll.u32 %v792, 16
      %v2398 = vrot.slane %v2396, 5
      %v2399 = vsel %vm799, %v2394, %v2398
      %v2400 = vld [vmem:[%s1 + $0x8] sm:$0x3]
      %v2401 = vunpack.c.l.b16 %v2389
      %v2402 = vunpack.c.l.b16 %v2399
      %v2403 = vpack.c.b16 %v2402, %v2401
      %v2405 = vsel %vm1237, %v2403, 0
      %v2408 = vsel %vm1286, %v2400, 0
      %2410 = vmatprep.subr.bf16.mxu0 0
      %2411 = vmatpush1.bf16.msra.mxu0 0
      %2412 = vmatprep.subr.bf16.mxu0 0
      %2413 = vmatpush1.bf16.msra.mxu0 0
      %2414 = vmatprep.subr.bf16.mxu0 0
      %2415 = vmatpush1.bf16.msra.mxu0 0
      %2416 = vmatprep.subr.bf16.mxu0 0
      %2417 = vmatpush1.bf16.msra.mxu0 0
      %2418 = vmatprep.subr.bf16.mxu0 0
      %2419 = vmatpush1.bf16.msra.mxu0 0
      %2420 = vmatprep.subr.bf16.mxu0 0
      %2421 = vmatpush1.bf16.msra.mxu0 0
      %2422 = vmatprep.subr.bf16.mxu0 0
      %2423 = vmatpush1.bf16.msra.mxu0 0
      %2424 = vmatprep.subr.bf16.mxu0 0
      %2425 = vmatpush1.bf16.msra.mxu0 %v2408
      %2426 = vmatprep.subr.bf16.mxu0 0
      %2427 = vmatpush2.bf16.msra.mxu0 0
      %2428 = vmatprep.subr.bf16.mxu0 0
      %2429 = vmatpush2.bf16.msra.mxu0 0
      %2430 = vmatprep.subr.bf16.mxu0 0
      %2431 = vmatpush2.bf16.msra.mxu0 0
      %2432 = vmatprep.subr.bf16.mxu0 0
      %2433 = vmatpush2.bf16.msra.mxu0 0
      %2434 = vmatprep.subr.bf16.mxu0 0
      %2435 = vmatpush2.bf16.msra.mxu0 0
      %2436 = vmatprep.subr.bf16.mxu0 0
      %2437 = vmatpush2.bf16.msra.mxu0 0
      %2438 = vmatprep.subr.bf16.mxu0 0
      %2439 = vmatpush2.bf16.msra.mxu0 0
      %2440 = vmatprep.subr.bf16.mxu0 0
      %2441 = vmatpush2.bf16.msra.mxu0 0
      %2442 = vmatprep.mubr.bf16.mxu0 0
      %2443 = vmatmul.mubr.bf16.gmra.mxu0 %v1242
      %v2444 = vpop.f32.mrf.mxu0
      %v2445 = vadd.f32 0.0, %v2444
      %v2446 = vpop.f32.mrf.mxu0
      %v2447 = vpop.f32.mrf.mxu0
      %v2448 = vadd.f32 0.0, %v2447
      %v2449 = vpop.f32.mrf.mxu0
      %2450 = vmatprep.mubr.bf16.mxu0 0
      %2451 = vmatmul.mubr.bf16.gmra.mxu0 %v1245
      %v2452 = vpop.f32.mrf.mxu0
      %v2453 = vadd.f32 0.0, %v2452
      %v2454 = vpop.f32.mrf.mxu0
      %v2455 = vpop.f32.mrf.mxu0
      %v2456 = vadd.f32 0.0, %v2455
      %v2457 = vpop.f32.mrf.mxu0
      %2458 = vmatprep.mubr.bf16.mxu0 0
      %2459 = vmatmul.mubr.bf16.gmra.mxu0 %v1248
      %v2460 = vpop.f32.mrf.mxu0
      %v2461 = vadd.f32 0.0, %v2460
      %v2462 = vpop.f32.mrf.mxu0
      %v2463 = vpop.f32.mrf.mxu0
      %v2464 = vadd.f32 0.0, %v2463
      %v2465 = vpop.f32.mrf.mxu0
      %2466 = vmatprep.mubr.bf16.mxu0 0
      %2467 = vmatmul.mubr.bf16.gmra.mxu0 %v1251
      %v2468 = vpop.f32.mrf.mxu0
      %v2469 = vadd.f32 0.0, %v2468
      %v2470 = vpop.f32.mrf.mxu0
      %v2471 = vpop.f32.mrf.mxu0
      %v2472 = vadd.f32 0.0, %v2471
      %v2473 = vpop.f32.mrf.mxu0
      %2474 = vmatprep.mubr.bf16.mxu0 0
      %2475 = vmatmul.mubr.bf16.gmra.mxu0 %v1254
      %v2476 = vpop.f32.mrf.mxu0
      %v2477 = vadd.f32 0.0, %v2476
      %v2478 = vpop.f32.mrf.mxu0
      %v2479 = vpop.f32.mrf.mxu0
      %v2480 = vadd.f32 0.0, %v2479
      %v2481 = vpop.f32.mrf.mxu0
      %2482 = vmatprep.mubr.bf16.mxu0 0
      %2483 = vmatmul.mubr.bf16.gmra.mxu0 %v1257
      %v2484 = vpop.f32.mrf.mxu0
      %v2485 = vadd.f32 0.0, %v2484
      %v2486 = vpop.f32.mrf.mxu0
      %v2487 = vpop.f32.mrf.mxu0
      %v2488 = vadd.f32 0.0, %v2487
      %v2489 = vpop.f32.mrf.mxu0
      %2490 = vmatprep.mubr.bf16.mxu0 0
      %2491 = vmatmul.mubr.bf16.gmra.mxu0 %v1260
      %v2492 = vpop.f32.mrf.mxu0
      %v2493 = vadd.f32 0.0, %v2492
      %v2494 = vpop.f32.mrf.mxu0
      %v2495 = vpop.f32.mrf.mxu0
      %v2496 = vadd.f32 0.0, %v2495
      %v2497 = vpop.f32.mrf.mxu0
      %2498 = vmatprep.mubr.bf16.mxu0 0
      %2499 = vmatmul.mubr.bf16.gmra.mxu0 %v1263
      %v2500 = vpop.f32.mrf.mxu0
      %v2501 = vadd.f32 0.0, %v2500
      %v2502 = vpop.f32.mrf.mxu0
      %v2503 = vpop.f32.mrf.mxu0
      %v2504 = vadd.f32 0.0, %v2503
      %v2505 = vpop.f32.mrf.mxu0
      %2506 = vmatprep.mubr.bf16.mxu0 0
      %2507 = vmatmul.mubr.bf16.gmra.mxu0 %v1266
      %v2508 = vpop.f32.mrf.mxu0
      %v2509 = vadd.f32 0.0, %v2508
      %v2510 = vpop.f32.mrf.mxu0
      %v2511 = vpop.f32.mrf.mxu0
      %v2512 = vadd.f32 0.0, %v2511
      %v2513 = vpop.f32.mrf.mxu0
      %2514 = vmatprep.mubr.bf16.mxu0 0
      %2515 = vmatmul.mubr.bf16.gmra.mxu0 %v1269
      %v2516 = vpop.f32.mrf.mxu0
      %v2517 = vadd.f32 0.0, %v2516
      %v2518 = vpop.f32.mrf.mxu0
      %v2519 = vpop.f32.mrf.mxu0
      %v2520 = vadd.f32 0.0, %v2519
      %v2521 = vpop.f32.mrf.mxu0
      %2522 = vmatprep.mubr.bf16.mxu0 0
      %2523 = vmatmul.mubr.bf16.gmra.mxu0 %v1272
      %v2524 = vpop.f32.mrf.mxu0
      %v2525 = vadd.f32 0.0, %v2524
      %v2526 = vpop.f32.mrf.mxu0
      %v2527 = vpop.f32.mrf.mxu0
      %v2528 = vadd.f32 0.0, %v2527
      %v2529 = vpop.f32.mrf.mxu0
      %2530 = vmatprep.mubr.bf16.mxu0 0
      %2531 = vmatmul.mubr.bf16.gmra.mxu0 %v1275
      %v2532 = vpop.f32.mrf.mxu0
      %v2533 = vadd.f32 0.0, %v2532
      %v2534 = vpop.f32.mrf.mxu0
      %v2535 = vpop.f32.mrf.mxu0
      %v2536 = vadd.f32 0.0, %v2535
      %v2537 = vpop.f32.mrf.mxu0
      %2538 = vmatprep.mubr.bf16.mxu0 0
      %2539 = vmatmul.mubr.bf16.gmra.mxu0 %v1278
      %v2540 = vpop.f32.mrf.mxu0
      %v2541 = vadd.f32 0.0, %v2540
      %v2542 = vpop.f32.mrf.mxu0
      %v2543 = vpop.f32.mrf.mxu0
      %v2544 = vadd.f32 0.0, %v2543
      %v2545 = vpop.f32.mrf.mxu0
      %2546 = vmatprep.mubr.bf16.mxu0 0
      %2547 = vmatmul.mubr.bf16.gmra.mxu0 %v1281
      %v2548 = vpop.f32.mrf.mxu0
      %v2549 = vadd.f32 0.0, %v2548
      %v2550 = vpop.f32.mrf.mxu0
      %v2551 = vpop.f32.mrf.mxu0
      %v2552 = vadd.f32 0.0, %v2551
      %v2553 = vpop.f32.mrf.mxu0
      %2554 = vmatprep.mubr.bf16.mxu0 0
      %2555 = vmatmul.mubr.bf16.gmra.mxu0 %v1284
      %v2556 = vpop.f32.mrf.mxu0
      %v2557 = vadd.f32 0.0, %v2556
      %v2558 = vpop.f32.mrf.mxu0
      %v2559 = vpop.f32.mrf.mxu0
      %v2560 = vadd.f32 0.0, %v2559
      %v2561 = vpop.f32.mrf.mxu0
      %2562 = vmatprep.mubr.bf16.mxu0 0
      %2563 = vmatmul.mubr.bf16.gmra.mxu0 %v2405
      %v2564 = vpop.f32.mrf.mxu0
      %v2565 = vadd.f32 0.0, %v2564
      %v2566 = vpop.f32.mrf.mxu0
      %v2567 = vpop.f32.mrf.mxu0
      %v2568 = vadd.f32 0.0, %v2567
      %v2569 = vpop.f32.mrf.mxu0
      %2570 = vdwg.mxu0
      %v2571 = vadd.f32 %v2344, %v2445
      %v2572 = vadd.f32 %v2345, %v2448
      %v2573 = vadd.f32 %v2346, %v2453
      %v2574 = vadd.f32 %v2347, %v2456
      %v2575 = vadd.f32 %v2348, %v2461
      %v2576 = vadd.f32 %v2349, %v2464
      %v2577 = vadd.f32 %v2350, %v2469
      %v2578 = vadd.f32 %v2351, %v2472
      %v2579 = vadd.f32 %v2352, %v2477
      %v2580 = vadd.f32 %v2353, %v2480
      %v2581 = vadd.f32 %v2354, %v2485
      %v2582 = vadd.f32 %v2355, %v2488
      %v2583 = vadd.f32 %v2356, %v2493
      %v2584 = vadd.f32 %v2357, %v2496
      %v2585 = vadd.f32 %v2358, %v2501
      %v2586 = vadd.f32 %v2359, %v2504
      %v2587 = vadd.f32 %v2360, %v2509
      %v2588 = vadd.f32 %v2361, %v2512
      %v2589 = vadd.f32 %v2362, %v2517
      %v2590 = vadd.f32 %v2363, %v2520
      %v2591 = vadd.f32 %v2364, %v2525
      %v2592 = vadd.f32 %v2365, %v2528
      %v2593 = vadd.f32 %v2366, %v2533
      %v2594 = vadd.f32 %v2367, %v2536
      %v2595 = vadd.f32 %v2368, %v2541
      %v2596 = vadd.f32 %v2369, %v2544
      %v2597 = vadd.f32 %v2370, %v2549
      %v2598 = vadd.f32 %v2371, %v2552
      %v2599 = vadd.f32 %v2372, %v2557
      %v2600 = vadd.f32 %v2373, %v2560
      %v2601 = vadd.f32 %v2374, %v2565
      %v2602 = vadd.f32 %v2375, %v2568
      %v2604 = vrot.slane %v790, 5
      %v2605 = vrot.slane %v2604, 4
      %v2606 = vrot.slane %v791, 5
      %v2607 = vsel %vm1761, %v2605, %v2606
      %v2608 = vrot.slane %v2606, 4
      %v2609 = vrot.slane %v792, 5
      %v2610 = vsel %vm1761, %v2608, %v2609
      %v2611 = vld [vmem:[%s1 + $0x8] sm:$0xc]
      %v2612 = vunpack.c.l.b16 %v2607
      %v2613 = vunpack.c.l.b16 %v2610
      %v2614 = vpack.c.b16 %v2613, %v2612
      %v2616 = vunpack.c.l.b16 %v2611
      %v2617 = vpack.c.b16 %v2616, %v2616
      %v2618 = vrot.slane %v2617, 2
      %v2620 = vsel %vm1237, %v2614, 0
      %v2623 = vsel %vm1286, %v2618, 0
      %2625 = vmatprep.subr.bf16.mxu0 0
      %2626 = vmatpush1.bf16.msra.mxu0 0
      %2627 = vmatprep.subr.bf16.mxu0 0
      %2628 = vmatpush1.bf16.msra.mxu0 0
      %2629 = vmatprep.subr.bf16.mxu0 0
      %2630 = vmatpush1.bf16.msra.mxu0 0
      %2631 = vmatprep.subr.bf16.mxu0 0
      %2632 = vmatpush1.bf16.msra.mxu0 0
      %2633 = vmatprep.subr.bf16.mxu0 0
      %2634 = vmatpush1.bf16.msra.mxu0 0
      %2635 = vmatprep.subr.bf16.mxu0 0
      %2636 = vmatpush1.bf16.msra.mxu0 0
      %2637 = vmatprep.subr.bf16.mxu0 0
      %2638 = vmatpush1.bf16.msra.mxu0 0
      %2639 = vmatprep.subr.bf16.mxu0 0
      %2640 = vmatpush1.bf16.msra.mxu0 %v2623
      %2641 = vmatprep.subr.bf16.mxu0 0
      %2642 = vmatpush2.bf16.msra.mxu0 0
      %2643 = vmatprep.subr.bf16.mxu0 0
      %2644 = vmatpush2.bf16.msra.mxu0 0
      %2645 = vmatprep.subr.bf16.mxu0 0
      %2646 = vmatpush2.bf16.msra.mxu0 0
      %2647 = vmatprep.subr.bf16.mxu0 0
      %2648 = vmatpush2.bf16.msra.mxu0 0
      %2649 = vmatprep.subr.bf16.mxu0 0
      %2650 = vmatpush2.bf16.msra.mxu0 0
      %2651 = vmatprep.subr.bf16.mxu0 0
      %2652 = vmatpush2.bf16.msra.mxu0 0
      %2653 = vmatprep.subr.bf16.mxu0 0
      %2654 = vmatpush2.bf16.msra.mxu0 0
      %2655 = vmatprep.subr.bf16.mxu0 0
      %2656 = vmatpush2.bf16.msra.mxu0 0
      %2657 = vmatprep.mubr.bf16.mxu0 0
      %2658 = vmatmul.mubr.bf16.gmra.mxu0 %v1927
      %v2659 = vpop.f32.mrf.mxu0
      %v2660 = vadd.f32 0.0, %v2659
      %v2661 = vpop.f32.mrf.mxu0
      %v2662 = vpop.f32.mrf.mxu0
      %v2663 = vadd.f32 0.0, %v2662
      %v2664 = vpop.f32.mrf.mxu0
      %2665 = vmatprep.mubr.bf16.mxu0 0
      %2666 = vmatmul.mubr.bf16.gmra.mxu0 %v1930
      %v2667 = vpop.f32.mrf.mxu0
      %v2668 = vadd.f32 0.0, %v2667
      %v2669 = vpop.f32.mrf.mxu0
      %v2670 = vpop.f32.mrf.mxu0
      %v2671 = vadd.f32 0.0, %v2670
      %v2672 = vpop.f32.mrf.mxu0
      %2673 = vmatprep.mubr.bf16.mxu0 0
      %2674 = vmatmul.mubr.bf16.gmra.mxu0 %v1933
      %v2675 = vpop.f32.mrf.mxu0
      %v2676 = vadd.f32 0.0, %v2675
      %v2677 = vpop.f32.mrf.mxu0
      %v2678 = vpop.f32.mrf.mxu0
      %v2679 = vadd.f32 0.0, %v2678
      %v2680 = vpop.f32.mrf.mxu0
      %2681 = vmatprep.mubr.bf16.mxu0 0
      %2682 = vmatmul.mubr.bf16.gmra.mxu0 %v1936
      %v2683 = vpop.f32.mrf.mxu0
      %v2684 = vadd.f32 0.0, %v2683
      %v2685 = vpop.f32.mrf.mxu0
      %v2686 = vpop.f32.mrf.mxu0
      %v2687 = vadd.f32 0.0, %v2686
      %v2688 = vpop.f32.mrf.mxu0
      %2689 = vmatprep.mubr.bf16.mxu0 0
      %2690 = vmatmul.mubr.bf16.gmra.mxu0 %v1939
      %v2691 = vpop.f32.mrf.mxu0
      %v2692 = vadd.f32 0.0, %v2691
      %v2693 = vpop.f32.mrf.mxu0
      %v2694 = vpop.f32.mrf.mxu0
      %v2695 = vadd.f32 0.0, %v2694
      %v2696 = vpop.f32.mrf.mxu0
      %2697 = vmatprep.mubr.bf16.mxu0 0
      %2698 = vmatmul.mubr.bf16.gmra.mxu0 %v1942
      %v2699 = vpop.f32.mrf.mxu0
      %v2700 = vadd.f32 0.0, %v2699
      %v2701 = vpop.f32.mrf.mxu0
      %v2702 = vpop.f32.mrf.mxu0
      %v2703 = vadd.f32 0.0, %v2702
      %v2704 = vpop.f32.mrf.mxu0
      %2705 = vmatprep.mubr.bf16.mxu0 0
      %2706 = vmatmul.mubr.bf16.gmra.mxu0 %v1945
      %v2707 = vpop.f32.mrf.mxu0
      %v2708 = vadd.f32 0.0, %v2707
      %v2709 = vpop.f32.mrf.mxu0
      %v2710 = vpop.f32.mrf.mxu0
      %v2711 = vadd.f32 0.0, %v2710
      %v2712 = vpop.f32.mrf.mxu0
      %2713 = vmatprep.mubr.bf16.mxu0 0
      %2714 = vmatmul.mubr.bf16.gmra.mxu0 %v1948
      %v2715 = vpop.f32.mrf.mxu0
      %v2716 = vadd.f32 0.0, %v2715
      %v2717 = vpop.f32.mrf.mxu0
      %v2718 = vpop.f32.mrf.mxu0
      %v2719 = vadd.f32 0.0, %v2718
      %v2720 = vpop.f32.mrf.mxu0
      %2721 = vmatprep.mubr.bf16.mxu0 0
      %2722 = vmatmul.mubr.bf16.gmra.mxu0 %v1951
      %v2723 = vpop.f32.mrf.mxu0
      %v2724 = vadd.f32 0.0, %v2723
      %v2725 = vpop.f32.mrf.mxu0
      %v2726 = vpop.f32.mrf.mxu0
      %v2727 = vadd.f32 0.0, %v2726
      %v2728 = vpop.f32.mrf.mxu0
      %2729 = vmatprep.mubr.bf16.mxu0 0
      %2730 = vmatmul.mubr.bf16.gmra.mxu0 %v1954
      %v2731 = vpop.f32.mrf.mxu0
      %v2732 = vadd.f32 0.0, %v2731
      %v2733 = vpop.f32.mrf.mxu0
      %v2734 = vpop.f32.mrf.mxu0
      %v2735 = vadd.f32 0.0, %v2734
      %v2736 = vpop.f32.mrf.mxu0
      %2737 = vmatprep.mubr.bf16.mxu0 0
      %2738 = vmatmul.mubr.bf16.gmra.mxu0 %v1957
      %v2739 = vpop.f32.mrf.mxu0
      %v2740 = vadd.f32 0.0, %v2739
      %v2741 = vpop.f32.mrf.mxu0
      %v2742 = vpop.f32.mrf.mxu0
      %v2743 = vadd.f32 0.0, %v2742
      %v2744 = vpop.f32.mrf.mxu0
      %2745 = vmatprep.mubr.bf16.mxu0 0
      %2746 = vmatmul.mubr.bf16.gmra.mxu0 %v1960
      %v2747 = vpop.f32.mrf.mxu0
      %v2748 = vadd.f32 0.0, %v2747
      %v2749 = vpop.f32.mrf.mxu0
      %v2750 = vpop.f32.mrf.mxu0
      %v2751 = vadd.f32 0.0, %v2750
      %v2752 = vpop.f32.mrf.mxu0
      %2753 = vmatprep.mubr.bf16.mxu0 0
      %2754 = vmatmul.mubr.bf16.gmra.mxu0 %v1963
      %v2755 = vpop.f32.mrf.mxu0
      %v2756 = vadd.f32 0.0, %v2755
      %v2757 = vpop.f32.mrf.mxu0
      %v2758 = vpop.f32.mrf.mxu0
      %v2759 = vadd.f32 0.0, %v2758
      %v2760 = vpop.f32.mrf.mxu0
      %2761 = vmatprep.mubr.bf16.mxu0 0
      %2762 = vmatmul.mubr.bf16.gmra.mxu0 %v1966
      %v2763 = vpop.f32.mrf.mxu0
      %v2764 = vadd.f32 0.0, %v2763
      %v2765 = vpop.f32.mrf.mxu0
      %v2766 = vpop.f32.mrf.mxu0
      %v2767 = vadd.f32 0.0, %v2766
      %v2768 = vpop.f32.mrf.mxu0
      %2769 = vmatprep.mubr.bf16.mxu0 0
      %2770 = vmatmul.mubr.bf16.gmra.mxu0 %v1969
      %v2771 = vpop.f32.mrf.mxu0
      %v2772 = vadd.f32 0.0, %v2771
      %v2773 = vpop.f32.mrf.mxu0
      %v2774 = vpop.f32.mrf.mxu0
      %v2775 = vadd.f32 0.0, %v2774
      %v2776 = vpop.f32.mrf.mxu0
      %2777 = vmatprep.mubr.bf16.mxu0 0
      %2778 = vmatmul.mubr.bf16.gmra.mxu0 %v2620
      %v2779 = vpop.f32.mrf.mxu0
      %v2780 = vadd.f32 0.0, %v2779
      %v2781 = vpop.f32.mrf.mxu0
      %v2782 = vpop.f32.mrf.mxu0
      %v2783 = vadd.f32 0.0, %v2782
      %v2784 = vpop.f32.mrf.mxu0
      %2785 = vdwg.mxu0
      %v2786 = vadd.f32 %v2571, %v2660
      %v2787 = vadd.f32 %v2572, %v2663
      %v2788 = vadd.f32 %v2573, %v2668
      %v2789 = vadd.f32 %v2574, %v2671
      %v2790 = vadd.f32 %v2575, %v2676
      %v2791 = vadd.f32 %v2576, %v2679
      %v2792 = vadd.f32 %v2577, %v2684
      %v2793 = vadd.f32 %v2578, %v2687
      %v2794 = vadd.f32 %v2579, %v2692
      %v2795 = vadd.f32 %v2580, %v2695
      %v2796 = vadd.f32 %v2581, %v2700
      %v2797 = vadd.f32 %v2582, %v2703
      %v2798 = vadd.f32 %v2583, %v2708
      %v2799 = vadd.f32 %v2584, %v2711
      %v2800 = vadd.f32 %v2585, %v2716
      %v2801 = vadd.f32 %v2586, %v2719
      %v2802 = vadd.f32 %v2587, %v2724
      %v2803 = vadd.f32 %v2588, %v2727
      %v2804 = vadd.f32 %v2589, %v2732
      %v2805 = vadd.f32 %v2590, %v2735
      %v2806 = vadd.f32 %v2591, %v2740
      %v2807 = vadd.f32 %v2592, %v2743
      %v2808 = vadd.f32 %v2593, %v2748
      %v2809 = vadd.f32 %v2594, %v2751
      %v2810 = vadd.f32 %v2595, %v2756
      %v2811 = vadd.f32 %v2596, %v2759
      %v2812 = vadd.f32 %v2597, %v2764
      %v2813 = vadd.f32 %v2598, %v2767
      %v2814 = vadd.f32 %v2599, %v2772
      %v2815 = vadd.f32 %v2600, %v2775
      %v2816 = vadd.f32 %v2601, %v2780
      %v2817 = vadd.f32 %v2602, %v2783
      %v2818 = vld [vmem:[%s1 + $0xc] sm:$0x3]
      %v2821 = vunpack.c.l.b16 %v793
      %v2822 = vunpack.c.l.b16 %v794
      %v2823 = vpack.c.b16 %v2822, %v2821
      %v2825 = vsel %vm1237, %v2823, 0
      %v2828 = vsel %vm1286, %v2818, 0
      %2830 = vmatprep.subr.bf16.mxu0 0
      %2831 = vmatpush1.bf16.msra.mxu0 0
      %2832 = vmatprep.subr.bf16.mxu0 0
      %2833 = vmatpush1.bf16.msra.mxu0 0
      %2834 = vmatprep.subr.bf16.mxu0 0
      %2835 = vmatpush1.bf16.msra.mxu0 0
      %2836 = vmatprep.subr.bf16.mxu0 0
      %2837 = vmatpush1.bf16.msra.mxu0 0
      %2838 = vmatprep.subr.bf16.mxu0 0
      %2839 = vmatpush1.bf16.msra.mxu0 0
      %2840 = vmatprep.subr.bf16.mxu0 0
      %2841 = vmatpush1.bf16.msra.mxu0 0
      %2842 = vmatprep.subr.bf16.mxu0 0
      %2843 = vmatpush1.bf16.msra.mxu0 0
      %2844 = vmatprep.subr.bf16.mxu0 0
      %2845 = vmatpush1.bf16.msra.mxu0 %v2828
      %2846 = vmatprep.subr.bf16.mxu0 0
      %2847 = vmatpush2.bf16.msra.mxu0 0
      %2848 = vmatprep.subr.bf16.mxu0 0
      %2849 = vmatpush2.bf16.msra.mxu0 0
      %2850 = vmatprep.subr.bf16.mxu0 0
      %2851 = vmatpush2.bf16.msra.mxu0 0
      %2852 = vmatprep.subr.bf16.mxu0 0
      %2853 = vmatpush2.bf16.msra.mxu0 0
      %2854 = vmatprep.subr.bf16.mxu0 0
      %2855 = vmatpush2.bf16.msra.mxu0 0
      %2856 = vmatprep.subr.bf16.mxu0 0
      %2857 = vmatpush2.bf16.msra.mxu0 0
      %2858 = vmatprep.subr.bf16.mxu0 0
      %2859 = vmatpush2.bf16.msra.mxu0 0
      %2860 = vmatprep.subr.bf16.mxu0 0
      %2861 = vmatpush2.bf16.msra.mxu0 0
      %2862 = vmatprep.mubr.bf16.mxu0 0
      %2863 = vmatmul.mubr.bf16.gmra.mxu0 %v1538
      %v2864 = vpop.f32.mrf.mxu0
      %v2865 = vadd.f32 0.0, %v2864
      %v2866 = vpop.f32.mrf.mxu0
      %v2867 = vpop.f32.mrf.mxu0
      %v2868 = vadd.f32 0.0, %v2867
      %v2869 = vpop.f32.mrf.mxu0
      %2870 = vmatprep.mubr.bf16.mxu0 0
      %2871 = vmatmul.mubr.bf16.gmra.mxu0 %v1541
      %v2872 = vpop.f32.mrf.mxu0
      %v2873 = vadd.f32 0.0, %v2872
      %v2874 = vpop.f32.mrf.mxu0
      %v2875 = vpop.f32.mrf.mxu0
      %v2876 = vadd.f32 0.0, %v2875
      %v2877 = vpop.f32.mrf.mxu0
      %2878 = vmatprep.mubr.bf16.mxu0 0
      %2879 = vmatmul.mubr.bf16.gmra.mxu0 %v1544
      %v2880 = vpop.f32.mrf.mxu0
      %v2881 = vadd.f32 0.0, %v2880
      %v2882 = vpop.f32.mrf.mxu0
      %v2883 = vpop.f32.mrf.mxu0
      %v2884 = vadd.f32 0.0, %v2883
      %v2885 = vpop.f32.mrf.mxu0
      %2886 = vmatprep.mubr.bf16.mxu0 0
      %2887 = vmatmul.mubr.bf16.gmra.mxu0 %v1547
      %v2888 = vpop.f32.mrf.mxu0
      %v2889 = vadd.f32 0.0, %v2888
      %v2890 = vpop.f32.mrf.mxu0
      %v2891 = vpop.f32.mrf.mxu0
      %v2892 = vadd.f32 0.0, %v2891
      %v2893 = vpop.f32.mrf.mxu0
      %2894 = vmatprep.mubr.bf16.mxu0 0
      %2895 = vmatmul.mubr.bf16.gmra.mxu0 %v1550
      %v2896 = vpop.f32.mrf.mxu0
      %v2897 = vadd.f32 0.0, %v2896
      %v2898 = vpop.f32.mrf.mxu0
      %v2899 = vpop.f32.mrf.mxu0
      %v2900 = vadd.f32 0.0, %v2899
      %v2901 = vpop.f32.mrf.mxu0
      %2902 = vmatprep.mubr.bf16.mxu0 0
      %2903 = vmatmul.mubr.bf16.gmra.mxu0 %v1553
      %v2904 = vpop.f32.mrf.mxu0
      %v2905 = vadd.f32 0.0, %v2904
      %v2906 = vpop.f32.mrf.mxu0
      %v2907 = vpop.f32.mrf.mxu0
      %v2908 = vadd.f32 0.0, %v2907
      %v2909 = vpop.f32.mrf.mxu0
      %2910 = vmatprep.mubr.bf16.mxu0 0
      %2911 = vmatmul.mubr.bf16.gmra.mxu0 %v1556
      %v2912 = vpop.f32.mrf.mxu0
      %v2913 = vadd.f32 0.0, %v2912
      %v2914 = vpop.f32.mrf.mxu0
      %v2915 = vpop.f32.mrf.mxu0
      %v2916 = vadd.f32 0.0, %v2915
      %v2917 = vpop.f32.mrf.mxu0
      %2918 = vmatprep.mubr.bf16.mxu0 0
      %2919 = vmatmul.mubr.bf16.gmra.mxu0 %v1559
      %v2920 = vpop.f32.mrf.mxu0
      %v2921 = vadd.f32 0.0, %v2920
      %v2922 = vpop.f32.mrf.mxu0
      %v2923 = vpop.f32.mrf.mxu0
      %v2924 = vadd.f32 0.0, %v2923
      %v2925 = vpop.f32.mrf.mxu0
      %2926 = vmatprep.mubr.bf16.mxu0 0
      %2927 = vmatmul.mubr.bf16.gmra.mxu0 %v1562
      %v2928 = vpop.f32.mrf.mxu0
      %v2929 = vadd.f32 0.0, %v2928
      %v2930 = vpop.f32.mrf.mxu0
      %v2931 = vpop.f32.mrf.mxu0
      %v2932 = vadd.f32 0.0, %v2931
      %v2933 = vpop.f32.mrf.mxu0
      %2934 = vmatprep.mubr.bf16.mxu0 0
      %2935 = vmatmul.mubr.bf16.gmra.mxu0 %v1565
      %v2936 = vpop.f32.mrf.mxu0
      %v2937 = vadd.f32 0.0, %v2936
      %v2938 = vpop.f32.mrf.mxu0
      %v2939 = vpop.f32.mrf.mxu0
      %v2940 = vadd.f32 0.0, %v2939
      %v2941 = vpop.f32.mrf.mxu0
      %2942 = vmatprep.mubr.bf16.mxu0 0
      %2943 = vmatmul.mubr.bf16.gmra.mxu0 %v1568
      %v2944 = vpop.f32.mrf.mxu0
      %v2945 = vadd.f32 0.0, %v2944
      %v2946 = vpop.f32.mrf.mxu0
      %v2947 = vpop.f32.mrf.mxu0
      %v2948 = vadd.f32 0.0, %v2947
      %v2949 = vpop.f32.mrf.mxu0
      %2950 = vmatprep.mubr.bf16.mxu0 0
      %2951 = vmatmul.mubr.bf16.gmra.mxu0 %v1571
      %v2952 = vpop.f32.mrf.mxu0
      %v2953 = vadd.f32 0.0, %v2952
      %v2954 = vpop.f32.mrf.mxu0
      %v2955 = vpop.f32.mrf.mxu0
      %v2956 = vadd.f32 0.0, %v2955
      %v2957 = vpop.f32.mrf.mxu0
      %2958 = vmatprep.mubr.bf16.mxu0 0
      %2959 = vmatmul.mubr.bf16.gmra.mxu0 %v1574
      %v2960 = vpop.f32.mrf.mxu0
      %v2961 = vadd.f32 0.0, %v2960
      %v2962 = vpop.f32.mrf.mxu0
      %v2963 = vpop.f32.mrf.mxu0
      %v2964 = vadd.f32 0.0, %v2963
      %v2965 = vpop.f32.mrf.mxu0
      %2966 = vmatprep.mubr.bf16.mxu0 0
      %2967 = vmatmul.mubr.bf16.gmra.mxu0 %v1577
      %v2968 = vpop.f32.mrf.mxu0
      %v2969 = vadd.f32 0.0, %v2968
      %v2970 = vpop.f32.mrf.mxu0
      %v2971 = vpop.f32.mrf.mxu0
      %v2972 = vadd.f32 0.0, %v2971
      %v2973 = vpop.f32.mrf.mxu0
      %2974 = vmatprep.mubr.bf16.mxu0 0
      %2975 = vmatmul.mubr.bf16.gmra.mxu0 %v2178
      %v2976 = vpop.f32.mrf.mxu0
      %v2977 = vadd.f32 0.0, %v2976
      %v2978 = vpop.f32.mrf.mxu0
      %v2979 = vpop.f32.mrf.mxu0
      %v2980 = vadd.f32 0.0, %v2979
      %v2981 = vpop.f32.mrf.mxu0
      %2982 = vmatprep.mubr.bf16.mxu0 0
      %2983 = vmatmul.mubr.bf16.gmra.mxu0 %v2825
      %v2984 = vpop.f32.mrf.mxu0
      %v2985 = vadd.f32 0.0, %v2984
      %v2986 = vpop.f32.mrf.mxu0
      %v2987 = vpop.f32.mrf.mxu0
      %v2988 = vadd.f32 0.0, %v2987
      %v2989 = vpop.f32.mrf.mxu0
      %2990 = vdwg.mxu0
      %v2991 = vadd.f32 %v2786, %v2865
      %v2992 = vadd.f32 %v2787, %v2868
      %v2993 = vadd.f32 %v2788, %v2873
      %v2994 = vadd.f32 %v2789, %v2876
      %v2995 = vadd.f32 %v2790, %v2881
      %v2996 = vadd.f32 %v2791, %v2884
      %v2997 = vadd.f32 %v2792, %v2889
      %v2998 = vadd.f32 %v2793, %v2892
      %v2999 = vadd.f32 %v2794, %v2897
      %v3000 = vadd.f32 %v2795, %v2900
      %v3001 = vadd.f32 %v2796, %v2905
      %v3002 = vadd.f32 %v2797, %v2908
      %v3003 = vadd.f32 %v2798, %v2913
      %v3004 = vadd.f32 %v2799, %v2916
      %v3005 = vadd.f32 %v2800, %v2921
      %v3006 = vadd.f32 %v2801, %v2924
      %v3007 = vadd.f32 %v2802, %v2929
      %v3008 = vadd.f32 %v2803, %v2932
      %v3009 = vadd.f32 %v2804, %v2937
      %v3010 = vadd.f32 %v2805, %v2940
      %v3011 = vadd.f32 %v2806, %v2945
      %v3012 = vadd.f32 %v2807, %v2948
      %v3013 = vadd.f32 %v2808, %v2953
      %v3014 = vadd.f32 %v2809, %v2956
      %v3015 = vadd.f32 %v2810, %v2961
      %v3016 = vadd.f32 %v2811, %v2964
      %v3017 = vadd.f32 %v2812, %v2969
      %v3018 = vadd.f32 %v2813, %v2972
      %v3019 = vadd.f32 %v2814, %v2977
      %v3020 = vadd.f32 %v2815, %v2980
      %v3021 = vadd.f32 %v2816, %v2985
      %v3022 = vadd.f32 %v2817, %v2988
      %v3024 = vshrl.u32 %v793, 16
      %v3026 = vrot.slane %v3024, 4
      %v3027 = vshll.u32 %v793, 16
      %v3029 = vrot.slane %v3027, 5
      %v3030 = vor.u32 %v3026, %v3029
      %v3031 = vrot.slane %v3030, 4
      %v3033 = vshll.u32 %v794, 16
      %v3035 = vrot.slane %v3033, 5
      %v3036 = vsel %vm799, %v3031, %v3035
      %v3037 = vshrl.u32 %v794, 16
      %v3039 = vrot.slane %v3037, 4
      %v3040 = vor.u32 %v3039, %v3035
      %v3041 = vrot.slane %v3040, 4
      %v3043 = vshll.u32 %v795, 16
      %v3045 = vrot.slane %v3043, 5
      %v3046 = vsel %vm799, %v3041, %v3045
      %v3047 = vld [vmem:[%s1 + $0xc] sm:$0xc]
      %v3048 = vunpack.c.l.b16 %v3036
      %v3049 = vunpack.c.l.b16 %v3046
      %v3050 = vpack.c.b16 %v3049, %v3048
      %v3052 = vunpack.c.l.b16 %v3047
      %v3053 = vpack.c.b16 %v3052, %v3052
      %v3054 = vrot.slane %v3053, 2
      %v3056 = vsel %vm1237, %v3050, 0
      %v3059 = vsel %vm1286, %v3054, 0
      %3061 = vmatprep.subr.bf16.mxu0 0
      %3062 = vmatpush1.bf16.msra.mxu0 0
      %3063 = vmatprep.subr.bf16.mxu0 0
      %3064 = vmatpush1.bf16.msra.mxu0 0
      %3065 = vmatprep.subr.bf16.mxu0 0
      %3066 = vmatpush1.bf16.msra.mxu0 0
      %3067 = vmatprep.subr.bf16.mxu0 0
      %3068 = vmatpush1.bf16.msra.mxu0 0
      %3069 = vmatprep.subr.bf16.mxu0 0
      %3070 = vmatpush1.bf16.msra.mxu0 0
      %3071 = vmatprep.subr.bf16.mxu0 0
      %3072 = vmatpush1.bf16.msra.mxu0 0
      %3073 = vmatprep.subr.bf16.mxu0 0
      %3074 = vmatpush1.bf16.msra.mxu0 0
      %3075 = vmatprep.subr.bf16.mxu0 0
      %3076 = vmatpush1.bf16.msra.mxu0 %v3059
      %3077 = vmatprep.subr.bf16.mxu0 0
      %3078 = vmatpush2.bf16.msra.mxu0 0
      %3079 = vmatprep.subr.bf16.mxu0 0
      %3080 = vmatpush2.bf16.msra.mxu0 0
      %3081 = vmatprep.subr.bf16.mxu0 0
      %3082 = vmatpush2.bf16.msra.mxu0 0
      %3083 = vmatprep.subr.bf16.mxu0 0
      %3084 = vmatpush2.bf16.msra.mxu0 0
      %3085 = vmatprep.subr.bf16.mxu0 0
      %3086 = vmatpush2.bf16.msra.mxu0 0
      %3087 = vmatprep.subr.bf16.mxu0 0
      %3088 = vmatpush2.bf16.msra.mxu0 0
      %3089 = vmatprep.subr.bf16.mxu0 0
      %3090 = vmatpush2.bf16.msra.mxu0 0
      %3091 = vmatprep.subr.bf16.mxu0 0
      %3092 = vmatpush2.bf16.msra.mxu0 0
      %3093 = vmatprep.mubr.bf16.mxu0 0
      %3094 = vmatmul.mubr.bf16.gmra.mxu0 %v1245
      %v3095 = vpop.f32.mrf.mxu0
      %v3096 = vadd.f32 0.0, %v3095
      %v3097 = vpop.f32.mrf.mxu0
      %v3098 = vpop.f32.mrf.mxu0
      %v3099 = vadd.f32 0.0, %v3098
      %v3100 = vpop.f32.mrf.mxu0
      %3101 = vmatprep.mubr.bf16.mxu0 0
      %3102 = vmatmul.mubr.bf16.gmra.mxu0 %v1248
      %v3103 = vpop.f32.mrf.mxu0
      %v3104 = vadd.f32 0.0, %v3103
      %v3105 = vpop.f32.mrf.mxu0
      %v3106 = vpop.f32.mrf.mxu0
      %v3107 = vadd.f32 0.0, %v3106
      %v3108 = vpop.f32.mrf.mxu0
      %3109 = vmatprep.mubr.bf16.mxu0 0
      %3110 = vmatmul.mubr.bf16.gmra.mxu0 %v1251
      %v3111 = vpop.f32.mrf.mxu0
      %v3112 = vadd.f32 0.0, %v3111
      %v3113 = vpop.f32.mrf.mxu0
      %v3114 = vpop.f32.mrf.mxu0
      %v3115 = vadd.f32 0.0, %v3114
      %v3116 = vpop.f32.mrf.mxu0
      %3117 = vmatprep.mubr.bf16.mxu0 0
      %3118 = vmatmul.mubr.bf16.gmra.mxu0 %v1254
      %v3119 = vpop.f32.mrf.mxu0
      %v3120 = vadd.f32 0.0, %v3119
      %v3121 = vpop.f32.mrf.mxu0
      %v3122 = vpop.f32.mrf.mxu0
      %v3123 = vadd.f32 0.0, %v3122
      %v3124 = vpop.f32.mrf.mxu0
      %3125 = vmatprep.mubr.bf16.mxu0 0
      %3126 = vmatmul.mubr.bf16.gmra.mxu0 %v1257
      %v3127 = vpop.f32.mrf.mxu0
      %v3128 = vadd.f32 0.0, %v3127
      %v3129 = vpop.f32.mrf.mxu0
      %v3130 = vpop.f32.mrf.mxu0
      %v3131 = vadd.f32 0.0, %v3130
      %v3132 = vpop.f32.mrf.mxu0
      %3133 = vmatprep.mubr.bf16.mxu0 0
      %3134 = vmatmul.mubr.bf16.gmra.mxu0 %v1260
      %v3135 = vpop.f32.mrf.mxu0
      %v3136 = vadd.f32 0.0, %v3135
      %v3137 = vpop.f32.mrf.mxu0
      %v3138 = vpop.f32.mrf.mxu0
      %v3139 = vadd.f32 0.0, %v3138
      %v3140 = vpop.f32.mrf.mxu0
      %3141 = vmatprep.mubr.bf16.mxu0 0
      %3142 = vmatmul.mubr.bf16.gmra.mxu0 %v1263
      %v3143 = vpop.f32.mrf.mxu0
      %v3144 = vadd.f32 0.0, %v3143
      %v3145 = vpop.f32.mrf.mxu0
      %v3146 = vpop.f32.mrf.mxu0
      %v3147 = vadd.f32 0.0, %v3146
      %v3148 = vpop.f32.mrf.mxu0
      %3149 = vmatprep.mubr.bf16.mxu0 0
      %3150 = vmatmul.mubr.bf16.gmra.mxu0 %v1266
      %v3151 = vpop.f32.mrf.mxu0
      %v3152 = vadd.f32 0.0, %v3151
      %v3153 = vpop.f32.mrf.mxu0
      %v3154 = vpop.f32.mrf.mxu0
      %v3155 = vadd.f32 0.0, %v3154
      %v3156 = vpop.f32.mrf.mxu0
      %3157 = vmatprep.mubr.bf16.mxu0 0
      %3158 = vmatmul.mubr.bf16.gmra.mxu0 %v1269
      %v3159 = vpop.f32.mrf.mxu0
      %v3160 = vadd.f32 0.0, %v3159
      %v3161 = vpop.f32.mrf.mxu0
      %v3162 = vpop.f32.mrf.mxu0
      %v3163 = vadd.f32 0.0, %v3162
      %v3164 = vpop.f32.mrf.mxu0
      %3165 = vmatprep.mubr.bf16.mxu0 0
      %3166 = vmatmul.mubr.bf16.gmra.mxu0 %v1272
      %v3167 = vpop.f32.mrf.mxu0
      %v3168 = vadd.f32 0.0, %v3167
      %v3169 = vpop.f32.mrf.mxu0
      %v3170 = vpop.f32.mrf.mxu0
      %v3171 = vadd.f32 0.0, %v3170
      %v3172 = vpop.f32.mrf.mxu0
      %3173 = vmatprep.mubr.bf16.mxu0 0
      %3174 = vmatmul.mubr.bf16.gmra.mxu0 %v1275
      %v3175 = vpop.f32.mrf.mxu0
      %v3176 = vadd.f32 0.0, %v3175
      %v3177 = vpop.f32.mrf.mxu0
      %v3178 = vpop.f32.mrf.mxu0
      %v3179 = vadd.f32 0.0, %v3178
      %v3180 = vpop.f32.mrf.mxu0
      %3181 = vmatprep.mubr.bf16.mxu0 0
      %3182 = vmatmul.mubr.bf16.gmra.mxu0 %v1278
      %v3183 = vpop.f32.mrf.mxu0
      %v3184 = vadd.f32 0.0, %v3183
      %v3185 = vpop.f32.mrf.mxu0
      %v3186 = vpop.f32.mrf.mxu0
      %v3187 = vadd.f32 0.0, %v3186
      %v3188 = vpop.f32.mrf.mxu0
      %3189 = vmatprep.mubr.bf16.mxu0 0
      %3190 = vmatmul.mubr.bf16.gmra.mxu0 %v1281
      %v3191 = vpop.f32.mrf.mxu0
      %v3192 = vadd.f32 0.0, %v3191
      %v3193 = vpop.f32.mrf.mxu0
      %v3194 = vpop.f32.mrf.mxu0
      %v3195 = vadd.f32 0.0, %v3194
      %v3196 = vpop.f32.mrf.mxu0
      %3197 = vmatprep.mubr.bf16.mxu0 0
      %3198 = vmatmul.mubr.bf16.gmra.mxu0 %v1284
      %v3199 = vpop.f32.mrf.mxu0
      %v3200 = vadd.f32 0.0, %v3199
      %v3201 = vpop.f32.mrf.mxu0
      %v3202 = vpop.f32.mrf.mxu0
      %v3203 = vadd.f32 0.0, %v3202
      %v3204 = vpop.f32.mrf.mxu0
      %3205 = vmatprep.mubr.bf16.mxu0 0
      %3206 = vmatmul.mubr.bf16.gmra.mxu0 %v2405
      %v3207 = vpop.f32.mrf.mxu0
      %v3208 = vadd.f32 0.0, %v3207
      %v3209 = vpop.f32.mrf.mxu0
      %v3210 = vpop.f32.mrf.mxu0
      %v3211 = vadd.f32 0.0, %v3210
      %v3212 = vpop.f32.mrf.mxu0
      %3213 = vmatprep.mubr.bf16.mxu0 0
      %3214 = vmatmul.mubr.bf16.gmra.mxu0 %v3056
      %v3215 = vpop.f32.mrf.mxu0
      %v3216 = vadd.f32 0.0, %v3215
      %v3217 = vpop.f32.mrf.mxu0
      %v3218 = vpop.f32.mrf.mxu0
      %v3219 = vadd.f32 0.0, %v3218
      %v3220 = vpop.f32.mrf.mxu0
      %3221 = vdwg.mxu0
      %v3222 = vadd.f32 %v2991, %v3096
      %v3223 = vadd.f32 %v2992, %v3099
      %v3224 = vadd.f32 %v2993, %v3104
      %v3225 = vadd.f32 %v2994, %v3107
      %v3226 = vadd.f32 %v2995, %v3112
      %v3227 = vadd.f32 %v2996, %v3115
      %v3228 = vadd.f32 %v2997, %v3120
      %v3229 = vadd.f32 %v2998, %v3123
      %v3230 = vadd.f32 %v2999, %v3128
      %v3231 = vadd.f32 %v3000, %v3131
      %v3232 = vadd.f32 %v3001, %v3136
      %v3233 = vadd.f32 %v3002, %v3139
      %v3234 = vadd.f32 %v3003, %v3144
      %v3235 = vadd.f32 %v3004, %v3147
      %v3236 = vadd.f32 %v3005, %v3152
      %v3237 = vadd.f32 %v3006, %v3155
      %v3238 = vadd.f32 %v3007, %v3160
      %v3239 = vadd.f32 %v3008, %v3163
      %v3240 = vadd.f32 %v3009, %v3168
      %v3241 = vadd.f32 %v3010, %v3171
      %v3242 = vadd.f32 %v3011, %v3176
      %v3243 = vadd.f32 %v3012, %v3179
      %v3244 = vadd.f32 %v3013, %v3184
      %v3245 = vadd.f32 %v3014, %v3187
      %v3246 = vadd.f32 %v3015, %v3192
      %v3247 = vadd.f32 %v3016, %v3195
      %v3248 = vadd.f32 %v3017, %v3200
      %v3249 = vadd.f32 %v3018, %v3203
      %v3250 = vadd.f32 %v3019, %v3208
      %v3251 = vadd.f32 %v3020, %v3211
      %v3252 = vadd.f32 %v3021, %v3216
      %v3253 = vadd.f32 %v3022, %v3219
      %v3255 = vrot.slane %v793, 5
      %v3256 = vrot.slane %v3255, 4
      %v3257 = vrot.slane %v794, 5
      %v3258 = vsel %vm1761, %v3256, %v3257
      %v3259 = vrot.slane %v3257, 4
      %v3260 = vrot.slane %v795, 5
      %v3261 = vsel %vm1761, %v3259, %v3260
      %v3262 = vld [vmem:[%s1 + $0x10] sm:$0x3]
      %v3263 = vunpack.c.l.b16 %v3258
      %v3264 = vunpack.c.l.b16 %v3261
      %v3265 = vpack.c.b16 %v3264, %v3263
      %v3267 = vsel %vm1237, %v3265, 0
      %v3270 = vsel %vm1286, %v3262, 0
      %3272 = vmatprep.subr.bf16.mxu0 0
      %3273 = vmatpush1.bf16.msra.mxu0 0
      %3274 = vmatprep.subr.bf16.mxu0 0
      %3275 = vmatpush1.bf16.msra.mxu0 0
      %3276 = vmatprep.subr.bf16.mxu0 0
      %3277 = vmatpush1.bf16.msra.mxu0 0
      %3278 = vmatprep.subr.bf16.mxu0 0
      %3279 = vmatpush1.bf16.msra.mxu0 0
      %3280 = vmatprep.subr.bf16.mxu0 0
      %3281 = vmatpush1.bf16.msra.mxu0 0
      %3282 = vmatprep.subr.bf16.mxu0 0
      %3283 = vmatpush1.bf16.msra.mxu0 0
      %3284 = vmatprep.subr.bf16.mxu0 0
      %3285 = vmatpush1.bf16.msra.mxu0 0
      %3286 = vmatprep.subr.bf16.mxu0 0
      %3287 = vmatpush1.bf16.msra.mxu0 %v3270
      %3288 = vmatprep.subr.bf16.mxu0 0
      %3289 = vmatpush2.bf16.msra.mxu0 0
      %3290 = vmatprep.subr.bf16.mxu0 0
      %3291 = vmatpush2.bf16.msra.mxu0 0
      %3292 = vmatprep.subr.bf16.mxu0 0
      %3293 = vmatpush2.bf16.msra.mxu0 0
      %3294 = vmatprep.subr.bf16.mxu0 0
      %3295 = vmatpush2.bf16.msra.mxu0 0
      %3296 = vmatprep.subr.bf16.mxu0 0
      %3297 = vmatpush2.bf16.msra.mxu0 0
      %3298 = vmatprep.subr.bf16.mxu0 0
      %3299 = vmatpush2.bf16.msra.mxu0 0
      %3300 = vmatprep.subr.bf16.mxu0 0
      %3301 = vmatpush2.bf16.msra.mxu0 0
      %3302 = vmatprep.subr.bf16.mxu0 0
      %3303 = vmatpush2.bf16.msra.mxu0 0
      %3304 = vmatprep.mubr.bf16.mxu0 0
      %3305 = vmatmul.mubr.bf16.gmra.mxu0 %v1930
      %v3306 = vpop.f32.mrf.mxu0
      %v3307 = vadd.f32 0.0, %v3306
      %v3308 = vpop.f32.mrf.mxu0
      %v3309 = vpop.f32.mrf.mxu0
      %v3310 = vadd.f32 0.0, %v3309
      %v3311 = vpop.f32.mrf.mxu0
      %3312 = vmatprep.mubr.bf16.mxu0 0
      %3313 = vmatmul.mubr.bf16.gmra.mxu0 %v1933
      %v3314 = vpop.f32.mrf.mxu0
      %v3315 = vadd.f32 0.0, %v3314
      %v3316 = vpop.f32.mrf.mxu0
      %v3317 = vpop.f32.mrf.mxu0
      %v3318 = vadd.f32 0.0, %v3317
      %v3319 = vpop.f32.mrf.mxu0
      %3320 = vmatprep.mubr.bf16.mxu0 0
      %3321 = vmatmul.mubr.bf16.gmra.mxu0 %v1936
      %v3322 = vpop.f32.mrf.mxu0
      %v3323 = vadd.f32 0.0, %v3322
      %v3324 = vpop.f32.mrf.mxu0
      %v3325 = vpop.f32.mrf.mxu0
      %v3326 = vadd.f32 0.0, %v3325
      %v3327 = vpop.f32.mrf.mxu0
      %3328 = vmatprep.mubr.bf16.mxu0 0
      %3329 = vmatmul.mubr.bf16.gmra.mxu0 %v1939
      %v3330 = vpop.f32.mrf.mxu0
      %v3331 = vadd.f32 0.0, %v3330
      %v3332 = vpop.f32.mrf.mxu0
      %v3333 = vpop.f32.mrf.mxu0
      %v3334 = vadd.f32 0.0, %v3333
      %v3335 = vpop.f32.mrf.mxu0
      %3336 = vmatprep.mubr.bf16.mxu0 0
      %3337 = vmatmul.mubr.bf16.gmra.mxu0 %v1942
      %v3338 = vpop.f32.mrf.mxu0
      %v3339 = vadd.f32 0.0, %v3338
      %v3340 = vpop.f32.mrf.mxu0
      %v3341 = vpop.f32.mrf.mxu0
      %v3342 = vadd.f32 0.0, %v3341
      %v3343 = vpop.f32.mrf.mxu0
      %3344 = vmatprep.mubr.bf16.mxu0 0
      %3345 = vmatmul.mubr.bf16.gmra.mxu0 %v1945
      %v3346 = vpop.f32.mrf.mxu0
      %v3347 = vadd.f32 0.0, %v3346
      %v3348 = vpop.f32.mrf.mxu0
      %v3349 = vpop.f32.mrf.mxu0
      %v3350 = vadd.f32 0.0, %v3349
      %v3351 = vpop.f32.mrf.mxu0
      %3352 = vmatprep.mubr.bf16.mxu0 0
      %3353 = vmatmul.mubr.bf16.gmra.mxu0 %v1948
      %v3354 = vpop.f32.mrf.mxu0
      %v3355 = vadd.f32 0.0, %v3354
      %v3356 = vpop.f32.mrf.mxu0
      %v3357 = vpop.f32.mrf.mxu0
      %v3358 = vadd.f32 0.0, %v3357
      %v3359 = vpop.f32.mrf.mxu0
      %3360 = vmatprep.mubr.bf16.mxu0 0
      %3361 = vmatmul.mubr.bf16.gmra.mxu0 %v1951
      %v3362 = vpop.f32.mrf.mxu0
      %v3363 = vadd.f32 0.0, %v3362
      %v3364 = vpop.f32.mrf.mxu0
      %v3365 = vpop.f32.mrf.mxu0
      %v3366 = vadd.f32 0.0, %v3365
      %v3367 = vpop.f32.mrf.mxu0
      %3368 = vmatprep.mubr.bf16.mxu0 0
      %3369 = vmatmul.mubr.bf16.gmra.mxu0 %v1954
      %v3370 = vpop.f32.mrf.mxu0
      %v3371 = vadd.f32 0.0, %v3370
      %v3372 = vpop.f32.mrf.mxu0
      %v3373 = vpop.f32.mrf.mxu0
      %v3374 = vadd.f32 0.0, %v3373
      %v3375 = vpop.f32.mrf.mxu0
      %3376 = vmatprep.mubr.bf16.mxu0 0
      %3377 = vmatmul.mubr.bf16.gmra.mxu0 %v1957
      %v3378 = vpop.f32.mrf.mxu0
      %v3379 = vadd.f32 0.0, %v3378
      %v3380 = vpop.f32.mrf.mxu0
      %v3381 = vpop.f32.mrf.mxu0
      %v3382 = vadd.f32 0.0, %v3381
      %v3383 = vpop.f32.mrf.mxu0
      %3384 = vmatprep.mubr.bf16.mxu0 0
      %3385 = vmatmul.mubr.bf16.gmra.mxu0 %v1960
      %v3386 = vpop.f32.mrf.mxu0
      %v3387 = vadd.f32 0.0, %v3386
      %v3388 = vpop.f32.mrf.mxu0
      %v3389 = vpop.f32.mrf.mxu0
      %v3390 = vadd.f32 0.0, %v3389
      %v3391 = vpop.f32.mrf.mxu0
      %3392 = vmatprep.mubr.bf16.mxu0 0
      %3393 = vmatmul.mubr.bf16.gmra.mxu0 %v1963
      %v3394 = vpop.f32.mrf.mxu0
      %v3395 = vadd.f32 0.0, %v3394
      %v3396 = vpop.f32.mrf.mxu0
      %v3397 = vpop.f32.mrf.mxu0
      %v3398 = vadd.f32 0.0, %v3397
      %v3399 = vpop.f32.mrf.mxu0
      %3400 = vmatprep.mubr.bf16.mxu0 0
      %3401 = vmatmul.mubr.bf16.gmra.mxu0 %v1966
      %v3402 = vpop.f32.mrf.mxu0
      %v3403 = vadd.f32 0.0, %v3402
      %v3404 = vpop.f32.mrf.mxu0
      %v3405 = vpop.f32.mrf.mxu0
      %v3406 = vadd.f32 0.0, %v3405
      %v3407 = vpop.f32.mrf.mxu0
      %3408 = vmatprep.mubr.bf16.mxu0 0
      %3409 = vmatmul.mubr.bf16.gmra.mxu0 %v1969
      %v3410 = vpop.f32.mrf.mxu0
      %v3411 = vadd.f32 0.0, %v3410
      %v3412 = vpop.f32.mrf.mxu0
      %v3413 = vpop.f32.mrf.mxu0
      %v3414 = vadd.f32 0.0, %v3413
      %v3415 = vpop.f32.mrf.mxu0
      %3416 = vmatprep.mubr.bf16.mxu0 0
      %3417 = vmatmul.mubr.bf16.gmra.mxu0 %v2620
      %v3418 = vpop.f32.mrf.mxu0
      %v3419 = vadd.f32 0.0, %v3418
      %v3420 = vpop.f32.mrf.mxu0
      %v3421 = vpop.f32.mrf.mxu0
      %v3422 = vadd.f32 0.0, %v3421
      %v3423 = vpop.f32.mrf.mxu0
      %3424 = vmatprep.mubr.bf16.mxu0 0
      %3425 = vmatmul.mubr.bf16.gmra.mxu0 %v3267
      %v3426 = vpop.f32.mrf.mxu0
      %v3427 = vadd.f32 0.0, %v3426
      %v3428 = vpop.f32.mrf.mxu0
      %v3429 = vpop.f32.mrf.mxu0
      %v3430 = vadd.f32 0.0, %v3429
      %v3431 = vpop.f32.mrf.mxu0
      %3432 = vdwg.mxu0
      %v3433 = vadd.f32 %v3222, %v3307
      %v3434 = vadd.f32 %v3223, %v3310
      %v3435 = vadd.f32 %v3224, %v3315
      %v3436 = vadd.f32 %v3225, %v3318
      %v3437 = vadd.f32 %v3226, %v3323
      %v3438 = vadd.f32 %v3227, %v3326
      %v3439 = vadd.f32 %v3228, %v3331
      %v3440 = vadd.f32 %v3229, %v3334
      %v3441 = vadd.f32 %v3230, %v3339
      %v3442 = vadd.f32 %v3231, %v3342
      %v3443 = vadd.f32 %v3232, %v3347
      %v3444 = vadd.f32 %v3233, %v3350
      %v3445 = vadd.f32 %v3234, %v3355
      %v3446 = vadd.f32 %v3235, %v3358
      %v3447 = vadd.f32 %v3236, %v3363
      %v3448 = vadd.f32 %v3237, %v3366
      %v3449 = vadd.f32 %v3238, %v3371
      %v3450 = vadd.f32 %v3239, %v3374
      %v3451 = vadd.f32 %v3240, %v3379
      %v3452 = vadd.f32 %v3241, %v3382
      %v3453 = vadd.f32 %v3242, %v3387
      %v3454 = vadd.f32 %v3243, %v3390
      %v3455 = vadd.f32 %v3244, %v3395
      %v3456 = vadd.f32 %v3245, %v3398
      %v3457 = vadd.f32 %v3246, %v3403
      %v3458 = vadd.f32 %v3247, %v3406
      %v3459 = vadd.f32 %v3248, %v3411
      %v3460 = vadd.f32 %v3249, %v3414
      %v3461 = vadd.f32 %v3250, %v3419
      %v3462 = vadd.f32 %v3251, %v3422
      %v3463 = vadd.f32 %v3252, %v3427
      %v3464 = vadd.f32 %v3253, %v3430
      %v3465 = vpack.c.bf16 %v3434, %v3433
      %v3466 = vpack.c.bf16 %v3436, %v3435
      %v3467 = vpack.c.bf16 %v3438, %v3437
      %v3468 = vpack.c.bf16 %v3440, %v3439
      %v3469 = vpack.c.bf16 %v3442, %v3441
      %v3470 = vpack.c.bf16 %v3444, %v3443
      %v3471 = vpack.c.bf16 %v3446, %v3445
      %v3472 = vpack.c.bf16 %v3448, %v3447
      %v3473 = vpack.c.bf16 %v3450, %v3449
      %v3474 = vpack.c.bf16 %v3452, %v3451
      %v3475 = vpack.c.bf16 %v3454, %v3453
      %v3476 = vpack.c.bf16 %v3456, %v3455
      %v3477 = vpack.c.bf16 %v3458, %v3457
      %v3478 = vpack.c.bf16 %v3460, %v3459
      %v3479 = vpack.c.bf16 %v3462, %v3461
      %v3480 = vpack.c.bf16 %v3464, %v3463
      %v3497 = vunpack.c.l.b16 %v3465
      %v3498 = vunpack.c.h.b16 %v3465
      %v3499 = vunpack.c.l.b16 %v3466
      %v3500 = vunpack.c.h.b16 %v3466
      %v3501 = vunpack.c.l.b16 %v3467
      %v3502 = vunpack.c.h.b16 %v3467
      %v3503 = vunpack.c.l.b16 %v3468
      %v3504 = vunpack.c.h.b16 %v3468
      %v3505 = vunpack.c.l.b16 %v3469
      %v3506 = vunpack.c.h.b16 %v3469
      %v3507 = vunpack.c.l.b16 %v3470
      %v3508 = vunpack.c.h.b16 %v3470
      %v3509 = vunpack.c.l.b16 %v3471
      %v3510 = vunpack.c.h.b16 %v3471
      %v3511 = vunpack.c.l.b16 %v3472
      %v3512 = vunpack.c.h.b16 %v3472
      %v3513 = vunpack.c.l.b16 %v3473
      %v3514 = vunpack.c.h.b16 %v3473
      %v3515 = vunpack.c.l.b16 %v3474
      %v3516 = vunpack.c.h.b16 %v3474
      %v3517 = vunpack.c.l.b16 %v3475
      %v3518 = vunpack.c.h.b16 %v3475
      %v3519 = vunpack.c.l.b16 %v3476
      %v3520 = vunpack.c.h.b16 %v3476
      %v3521 = vunpack.c.l.b16 %v3477
      %v3522 = vunpack.c.h.b16 %v3477
      %v3523 = vunpack.c.l.b16 %v3478
      %v3524 = vunpack.c.h.b16 %v3478
      %v3525 = vunpack.c.l.b16 %v3479
      %v3526 = vunpack.c.h.b16 %v3479
      %v3527 = vunpack.c.l.b16 %v3480
      %v3528 = vunpack.c.h.b16 %v3480
      %v3529 = vpack.c.b16 %v3497, %v3497
      %v3530 = vpack.c.b16 %v3498, %v3498
      %v3531 = vpack.c.b16 %v3499, %v3499
      %v3532 = vpack.c.b16 %v3500, %v3500
      %v3533 = vpack.c.b16 %v3501, %v3501
      %v3534 = vpack.c.b16 %v3502, %v3502
      %v3535 = vpack.c.b16 %v3503, %v3503
      %v3536 = vpack.c.b16 %v3504, %v3504
      %v3537 = vpack.c.b16 %v3505, %v3505
      %v3538 = vpack.c.b16 %v3506, %v3506
      %v3539 = vpack.c.b16 %v3507, %v3507
      %v3540 = vpack.c.b16 %v3508, %v3508
      %v3541 = vpack.c.b16 %v3509, %v3509
      %v3542 = vpack.c.b16 %v3510, %v3510
      %v3543 = vpack.c.b16 %v3511, %v3511
      %v3544 = vpack.c.b16 %v3512, %v3512
      %v3545 = vpack.c.b16 %v3513, %v3513
      %v3546 = vpack.c.b16 %v3514, %v3514
      %v3547 = vpack.c.b16 %v3515, %v3515
      %v3548 = vpack.c.b16 %v3516, %v3516
      %v3549 = vpack.c.b16 %v3517, %v3517
      %v3550 = vpack.c.b16 %v3518, %v3518
      %v3551 = vpack.c.b16 %v3519, %v3519
      %v3552 = vpack.c.b16 %v3520, %v3520
      %v3553 = vpack.c.b16 %v3521, %v3521
      %v3554 = vpack.c.b16 %v3522, %v3522
      %v3555 = vpack.c.b16 %v3523, %v3523
      %v3556 = vpack.c.b16 %v3524, %v3524
      %v3557 = vpack.c.b16 %v3525, %v3525
      %v3558 = vpack.c.b16 %v3526, %v3526
      %v3559 = vpack.c.b16 %v3527, %v3527
      %v3560 = vpack.c.b16 %v3528, %v3528
      %3593 = vst.msk [vmem:[%s200] sm:$0xf] %vm630, %v3529
      %3594 = vst.msk [vmem:[%s200 + $0x4] sm:$0xf] %vm630, %v3530
      %3595 = vst.msk [vmem:[%s200 + $0x8] sm:$0xf] %vm630, %v3531
      %3596 = vst.msk [vmem:[%s200 + $0xc] sm:$0xf] %vm630, %v3532
      %3597 = vst.msk [vmem:[%s200 + $0x10] sm:$0xf] %vm630, %v3533
      %3598 = vst.msk [vmem:[%s200 + $0x14] sm:$0xf] %vm630, %v3534
      %3599 = vst.msk [vmem:[%s200 + $0x18] sm:$0xf] %vm630, %v3535
      %3600 = vst.msk [vmem:[%s200 + $0x1c] sm:$0xf] %vm630, %v3536
      %3601 = vst.msk [vmem:[%s200 + $0x20] sm:$0xf] %vm630, %v3537
      %3602 = vst.msk [vmem:[%s200 + $0x24] sm:$0xf] %vm630, %v3538
      %3603 = vst.msk [vmem:[%s200 + $0x28] sm:$0xf] %vm630, %v3539
      %3604 = vst.msk [vmem:[%s200 + $0x2c] sm:$0xf] %vm630, %v3540
      %3605 = vst.msk [vmem:[%s200 + $0x30] sm:$0xf] %vm630, %v3541
      %3606 = vst.msk [vmem:[%s200 + $0x34] sm:$0xf] %vm630, %v3542
      %3607 = vst.msk [vmem:[%s200 + $0x38] sm:$0xf] %vm630, %v3543
      %3608 = vst.msk [vmem:[%s200 + $0x3c] sm:$0xf] %vm630, %v3544
      %3609 = vst.msk [vmem:[%s200 + $0x40] sm:$0xf] %vm630, %v3545
      %3610 = vst.msk [vmem:[%s200 + $0x44] sm:$0xf] %vm630, %v3546
      %3611 = vst.msk [vmem:[%s200 + $0x48] sm:$0xf] %vm630, %v3547
      %3612 = vst.msk [vmem:[%s200 + $0x4c] sm:$0xf] %vm630, %v3548
      %3613 = vst.msk [vmem:[%s200 + $0x50] sm:$0xf] %vm630, %v3549
      %3614 = vst.msk [vmem:[%s200 + $0x54] sm:$0xf] %vm630, %v3550
      %3615 = vst.msk [vmem:[%s200 + $0x58] sm:$0xf] %vm630, %v3551
      %3616 = vst.msk [vmem:[%s200 + $0x5c] sm:$0xf] %vm630, %v3552
      %3617 = vst.msk [vmem:[%s200 + $0x60] sm:$0xf] %vm630, %v3553
      %3618 = vst.msk [vmem:[%s200 + $0x64] sm:$0xf] %vm630, %v3554
      %3619 = vst.msk [vmem:[%s200 + $0x68] sm:$0xf] %vm630, %v3555
      %3620 = vst.msk [vmem:[%s200 + $0x6c] sm:$0xf] %vm630, %v3556
      %3621 = vst.msk [vmem:[%s200 + $0x70] sm:$0xf] %vm630, %v3557
      %3622 = vst.msk [vmem:[%s200 + $0x74] sm:$0xf] %vm630, %v3558
      %3623 = vst.msk [vmem:[%s200 + $0x78] sm:$0xf] %vm630, %v3559
      %3624 = vst.msk [vmem:[%s200 + $0x7c] sm:$0xf] %vm630, %v3560
      %v3625 = vsel %vm1237, %v3433, 0.0
      %v3626 = vsel %vm1237, %v3434, 0.0
      %v3627 = vadd.f32 %v3625, %v3626
      %v3628 = vsel %vm1237, %v3435, 0.0
      %v3629 = vadd.f32 %v3627, %v3628
      %v3630 = vsel %vm1237, %v3436, 0.0
      %v3631 = vadd.f32 %v3629, %v3630
      %v3632 = vsel %vm1237, %v3437, 0.0
      %v3633 = vadd.f32 %v3631, %v3632
      %v3634 = vsel %vm1237, %v3438, 0.0
      %v3635 = vadd.f32 %v3633, %v3634
      %v3636 = vsel %vm1237, %v3439, 0.0
      %v3637 = vadd.f32 %v3635, %v3636
      %v3638 = vsel %vm1237, %v3440, 0.0
      %v3639 = vadd.f32 %v3637, %v3638
      %v3640 = vsel %vm1237, %v3441, 0.0
      %v3641 = vadd.f32 %v3639, %v3640
      %v3642 = vsel %vm1237, %v3442, 0.0
      %v3643 = vadd.f32 %v3641, %v3642
      %v3644 = vsel %vm1237, %v3443, 0.0
      %v3645 = vadd.f32 %v3643, %v3644
      %v3646 = vsel %vm1237, %v3444, 0.0
      %v3647 = vadd.f32 %v3645, %v3646
      %v3648 = vsel %vm1237, %v3445, 0.0
      %v3649 = vadd.f32 %v3647, %v3648
      %v3650 = vsel %vm1237, %v3446, 0.0
      %v3651 = vadd.f32 %v3649, %v3650
      %v3652 = vsel %vm1237, %v3447, 0.0
      %v3653 = vadd.f32 %v3651, %v3652
      %v3654 = vsel %vm1237, %v3448, 0.0
      %v3655 = vadd.f32 %v3653, %v3654
      %v3656 = vsel %vm1237, %v3449, 0.0
      %v3657 = vadd.f32 %v3655, %v3656
      %v3658 = vsel %vm1237, %v3450, 0.0
      %v3659 = vadd.f32 %v3657, %v3658
      %v3660 = vsel %vm1237, %v3451, 0.0
      %v3661 = vadd.f32 %v3659, %v3660
      %v3662 = vsel %vm1237, %v3452, 0.0
      %v3663 = vadd.f32 %v3661, %v3662
      %v3664 = vsel %vm1237, %v3453, 0.0
      %v3665 = vadd.f32 %v3663, %v3664
      %v3666 = vsel %vm1237, %v3454, 0.0
      %v3667 = vadd.f32 %v3665, %v3666
      %v3668 = vsel %vm1237, %v3455, 0.0
      %v3669 = vadd.f32 %v3667, %v3668
      %v3670 = vsel %vm1237, %v3456, 0.0
      %v3671 = vadd.f32 %v3669, %v3670
      %v3672 = vsel %vm1237, %v3457, 0.0
      %v3673 = vadd.f32 %v3671, %v3672
      %v3674 = vsel %vm1237, %v3458, 0.0
      %v3675 = vadd.f32 %v3673, %v3674
      %v3676 = vsel %vm1237, %v3459, 0.0
      %v3677 = vadd.f32 %v3675, %v3676
      %v3678 = vsel %vm1237, %v3460, 0.0
      %v3679 = vadd.f32 %v3677, %v3678
      %v3680 = vsel %vm1237, %v3461, 0.0
      %v3681 = vadd.f32 %v3679, %v3680
      %v3682 = vsel %vm1237, %v3462, 0.0
      %v3683 = vadd.f32 %v3681, %v3682
      %v3684 = vsel %vm1237, %v3463, 0.0
      %v3685 = vadd.f32 %v3683, %v3684
      %v3686 = vsel %vm1237, %v3464, 0.0
      %v3687 = vadd.f32 %v3685, %v3686
      %v3688 = vrot.slane %v3687, 4
      %v3689 = vadd.f32 %v3687, %v3688
      %v3690 = vrot.slane %v3689, 2
      %v3691 = vadd.f32 %v3689, %v3690
      %v3692 = vrot.slane %v3691, 1
      %v3693 = vadd.f32 %v3691, %v3692
      %v3694 = vadd.f32 %v3693, 0.0
      %v3695 = vmul.f32 %v3433, %v3433
      %v3696 = vmul.f32 %v3434, %v3434
      %v3697 = vmul.f32 %v3435, %v3435
      %v3698 = vmul.f32 %v3436, %v3436
      %v3699 = vmul.f32 %v3437, %v3437
      %v3700 = vmul.f32 %v3438, %v3438
      %v3701 = vmul.f32 %v3439, %v3439
      %v3702 = vmul.f32 %v3440, %v3440
      %v3703 = vmul.f32 %v3441, %v3441
      %v3704 = vmul.f32 %v3442, %v3442
      %v3705 = vmul.f32 %v3443, %v3443
      %v3706 = vmul.f32 %v3444, %v3444
      %v3707 = vmul.f32 %v3445, %v3445
      %v3708 = vmul.f32 %v3446, %v3446
      %v3709 = vmul.f32 %v3447, %v3447
      %v3710 = vmul.f32 %v3448, %v3448
      %v3711 = vmul.f32 %v3449, %v3449
      %v3712 = vmul.f32 %v3450, %v3450
      %v3713 = vmul.f32 %v3451, %v3451
      %v3714 = vmul.f32 %v3452, %v3452
      %v3715 = vmul.f32 %v3453, %v3453
      %v3716 = vmul.f32 %v3454, %v3454
      %v3717 = vmul.f32 %v3455, %v3455
      %v3718 = vmul.f32 %v3456, %v3456
      %v3719 = vmul.f32 %v3457, %v3457
      %v3720 = vmul.f32 %v3458, %v3458
      %v3721 = vmul.f32 %v3459, %v3459
      %v3722 = vmul.f32 %v3460, %v3460
      %v3723 = vmul.f32 %v3461, %v3461
      %v3724 = vmul.f32 %v3462, %v3462
      %v3725 = vmul.f32 %v3463, %v3463
      %v3726 = vmul.f32 %v3464, %v3464
      %v3727 = vsel %vm1237, %v3695, 0.0
      %v3728 = vsel %vm1237, %v3696, 0.0
      %v3729 = vadd.f32 %v3727, %v3728
      %v3730 = vsel %vm1237, %v3697, 0.0
      %v3731 = vadd.f32 %v3729, %v3730
      %v3732 = vsel %vm1237, %v3698, 0.0
      %v3733 = vadd.f32 %v3731, %v3732
      %v3734 = vsel %vm1237, %v3699, 0.0
      %v3735 = vadd.f32 %v3733, %v3734
      %v3736 = vsel %vm1237, %v3700, 0.0
      %v3737 = vadd.f32 %v3735, %v3736
      %v3738 = vsel %vm1237, %v3701, 0.0
      %v3739 = vadd.f32 %v3737, %v3738
      %v3740 = vsel %vm1237, %v3702, 0.0
      %v3741 = vadd.f32 %v3739, %v3740
      %v3742 = vsel %vm1237, %v3703, 0.0
      %v3743 = vadd.f32 %v3741, %v3742
      %v3744 = vsel %vm1237, %v3704, 0.0
      %v3745 = vadd.f32 %v3743, %v3744
      %v3746 = vsel %vm1237, %v3705, 0.0
      %v3747 = vadd.f32 %v3745, %v3746
      %v3748 = vsel %vm1237, %v3706, 0.0
      %v3749 = vadd.f32 %v3747, %v3748
      %v3750 = vsel %vm1237, %v3707, 0.0
      %v3751 = vadd.f32 %v3749, %v3750
      %v3752 = vsel %vm1237, %v3708, 0.0
      %v3753 = vadd.f32 %v3751, %v3752
      %v3754 = vsel %vm1237, %v3709, 0.0
      %v3755 = vadd.f32 %v3753, %v3754
      %v3756 = vsel %vm1237, %v3710, 0.0
      %v3757 = vadd.f32 %v3755, %v3756
      %v3758 = vsel %vm1237, %v3711, 0.0
      %v3759 = vadd.f32 %v3757, %v3758
      %v3760 = vsel %vm1237, %v3712, 0.0
      %v3761 = vadd.f32 %v3759, %v3760
      %v3762 = vsel %vm1237, %v3713, 0.0
      %v3763 = vadd.f32 %v3761, %v3762
      %v3764 = vsel %vm1237, %v3714, 0.0
      %v3765 = vadd.f32 %v3763, %v3764
      %v3766 = vsel %vm1237, %v3715, 0.0
      %v3767 = vadd.f32 %v3765, %v3766
      %v3768 = vsel %vm1237, %v3716, 0.0
      %v3769 = vadd.f32 %v3767, %v3768
      %v3770 = vsel %vm1237, %v3717, 0.0
      %v3771 = vadd.f32 %v3769, %v3770
      %v3772 = vsel %vm1237, %v3718, 0.0
      %v3773 = vadd.f32 %v3771, %v3772
      %v3774 = vsel %vm1237, %v3719, 0.0
      %v3775 = vadd.f32 %v3773, %v3774
      %v3776 = vsel %vm1237, %v3720, 0.0
      %v3777 = vadd.f32 %v3775, %v3776
      %v3778 = vsel %vm1237, %v3721, 0.0
      %v3779 = vadd.f32 %v3777, %v3778
      %v3780 = vsel %vm1237, %v3722, 0.0
      %v3781 = vadd.f32 %v3779, %v3780
      %v3782 = vsel %vm1237, %v3723, 0.0
      %v3783 = vadd.f32 %v3781, %v3782
      %v3784 = vsel %vm1237, %v3724, 0.0
      %v3785 = vadd.f32 %v3783, %v3784
      %v3786 = vsel %vm1237, %v3725, 0.0
      %v3787 = vadd.f32 %v3785, %v3786
      %v3788 = vsel %vm1237, %v3726, 0.0
      %v3789 = vadd.f32 %v3787, %v3788
      %v3790 = vrot.slane %v3789, 4
      %v3791 = vadd.f32 %v3789, %v3790
      %v3792 = vrot.slane %v3791, 2
      %v3793 = vadd.f32 %v3791, %v3792
      %v3794 = vrot.slane %v3793, 1
      %v3795 = vadd.f32 %v3793, %v3794
      %v3796 = vadd.f32 %v3795, 0.0
      %v3797 = vld [vmem:[%s205] sm:$0x3]
      %vm3798 = vcmask 1040384
      %v3799 = vsel %vm3798, %v3694, %v3796
      %v3800 = vadd.f32 %v3797, %v3799
      %vm3801 = vcmask 25600
      %3802 = vst.msk [vmem:[%s205] sm:$0x3] %vm3801, %v3800
      %s3803 = sadd.s32 %s19, %s20
      %p3804 = scmp.lt.s32.totalorder %s3803, 1
      %s3805 = scalar_select %p3804, %s3803, 1
      %s3806 = smul.addr %s3805, 32
      %s3807 = smul.addr %s3806, 4
      %s3808 = scalar_lea.vmem %s2, %s3807
      %p3809 = scmp.lt.s32.totalorder %s19, 1
      %s3810 = scalar_select %p3809, %s19, 1
      %s3811 = smul.addr %s3810, 2
      %s3812 = scalar_lea.vmem %s3, %s3811
      // Predicated region
      $region33: #{basic_block_forward.3} parent=27 // pred_check
        %p3813 = pneg %p96
      $region34: #{basic_block_forward.3} parent=27 // pred_check_branch
        %3815 = sbr.rel (%p3813) target = $region36
      $region35: #{basic_block_forward.3} parent=27 // pred_region
        %s3816 = sadd.s32 %s19, %s20
      $region36: #{basic_block_forward.3} parent=27 // pred_fallthru
        _
      // Predicated region
      $region37: #{basic_block_forward.3} parent=27 // pred_check
        %p3817 = pneg %p122
      $region38: #{basic_block_forward.3} parent=27 // pred_check_branch
        %3819 = sbr.rel (%p3817) target = $region40
      $region39: #{basic_block_forward.3} parent=27 // pred_region
        _
      $region40: #{basic_block_forward.3} parent=27 // pred_fallthru
        _
    $region28: #{basic_block_forward.3} parent=5 // pred_fallthru
      _
    %p3820 = scmp.le.s32.totalorder 2, %s10
    // Predicated region
    $region41: #{basic_block_forward.3} parent=5 // pred_check
      %p3821 = pneg %p3820
    $region42: #{basic_block_forward.3} parent=5 // pred_check_branch
      %3823 = sbr.rel (%p3821) target = $region44
    $region43: #{basic_block_forward.3} parent=5 // pred_region
      %s3824 = ssub.s32 %s10, 2
      // Predicated region
      $region45: #{basic_block_forward.3} parent=43 // pred_check
        %p3825 = pneg %p102
      $region46: #{basic_block_forward.3} parent=43 // pred_check_branch
        %3827 = sbr.rel (%p3825) target = $region48
      $region47: #{basic_block_forward.3} parent=43 // pred_region
        %s3828 = sadd.s32 %s21, %s22
        %p3829 = scmp.lt.s32.totalorder %s3828, 1
        %s3830 = scalar_select %p3829, %s3828, 1
        %s3831 = smul.addr %s3830, 32
        %s3832 = smul.addr %s3831, 4
        %s3833 = scalar_lea.vmem %s2, %s3832
      $region48: #{basic_block_forward.3} parent=43 // pred_fallthru
        _
      // Predicated region
      $region49: #{basic_block_forward.3} parent=43 // pred_check
        %p3834 = pneg %p128
      $region50: #{basic_block_forward.3} parent=43 // pred_check_branch
        %3836 = sbr.rel (%p3834) target = $region52
      $region51: #{basic_block_forward.3} parent=43 // pred_region
        %p3837 = scmp.lt.s32.totalorder %s21, 1
        %s3838 = scalar_select %p3837, %s21, 1
        %s3839 = smul.addr %s3838, 2
        %s3840 = scalar_lea.vmem %s3, %s3839
      $region52: #{basic_block_forward.3} parent=43 // pred_fallthru
        _
    $region44: #{basic_block_forward.3} parent=5 // pred_fallthru
      _
  $region6: #{basic_block_forward.3} parent=0 // loop_footer
    %s14 = sadd.s32 1, %s10
  $region7: #{basic_block_forward.3} parent=0 // loop_footer_branch
    %9 = sbr.rel target = $region3
  $region8: #{basic_block_forward.3} parent=0 // loop_exit
    _

// kernel: basic_block_forward.4
$region0: #{basic_block_forward.4}
  #allocation0 [shape = 'u32[]', space=smem, size = 0x4, offset = 0x4, fixed_abs, tag = 'smem constant byte address 0x4 - core index']
  #allocation1 [shape = 'u32[144,128]{1,0:T(1,128)}', space=vmem, size = 0x12000, scoped, tag = 'internal scratch']
  #allocation2 [shape = 'bf16[18,24,4]{2,1,0:T(8,128)(2,1)}', space=vmem, size = 0x1b000, scoped, tag = 'scratch operand']
  %s0 = inlined_call_operand.vmem [shape: bf16[2,256,4], index: 0, kind: input, shape index: {}]
  %s1 = inlined_call_operand.vmem [shape: f32[1,4], index: 1, kind: input, shape index: {}]
  %s2 = inlined_call_operand.vmem [shape: f32[1,4], index: 2, kind: input, shape index: {}]
  %s3 = inlined_call_operand.vmem [shape: bf16[36,4], index: 3, kind: input, shape index: {}]
  %s4 = inlined_call_operand.vmem [shape: bf16[2,256,4], index: 4, kind: output, shape index: {0}]
  %s5 = inlined_call_operand.vmem [shape: f32[2,2,4], index: 5, kind: output, shape index: {1}]
  %6 = xla_tuple %s4, %s5
  %s7 = sld [smem:[#allocation0]]
  $region61: #{basic_block_forward.4} parent=0
    _
  %s9 = ssub.s32 1, %s7
  %s10 = scalar_select 0, %s9, %s7
  loop: start=0, step=1, limit=4
  $region2: #{basic_block_forward.4} parent=0 // loop_pre_header
    _
  $region3: #{basic_block_forward.4} parent=0 // loop_header
    %s12 = sphi 0, %s16
    %p13 = scmp.ge.s32.totalorder %s12, 4
    %s19 = sphi 0, %s31
    %s20 = sphi 0, %s27
    %s21 = sphi 0, %s19
    %s22 = sphi 0, %s20
    %s23 = sphi 0, %s21
    %s24 = sphi 0, %s22
    %s36 = sphi 0, %s38
    %s39 = sphi 0, %s36
    %s40 = sphi 0, %s39
    %s56 = sphi 0, %s40
    %s60 = sphi 0, %s60
    %s62 = sphi 0, %s60
    %s63 = sphi 0, %s62
    %s77 = sphi 0, %s63
    %s81 = sphi 0, %s81
    %s83 = sphi 0, %s81
    %s84 = sphi 0, %s83
    %s98 = sphi 0, %s84
    %s102 = sphi 0, %s102
    %s104 = sphi 0, %s102
    %s105 = sphi 0, %s104
    %s119 = sphi 0, %s105
    %s127 = sphi 0, %s129
    %s130 = sphi 0, %s127
    %s131 = sphi 0, %s130
    %s147 = sphi 0, %s131
    %s153 = sphi 0, %s155
    %s156 = sphi 0, %s153
    %s157 = sphi 0, %s156
    %s173 = sphi 0, %s157
  $region4: #{basic_block_forward.4} parent=0 // loop_header_branch
    %15 = sbr.rel (%p13) target = $region8
  $region5: #{basic_block_forward.4} parent=0 // loop_body
    %s17 = ssub.s32 %s12, 1
    %s18 = ssub.s32 %s12, 2
    %s25 = sadd.s32 1, %s20
    %p26 = scmp.ge.s32.totalorder %s25, 1
    %s27 = scalar_select %p26, 0, %s25
    %s28 = sadd.s32 1, %s19
    %s29 = scalar_select %p26, %s28, %s19
    %p30 = scmp.ge.s32.totalorder %s29, 2
    %s31 = scalar_select %p30, 0, %s29
    %s32 = sadd.s32 %s19, %s20
    %s33 = sadd.s32 %s31, %s27
    %s34 = ssub.s32 %s32, %s33
    %p35 = scmp.eq.s32.totalorder %s34, 0
    %s37 = sadd.s32 %s36, 1
    %s38 = scalar_select %p35, %s36, %s37
    %p41 = pneg %p35
    %p42 = scmp.eq.s32.totalorder %s12, 1
    %p43 = por %p41, %p42
    %p44 = scmp.ne.s32.totalorder %s36, %s39
    %p45 = scmp.eq.s32.totalorder %s12, 0
    %p46 = por %p44, %p45
    %p47 = scmp.ne.s32.totalorder %s36, %s39
    %p48 = scmp.eq.s32.totalorder %s17, 1
    %p49 = por %p47, %p48
    %p50 = scmp.ne.s32.totalorder %s39, %s40
    %p51 = scmp.eq.s32.totalorder %s17, 0
    %p52 = por %p50, %p51
    %p53 = scmp.ne.s32.totalorder %s39, %s40
    %p54 = scmp.eq.s32.totalorder %s18, 1
    %p55 = por %p53, %p54
    %p57 = scmp.ne.s32.totalorder %s40, %s56
    %p58 = scmp.eq.s32.totalorder %s18, 0
    %p59 = por %p57, %p58
    %s61 = sadd.s32 %s60, 1
    %p64 = scmp.eq.s32.totalorder %s12, 1
    %p65 = scmp.ne.s32.totalorder %s60, %s62
    %p66 = scmp.eq.s32.totalorder %s12, 0
    %p67 = por %p65, %p66
    %p68 = scmp.ne.s32.totalorder %s60, %s62
    %p69 = scmp.eq.s32.totalorder %s17, 1
    %p70 = por %p68, %p69
    %p71 = scmp.ne.s32.totalorder %s62, %s63
    %p72 = scmp.eq.s32.totalorder %s17, 0
    %p73 = por %p71, %p72
    %p74 = scmp.ne.s32.totalorder %s62, %s63
    %p75 = scmp.eq.s32.totalorder %s18, 1
    %p76 = por %p74, %p75
    %p78 = scmp.ne.s32.totalorder %s63, %s77
    %p79 = scmp.eq.s32.totalorder %s18, 0
    %p80 = por %p78, %p79
    %s82 = sadd.s32 %s81, 1
    %p85 = scmp.eq.s32.totalorder %s12, 1
    %p86 = scmp.ne.s32.totalorder %s81, %s83
    %p87 = scmp.eq.s32.totalorder %s12, 0
    %p88 = por %p86, %p87
    %p89 = scmp.ne.s32.totalorder %s81, %s83
    %p90 = scmp.eq.s32.totalorder %s17, 1
    %p91 = por %p89, %p90
    %p92 = scmp.ne.s32.totalorder %s83, %s84
    %p93 = scmp.eq.s32.totalorder %s17, 0
    %p94 = por %p92, %p93
    %p95 = scmp.ne.s32.totalorder %s83, %s84
    %p96 = scmp.eq.s32.totalorder %s18, 1
    %p97 = por %p95, %p96
    %p99 = scmp.ne.s32.totalorder %s84, %s98
    %p100 = scmp.eq.s32.totalorder %s18, 0
    %p101 = por %p99, %p100
    %s103 = sadd.s32 %s102, 1
    %p106 = scmp.eq.s32.totalorder %s12, 1
    %p107 = scmp.ne.s32.totalorder %s102, %s104
    %p108 = scmp.eq.s32.totalorder %s12, 0
    %p109 = por %p107, %p108
    %p110 = scmp.ne.s32.totalorder %s102, %s104
    %p111 = scmp.eq.s32.totalorder %s17, 1
    %p112 = por %p110, %p111
    %p113 = scmp.ne.s32.totalorder %s104, %s105
    %p114 = scmp.eq.s32.totalorder %s17, 0
    %p115 = por %p113, %p114
    %p116 = scmp.ne.s32.totalorder %s104, %s105
    %p117 = scmp.eq.s32.totalorder %s18, 1
    %p118 = por %p116, %p117
    %p120 = scmp.ne.s32.totalorder %s105, %s119
    %p121 = scmp.eq.s32.totalorder %s18, 0
    %p122 = por %p120, %p121
    %s123 = sadd.s32 %s19, %s20
    %s124 = sadd.s32 %s31, %s27
    %s125 = ssub.s32 %s123, %s124
    %p126 = scmp.eq.s32.totalorder %s125, 0
    %s128 = sadd.s32 %s127, 1
    %s129 = scalar_select %p126, %s127, %s128
    %p132 = pneg %p126
    %p133 = scmp.eq.s32.totalorder %s12, 1
    %p134 = por %p132, %p133
    %p135 = scmp.ne.s32.totalorder %s127, %s130
    %p136 = scmp.eq.s32.totalorder %s12, 0
    %p137 = por %p135, %p136
    %p138 = scmp.ne.s32.totalorder %s127, %s130
    %p139 = scmp.eq.s32.totalorder %s17, 1
    %p140 = por %p138, %p139
    %p141 = scmp.ne.s32.totalorder %s130, %s131
    %p142 = scmp.eq.s32.totalorder %s17, 0
    %p143 = por %p141, %p142
    %p144 = scmp.ne.s32.totalorder %s130, %s131
    %p145 = scmp.eq.s32.totalorder %s18, 1
    %p146 = por %p144, %p145
    %p148 = scmp.ne.s32.totalorder %s131, %s147
    %p149 = scmp.eq.s32.totalorder %s18, 0
    %p150 = por %p148, %p149
    %s151 = ssub.s32 %s19, %s31
    %p152 = scmp.eq.s32.totalorder %s151, 0
    %s154 = sadd.s32 %s153, 1
    %s155 = scalar_select %p152, %s153, %s154
    %p158 = pneg %p152
    %p159 = scmp.eq.s32.totalorder %s12, 1
    %p160 = por %p158, %p159
    %p161 = scmp.ne.s32.totalorder %s153, %s156
    %p162 = scmp.eq.s32.totalorder %s12, 0
    %p163 = por %p161, %p162
    %p164 = scmp.ne.s32.totalorder %s153, %s156
    %p165 = scmp.eq.s32.totalorder %s17, 1
    %p166 = por %p164, %p165
    %p167 = scmp.ne.s32.totalorder %s156, %s157
    %p168 = scmp.eq.s32.totalorder %s17, 0
    %p169 = por %p167, %p168
    %p170 = scmp.ne.s32.totalorder %s156, %s157
    %p171 = scmp.eq.s32.totalorder %s18, 1
    %p172 = por %p170, %p171
    %p174 = scmp.ne.s32.totalorder %s157, %s173
    %p175 = scmp.eq.s32.totalorder %s18, 0
    %p176 = por %p174, %p175
    %p177 = scmp.le.s32.totalorder 1, %s12
    %p178 = scmp.lt.s32.totalorder %s12, 3
    %p179 = pnand %p177, %p178
    %p180 = pneg %p179
    // Predicated region
    $region9: #{basic_block_forward.4} parent=5 // pred_check
      _
    $region10: #{basic_block_forward.4} parent=5 // pred_check_branch
      %182 = sbr.rel (%p179) target = $region12
    $region11: #{basic_block_forward.4} parent=5 // pred_region
      %s183 = ssub.s32 %s12, 1
      // Predicated region
      $region13: #{basic_block_forward.4} parent=11 // pred_check
        %p184 = pneg %p73
      $region14: #{basic_block_forward.4} parent=11 // pred_check_branch
        %186 = sbr.rel (%p184) target = $region16
      $region15: #{basic_block_forward.4} parent=11 // pred_region
        _
      $region16: #{basic_block_forward.4} parent=11 // pred_fallthru
        _
      // Predicated region
      $region17: #{basic_block_forward.4} parent=11 // pred_check
        %p187 = pneg %p94
      $region18: #{basic_block_forward.4} parent=11 // pred_check_branch
        %189 = sbr.rel (%p187) target = $region20
      $region19: #{basic_block_forward.4} parent=11 // pred_region
        _
      $region20: #{basic_block_forward.4} parent=11 // pred_fallthru
        _
      // Predicated region
      $region21: #{basic_block_forward.4} parent=11 // pred_check
        %p190 = pneg %p115
      $region22: #{basic_block_forward.4} parent=11 // pred_check_branch
        %192 = sbr.rel (%p190) target = $region24
      $region23: #{basic_block_forward.4} parent=11 // pred_region
        _
      $region24: #{basic_block_forward.4} parent=11 // pred_fallthru
        _
    $region12: #{basic_block_forward.4} parent=5 // pred_fallthru
      _
    %p193 = scmp.lt.s32.totalorder %s12, 2
    // Predicated region
    $region25: #{basic_block_forward.4} parent=5 // pred_check
      %p194 = pneg %p193
    $region26: #{basic_block_forward.4} parent=5 // pred_check_branch
      %196 = sbr.rel (%p194) target = $region28
    $region27: #{basic_block_forward.4} parent=5 // pred_region
      // Predicated region
      $region29: #{basic_block_forward.4} parent=27 // pred_check
        %p197 = pneg %p46
      $region30: #{basic_block_forward.4} parent=27 // pred_check_branch
        %199 = sbr.rel (%p197) target = $region32
      $region31: #{basic_block_forward.4} parent=27 // pred_region
        %s200 = sadd.s32 %s19, %s20
        %p201 = scmp.lt.s32.totalorder %s200, 1
        %s202 = scalar_select %p201, %s200, 1
        %s203 = smul.addr %s202, 32
        %s204 = smul.addr %s203, 4
        %s205 = scalar_lea.vmem %s0, %s204
        %s206 = sadd.s32 %s19, %s20
      $region32: #{basic_block_forward.4} parent=27 // pred_fallthru
        _
    $region28: #{basic_block_forward.4} parent=5 // pred_fallthru
      _
    %p207 = scmp.le.s32.totalorder 1, %s12
    %p208 = scmp.lt.s32.totalorder %s12, 3
    %p209 = pnand %p207, %p208
    %p210 = pneg %p209
    // Predicated region
    $region33: #{basic_block_forward.4} parent=5 // pred_check
      _
    $region34: #{basic_block_forward.4} parent=5 // pred_check_branch
      %212 = sbr.rel (%p209) target = $region36
    $region35: #{basic_block_forward.4} parent=5 // pred_region
      %s213 = ssub.s32 %s12, 1
      %s214 = sadd.s32 %s21, %s22
      %p215 = scmp.lt.s32.totalorder %s214, 1
      %s216 = scalar_select %p215, %s214, 1
      %s217 = smul.addr %s216, 32
      %s218 = smul.addr %s217, 4
      %s219 = scalar_lea.vmem %s0, %s218
      %p220 = pneg %p52
      %p221 = pneg %p49
      %p222 = pneg %p73
      %p223 = pneg %p70
      %p224 = pneg %p94
      %p225 = pneg %p91
      %p226 = pneg %p115
      %p227 = pneg %p112
      %p228 = pneg %p143
      %p229 = pneg %p140
      %s230 = sadd.s32 %s21, %s22
      %p231 = scmp.lt.s32.totalorder %s230, 1
      %s232 = scalar_select %p231, %s230, 1
      %s233 = smul.addr %s232, 32
      %s234 = smul.addr %s233, 4
      %s235 = scalar_lea.vmem %s4, %s234
      %p236 = pneg %p169
      %p237 = pneg %p166
      %p238 = scmp.lt.s32.totalorder %s21, 1
      %s239 = scalar_select %p238, %s21, 1
      %s240 = smul.addr %s239, 2
      %s241 = scalar_lea.vmem %s5, %s240
      %s242 = sadd.s32 %s21, %s22
      %p243 = scmp.lt.s32.totalorder %s242, 1
      %s244 = scalar_select %p243, %s242, 1
      %s245 = smul.addr %s244, 32
      %s246 = smul.addr %s245, 4
      %s247 = scalar_lea.vmem %s0, %s246
      %s248 = sadd.s32 %s21, %s22
      %s249 = sadd.s32 %s21, %s22
      %p250 = scmp.lt.s32.totalorder %s249, 1
      %s251 = scalar_select %p250, %s249, 1
      %s252 = smul.addr %s251, 32
      %s253 = smul.addr %s252, 4
      %s254 = scalar_lea.vmem %s4, %s253
      %s255 = sadd.s32 %s21, %s22
      %p256 = scmp.lt.s32.totalorder %s21, 1
      %s257 = scalar_select %p256, %s21, 1
      %s258 = smul.addr %s257, 2
      %s259 = scalar_lea.vmem %s5, %s258
      %p261 = scmp.eq.s32.totalorder %s22, 0
      // Predicated region
      $region37: #{basic_block_forward.4} parent=35 // pred_check
        %p262 = pneg %p261
      $region38: #{basic_block_forward.4} parent=35 // pred_check_branch
        %264 = sbr.rel (%p262) target = $region40
      $region39: #{basic_block_forward.4} parent=35 // pred_region
        %vm265 = vcmask 27648
        %266 = vst.msk [vmem:[#allocation2] sm:$0xf] %vm265, 0
        %267 = vst.msk [vmem:[#allocation2 + $0x4] sm:$0xf] %vm265, 0
        %268 = vst.msk [vmem:[#allocation2 + $0x8] sm:$0xf] %vm265, 0
        %269 = vst.msk [vmem:[#allocation2 + $0xc] sm:$0xf] %vm265, 0
        %270 = vst.msk [vmem:[#allocation2 + $0x10] sm:$0xf] %vm265, 0
        %271 = vst.msk [vmem:[#allocation2 + $0x14] sm:$0xf] %vm265, 0
        %272 = vst.msk [vmem:[#allocation2 + $0x18] sm:$0xf] %vm265, 0
        %273 = vst.msk [vmem:[#allocation2 + $0x1c] sm:$0xf] %vm265, 0
        %274 = vst.msk [vmem:[#allocation2 + $0x20] sm:$0xf] %vm265, 0
        %275 = vst.msk [vmem:[#allocation2 + $0x24] sm:$0xf] %vm265, 0
        %276 = vst.msk [vmem:[#allocation2 + $0x28] sm:$0xf] %vm265, 0
        %277 = vst.msk [vmem:[#allocation2 + $0x2c] sm:$0xf] %vm265, 0
        %278 = vst.msk [vmem:[#allocation2 + $0x30] sm:$0xf] %vm265, 0
        %279 = vst.msk [vmem:[#allocation2 + $0x34] sm:$0xf] %vm265, 0
        %280 = vst.msk [vmem:[#allocation2 + $0x38] sm:$0xf] %vm265, 0
        %281 = vst.msk [vmem:[#allocation2 + $0x3c] sm:$0xf] %vm265, 0
        %282 = vst.msk [vmem:[#allocation2 + $0x40] sm:$0xf] %vm265, 0
        %283 = vst.msk [vmem:[#allocation2 + $0x44] sm:$0xf] %vm265, 0
        %284 = vst.msk [vmem:[#allocation2 + $0x48] sm:$0xf] %vm265, 0
        %285 = vst.msk [vmem:[#allocation2 + $0x4c] sm:$0xf] %vm265, 0
        %286 = vst.msk [vmem:[#allocation2 + $0x50] sm:$0xf] %vm265, 0
        %287 = vst.msk [vmem:[#allocation2 + $0x54] sm:$0xf] %vm265, 0
        %288 = vst.msk [vmem:[#allocation2 + $0x58] sm:$0xf] %vm265, 0
        %289 = vst.msk [vmem:[#allocation2 + $0x5c] sm:$0xf] %vm265, 0
        %290 = vst.msk [vmem:[#allocation2 + $0x60] sm:$0xf] %vm265, 0
        %291 = vst.msk [vmem:[#allocation2 + $0x64] sm:$0xf] %vm265, 0
        %292 = vst.msk [vmem:[#allocation2 + $0x68] sm:$0xf] %vm265, 0
        %293 = vst.msk [vmem:[#allocation2 + $0x6c] sm:$0xf] %vm265, 0
        %294 = vst.msk [vmem:[#allocation2 + $0x70] sm:$0xf] %vm265, 0
        %295 = vst.msk [vmem:[#allocation2 + $0x74] sm:$0xf] %vm265, 0
        %296 = vst.msk [vmem:[#allocation2 + $0x78] sm:$0xf] %vm265, 0
        %297 = vst.msk [vmem:[#allocation2 + $0x7c] sm:$0xf] %vm265, 0
        %298 = vst.msk [vmem:[#allocation2 + $0x80] sm:$0xf] %vm265, 0
        %299 = vst.msk [vmem:[#allocation2 + $0x84] sm:$0xf] %vm265, 0
        %300 = vst.msk [vmem:[#allocation2 + $0x88] sm:$0xf] %vm265, 0
        %301 = vst.msk [vmem:[#allocation2 + $0x8c] sm:$0xf] %vm265, 0
        %302 = vst.msk [vmem:[#allocation2 + $0x90] sm:$0xf] %vm265, 0
        %303 = vst.msk [vmem:[#allocation2 + $0x94] sm:$0xf] %vm265, 0
        %304 = vst.msk [vmem:[#allocation2 + $0x98] sm:$0xf] %vm265, 0
        %305 = vst.msk [vmem:[#allocation2 + $0x9c] sm:$0xf] %vm265, 0
        %306 = vst.msk [vmem:[#allocation2 + $0xa0] sm:$0xf] %vm265, 0
        %307 = vst.msk [vmem:[#allocation2 + $0xa4] sm:$0xf] %vm265, 0
        %308 = vst.msk [vmem:[#allocation2 + $0xa8] sm:$0xf] %vm265, 0
        %309 = vst.msk [vmem:[#allocation2 + $0xac] sm:$0xf] %vm265, 0
        %310 = vst.msk [vmem:[#allocation2 + $0xb0] sm:$0xf] %vm265, 0
        %311 = vst.msk [vmem:[#allocation2 + $0xb4] sm:$0xf] %vm265, 0
        %312 = vst.msk [vmem:[#allocation2 + $0xb8] sm:$0xf] %vm265, 0
        %313 = vst.msk [vmem:[#allocation2 + $0xbc] sm:$0xf] %vm265, 0
        %314 = vst.msk [vmem:[#allocation2 + $0xc0] sm:$0xf] %vm265, 0
        %315 = vst.msk [vmem:[#allocation2 + $0xc4] sm:$0xf] %vm265, 0
        %316 = vst.msk [vmem:[#allocation2 + $0xc8] sm:$0xf] %vm265, 0
        %317 = vst.msk [vmem:[#allocation2 + $0xcc] sm:$0xf] %vm265, 0
        %318 = vst.msk [vmem:[#allocation2 + $0xd0] sm:$0xf] %vm265, 0
        %319 = vst.msk [vmem:[#allocation2 + $0xd4] sm:$0xf] %vm265, 0
        %vm320 = vcmask 25600
        %321 = vst.msk [vmem:[%s259] sm:$0x3] %vm320, 0.0
      $region40: #{basic_block_forward.4} parent=35 // pred_fallthru
        _
      %v322 = vld [vmem:[%s247] sm:$0xf]
      %v323 = vld [vmem:[%s247 + $0x4] sm:$0xf]
      %v324 = vld [vmem:[%s247 + $0x8] sm:$0xf]
      %v325 = vld [vmem:[%s247 + $0xc] sm:$0xf]
      %v326 = vld [vmem:[%s247 + $0x10] sm:$0xf]
      %v327 = vld [vmem:[%s247 + $0x14] sm:$0xf]
      %v328 = vld [vmem:[%s247 + $0x18] sm:$0xf]
      %v329 = vld [vmem:[%s247 + $0x1c] sm:$0xf]
      %v330 = vld [vmem:[%s247 + $0x20] sm:$0xf]
      %v331 = vld [vmem:[%s247 + $0x24] sm:$0xf]
      %v332 = vld [vmem:[%s247 + $0x28] sm:$0xf]
      %v333 = vld [vmem:[%s247 + $0x2c] sm:$0xf]
      %v334 = vld [vmem:[%s247 + $0x30] sm:$0xf]
      %v335 = vld [vmem:[%s247 + $0x34] sm:$0xf]
      %v336 = vld [vmem:[%s247 + $0x38] sm:$0xf]
      %v337 = vld [vmem:[%s247 + $0x3c] sm:$0xf]
      %v338 = vld [vmem:[%s247 + $0x40] sm:$0xf]
      %v339 = vld [vmem:[%s247 + $0x44] sm:$0xf]
      %v340 = vld [vmem:[%s247 + $0x48] sm:$0xf]
      %v341 = vld [vmem:[%s247 + $0x4c] sm:$0xf]
      %v342 = vld [vmem:[%s247 + $0x50] sm:$0xf]
      %v343 = vld [vmem:[%s247 + $0x54] sm:$0xf]
      %v344 = vld [vmem:[%s247 + $0x58] sm:$0xf]
      %v345 = vld [vmem:[%s247 + $0x5c] sm:$0xf]
      %v346 = vld [vmem:[%s247 + $0x60] sm:$0xf]
      %v347 = vld [vmem:[%s247 + $0x64] sm:$0xf]
      %v348 = vld [vmem:[%s247 + $0x68] sm:$0xf]
      %v349 = vld [vmem:[%s247 + $0x6c] sm:$0xf]
      %v350 = vld [vmem:[%s247 + $0x70] sm:$0xf]
      %v351 = vld [vmem:[%s247 + $0x74] sm:$0xf]
      %v352 = vld [vmem:[%s247 + $0x78] sm:$0xf]
      %v353 = vld [vmem:[%s247 + $0x7c] sm:$0xf]
      %v354 = vunpack.c.l.bf16 %v322
      %v355 = vunpack.c.l.bf16 %v323
      %v356 = vunpack.c.l.bf16 %v324
      %v357 = vunpack.c.l.bf16 %v325
      %v358 = vunpack.c.l.bf16 %v326
      %v359 = vunpack.c.l.bf16 %v327
      %v360 = vunpack.c.l.bf16 %v328
      %v361 = vunpack.c.l.bf16 %v329
      %v362 = vunpack.c.l.bf16 %v330
      %v363 = vunpack.c.l.bf16 %v331
      %v364 = vunpack.c.l.bf16 %v332
      %v365 = vunpack.c.l.bf16 %v333
      %v366 = vunpack.c.l.bf16 %v334
      %v367 = vunpack.c.l.bf16 %v335
      %v368 = vunpack.c.l.bf16 %v336
      %v369 = vunpack.c.l.bf16 %v337
      %v370 = vunpack.c.l.bf16 %v338
      %v371 = vunpack.c.l.bf16 %v339
      %v372 = vunpack.c.l.bf16 %v340
      %v373 = vunpack.c.l.bf16 %v341
      %v374 = vunpack.c.l.bf16 %v342
      %v375 = vunpack.c.l.bf16 %v343
      %v376 = vunpack.c.l.bf16 %v344
      %v377 = vunpack.c.l.bf16 %v345
      %v378 = vunpack.c.l.bf16 %v346
      %v379 = vunpack.c.l.bf16 %v347
      %v380 = vunpack.c.l.bf16 %v348
      %v381 = vunpack.c.l.bf16 %v349
      %v382 = vunpack.c.l.bf16 %v350
      %v383 = vunpack.c.l.bf16 %v351
      %v384 = vunpack.c.l.bf16 %v352
      %v385 = vunpack.c.l.bf16 %v353
      %v386 = vld [vmem:[%s1] sm:$0x1]
      %v388 = vlaneseq
      %v389 = vshrl.u32 %v388, 7
      %v390 = vsub.s32 0, %v389
      %v391 = vrot.slane %v386, %v390
      %v393 = vmul.f32 %v354, %v391
      %v394 = vmul.f32 %v355, %v391
      %v395 = vmul.f32 %v356, %v391
      %v396 = vmul.f32 %v357, %v391
      %v397 = vmul.f32 %v358, %v391
      %v398 = vmul.f32 %v359, %v391
      %v399 = vmul.f32 %v360, %v391
      %v400 = vmul.f32 %v361, %v391
      %v401 = vmul.f32 %v362, %v391
      %v402 = vmul.f32 %v363, %v391
      %v403 = vmul.f32 %v364, %v391
      %v404 = vmul.f32 %v365, %v391
      %v405 = vmul.f32 %v366, %v391
      %v406 = vmul.f32 %v367, %v391
      %v407 = vmul.f32 %v368, %v391
      %v408 = vmul.f32 %v369, %v391
      %v409 = vmul.f32 %v370, %v391
      %v410 = vmul.f32 %v371, %v391
      %v411 = vmul.f32 %v372, %v391
      %v412 = vmul.f32 %v373, %v391
      %v413 = vmul.f32 %v374, %v391
      %v414 = vmul.f32 %v375, %v391
      %v415 = vmul.f32 %v376, %v391
      %v416 = vmul.f32 %v377, %v391
      %v417 = vmul.f32 %v378, %v391
      %v418 = vmul.f32 %v379, %v391
      %v419 = vmul.f32 %v380, %v391
      %v420 = vmul.f32 %v381, %v391
      %v421 = vmul.f32 %v382, %v391
      %v422 = vmul.f32 %v383, %v391
      %v423 = vmul.f32 %v384, %v391
      %v424 = vmul.f32 %v385, %v391
      %v425 = vld [vmem:[%s2] sm:$0x1]
      %v427 = vlaneseq
      %v428 = vshrl.u32 %v427, 7
      %v429 = vsub.s32 0, %v428
      %v430 = vrot.slane %v425, %v429
      %v432 = vadd.f32 %v393, %v430
      %v433 = vadd.f32 %v394, %v430
      %v434 = vadd.f32 %v395, %v430
      %v435 = vadd.f32 %v396, %v430
      %v436 = vadd.f32 %v397, %v430
      %v437 = vadd.f32 %v398, %v430
      %v438 = vadd.f32 %v399, %v430
      %v439 = vadd.f32 %v400, %v430
      %v440 = vadd.f32 %v401, %v430
      %v441 = vadd.f32 %v402, %v430
      %v442 = vadd.f32 %v403, %v430
      %v443 = vadd.f32 %v404, %v430
      %v444 = vadd.f32 %v405, %v430
      %v445 = vadd.f32 %v406, %v430
      %v446 = vadd.f32 %v407, %v430
      %v447 = vadd.f32 %v408, %v430
      %v448 = vadd.f32 %v409, %v430
      %v449 = vadd.f32 %v410, %v430
      %v450 = vadd.f32 %v411, %v430
      %v451 = vadd.f32 %v412, %v430
      %v452 = vadd.f32 %v413, %v430
      %v453 = vadd.f32 %v414, %v430
      %v454 = vadd.f32 %v415, %v430
      %v455 = vadd.f32 %v416, %v430
      %v456 = vadd.f32 %v417, %v430
      %v457 = vadd.f32 %v418, %v430
      %v458 = vadd.f32 %v419, %v430
      %v459 = vadd.f32 %v420, %v430
      %v460 = vadd.f32 %v421, %v430
      %v461 = vadd.f32 %v422, %v430
      %v462 = vadd.f32 %v423, %v430
      %v463 = vadd.f32 %v424, %v430
      %v464 = vmax.f32 %v432, 0.0
      %v465 = vmax.f32 %v433, 0.0
      %v466 = vmax.f32 %v434, 0.0
      %v467 = vmax.f32 %v435, 0.0
      %v468 = vmax.f32 %v436, 0.0
      %v469 = vmax.f32 %v437, 0.0
      %v470 = vmax.f32 %v438, 0.0
      %v471 = vmax.f32 %v439, 0.0
      %v472 = vmax.f32 %v440, 0.0
      %v473 = vmax.f32 %v441, 0.0
      %v474 = vmax.f32 %v442, 0.0
      %v475 = vmax.f32 %v443, 0.0
      %v476 = vmax.f32 %v444, 0.0
      %v477 = vmax.f32 %v445, 0.0
      %v478 = vmax.f32 %v446, 0.0
      %v479 = vmax.f32 %v447, 0.0
      %v480 = vmax.f32 %v448, 0.0
      %v481 = vmax.f32 %v449, 0.0
      %v482 = vmax.f32 %v450, 0.0
      %v483 = vmax.f32 %v451, 0.0
      %v484 = vmax.f32 %v452, 0.0
      %v485 = vmax.f32 %v453, 0.0
      %v486 = vmax.f32 %v454, 0.0
      %v487 = vmax.f32 %v455, 0.0
      %v488 = vmax.f32 %v456, 0.0
      %v489 = vmax.f32 %v457, 0.0
      %v490 = vmax.f32 %v458, 0.0
      %v491 = vmax.f32 %v459, 0.0
      %v492 = vmax.f32 %v460, 0.0
      %v493 = vmax.f32 %v461, 0.0
      %v494 = vmax.f32 %v462, 0.0
      %v495 = vmax.f32 %v463, 0.0
      %v496 = vpack.c.bf16 %v465, %v464
      %v497 = vpack.c.bf16 %v467, %v466
      %v498 = vpack.c.bf16 %v469, %v468
      %v499 = vpack.c.bf16 %v471, %v470
      %v500 = vpack.c.bf16 %v473, %v472
      %v501 = vpack.c.bf16 %v475, %v474
      %v502 = vpack.c.bf16 %v477, %v476
      %v503 = vpack.c.bf16 %v479, %v478
      %v504 = vpack.c.bf16 %v481, %v480
      %v505 = vpack.c.bf16 %v483, %v482
      %v506 = vpack.c.bf16 %v485, %v484
      %v507 = vpack.c.bf16 %v487, %v486
      %v508 = vpack.c.bf16 %v489, %v488
      %v509 = vpack.c.bf16 %v491, %v490
      %v510 = vpack.c.bf16 %v493, %v492
      %v511 = vpack.c.bf16 %v495, %v494
      %v528 = vunpack.c.l.b16 %v496
      %v529 = vunpack.c.h.b16 %v496
      %v530 = vunpack.c.l.b16 %v497
      %v531 = vunpack.c.h.b16 %v497
      %v532 = vunpack.c.l.b16 %v498
      %v533 = vunpack.c.h.b16 %v498
      %v534 = vunpack.c.l.b16 %v499
      %v535 = vunpack.c.h.b16 %v499
      %v536 = vunpack.c.l.b16 %v500
      %v537 = vunpack.c.h.b16 %v500
      %v538 = vunpack.c.l.b16 %v501
      %v539 = vunpack.c.h.b16 %v501
      %v540 = vunpack.c.l.b16 %v502
      %v541 = vunpack.c.h.b16 %v502
      %v542 = vunpack.c.l.b16 %v503
      %v543 = vunpack.c.h.b16 %v503
      %v544 = vunpack.c.l.b16 %v504
      %v545 = vunpack.c.h.b16 %v504
      %v546 = vunpack.c.l.b16 %v505
      %v547 = vunpack.c.h.b16 %v505
      %v548 = vunpack.c.l.b16 %v506
      %v549 = vunpack.c.h.b16 %v506
      %v550 = vunpack.c.l.b16 %v507
      %v551 = vunpack.c.h.b16 %v507
      %v552 = vunpack.c.l.b16 %v508
      %v553 = vunpack.c.h.b16 %v508
      %v554 = vunpack.c.l.b16 %v509
      %v555 = vunpack.c.h.b16 %v509
      %v556 = vunpack.c.l.b16 %v510
      %v557 = vunpack.c.h.b16 %v510
      %v558 = vunpack.c.l.b16 %v511
      %v559 = vunpack.c.h.b16 %v511
      %v560 = vpack.c.b16 %v528, %v528
      %v561 = vpack.c.b16 %v529, %v529
      %v562 = vpack.c.b16 %v530, %v530
      %v563 = vpack.c.b16 %v531, %v531
      %v564 = vpack.c.b16 %v532, %v532
      %v565 = vpack.c.b16 %v533, %v533
      %v566 = vpack.c.b16 %v534, %v534
      %v567 = vpack.c.b16 %v535, %v535
      %v568 = vpack.c.b16 %v536, %v536
      %v569 = vpack.c.b16 %v537, %v537
      %v570 = vpack.c.b16 %v538, %v538
      %v571 = vpack.c.b16 %v539, %v539
      %v572 = vpack.c.b16 %v540, %v540
      %v573 = vpack.c.b16 %v541, %v541
      %v574 = vpack.c.b16 %v542, %v542
      %v575 = vpack.c.b16 %v543, %v543
      %v576 = vpack.c.b16 %v544, %v544
      %v577 = vpack.c.b16 %v545, %v545
      %v578 = vpack.c.b16 %v546, %v546
      %v579 = vpack.c.b16 %v547, %v547
      %v580 = vpack.c.b16 %v548, %v548
      %v581 = vpack.c.b16 %v549, %v549
      %v582 = vpack.c.b16 %v550, %v550
      %v583 = vpack.c.b16 %v551, %v551
      %v584 = vpack.c.b16 %v552, %v552
      %v585 = vpack.c.b16 %v553, %v553
      %v586 = vpack.c.b16 %v554, %v554
      %v587 = vpack.c.b16 %v555, %v555
      %v588 = vpack.c.b16 %v556, %v556
      %v589 = vpack.c.b16 %v557, %v557
      %v590 = vpack.c.b16 %v558, %v558
      %v591 = vpack.c.b16 %v559, %v559
      %vm592 = vsmask.f32 256
      %vm593 = vsmask.f32 4368
      %vm594 = vmor %vm592, %vm593
      %v596 = vshrl.u32 %v560, 16
      %v598 = vrot.slane %v596, 7
      %v599 = vshll.u32 %v560, 16
      %v601 = vor.u32 %v598, %v599
      %v602 = vrot.slane %v598, 4
      %v604 = vshrl.u32 %v561, 16
      %v606 = vrot.slane %v604, 7
      %v607 = vshll.u32 %v561, 16
      %v609 = vor.u32 %v606, %v607
      %v610 = vsel %vm594, %v602, %v609
      %v611 = vrot.slane %v606, 4
      %v613 = vshrl.u32 %v562, 16
      %v615 = vrot.slane %v613, 7
      %v616 = vshll.u32 %v562, 16
      %v618 = vor.u32 %v615, %v616
      %v619 = vrot.slane %v615, 4
      %v621 = vshrl.u32 %v563, 16
      %v623 = vrot.slane %v621, 7
      %v624 = vshll.u32 %v563, 16
      %v626 = vor.u32 %v623, %v624
      %v627 = vsel %vm594, %v619, %v626
      %v628 = vrot.slane %v623, 4
      %v630 = vshrl.u32 %v564, 16
      %v632 = vrot.slane %v630, 7
      %v633 = vshll.u32 %v564, 16
      %v635 = vor.u32 %v632, %v633
      %v636 = vrot.slane %v632, 4
      %v638 = vshrl.u32 %v565, 16
      %v640 = vrot.slane %v638, 7
      %v641 = vshll.u32 %v565, 16
      %v643 = vor.u32 %v640, %v641
      %v644 = vsel %vm594, %v636, %v643
      %v645 = vrot.slane %v640, 4
      %v647 = vshrl.u32 %v566, 16
      %v649 = vrot.slane %v647, 7
      %v650 = vshll.u32 %v566, 16
      %v652 = vor.u32 %v649, %v650
      %v653 = vrot.slane %v649, 4
      %v655 = vshrl.u32 %v567, 16
      %v657 = vrot.slane %v655, 7
      %v658 = vshll.u32 %v567, 16
      %v660 = vor.u32 %v657, %v658
      %v661 = vsel %vm594, %v653, %v660
      %v662 = vrot.slane %v657, 4
      %v664 = vshrl.u32 %v568, 16
      %v666 = vrot.slane %v664, 7
      %v667 = vshll.u32 %v568, 16
      %v669 = vor.u32 %v666, %v667
      %v670 = vrot.slane %v666, 4
      %v672 = vshrl.u32 %v569, 16
      %v674 = vrot.slane %v672, 7
      %v675 = vshll.u32 %v569, 16
      %v677 = vor.u32 %v674, %v675
      %v678 = vsel %vm594, %v670, %v677
      %v679 = vrot.slane %v674, 4
      %v681 = vshrl.u32 %v570, 16
      %v683 = vrot.slane %v681, 7
      %v684 = vshll.u32 %v570, 16
      %v686 = vor.u32 %v683, %v684
      %v687 = vrot.slane %v683, 4
      %v689 = vshrl.u32 %v571, 16
      %v691 = vrot.slane %v689, 7
      %v692 = vshll.u32 %v571, 16
      %v694 = vor.u32 %v691, %v692
      %v695 = vsel %vm594, %v687, %v694
      %v696 = vrot.slane %v691, 4
      %v698 = vshrl.u32 %v572, 16
      %v700 = vrot.slane %v698, 7
      %v701 = vshll.u32 %v572, 16
      %v703 = vor.u32 %v700, %v701
      %v704 = vrot.slane %v700, 4
      %v706 = vshrl.u32 %v573, 16
      %v708 = vrot.slane %v706, 7
      %v709 = vshll.u32 %v573, 16
      %v711 = vor.u32 %v708, %v709
      %v712 = vsel %vm594, %v704, %v711
      %v713 = vrot.slane %v708, 4
      %v715 = vshrl.u32 %v574, 16
      %v717 = vrot.slane %v715, 7
      %v718 = vshll.u32 %v574, 16
      %v720 = vor.u32 %v717, %v718
      %v721 = vrot.slane %v717, 4
      %v723 = vshrl.u32 %v575, 16
      %v725 = vrot.slane %v723, 7
      %v726 = vshll.u32 %v575, 16
      %v728 = vor.u32 %v725, %v726
      %v729 = vsel %vm594, %v721, %v728
      %v730 = vrot.slane %v725, 4
      %v732 = vshrl.u32 %v576, 16
      %v734 = vrot.slane %v732, 7
      %v735 = vshll.u32 %v576, 16
      %v737 = vor.u32 %v734, %v735
      %v738 = vrot.slane %v734, 4
      %v740 = vshrl.u32 %v577, 16
      %v742 = vrot.slane %v740, 7
      %v743 = vshll.u32 %v577, 16
      %v745 = vor.u32 %v742, %v743
      %v746 = vsel %vm594, %v738, %v745
      %v747 = vrot.slane %v742, 4
      %v749 = vshrl.u32 %v578, 16
      %v751 = vrot.slane %v749, 7
      %v752 = vshll.u32 %v578, 16
      %v754 = vor.u32 %v751, %v752
      %v755 = vrot.slane %v751, 4
      %v757 = vshrl.u32 %v579, 16
      %v759 = vrot.slane %v757, 7
      %v760 = vshll.u32 %v579, 16
      %v762 = vor.u32 %v759, %v760
      %v763 = vsel %vm594, %v755, %v762
      %v764 = vrot.slane %v759, 4
      %v766 = vshrl.u32 %v580, 16
      %v768 = vrot.slane %v766, 7
      %v769 = vshll.u32 %v580, 16
      %v771 = vor.u32 %v768, %v769
      %v772 = vrot.slane %v768, 4
      %v774 = vshrl.u32 %v581, 16
      %v776 = vrot.slane %v774, 7
      %v777 = vshll.u32 %v581, 16
      %v779 = vor.u32 %v776, %v777
      %v780 = vsel %vm594, %v772, %v779
      %v781 = vrot.slane %v776, 4
      %v783 = vshrl.u32 %v582, 16
      %v785 = vrot.slane %v783, 7
      %v786 = vshll.u32 %v582, 16
      %v788 = vor.u32 %v785, %v786
      %v789 = vrot.slane %v785, 4
      %v791 = vshrl.u32 %v583, 16
      %v793 = vrot.slane %v791, 7
      %v794 = vshll.u32 %v583, 16
      %v796 = vor.u32 %v793, %v794
      %v797 = vsel %vm594, %v789, %v796
      %v798 = vrot.slane %v793, 4
      %v800 = vshrl.u32 %v584, 16
      %v802 = vrot.slane %v800, 7
      %v803 = vshll.u32 %v584, 16
      %v805 = vor.u32 %v802, %v803
      %v806 = vrot.slane %v802, 4
      %v808 = vshrl.u32 %v585, 16
      %v810 = vrot.slane %v808, 7
      %v811 = vshll.u32 %v585, 16
      %v813 = vor.u32 %v810, %v811
      %v814 = vsel %vm594, %v806, %v813
      %v815 = vrot.slane %v810, 4
      %v817 = vshrl.u32 %v586, 16
      %v819 = vrot.slane %v817, 7
      %v820 = vshll.u32 %v586, 16
      %v822 = vor.u32 %v819, %v820
      %v823 = vrot.slane %v819, 4
      %v825 = vshrl.u32 %v587, 16
      %v827 = vrot.slane %v825, 7
      %v828 = vshll.u32 %v587, 16
      %v830 = vor.u32 %v827, %v828
      %v831 = vsel %vm594, %v823, %v830
      %v832 = vrot.slane %v827, 4
      %v834 = vshrl.u32 %v588, 16
      %v836 = vrot.slane %v834, 7
      %v837 = vshll.u32 %v588, 16
      %v839 = vor.u32 %v836, %v837
      %v840 = vrot.slane %v836, 4
      %v842 = vshrl.u32 %v589, 16
      %v844 = vrot.slane %v842, 7
      %v845 = vshll.u32 %v589, 16
      %v847 = vor.u32 %v844, %v845
      %v848 = vsel %vm594, %v840, %v847
      %v849 = vrot.slane %v844, 4
      %v851 = vshrl.u32 %v590, 16
      %v853 = vrot.slane %v851, 7
      %v854 = vshll.u32 %v590, 16
      %v856 = vor.u32 %v853, %v854
      %v857 = vrot.slane %v853, 4
      %v859 = vshrl.u32 %v591, 16
      %v861 = vrot.slane %v859, 7
      %v862 = vshll.u32 %v591, 16
      %v864 = vor.u32 %v861, %v862
      %v865 = vsel %vm594, %v857, %v864
      %v866 = vrot.slane %v861, 4
      %s915 = scalar_lea.vmem [#allocation2], 12
      %vm916 = vcmask 27648
      %vm917 = vsmask.f32 7938
      %vm918 = vmand %vm916, %vm917
      %v919 = vld [vmem:[%s915] sm:$0xf]
      %v920 = vsel %vm918, %v601, %v919
      %921 = vst [vmem:[%s915] sm:$0xf] %v920
      %vm922 = vcmask 27648
      %923 = vst.msk [vmem:[%s915 + $0x4] sm:$0xf] %vm922, %v610
      %vm924 = vcmask 24576
      %vm925 = vmand %vm924, %vm592
      %v926 = vld [vmem:[%s915 + $0x8] sm:$0x1]
      %v927 = vsel %vm925, %v611, %v926
      %928 = vst [vmem:[%s915 + $0x8] sm:$0x1] %v927
      %v929 = vld [vmem:[%s915 + $0xc] sm:$0xf]
      %v930 = vsel %vm918, %v618, %v929
      %931 = vst [vmem:[%s915 + $0xc] sm:$0xf] %v930
      %932 = vst.msk [vmem:[%s915 + $0x10] sm:$0xf] %vm922, %v627
      %v933 = vld [vmem:[%s915 + $0x14] sm:$0x1]
      %v934 = vsel %vm925, %v628, %v933
      %935 = vst [vmem:[%s915 + $0x14] sm:$0x1] %v934
      %v936 = vld [vmem:[%s915 + $0x18] sm:$0xf]
      %v937 = vsel %vm918, %v635, %v936
      %938 = vst [vmem:[%s915 + $0x18] sm:$0xf] %v937
      %939 = vst.msk [vmem:[%s915 + $0x1c] sm:$0xf] %vm922, %v644
      %v940 = vld [vmem:[%s915 + $0x20] sm:$0x1]
      %v941 = vsel %vm925, %v645, %v940
      %942 = vst [vmem:[%s915 + $0x20] sm:$0x1] %v941
      %v943 = vld [vmem:[%s915 + $0x24] sm:$0xf]
      %v944 = vsel %vm918, %v652, %v943
      %945 = vst [vmem:[%s915 + $0x24] sm:$0xf] %v944
      %946 = vst.msk [vmem:[%s915 + $0x28] sm:$0xf] %vm922, %v661
      %v947 = vld [vmem:[%s915 + $0x2c] sm:$0x1]
      %v948 = vsel %vm925, %v662, %v947
      %949 = vst [vmem:[%s915 + $0x2c] sm:$0x1] %v948
      %v950 = vld [vmem:[%s915 + $0x30] sm:$0xf]
      %v951 = vsel %vm918, %v669, %v950
      %952 = vst [vmem:[%s915 + $0x30] sm:$0xf] %v951
      %953 = vst.msk [vmem:[%s915 + $0x34] sm:$0xf] %vm922, %v678
      %v954 = vld [vmem:[%s915 + $0x38] sm:$0x1]
      %v955 = vsel %vm925, %v679, %v954
      %956 = vst [vmem:[%s915 + $0x38] sm:$0x1] %v955
      %v957 = vld [vmem:[%s915 + $0x3c] sm:$0xf]
      %v958 = vsel %vm918, %v686, %v957
      %959 = vst [vmem:[%s915 + $0x3c] sm:$0xf] %v958
      %960 = vst.msk [vmem:[%s915 + $0x40] sm:$0xf] %vm922, %v695
      %v961 = vld [vmem:[%s915 + $0x44] sm:$0x1]
      %v962 = vsel %vm925, %v696, %v961
      %963 = vst [vmem:[%s915 + $0x44] sm:$0x1] %v962
      %v964 = vld [vmem:[%s915 + $0x48] sm:$0xf]
      %v965 = vsel %vm918, %v703, %v964
      %966 = vst [vmem:[%s915 + $0x48] sm:$0xf] %v965
      %967 = vst.msk [vmem:[%s915 + $0x4c] sm:$0xf] %vm922, %v712
      %v968 = vld [vmem:[%s915 + $0x50] sm:$0x1]
      %v969 = vsel %vm925, %v713, %v968
      %970 = vst [vmem:[%s915 + $0x50] sm:$0x1] %v969
      %v971 = vld [vmem:[%s915 + $0x54] sm:$0xf]
      %v972 = vsel %vm918, %v720, %v971
      %973 = vst [vmem:[%s915 + $0x54] sm:$0xf] %v972
      %974 = vst.msk [vmem:[%s915 + $0x58] sm:$0xf] %vm922, %v729
      %v975 = vld [vmem:[%s915 + $0x5c] sm:$0x1]
      %v976 = vsel %vm925, %v730, %v975
      %977 = vst [vmem:[%s915 + $0x5c] sm:$0x1] %v976
      %v978 = vld [vmem:[%s915 + $0x60] sm:$0xf]
      %v979 = vsel %vm918, %v737, %v978
      %980 = vst [vmem:[%s915 + $0x60] sm:$0xf] %v979
      %981 = vst.msk [vmem:[%s915 + $0x64] sm:$0xf] %vm922, %v746
      %v982 = vld [vmem:[%s915 + $0x68] sm:$0x1]
      %v983 = vsel %vm925, %v747, %v982
      %984 = vst [vmem:[%s915 + $0x68] sm:$0x1] %v983
      %v985 = vld [vmem:[%s915 + $0x6c] sm:$0xf]
      %v986 = vsel %vm918, %v754, %v985
      %987 = vst [vmem:[%s915 + $0x6c] sm:$0xf] %v986
      %988 = vst.msk [vmem:[%s915 + $0x70] sm:$0xf] %vm922, %v763
      %v989 = vld [vmem:[%s915 + $0x74] sm:$0x1]
      %v990 = vsel %vm925, %v764, %v989
      %991 = vst [vmem:[%s915 + $0x74] sm:$0x1] %v990
      %v992 = vld [vmem:[%s915 + $0x78] sm:$0xf]
      %v993 = vsel %vm918, %v771, %v992
      %994 = vst [vmem:[%s915 + $0x78] sm:$0xf] %v993
      %995 = vst.msk [vmem:[%s915 + $0x7c] sm:$0xf] %vm922, %v780
      %v996 = vld [vmem:[%s915 + $0x80] sm:$0x1]
      %v997 = vsel %vm925, %v781, %v996
      %998 = vst [vmem:[%s915 + $0x80] sm:$0x1] %v997
      %v999 = vld [vmem:[%s915 + $0x84] sm:$0xf]
      %v1000 = vsel %vm918, %v788, %v999
      %1001 = vst [vmem:[%s915 + $0x84] sm:$0xf] %v1000
      %1002 = vst.msk [vmem:[%s915 + $0x88] sm:$0xf] %vm922, %v797
      %v1003 = vld [vmem:[%s915 + $0x8c] sm:$0x1]
      %v1004 = vsel %vm925, %v798, %v1003
      %1005 = vst [vmem:[%s915 + $0x8c] sm:$0x1] %v1004
      %v1006 = vld [vmem:[%s915 + $0x90] sm:$0xf]
      %v1007 = vsel %vm918, %v805, %v1006
      %1008 = vst [vmem:[%s915 + $0x90] sm:$0xf] %v1007
      %1009 = vst.msk [vmem:[%s915 + $0x94] sm:$0xf] %vm922, %v814
      %v1010 = vld [vmem:[%s915 + $0x98] sm:$0x1]
      %v1011 = vsel %vm925, %v815, %v1010
      %1012 = vst [vmem:[%s915 + $0x98] sm:$0x1] %v1011
      %v1013 = vld [vmem:[%s915 + $0x9c] sm:$0xf]
      %v1014 = vsel %vm918, %v822, %v1013
      %1015 = vst [vmem:[%s915 + $0x9c] sm:$0xf] %v1014
      %1016 = vst.msk [vmem:[%s915 + $0xa0] sm:$0xf] %vm922, %v831
      %v1017 = vld [vmem:[%s915 + $0xa4] sm:$0x1]
      %v1018 = vsel %vm925, %v832, %v1017
      %1019 = vst [vmem:[%s915 + $0xa4] sm:$0x1] %v1018
      %v1020 = vld [vmem:[%s915 + $0xa8] sm:$0xf]
      %v1021 = vsel %vm918, %v839, %v1020
      %1022 = vst [vmem:[%s915 + $0xa8] sm:$0xf] %v1021
      %1023 = vst.msk [vmem:[%s915 + $0xac] sm:$0xf] %vm922, %v848
      %v1024 = vld [vmem:[%s915 + $0xb0] sm:$0x1]
      %v1025 = vsel %vm925, %v849, %v1024
      %1026 = vst [vmem:[%s915 + $0xb0] sm:$0x1] %v1025
      %v1027 = vld [vmem:[%s915 + $0xb4] sm:$0xf]
      %v1028 = vsel %vm918, %v856, %v1027
      %1029 = vst [vmem:[%s915 + $0xb4] sm:$0xf] %v1028
      %1030 = vst.msk [vmem:[%s915 + $0xb8] sm:$0xf] %vm922, %v865
      %v1031 = vld [vmem:[%s915 + $0xbc] sm:$0x1]
      %v1032 = vsel %vm925, %v866, %v1031
      %1033 = vst [vmem:[%s915 + $0xbc] sm:$0x1] %v1032
      %v1034 = vld [vmem:[#allocation2] sm:$0xf]
      %v1035 = vld [vmem:[#allocation2 + $0x4] sm:$0xf]
      %v1036 = vld [vmem:[#allocation2 + $0x8] sm:$0xf]
      %v1037 = vld [vmem:[#allocation2 + $0xc] sm:$0xf]
      %v1038 = vld [vmem:[#allocation2 + $0x10] sm:$0xf]
      %v1039 = vld [vmem:[#allocation2 + $0x14] sm:$0xf]
      %v1040 = vld [vmem:[#allocation2 + $0x18] sm:$0xf]
      %v1041 = vld [vmem:[#allocation2 + $0x1c] sm:$0xf]
      %v1042 = vld [vmem:[#allocation2 + $0x20] sm:$0xf]
      %v1043 = vld [vmem:[#allocation2 + $0x24] sm:$0xf]
      %v1044 = vld [vmem:[#allocation2 + $0x28] sm:$0xf]
      %v1045 = vld [vmem:[#allocation2 + $0x2c] sm:$0xf]
      %v1046 = vld [vmem:[#allocation2 + $0x30] sm:$0xf]
      %v1047 = vld [vmem:[#allocation2 + $0x34] sm:$0xf]
      %v1048 = vld [vmem:[#allocation2 + $0x38] sm:$0xf]
      %v1049 = vld [vmem:[#allocation2 + $0x3c] sm:$0xf]
      %v1050 = vld [vmem:[#allocation2 + $0x40] sm:$0xf]
      %v1051 = vld [vmem:[#allocation2 + $0x44] sm:$0xf]
      %v1052 = vld [vmem:[#allocation2 + $0x48] sm:$0xf]
      %v1053 = vld [vmem:[#allocation2 + $0x4c] sm:$0xf]
      %v1054 = vld [vmem:[#allocation2 + $0x50] sm:$0xf]
      %v1055 = vld [vmem:[#allocation2 + $0x54] sm:$0xf]
      %v1056 = vld [vmem:[#allocation2 + $0x58] sm:$0xf]
      %v1057 = vld [vmem:[#allocation2 + $0x5c] sm:$0xf]
      %v1058 = vld [vmem:[#allocation2 + $0x60] sm:$0xf]
      %v1059 = vld [vmem:[#allocation2 + $0x64] sm:$0xf]
      %v1060 = vld [vmem:[#allocation2 + $0x68] sm:$0xf]
      %v1061 = vld [vmem:[#allocation2 + $0x6c] sm:$0xf]
      %v1062 = vld [vmem:[#allocation2 + $0x70] sm:$0xf]
      %v1063 = vld [vmem:[#allocation2 + $0x74] sm:$0xf]
      %v1064 = vld [vmem:[#allocation2 + $0x78] sm:$0xf]
      %v1065 = vld [vmem:[#allocation2 + $0x7c] sm:$0xf]
      %v1066 = vld [vmem:[#allocation2 + $0x80] sm:$0xf]
      %v1067 = vld [vmem:[#allocation2 + $0x84] sm:$0xf]
      %v1068 = vld [vmem:[#allocation2 + $0x88] sm:$0xf]
      %v1069 = vld [vmem:[#allocation2 + $0x8c] sm:$0xf]
      %v1070 = vld [vmem:[#allocation2 + $0x90] sm:$0xf]
      %v1071 = vld [vmem:[#allocation2 + $0x94] sm:$0xf]
      %v1072 = vld [vmem:[#allocation2 + $0x98] sm:$0xf]
      %v1073 = vld [vmem:[#allocation2 + $0x9c] sm:$0xf]
      %v1074 = vld [vmem:[#allocation2 + $0xa0] sm:$0xf]
      %v1075 = vld [vmem:[#allocation2 + $0xa4] sm:$0xf]
      %v1076 = vld [vmem:[#allocation2 + $0xa8] sm:$0xf]
      %v1077 = vld [vmem:[#allocation2 + $0xac] sm:$0xf]
      %v1078 = vld [vmem:[#allocation2 + $0xb0] sm:$0xf]
      %v1079 = vld [vmem:[#allocation2 + $0xb4] sm:$0xf]
      %v1080 = vld [vmem:[#allocation2 + $0xb8] sm:$0xf]
      %v1081 = vld [vmem:[#allocation2 + $0xbc] sm:$0xf]
      %v1082 = vld [vmem:[#allocation2 + $0xc0] sm:$0xf]
      %v1083 = vld [vmem:[#allocation2 + $0xc4] sm:$0xf]
      %v1084 = vld [vmem:[#allocation2 + $0xc8] sm:$0xf]
      %v1085 = vld [vmem:[#allocation2 + $0xcc] sm:$0xf]
      %v1086 = vld [vmem:[#allocation2 + $0xd0] sm:$0xf]
      %v1087 = vld [vmem:[#allocation2 + $0xd4] sm:$0xf]
      %v1088 = vld [vmem:[%s3] sm:$0x3]
      %vm1089 = vsmask.f32 3328
      %vm1090 = vsmask.f32 7440
      %vm1091 = vmor %vm1089, %vm1090
      %v1093 = vshrl.u32 %v1034, 16
      %v1095 = vrot.slane %v1093, 4
      %v1096 = vshll.u32 %v1034, 16
      %v1098 = vrot.slane %v1096, 5
      %v1099 = vor.u32 %v1095, %v1098
      %v1100 = vrot.slane %v1099, 4
      %v1102 = vshll.u32 %v1035, 16
      %v1104 = vrot.slane %v1102, 5
      %v1105 = vsel %vm1091, %v1100, %v1104
      %v1106 = vshrl.u32 %v1035, 16
      %v1108 = vrot.slane %v1106, 4
      %v1109 = vor.u32 %v1108, %v1104
      %v1110 = vrot.slane %v1109, 4
      %v1112 = vshll.u32 %v1036, 16
      %v1114 = vrot.slane %v1112, 5
      %v1115 = vsel %vm1091, %v1110, %v1114
      %v1117 = vshrl.u32 %v1037, 16
      %v1119 = vrot.slane %v1117, 4
      %v1120 = vshll.u32 %v1037, 16
      %v1122 = vrot.slane %v1120, 5
      %v1123 = vor.u32 %v1119, %v1122
      %v1124 = vrot.slane %v1123, 4
      %v1126 = vshll.u32 %v1038, 16
      %v1128 = vrot.slane %v1126, 5
      %v1129 = vsel %vm1091, %v1124, %v1128
      %v1130 = vshrl.u32 %v1038, 16
      %v1132 = vrot.slane %v1130, 4
      %v1133 = vor.u32 %v1132, %v1128
      %v1134 = vrot.slane %v1133, 4
      %v1136 = vshll.u32 %v1039, 16
      %v1138 = vrot.slane %v1136, 5
      %v1139 = vsel %vm1091, %v1134, %v1138
      %v1141 = vshrl.u32 %v1040, 16
      %v1143 = vrot.slane %v1141, 4
      %v1144 = vshll.u32 %v1040, 16
      %v1146 = vrot.slane %v1144, 5
      %v1147 = vor.u32 %v1143, %v1146
      %v1148 = vrot.slane %v1147, 4
      %v1150 = vshll.u32 %v1041, 16
      %v1152 = vrot.slane %v1150, 5
      %v1153 = vsel %vm1091, %v1148, %v1152
      %v1154 = vshrl.u32 %v1041, 16
      %v1156 = vrot.slane %v1154, 4
      %v1157 = vor.u32 %v1156, %v1152
      %v1158 = vrot.slane %v1157, 4
      %v1160 = vshll.u32 %v1042, 16
      %v1162 = vrot.slane %v1160, 5
      %v1163 = vsel %vm1091, %v1158, %v1162
      %v1165 = vshrl.u32 %v1043, 16
      %v1167 = vrot.slane %v1165, 4
      %v1168 = vshll.u32 %v1043, 16
      %v1170 = vrot.slane %v1168, 5
      %v1171 = vor.u32 %v1167, %v1170
      %v1172 = vrot.slane %v1171, 4
      %v1174 = vshll.u32 %v1044, 16
      %v1176 = vrot.slane %v1174, 5
      %v1177 = vsel %vm1091, %v1172, %v1176
      %v1178 = vshrl.u32 %v1044, 16
      %v1180 = vrot.slane %v1178, 4
      %v1181 = vor.u32 %v1180, %v1176
      %v1182 = vrot.slane %v1181, 4
      %v1184 = vshll.u32 %v1045, 16
      %v1186 = vrot.slane %v1184, 5
      %v1187 = vsel %vm1091, %v1182, %v1186
      %v1189 = vshrl.u32 %v1046, 16
      %v1191 = vrot.slane %v1189, 4
      %v1192 = vshll.u32 %v1046, 16
      %v1194 = vrot.slane %v1192, 5
      %v1195 = vor.u32 %v1191, %v1194
      %v1196 = vrot.slane %v1195, 4
      %v1198 = vshll.u32 %v1047, 16
      %v1200 = vrot.slane %v1198, 5
      %v1201 = vsel %vm1091, %v1196, %v1200
      %v1202 = vshrl.u32 %v1047, 16
      %v1204 = vrot.slane %v1202, 4
      %v1205 = vor.u32 %v1204, %v1200
      %v1206 = vrot.slane %v1205, 4
      %v1208 = vshll.u32 %v1048, 16
      %v1210 = vrot.slane %v1208, 5
      %v1211 = vsel %vm1091, %v1206, %v1210
      %v1213 = vshrl.u32 %v1049, 16
      %v1215 = vrot.slane %v1213, 4
      %v1216 = vshll.u32 %v1049, 16
      %v1218 = vrot.slane %v1216, 5
      %v1219 = vor.u32 %v1215, %v1218
      %v1220 = vrot.slane %v1219, 4
      %v1222 = vshll.u32 %v1050, 16
      %v1224 = vrot.slane %v1222, 5
      %v1225 = vsel %vm1091, %v1220, %v1224
      %v1226 = vshrl.u32 %v1050, 16
      %v1228 = vrot.slane %v1226, 4
      %v1229 = vor.u32 %v1228, %v1224
      %v1230 = vrot.slane %v1229, 4
      %v1232 = vshll.u32 %v1051, 16
      %v1234 = vrot.slane %v1232, 5
      %v1235 = vsel %vm1091, %v1230, %v1234
      %v1237 = vshrl.u32 %v1052, 16
      %v1239 = vrot.slane %v1237, 4
      %v1240 = vshll.u32 %v1052, 16
      %v1242 = vrot.slane %v1240, 5
      %v1243 = vor.u32 %v1239, %v1242
      %v1244 = vrot.slane %v1243, 4
      %v1246 = vshll.u32 %v1053, 16
      %v1248 = vrot.slane %v1246, 5
      %v1249 = vsel %vm1091, %v1244, %v1248
      %v1250 = vshrl.u32 %v1053, 16
      %v1252 = vrot.slane %v1250, 4
      %v1253 = vor.u32 %v1252, %v1248
      %v1254 = vrot.slane %v1253, 4
      %v1256 = vshll.u32 %v1054, 16
      %v1258 = vrot.slane %v1256, 5
      %v1259 = vsel %vm1091, %v1254, %v1258
      %v1261 = vshrl.u32 %v1055, 16
      %v1263 = vrot.slane %v1261, 4
      %v1264 = vshll.u32 %v1055, 16
      %v1266 = vrot.slane %v1264, 5
      %v1267 = vor.u32 %v1263, %v1266
      %v1268 = vrot.slane %v1267, 4
      %v1270 = vshll.u32 %v1056, 16
      %v1272 = vrot.slane %v1270, 5
      %v1273 = vsel %vm1091, %v1268, %v1272
      %v1274 = vshrl.u32 %v1056, 16
      %v1276 = vrot.slane %v1274, 4
      %v1277 = vor.u32 %v1276, %v1272
      %v1278 = vrot.slane %v1277, 4
      %v1280 = vshll.u32 %v1057, 16
      %v1282 = vrot.slane %v1280, 5
      %v1283 = vsel %vm1091, %v1278, %v1282
      %v1285 = vshrl.u32 %v1058, 16
      %v1287 = vrot.slane %v1285, 4
      %v1288 = vshll.u32 %v1058, 16
      %v1290 = vrot.slane %v1288, 5
      %v1291 = vor.u32 %v1287, %v1290
      %v1292 = vrot.slane %v1291, 4
      %v1294 = vshll.u32 %v1059, 16
      %v1296 = vrot.slane %v1294, 5
      %v1297 = vsel %vm1091, %v1292, %v1296
      %v1298 = vshrl.u32 %v1059, 16
      %v1300 = vrot.slane %v1298, 4
      %v1301 = vor.u32 %v1300, %v1296
      %v1302 = vrot.slane %v1301, 4
      %v1304 = vshll.u32 %v1060, 16
      %v1306 = vrot.slane %v1304, 5
      %v1307 = vsel %vm1091, %v1302, %v1306
      %v1309 = vshrl.u32 %v1061, 16
      %v1311 = vrot.slane %v1309, 4
      %v1312 = vshll.u32 %v1061, 16
      %v1314 = vrot.slane %v1312, 5
      %v1315 = vor.u32 %v1311, %v1314
      %v1316 = vrot.slane %v1315, 4
      %v1318 = vshll.u32 %v1062, 16
      %v1320 = vrot.slane %v1318, 5
      %v1321 = vsel %vm1091, %v1316, %v1320
      %v1322 = vshrl.u32 %v1062, 16
      %v1324 = vrot.slane %v1322, 4
      %v1325 = vor.u32 %v1324, %v1320
      %v1326 = vrot.slane %v1325, 4
      %v1328 = vshll.u32 %v1063, 16
      %v1330 = vrot.slane %v1328, 5
      %v1331 = vsel %vm1091, %v1326, %v1330
      %v1333 = vshrl.u32 %v1064, 16
      %v1335 = vrot.slane %v1333, 4
      %v1336 = vshll.u32 %v1064, 16
      %v1338 = vrot.slane %v1336, 5
      %v1339 = vor.u32 %v1335, %v1338
      %v1340 = vrot.slane %v1339, 4
      %v1342 = vshll.u32 %v1065, 16
      %v1344 = vrot.slane %v1342, 5
      %v1345 = vsel %vm1091, %v1340, %v1344
      %v1346 = vshrl.u32 %v1065, 16
      %v1348 = vrot.slane %v1346, 4
      %v1349 = vor.u32 %v1348, %v1344
      %v1350 = vrot.slane %v1349, 4
      %v1352 = vshll.u32 %v1066, 16
      %v1354 = vrot.slane %v1352, 5
      %v1355 = vsel %vm1091, %v1350, %v1354
      %v1357 = vshrl.u32 %v1067, 16
      %v1359 = vrot.slane %v1357, 4
      %v1360 = vshll.u32 %v1067, 16
      %v1362 = vrot.slane %v1360, 5
      %v1363 = vor.u32 %v1359, %v1362
      %v1364 = vrot.slane %v1363, 4
      %v1366 = vshll.u32 %v1068, 16
      %v1368 = vrot.slane %v1366, 5
      %v1369 = vsel %vm1091, %v1364, %v1368
      %v1370 = vshrl.u32 %v1068, 16
      %v1372 = vrot.slane %v1370, 4
      %v1373 = vor.u32 %v1372, %v1368
      %v1374 = vrot.slane %v1373, 4
      %v1376 = vshll.u32 %v1069, 16
      %v1378 = vrot.slane %v1376, 5
      %v1379 = vsel %vm1091, %v1374, %v1378
      %v1381 = vshrl.u32 %v1070, 16
      %v1383 = vrot.slane %v1381, 4
      %v1384 = vshll.u32 %v1070, 16
      %v1386 = vrot.slane %v1384, 5
      %v1387 = vor.u32 %v1383, %v1386
      %v1388 = vrot.slane %v1387, 4
      %v1390 = vshll.u32 %v1071, 16
      %v1392 = vrot.slane %v1390, 5
      %v1393 = vsel %vm1091, %v1388, %v1392
      %v1394 = vshrl.u32 %v1071, 16
      %v1396 = vrot.slane %v1394, 4
      %v1397 = vor.u32 %v1396, %v1392
      %v1398 = vrot.slane %v1397, 4
      %v1400 = vshll.u32 %v1072, 16
      %v1402 = vrot.slane %v1400, 5
      %v1403 = vsel %vm1091, %v1398, %v1402
      %v1405 = vshrl.u32 %v1073, 16
      %v1407 = vrot.slane %v1405, 4
      %v1408 = vshll.u32 %v1073, 16
      %v1410 = vrot.slane %v1408, 5
      %v1411 = vor.u32 %v1407, %v1410
      %v1412 = vrot.slane %v1411, 4
      %v1414 = vshll.u32 %v1074, 16
      %v1416 = vrot.slane %v1414, 5
      %v1417 = vsel %vm1091, %v1412, %v1416
      %v1418 = vshrl.u32 %v1074, 16
      %v1420 = vrot.slane %v1418, 4
      %v1421 = vor.u32 %v1420, %v1416
      %v1422 = vrot.slane %v1421, 4
      %v1424 = vshll.u32 %v1075, 16
      %v1426 = vrot.slane %v1424, 5
      %v1427 = vsel %vm1091, %v1422, %v1426
      %v1429 = vshrl.u32 %v1076, 16
      %v1431 = vrot.slane %v1429, 4
      %v1432 = vshll.u32 %v1076, 16
      %v1434 = vrot.slane %v1432, 5
      %v1435 = vor.u32 %v1431, %v1434
      %v1436 = vrot.slane %v1435, 4
      %v1438 = vshll.u32 %v1077, 16
      %v1440 = vrot.slane %v1438, 5
      %v1441 = vsel %vm1091, %v1436, %v1440
      %v1442 = vshrl.u32 %v1077, 16
      %v1444 = vrot.slane %v1442, 4
      %v1445 = vor.u32 %v1444, %v1440
      %v1446 = vrot.slane %v1445, 4
      %v1448 = vshll.u32 %v1078, 16
      %v1450 = vrot.slane %v1448, 5
      %v1451 = vsel %vm1091, %v1446, %v1450
      %v1453 = vshrl.u32 %v1079, 16
      %v1455 = vrot.slane %v1453, 4
      %v1456 = vshll.u32 %v1079, 16
      %v1458 = vrot.slane %v1456, 5
      %v1459 = vor.u32 %v1455, %v1458
      %v1460 = vrot.slane %v1459, 4
      %v1462 = vshll.u32 %v1080, 16
      %v1464 = vrot.slane %v1462, 5
      %v1465 = vsel %vm1091, %v1460, %v1464
      %v1466 = vshrl.u32 %v1080, 16
      %v1468 = vrot.slane %v1466, 4
      %v1469 = vor.u32 %v1468, %v1464
      %v1470 = vrot.slane %v1469, 4
      %v1472 = vshll.u32 %v1081, 16
      %v1474 = vrot.slane %v1472, 5
      %v1475 = vsel %vm1091, %v1470, %v1474
      %v1476 = vld [vmem:[%s3] sm:$0xc]
      %v1477 = vunpack.c.l.b16 %v1105
      %v1478 = vunpack.c.l.b16 %v1115
      %v1479 = vunpack.c.l.b16 %v1129
      %v1480 = vunpack.c.l.b16 %v1139
      %v1481 = vunpack.c.l.b16 %v1153
      %v1482 = vunpack.c.l.b16 %v1163
      %v1483 = vunpack.c.l.b16 %v1177
      %v1484 = vunpack.c.l.b16 %v1187
      %v1485 = vunpack.c.l.b16 %v1201
      %v1486 = vunpack.c.l.b16 %v1211
      %v1487 = vunpack.c.l.b16 %v1225
      %v1488 = vunpack.c.l.b16 %v1235
      %v1489 = vunpack.c.l.b16 %v1249
      %v1490 = vunpack.c.l.b16 %v1259
      %v1491 = vunpack.c.l.b16 %v1273
      %v1492 = vunpack.c.l.b16 %v1283
      %v1493 = vunpack.c.l.b16 %v1297
      %v1494 = vunpack.c.l.b16 %v1307
      %v1495 = vunpack.c.l.b16 %v1321
      %v1496 = vunpack.c.l.b16 %v1331
      %v1497 = vunpack.c.l.b16 %v1345
      %v1498 = vunpack.c.l.b16 %v1355
      %v1499 = vunpack.c.l.b16 %v1369
      %v1500 = vunpack.c.l.b16 %v1379
      %v1501 = vunpack.c.l.b16 %v1393
      %v1502 = vunpack.c.l.b16 %v1403
      %v1503 = vunpack.c.l.b16 %v1417
      %v1504 = vunpack.c.l.b16 %v1427
      %v1505 = vunpack.c.l.b16 %v1441
      %v1506 = vunpack.c.l.b16 %v1451
      %v1507 = vunpack.c.l.b16 %v1465
      %v1508 = vunpack.c.l.b16 %v1475
      %v1509 = vpack.c.b16 %v1478, %v1477
      %v1510 = vpack.c.b16 %v1480, %v1479
      %v1511 = vpack.c.b16 %v1482, %v1481
      %v1512 = vpack.c.b16 %v1484, %v1483
      %v1513 = vpack.c.b16 %v1486, %v1485
      %v1514 = vpack.c.b16 %v1488, %v1487
      %v1515 = vpack.c.b16 %v1490, %v1489
      %v1516 = vpack.c.b16 %v1492, %v1491
      %v1517 = vpack.c.b16 %v1494, %v1493
      %v1518 = vpack.c.b16 %v1496, %v1495
      %v1519 = vpack.c.b16 %v1498, %v1497
      %v1520 = vpack.c.b16 %v1500, %v1499
      %v1521 = vpack.c.b16 %v1502, %v1501
      %v1522 = vpack.c.b16 %v1504, %v1503
      %v1523 = vpack.c.b16 %v1506, %v1505
      %v1524 = vpack.c.b16 %v1508, %v1507
      %v1526 = vunpack.c.l.b16 %v1476
      %v1527 = vpack.c.b16 %v1526, %v1526
      %v1528 = vrot.slane %v1527, 2
      %vm1529 = vcmask 31744
      %v1531 = vsel %vm1529, %v1509, 0
      %v1534 = vsel %vm1529, %v1510, 0
      %v1537 = vsel %vm1529, %v1511, 0
      %v1540 = vsel %vm1529, %v1512, 0
      %v1543 = vsel %vm1529, %v1513, 0
      %v1546 = vsel %vm1529, %v1514, 0
      %v1549 = vsel %vm1529, %v1515, 0
      %v1552 = vsel %vm1529, %v1516, 0
      %v1555 = vsel %vm1529, %v1517, 0
      %v1558 = vsel %vm1529, %v1518, 0
      %v1561 = vsel %vm1529, %v1519, 0
      %v1564 = vsel %vm1529, %v1520, 0
      %v1567 = vsel %vm1529, %v1521, 0
      %v1570 = vsel %vm1529, %v1522, 0
      %v1573 = vsel %vm1529, %v1523, 0
      %v1576 = vsel %vm1529, %v1524, 0
      %vm1578 = vcmask 1041408
      %v1580 = vsel %vm1578, %v1528, 0
      %1582 = vmatprep.subr.bf16.mxu0 0
      %1583 = vmatpush1.bf16.msra.mxu0 0
      %1584 = vmatprep.subr.bf16.mxu0 0
      %1585 = vmatpush1.bf16.msra.mxu0 0
      %1586 = vmatprep.subr.bf16.mxu0 0
      %1587 = vmatpush1.bf16.msra.mxu0 0
      %1588 = vmatprep.subr.bf16.mxu0 0
      %1589 = vmatpush1.bf16.msra.mxu0 0
      %1590 = vmatprep.subr.bf16.mxu0 0
      %1591 = vmatpush1.bf16.msra.mxu0 0
      %1592 = vmatprep.subr.bf16.mxu0 0
      %1593 = vmatpush1.bf16.msra.mxu0 0
      %1594 = vmatprep.subr.bf16.mxu0 0
      %1595 = vmatpush1.bf16.msra.mxu0 0
      %1596 = vmatprep.subr.bf16.mxu0 0
      %1597 = vmatpush1.bf16.msra.mxu0 %v1580
      %1598 = vmatprep.subr.bf16.mxu0 0
      %1599 = vmatpush2.bf16.msra.mxu0 0
      %1600 = vmatprep.subr.bf16.mxu0 0
      %1601 = vmatpush2.bf16.msra.mxu0 0
      %1602 = vmatprep.subr.bf16.mxu0 0
      %1603 = vmatpush2.bf16.msra.mxu0 0
      %1604 = vmatprep.subr.bf16.mxu0 0
      %1605 = vmatpush2.bf16.msra.mxu0 0
      %1606 = vmatprep.subr.bf16.mxu0 0
      %1607 = vmatpush2.bf16.msra.mxu0 0
      %1608 = vmatprep.subr.bf16.mxu0 0
      %1609 = vmatpush2.bf16.msra.mxu0 0
      %1610 = vmatprep.subr.bf16.mxu0 0
      %1611 = vmatpush2.bf16.msra.mxu0 0
      %1612 = vmatprep.subr.bf16.mxu0 0
      %1613 = vmatpush2.bf16.msra.mxu0 0
      %1614 = vmatprep.mubr.bf16.mxu0 0
      %1615 = vmatmul.mubr.bf16.gmra.mxu0 %v1531
      %v1616 = vpop.f32.mrf.mxu0
      %v1617 = vadd.f32 0.0, %v1616
      %v1618 = vpop.f32.mrf.mxu0
      %v1619 = vpop.f32.mrf.mxu0
      %v1620 = vadd.f32 0.0, %v1619
      %v1621 = vpop.f32.mrf.mxu0
      %1622 = vmatprep.mubr.bf16.mxu0 0
      %1623 = vmatmul.mubr.bf16.gmra.mxu0 %v1534
      %v1624 = vpop.f32.mrf.mxu0
      %v1625 = vadd.f32 0.0, %v1624
      %v1626 = vpop.f32.mrf.mxu0
      %v1627 = vpop.f32.mrf.mxu0
      %v1628 = vadd.f32 0.0, %v1627
      %v1629 = vpop.f32.mrf.mxu0
      %1630 = vmatprep.mubr.bf16.mxu0 0
      %1631 = vmatmul.mubr.bf16.gmra.mxu0 %v1537
      %v1632 = vpop.f32.mrf.mxu0
      %v1633 = vadd.f32 0.0, %v1632
      %v1634 = vpop.f32.mrf.mxu0
      %v1635 = vpop.f32.mrf.mxu0
      %v1636 = vadd.f32 0.0, %v1635
      %v1637 = vpop.f32.mrf.mxu0
      %1638 = vmatprep.mubr.bf16.mxu0 0
      %1639 = vmatmul.mubr.bf16.gmra.mxu0 %v1540
      %v1640 = vpop.f32.mrf.mxu0
      %v1641 = vadd.f32 0.0, %v1640
      %v1642 = vpop.f32.mrf.mxu0
      %v1643 = vpop.f32.mrf.mxu0
      %v1644 = vadd.f32 0.0, %v1643
      %v1645 = vpop.f32.mrf.mxu0
      %1646 = vmatprep.mubr.bf16.mxu0 0
      %1647 = vmatmul.mubr.bf16.gmra.mxu0 %v1543
      %v1648 = vpop.f32.mrf.mxu0
      %v1649 = vadd.f32 0.0, %v1648
      %v1650 = vpop.f32.mrf.mxu0
      %v1651 = vpop.f32.mrf.mxu0
      %v1652 = vadd.f32 0.0, %v1651
      %v1653 = vpop.f32.mrf.mxu0
      %1654 = vmatprep.mubr.bf16.mxu0 0
      %1655 = vmatmul.mubr.bf16.gmra.mxu0 %v1546
      %v1656 = vpop.f32.mrf.mxu0
      %v1657 = vadd.f32 0.0, %v1656
      %v1658 = vpop.f32.mrf.mxu0
      %v1659 = vpop.f32.mrf.mxu0
      %v1660 = vadd.f32 0.0, %v1659
      %v1661 = vpop.f32.mrf.mxu0
      %1662 = vmatprep.mubr.bf16.mxu0 0
      %1663 = vmatmul.mubr.bf16.gmra.mxu0 %v1549
      %v1664 = vpop.f32.mrf.mxu0
      %v1665 = vadd.f32 0.0, %v1664
      %v1666 = vpop.f32.mrf.mxu0
      %v1667 = vpop.f32.mrf.mxu0
      %v1668 = vadd.f32 0.0, %v1667
      %v1669 = vpop.f32.mrf.mxu0
      %1670 = vmatprep.mubr.bf16.mxu0 0
      %1671 = vmatmul.mubr.bf16.gmra.mxu0 %v1552
      %v1672 = vpop.f32.mrf.mxu0
      %v1673 = vadd.f32 0.0, %v1672
      %v1674 = vpop.f32.mrf.mxu0
      %v1675 = vpop.f32.mrf.mxu0
      %v1676 = vadd.f32 0.0, %v1675
      %v1677 = vpop.f32.mrf.mxu0
      %1678 = vmatprep.mubr.bf16.mxu0 0
      %1679 = vmatmul.mubr.bf16.gmra.mxu0 %v1555
      %v1680 = vpop.f32.mrf.mxu0
      %v1681 = vadd.f32 0.0, %v1680
      %v1682 = vpop.f32.mrf.mxu0
      %v1683 = vpop.f32.mrf.mxu0
      %v1684 = vadd.f32 0.0, %v1683
      %v1685 = vpop.f32.mrf.mxu0
      %1686 = vmatprep.mubr.bf16.mxu0 0
      %1687 = vmatmul.mubr.bf16.gmra.mxu0 %v1558
      %v1688 = vpop.f32.mrf.mxu0
      %v1689 = vadd.f32 0.0, %v1688
      %v1690 = vpop.f32.mrf.mxu0
      %v1691 = vpop.f32.mrf.mxu0
      %v1692 = vadd.f32 0.0, %v1691
      %v1693 = vpop.f32.mrf.mxu0
      %1694 = vmatprep.mubr.bf16.mxu0 0
      %1695 = vmatmul.mubr.bf16.gmra.mxu0 %v1561
      %v1696 = vpop.f32.mrf.mxu0
      %v1697 = vadd.f32 0.0, %v1696
      %v1698 = vpop.f32.mrf.mxu0
      %v1699 = vpop.f32.mrf.mxu0
      %v1700 = vadd.f32 0.0, %v1699
      %v1701 = vpop.f32.mrf.mxu0
      %1702 = vmatprep.mubr.bf16.mxu0 0
      %1703 = vmatmul.mubr.bf16.gmra.mxu0 %v1564
      %v1704 = vpop.f32.mrf.mxu0
      %v1705 = vadd.f32 0.0, %v1704
      %v1706 = vpop.f32.mrf.mxu0
      %v1707 = vpop.f32.mrf.mxu0
      %v1708 = vadd.f32 0.0, %v1707
      %v1709 = vpop.f32.mrf.mxu0
      %1710 = vmatprep.mubr.bf16.mxu0 0
      %1711 = vmatmul.mubr.bf16.gmra.mxu0 %v1567
      %v1712 = vpop.f32.mrf.mxu0
      %v1713 = vadd.f32 0.0, %v1712
      %v1714 = vpop.f32.mrf.mxu0
      %v1715 = vpop.f32.mrf.mxu0
      %v1716 = vadd.f32 0.0, %v1715
      %v1717 = vpop.f32.mrf.mxu0
      %1718 = vmatprep.mubr.bf16.mxu0 0
      %1719 = vmatmul.mubr.bf16.gmra.mxu0 %v1570
      %v1720 = vpop.f32.mrf.mxu0
      %v1721 = vadd.f32 0.0, %v1720
      %v1722 = vpop.f32.mrf.mxu0
      %v1723 = vpop.f32.mrf.mxu0
      %v1724 = vadd.f32 0.0, %v1723
      %v1725 = vpop.f32.mrf.mxu0
      %1726 = vmatprep.mubr.bf16.mxu0 0
      %1727 = vmatmul.mubr.bf16.gmra.mxu0 %v1573
      %v1728 = vpop.f32.mrf.mxu0
      %v1729 = vadd.f32 0.0, %v1728
      %v1730 = vpop.f32.mrf.mxu0
      %v1731 = vpop.f32.mrf.mxu0
      %v1732 = vadd.f32 0.0, %v1731
      %v1733 = vpop.f32.mrf.mxu0
      %1734 = vmatprep.mubr.bf16.mxu0 0
      %1735 = vmatmul.mubr.bf16.gmra.mxu0 %v1576
      %v1736 = vpop.f32.mrf.mxu0
      %v1737 = vadd.f32 0.0, %v1736
      %v1738 = vpop.f32.mrf.mxu0
      %v1739 = vpop.f32.mrf.mxu0
      %v1740 = vadd.f32 0.0, %v1739
      %v1741 = vpop.f32.mrf.mxu0
      %1742 = vdwg.mxu0
      %v1775 = vunpack.c.l.b16 %v1034
      %v1776 = vunpack.c.l.b16 %v1035
      %v1777 = vunpack.c.l.b16 %v1037
      %v1778 = vunpack.c.l.b16 %v1038
      %v1779 = vunpack.c.l.b16 %v1040
      %v1780 = vunpack.c.l.b16 %v1041
      %v1781 = vunpack.c.l.b16 %v1043
      %v1782 = vunpack.c.l.b16 %v1044
      %v1783 = vunpack.c.l.b16 %v1046
      %v1784 = vunpack.c.l.b16 %v1047
      %v1785 = vunpack.c.l.b16 %v1049
      %v1786 = vunpack.c.l.b16 %v1050
      %v1787 = vunpack.c.l.b16 %v1052
      %v1788 = vunpack.c.l.b16 %v1053
      %v1789 = vunpack.c.l.b16 %v1055
      %v1790 = vunpack.c.l.b16 %v1056
      %v1791 = vunpack.c.l.b16 %v1058
      %v1792 = vunpack.c.l.b16 %v1059
      %v1793 = vunpack.c.l.b16 %v1061
      %v1794 = vunpack.c.l.b16 %v1062
      %v1795 = vunpack.c.l.b16 %v1064
      %v1796 = vunpack.c.l.b16 %v1065
      %v1797 = vunpack.c.l.b16 %v1067
      %v1798 = vunpack.c.l.b16 %v1068
      %v1799 = vunpack.c.l.b16 %v1070
      %v1800 = vunpack.c.l.b16 %v1071
      %v1801 = vunpack.c.l.b16 %v1073
      %v1802 = vunpack.c.l.b16 %v1074
      %v1803 = vunpack.c.l.b16 %v1076
      %v1804 = vunpack.c.l.b16 %v1077
      %v1805 = vunpack.c.l.b16 %v1079
      %v1806 = vunpack.c.l.b16 %v1080
      %v1807 = vpack.c.b16 %v1776, %v1775
      %v1808 = vpack.c.b16 %v1778, %v1777
      %v1809 = vpack.c.b16 %v1780, %v1779
      %v1810 = vpack.c.b16 %v1782, %v1781
      %v1811 = vpack.c.b16 %v1784, %v1783
      %v1812 = vpack.c.b16 %v1786, %v1785
      %v1813 = vpack.c.b16 %v1788, %v1787
      %v1814 = vpack.c.b16 %v1790, %v1789
      %v1815 = vpack.c.b16 %v1792, %v1791
      %v1816 = vpack.c.b16 %v1794, %v1793
      %v1817 = vpack.c.b16 %v1796, %v1795
      %v1818 = vpack.c.b16 %v1798, %v1797
      %v1819 = vpack.c.b16 %v1800, %v1799
      %v1820 = vpack.c.b16 %v1802, %v1801
      %v1821 = vpack.c.b16 %v1804, %v1803
      %v1822 = vpack.c.b16 %v1806, %v1805
      %v1824 = vsel %vm1529, %v1807, 0
      %v1827 = vsel %vm1529, %v1808, 0
      %v1830 = vsel %vm1529, %v1809, 0
      %v1833 = vsel %vm1529, %v1810, 0
      %v1836 = vsel %vm1529, %v1811, 0
      %v1839 = vsel %vm1529, %v1812, 0
      %v1842 = vsel %vm1529, %v1813, 0
      %v1845 = vsel %vm1529, %v1814, 0
      %v1848 = vsel %vm1529, %v1815, 0
      %v1851 = vsel %vm1529, %v1816, 0
      %v1854 = vsel %vm1529, %v1817, 0
      %v1857 = vsel %vm1529, %v1818, 0
      %v1860 = vsel %vm1529, %v1819, 0
      %v1863 = vsel %vm1529, %v1820, 0
      %v1866 = vsel %vm1529, %v1821, 0
      %v1869 = vsel %vm1529, %v1822, 0
      %v1872 = vsel %vm1578, %v1088, 0
      %1874 = vmatprep.subr.bf16.mxu0 0
      %1875 = vmatpush1.bf16.msra.mxu0 0
      %1876 = vmatprep.subr.bf16.mxu0 0
      %1877 = vmatpush1.bf16.msra.mxu0 0
      %1878 = vmatprep.subr.bf16.mxu0 0
      %1879 = vmatpush1.bf16.msra.mxu0 0
      %1880 = vmatprep.subr.bf16.mxu0 0
      %1881 = vmatpush1.bf16.msra.mxu0 0
      %1882 = vmatprep.subr.bf16.mxu0 0
      %1883 = vmatpush1.bf16.msra.mxu0 0
      %1884 = vmatprep.subr.bf16.mxu0 0
      %1885 = vmatpush1.bf16.msra.mxu0 0
      %1886 = vmatprep.subr.bf16.mxu0 0
      %1887 = vmatpush1.bf16.msra.mxu0 0
      %1888 = vmatprep.subr.bf16.mxu0 0
      %1889 = vmatpush1.bf16.msra.mxu0 %v1872
      %1890 = vmatprep.subr.bf16.mxu0 0
      %1891 = vmatpush2.bf16.msra.mxu0 0
      %1892 = vmatprep.subr.bf16.mxu0 0
      %1893 = vmatpush2.bf16.msra.mxu0 0
      %1894 = vmatprep.subr.bf16.mxu0 0
      %1895 = vmatpush2.bf16.msra.mxu0 0
      %1896 = vmatprep.subr.bf16.mxu0 0
      %1897 = vmatpush2.bf16.msra.mxu0 0
      %1898 = vmatprep.subr.bf16.mxu0 0
      %1899 = vmatpush2.bf16.msra.mxu0 0
      %1900 = vmatprep.subr.bf16.mxu0 0
      %1901 = vmatpush2.bf16.msra.mxu0 0
      %1902 = vmatprep.subr.bf16.mxu0 0
      %1903 = vmatpush2.bf16.msra.mxu0 0
      %1904 = vmatprep.subr.bf16.mxu0 0
      %1905 = vmatpush2.bf16.msra.mxu0 0
      %1906 = vmatprep.mubr.bf16.mxu0 0
      %1907 = vmatmul.mubr.bf16.gmra.mxu0 %v1824
      %v1908 = vpop.f32.mrf.mxu0
      %v1909 = vadd.f32 %v1617, %v1908
      %v1910 = vpop.f32.mrf.mxu0
      %v1911 = vpop.f32.mrf.mxu0
      %v1912 = vadd.f32 %v1620, %v1911
      %v1913 = vpop.f32.mrf.mxu0
      %1914 = vmatprep.mubr.bf16.mxu0 0
      %1915 = vmatmul.mubr.bf16.gmra.mxu0 %v1827
      %v1916 = vpop.f32.mrf.mxu0
      %v1917 = vadd.f32 %v1625, %v1916
      %v1918 = vpop.f32.mrf.mxu0
      %v1919 = vpop.f32.mrf.mxu0
      %v1920 = vadd.f32 %v1628, %v1919
      %v1921 = vpop.f32.mrf.mxu0
      %1922 = vmatprep.mubr.bf16.mxu0 0
      %1923 = vmatmul.mubr.bf16.gmra.mxu0 %v1830
      %v1924 = vpop.f32.mrf.mxu0
      %v1925 = vadd.f32 %v1633, %v1924
      %v1926 = vpop.f32.mrf.mxu0
      %v1927 = vpop.f32.mrf.mxu0
      %v1928 = vadd.f32 %v1636, %v1927
      %v1929 = vpop.f32.mrf.mxu0
      %1930 = vmatprep.mubr.bf16.mxu0 0
      %1931 = vmatmul.mubr.bf16.gmra.mxu0 %v1833
      %v1932 = vpop.f32.mrf.mxu0
      %v1933 = vadd.f32 %v1641, %v1932
      %v1934 = vpop.f32.mrf.mxu0
      %v1935 = vpop.f32.mrf.mxu0
      %v1936 = vadd.f32 %v1644, %v1935
      %v1937 = vpop.f32.mrf.mxu0
      %1938 = vmatprep.mubr.bf16.mxu0 0
      %1939 = vmatmul.mubr.bf16.gmra.mxu0 %v1836
      %v1940 = vpop.f32.mrf.mxu0
      %v1941 = vadd.f32 %v1649, %v1940
      %v1942 = vpop.f32.mrf.mxu0
      %v1943 = vpop.f32.mrf.mxu0
      %v1944 = vadd.f32 %v1652, %v1943
      %v1945 = vpop.f32.mrf.mxu0
      %1946 = vmatprep.mubr.bf16.mxu0 0
      %1947 = vmatmul.mubr.bf16.gmra.mxu0 %v1839
      %v1948 = vpop.f32.mrf.mxu0
      %v1949 = vadd.f32 %v1657, %v1948
      %v1950 = vpop.f32.mrf.mxu0
      %v1951 = vpop.f32.mrf.mxu0
      %v1952 = vadd.f32 %v1660, %v1951
      %v1953 = vpop.f32.mrf.mxu0
      %1954 = vmatprep.mubr.bf16.mxu0 0
      %1955 = vmatmul.mubr.bf16.gmra.mxu0 %v1842
      %v1956 = vpop.f32.mrf.mxu0
      %v1957 = vadd.f32 %v1665, %v1956
      %v1958 = vpop.f32.mrf.mxu0
      %v1959 = vpop.f32.mrf.mxu0
      %v1960 = vadd.f32 %v1668, %v1959
      %v1961 = vpop.f32.mrf.mxu0
      %1962 = vmatprep.mubr.bf16.mxu0 0
      %1963 = vmatmul.mubr.bf16.gmra.mxu0 %v1845
      %v1964 = vpop.f32.mrf.mxu0
      %v1965 = vadd.f32 %v1673, %v1964
      %v1966 = vpop.f32.mrf.mxu0
      %v1967 = vpop.f32.mrf.mxu0
      %v1968 = vadd.f32 %v1676, %v1967
      %v1969 = vpop.f32.mrf.mxu0
      %1970 = vmatprep.mubr.bf16.mxu0 0
      %1971 = vmatmul.mubr.bf16.gmra.mxu0 %v1848
      %v1972 = vpop.f32.mrf.mxu0
      %v1973 = vadd.f32 %v1681, %v1972
      %v1974 = vpop.f32.mrf.mxu0
      %v1975 = vpop.f32.mrf.mxu0
      %v1976 = vadd.f32 %v1684, %v1975
      %v1977 = vpop.f32.mrf.mxu0
      %1978 = vmatprep.mubr.bf16.mxu0 0
      %1979 = vmatmul.mubr.bf16.gmra.mxu0 %v1851
      %v1980 = vpop.f32.mrf.mxu0
      %v1981 = vadd.f32 %v1689, %v1980
      %v1982 = vpop.f32.mrf.mxu0
      %v1983 = vpop.f32.mrf.mxu0
      %v1984 = vadd.f32 %v1692, %v1983
      %v1985 = vpop.f32.mrf.mxu0
      %1986 = vmatprep.mubr.bf16.mxu0 0
      %1987 = vmatmul.mubr.bf16.gmra.mxu0 %v1854
      %v1988 = vpop.f32.mrf.mxu0
      %v1989 = vadd.f32 %v1697, %v1988
      %v1990 = vpop.f32.mrf.mxu0
      %v1991 = vpop.f32.mrf.mxu0
      %v1992 = vadd.f32 %v1700, %v1991
      %v1993 = vpop.f32.mrf.mxu0
      %1994 = vmatprep.mubr.bf16.mxu0 0
      %1995 = vmatmul.mubr.bf16.gmra.mxu0 %v1857
      %v1996 = vpop.f32.mrf.mxu0
      %v1997 = vadd.f32 %v1705, %v1996
      %v1998 = vpop.f32.mrf.mxu0
      %v1999 = vpop.f32.mrf.mxu0
      %v2000 = vadd.f32 %v1708, %v1999
      %v2001 = vpop.f32.mrf.mxu0
      %2002 = vmatprep.mubr.bf16.mxu0 0
      %2003 = vmatmul.mubr.bf16.gmra.mxu0 %v1860
      %v2004 = vpop.f32.mrf.mxu0
      %v2005 = vadd.f32 %v1713, %v2004
      %v2006 = vpop.f32.mrf.mxu0
      %v2007 = vpop.f32.mrf.mxu0
      %v2008 = vadd.f32 %v1716, %v2007
      %v2009 = vpop.f32.mrf.mxu0
      %2010 = vmatprep.mubr.bf16.mxu0 0
      %2011 = vmatmul.mubr.bf16.gmra.mxu0 %v1863
      %v2012 = vpop.f32.mrf.mxu0
      %v2013 = vadd.f32 %v1721, %v2012
      %v2014 = vpop.f32.mrf.mxu0
      %v2015 = vpop.f32.mrf.mxu0
      %v2016 = vadd.f32 %v1724, %v2015
      %v2017 = vpop.f32.mrf.mxu0
      %2018 = vmatprep.mubr.bf16.mxu0 0
      %2019 = vmatmul.mubr.bf16.gmra.mxu0 %v1866
      %v2020 = vpop.f32.mrf.mxu0
      %v2021 = vadd.f32 %v1729, %v2020
      %v2022 = vpop.f32.mrf.mxu0
      %v2023 = vpop.f32.mrf.mxu0
      %v2024 = vadd.f32 %v1732, %v2023
      %v2025 = vpop.f32.mrf.mxu0
      %2026 = vmatprep.mubr.bf16.mxu0 0
      %2027 = vmatmul.mubr.bf16.gmra.mxu0 %v1869
      %v2028 = vpop.f32.mrf.mxu0
      %v2029 = vadd.f32 %v1737, %v2028
      %v2030 = vpop.f32.mrf.mxu0
      %v2031 = vpop.f32.mrf.mxu0
      %v2032 = vadd.f32 %v1740, %v2031
      %v2033 = vpop.f32.mrf.mxu0
      %2034 = vdwg.mxu0
      %vm2051 = vcmask 1042432
      %vm2052 = vcmask 1046532
      %vm2053 = vmor %vm2051, %vm2052
      %v2054 = vrot.slane %v1034, 5
      %v2055 = vrot.slane %v2054, 4
      %v2056 = vrot.slane %v1035, 5
      %v2057 = vsel %vm2053, %v2055, %v2056
      %v2058 = vrot.slane %v2056, 4
      %v2059 = vrot.slane %v1036, 5
      %v2060 = vsel %vm2053, %v2058, %v2059
      %v2061 = vrot.slane %v1037, 5
      %v2062 = vrot.slane %v2061, 4
      %v2063 = vrot.slane %v1038, 5
      %v2064 = vsel %vm2053, %v2062, %v2063
      %v2065 = vrot.slane %v2063, 4
      %v2066 = vrot.slane %v1039, 5
      %v2067 = vsel %vm2053, %v2065, %v2066
      %v2068 = vrot.slane %v1040, 5
      %v2069 = vrot.slane %v2068, 4
      %v2070 = vrot.slane %v1041, 5
      %v2071 = vsel %vm2053, %v2069, %v2070
      %v2072 = vrot.slane %v2070, 4
      %v2073 = vrot.slane %v1042, 5
      %v2074 = vsel %vm2053, %v2072, %v2073
      %v2075 = vrot.slane %v1043, 5
      %v2076 = vrot.slane %v2075, 4
      %v2077 = vrot.slane %v1044, 5
      %v2078 = vsel %vm2053, %v2076, %v2077
      %v2079 = vrot.slane %v2077, 4
      %v2080 = vrot.slane %v1045, 5
      %v2081 = vsel %vm2053, %v2079, %v2080
      %v2082 = vrot.slane %v1046, 5
      %v2083 = vrot.slane %v2082, 4
      %v2084 = vrot.slane %v1047, 5
      %v2085 = vsel %vm2053, %v2083, %v2084
      %v2086 = vrot.slane %v2084, 4
      %v2087 = vrot.slane %v1048, 5
      %v2088 = vsel %vm2053, %v2086, %v2087
      %v2089 = vrot.slane %v1049, 5
      %v2090 = vrot.slane %v2089, 4
      %v2091 = vrot.slane %v1050, 5
      %v2092 = vsel %vm2053, %v2090, %v2091
      %v2093 = vrot.slane %v2091, 4
      %v2094 = vrot.slane %v1051, 5
      %v2095 = vsel %vm2053, %v2093, %v2094
      %v2096 = vrot.slane %v1052, 5
      %v2097 = vrot.slane %v2096, 4
      %v2098 = vrot.slane %v1053, 5
      %v2099 = vsel %vm2053, %v2097, %v2098
      %v2100 = vrot.slane %v2098, 4
      %v2101 = vrot.slane %v1054, 5
      %v2102 = vsel %vm2053, %v2100, %v2101
      %v2103 = vrot.slane %v1055, 5
      %v2104 = vrot.slane %v2103, 4
      %v2105 = vrot.slane %v1056, 5
      %v2106 = vsel %vm2053, %v2104, %v2105
      %v2107 = vrot.slane %v2105, 4
      %v2108 = vrot.slane %v1057, 5
      %v2109 = vsel %vm2053, %v2107, %v2108
      %v2110 = vrot.slane %v1058, 5
      %v2111 = vrot.slane %v2110, 4
      %v2112 = vrot.slane %v1059, 5
      %v2113 = vsel %vm2053, %v2111, %v2112
      %v2114 = vrot.slane %v2112, 4
      %v2115 = vrot.slane %v1060, 5
      %v2116 = vsel %vm2053, %v2114, %v2115
      %v2117 = vrot.slane %v1061, 5
      %v2118 = vrot.slane %v2117, 4
      %v2119 = vrot.slane %v1062, 5
      %v2120 = vsel %vm2053, %v2118, %v2119
      %v2121 = vrot.slane %v2119, 4
      %v2122 = vrot.slane %v1063, 5
      %v2123 = vsel %vm2053, %v2121, %v2122
      %v2124 = vrot.slane %v1064, 5
      %v2125 = vrot.slane %v2124, 4
      %v2126 = vrot.slane %v1065, 5
      %v2127 = vsel %vm2053, %v2125, %v2126
      %v2128 = vrot.slane %v2126, 4
      %v2129 = vrot.slane %v1066, 5
      %v2130 = vsel %vm2053, %v2128, %v2129
      %v2131 = vrot.slane %v1067, 5
      %v2132 = vrot.slane %v2131, 4
      %v2133 = vrot.slane %v1068, 5
      %v2134 = vsel %vm2053, %v2132, %v2133
      %v2135 = vrot.slane %v2133, 4
      %v2136 = vrot.slane %v1069, 5
      %v2137 = vsel %vm2053, %v2135, %v2136
      %v2138 = vrot.slane %v1070, 5
      %v2139 = vrot.slane %v2138, 4
      %v2140 = vrot.slane %v1071, 5
      %v2141 = vsel %vm2053, %v2139, %v2140
      %v2142 = vrot.slane %v2140, 4
      %v2143 = vrot.slane %v1072, 5
      %v2144 = vsel %vm2053, %v2142, %v2143
      %v2145 = vrot.slane %v1073, 5
      %v2146 = vrot.slane %v2145, 4
      %v2147 = vrot.slane %v1074, 5
      %v2148 = vsel %vm2053, %v2146, %v2147
      %v2149 = vrot.slane %v2147, 4
      %v2150 = vrot.slane %v1075, 5
      %v2151 = vsel %vm2053, %v2149, %v2150
      %v2152 = vrot.slane %v1076, 5
      %v2153 = vrot.slane %v2152, 4
      %v2154 = vrot.slane %v1077, 5
      %v2155 = vsel %vm2053, %v2153, %v2154
      %v2156 = vrot.slane %v2154, 4
      %v2157 = vrot.slane %v1078, 5
      %v2158 = vsel %vm2053, %v2156, %v2157
      %v2159 = vrot.slane %v1079, 5
      %v2160 = vrot.slane %v2159, 4
      %v2161 = vrot.slane %v1080, 5
      %v2162 = vsel %vm2053, %v2160, %v2161
      %v2163 = vrot.slane %v2161, 4
      %v2164 = vrot.slane %v1081, 5
      %v2165 = vsel %vm2053, %v2163, %v2164
      %v2166 = vld [vmem:[%s3 + $0x4] sm:$0x3]
      %v2167 = vunpack.c.l.b16 %v2057
      %v2168 = vunpack.c.l.b16 %v2060
      %v2169 = vunpack.c.l.b16 %v2064
      %v2170 = vunpack.c.l.b16 %v2067
      %v2171 = vunpack.c.l.b16 %v2071
      %v2172 = vunpack.c.l.b16 %v2074
      %v2173 = vunpack.c.l.b16 %v2078
      %v2174 = vunpack.c.l.b16 %v2081
      %v2175 = vunpack.c.l.b16 %v2085
      %v2176 = vunpack.c.l.b16 %v2088
      %v2177 = vunpack.c.l.b16 %v2092
      %v2178 = vunpack.c.l.b16 %v2095
      %v2179 = vunpack.c.l.b16 %v2099
      %v2180 = vunpack.c.l.b16 %v2102
      %v2181 = vunpack.c.l.b16 %v2106
      %v2182 = vunpack.c.l.b16 %v2109
      %v2183 = vunpack.c.l.b16 %v2113
      %v2184 = vunpack.c.l.b16 %v2116
      %v2185 = vunpack.c.l.b16 %v2120
      %v2186 = vunpack.c.l.b16 %v2123
      %v2187 = vunpack.c.l.b16 %v2127
      %v2188 = vunpack.c.l.b16 %v2130
      %v2189 = vunpack.c.l.b16 %v2134
      %v2190 = vunpack.c.l.b16 %v2137
      %v2191 = vunpack.c.l.b16 %v2141
      %v2192 = vunpack.c.l.b16 %v2144
      %v2193 = vunpack.c.l.b16 %v2148
      %v2194 = vunpack.c.l.b16 %v2151
      %v2195 = vunpack.c.l.b16 %v2155
      %v2196 = vunpack.c.l.b16 %v2158
      %v2197 = vunpack.c.l.b16 %v2162
      %v2198 = vunpack.c.l.b16 %v2165
      %v2199 = vpack.c.b16 %v2168, %v2167
      %v2200 = vpack.c.b16 %v2170, %v2169
      %v2201 = vpack.c.b16 %v2172, %v2171
      %v2202 = vpack.c.b16 %v2174, %v2173
      %v2203 = vpack.c.b16 %v2176, %v2175
      %v2204 = vpack.c.b16 %v2178, %v2177
      %v2205 = vpack.c.b16 %v2180, %v2179
      %v2206 = vpack.c.b16 %v2182, %v2181
      %v2207 = vpack.c.b16 %v2184, %v2183
      %v2208 = vpack.c.b16 %v2186, %v2185
      %v2209 = vpack.c.b16 %v2188, %v2187
      %v2210 = vpack.c.b16 %v2190, %v2189
      %v2211 = vpack.c.b16 %v2192, %v2191
      %v2212 = vpack.c.b16 %v2194, %v2193
      %v2213 = vpack.c.b16 %v2196, %v2195
      %v2214 = vpack.c.b16 %v2198, %v2197
      %v2216 = vsel %vm1529, %v2199, 0
      %v2219 = vsel %vm1529, %v2200, 0
      %v2222 = vsel %vm1529, %v2201, 0
      %v2225 = vsel %vm1529, %v2202, 0
      %v2228 = vsel %vm1529, %v2203, 0
      %v2231 = vsel %vm1529, %v2204, 0
      %v2234 = vsel %vm1529, %v2205, 0
      %v2237 = vsel %vm1529, %v2206, 0
      %v2240 = vsel %vm1529, %v2207, 0
      %v2243 = vsel %vm1529, %v2208, 0
      %v2246 = vsel %vm1529, %v2209, 0
      %v2249 = vsel %vm1529, %v2210, 0
      %v2252 = vsel %vm1529, %v2211, 0
      %v2255 = vsel %vm1529, %v2212, 0
      %v2258 = vsel %vm1529, %v2213, 0
      %v2261 = vsel %vm1529, %v2214, 0
      %v2264 = vsel %vm1578, %v2166, 0
      %2266 = vmatprep.subr.bf16.mxu0 0
      %2267 = vmatpush1.bf16.msra.mxu0 0
      %2268 = vmatprep.subr.bf16.mxu0 0
      %2269 = vmatpush1.bf16.msra.mxu0 0
      %2270 = vmatprep.subr.bf16.mxu0 0
      %2271 = vmatpush1.bf16.msra.mxu0 0
      %2272 = vmatprep.subr.bf16.mxu0 0
      %2273 = vmatpush1.bf16.msra.mxu0 0
      %2274 = vmatprep.subr.bf16.mxu0 0
      %2275 = vmatpush1.bf16.msra.mxu0 0
      %2276 = vmatprep.subr.bf16.mxu0 0
      %2277 = vmatpush1.bf16.msra.mxu0 0
      %2278 = vmatprep.subr.bf16.mxu0 0
      %2279 = vmatpush1.bf16.msra.mxu0 0
      %2280 = vmatprep.subr.bf16.mxu0 0
      %2281 = vmatpush1.bf16.msra.mxu0 %v2264
      %2282 = vmatprep.subr.bf16.mxu0 0
      %2283 = vmatpush2.bf16.msra.mxu0 0
      %2284 = vmatprep.subr.bf16.mxu0 0
      %2285 = vmatpush2.bf16.msra.mxu0 0
      %2286 = vmatprep.subr.bf16.mxu0 0
      %2287 = vmatpush2.bf16.msra.mxu0 0
      %2288 = vmatprep.subr.bf16.mxu0 0
      %2289 = vmatpush2.bf16.msra.mxu0 0
      %2290 = vmatprep.subr.bf16.mxu0 0
      %2291 = vmatpush2.bf16.msra.mxu0 0
      %2292 = vmatprep.subr.bf16.mxu0 0
      %2293 = vmatpush2.bf16.msra.mxu0 0
      %2294 = vmatprep.subr.bf16.mxu0 0
      %2295 = vmatpush2.bf16.msra.mxu0 0
      %2296 = vmatprep.subr.bf16.mxu0 0
      %2297 = vmatpush2.bf16.msra.mxu0 0
      %2298 = vmatprep.mubr.bf16.mxu0 0
      %2299 = vmatmul.mubr.bf16.gmra.mxu0 %v2216
      %v2300 = vpop.f32.mrf.mxu0
      %v2301 = vadd.f32 0.0, %v2300
      %v2302 = vpop.f32.mrf.mxu0
      %v2303 = vpop.f32.mrf.mxu0
      %v2304 = vadd.f32 0.0, %v2303
      %v2305 = vpop.f32.mrf.mxu0
      %2306 = vmatprep.mubr.bf16.mxu0 0
      %2307 = vmatmul.mubr.bf16.gmra.mxu0 %v2219
      %v2308 = vpop.f32.mrf.mxu0
      %v2309 = vadd.f32 0.0, %v2308
      %v2310 = vpop.f32.mrf.mxu0
      %v2311 = vpop.f32.mrf.mxu0
      %v2312 = vadd.f32 0.0, %v2311
      %v2313 = vpop.f32.mrf.mxu0
      %2314 = vmatprep.mubr.bf16.mxu0 0
      %2315 = vmatmul.mubr.bf16.gmra.mxu0 %v2222
      %v2316 = vpop.f32.mrf.mxu0
      %v2317 = vadd.f32 0.0, %v2316
      %v2318 = vpop.f32.mrf.mxu0
      %v2319 = vpop.f32.mrf.mxu0
      %v2320 = vadd.f32 0.0, %v2319
      %v2321 = vpop.f32.mrf.mxu0
      %2322 = vmatprep.mubr.bf16.mxu0 0
      %2323 = vmatmul.mubr.bf16.gmra.mxu0 %v2225
      %v2324 = vpop.f32.mrf.mxu0
      %v2325 = vadd.f32 0.0, %v2324
      %v2326 = vpop.f32.mrf.mxu0
      %v2327 = vpop.f32.mrf.mxu0
      %v2328 = vadd.f32 0.0, %v2327
      %v2329 = vpop.f32.mrf.mxu0
      %2330 = vmatprep.mubr.bf16.mxu0 0
      %2331 = vmatmul.mubr.bf16.gmra.mxu0 %v2228
      %v2332 = vpop.f32.mrf.mxu0
      %v2333 = vadd.f32 0.0, %v2332
      %v2334 = vpop.f32.mrf.mxu0
      %v2335 = vpop.f32.mrf.mxu0
      %v2336 = vadd.f32 0.0, %v2335
      %v2337 = vpop.f32.mrf.mxu0
      %2338 = vmatprep.mubr.bf16.mxu0 0
      %2339 = vmatmul.mubr.bf16.gmra.mxu0 %v2231
      %v2340 = vpop.f32.mrf.mxu0
      %v2341 = vadd.f32 0.0, %v2340
      %v2342 = vpop.f32.mrf.mxu0
      %v2343 = vpop.f32.mrf.mxu0
      %v2344 = vadd.f32 0.0, %v2343
      %v2345 = vpop.f32.mrf.mxu0
      %2346 = vmatprep.mubr.bf16.mxu0 0
      %2347 = vmatmul.mubr.bf16.gmra.mxu0 %v2234
      %v2348 = vpop.f32.mrf.mxu0
      %v2349 = vadd.f32 0.0, %v2348
      %v2350 = vpop.f32.mrf.mxu0
      %v2351 = vpop.f32.mrf.mxu0
      %v2352 = vadd.f32 0.0, %v2351
      %v2353 = vpop.f32.mrf.mxu0
      %2354 = vmatprep.mubr.bf16.mxu0 0
      %2355 = vmatmul.mubr.bf16.gmra.mxu0 %v2237
      %v2356 = vpop.f32.mrf.mxu0
      %v2357 = vadd.f32 0.0, %v2356
      %v2358 = vpop.f32.mrf.mxu0
      %v2359 = vpop.f32.mrf.mxu0
      %v2360 = vadd.f32 0.0, %v2359
      %v2361 = vpop.f32.mrf.mxu0
      %2362 = vmatprep.mubr.bf16.mxu0 0
      %2363 = vmatmul.mubr.bf16.gmra.mxu0 %v2240
      %v2364 = vpop.f32.mrf.mxu0
      %v2365 = vadd.f32 0.0, %v2364
      %v2366 = vpop.f32.mrf.mxu0
      %v2367 = vpop.f32.mrf.mxu0
      %v2368 = vadd.f32 0.0, %v2367
      %v2369 = vpop.f32.mrf.mxu0
      %2370 = vmatprep.mubr.bf16.mxu0 0
      %2371 = vmatmul.mubr.bf16.gmra.mxu0 %v2243
      %v2372 = vpop.f32.mrf.mxu0
      %v2373 = vadd.f32 0.0, %v2372
      %v2374 = vpop.f32.mrf.mxu0
      %v2375 = vpop.f32.mrf.mxu0
      %v2376 = vadd.f32 0.0, %v2375
      %v2377 = vpop.f32.mrf.mxu0
      %2378 = vmatprep.mubr.bf16.mxu0 0
      %2379 = vmatmul.mubr.bf16.gmra.mxu0 %v2246
      %v2380 = vpop.f32.mrf.mxu0
      %v2381 = vadd.f32 0.0, %v2380
      %v2382 = vpop.f32.mrf.mxu0
      %v2383 = vpop.f32.mrf.mxu0
      %v2384 = vadd.f32 0.0, %v2383
      %v2385 = vpop.f32.mrf.mxu0
      %2386 = vmatprep.mubr.bf16.mxu0 0
      %2387 = vmatmul.mubr.bf16.gmra.mxu0 %v2249
      %v2388 = vpop.f32.mrf.mxu0
      %v2389 = vadd.f32 0.0, %v2388
      %v2390 = vpop.f32.mrf.mxu0
      %v2391 = vpop.f32.mrf.mxu0
      %v2392 = vadd.f32 0.0, %v2391
      %v2393 = vpop.f32.mrf.mxu0
      %2394 = vmatprep.mubr.bf16.mxu0 0
      %2395 = vmatmul.mubr.bf16.gmra.mxu0 %v2252
      %v2396 = vpop.f32.mrf.mxu0
      %v2397 = vadd.f32 0.0, %v2396
      %v2398 = vpop.f32.mrf.mxu0
      %v2399 = vpop.f32.mrf.mxu0
      %v2400 = vadd.f32 0.0, %v2399
      %v2401 = vpop.f32.mrf.mxu0
      %2402 = vmatprep.mubr.bf16.mxu0 0
      %2403 = vmatmul.mubr.bf16.gmra.mxu0 %v2255
      %v2404 = vpop.f32.mrf.mxu0
      %v2405 = vadd.f32 0.0, %v2404
      %v2406 = vpop.f32.mrf.mxu0
      %v2407 = vpop.f32.mrf.mxu0
      %v2408 = vadd.f32 0.0, %v2407
      %v2409 = vpop.f32.mrf.mxu0
      %2410 = vmatprep.mubr.bf16.mxu0 0
      %2411 = vmatmul.mubr.bf16.gmra.mxu0 %v2258
      %v2412 = vpop.f32.mrf.mxu0
      %v2413 = vadd.f32 0.0, %v2412
      %v2414 = vpop.f32.mrf.mxu0
      %v2415 = vpop.f32.mrf.mxu0
      %v2416 = vadd.f32 0.0, %v2415
      %v2417 = vpop.f32.mrf.mxu0
      %2418 = vmatprep.mubr.bf16.mxu0 0
      %2419 = vmatmul.mubr.bf16.gmra.mxu0 %v2261
      %v2420 = vpop.f32.mrf.mxu0
      %v2421 = vadd.f32 0.0, %v2420
      %v2422 = vpop.f32.mrf.mxu0
      %v2423 = vpop.f32.mrf.mxu0
      %v2424 = vadd.f32 0.0, %v2423
      %v2425 = vpop.f32.mrf.mxu0
      %2426 = vdwg.mxu0
      %v2427 = vadd.f32 %v1909, %v2301
      %v2428 = vadd.f32 %v1912, %v2304
      %v2429 = vadd.f32 %v1917, %v2309
      %v2430 = vadd.f32 %v1920, %v2312
      %v2431 = vadd.f32 %v1925, %v2317
      %v2432 = vadd.f32 %v1928, %v2320
      %v2433 = vadd.f32 %v1933, %v2325
      %v2434 = vadd.f32 %v1936, %v2328
      %v2435 = vadd.f32 %v1941, %v2333
      %v2436 = vadd.f32 %v1944, %v2336
      %v2437 = vadd.f32 %v1949, %v2341
      %v2438 = vadd.f32 %v1952, %v2344
      %v2439 = vadd.f32 %v1957, %v2349
      %v2440 = vadd.f32 %v1960, %v2352
      %v2441 = vadd.f32 %v1965, %v2357
      %v2442 = vadd.f32 %v1968, %v2360
      %v2443 = vadd.f32 %v1973, %v2365
      %v2444 = vadd.f32 %v1976, %v2368
      %v2445 = vadd.f32 %v1981, %v2373
      %v2446 = vadd.f32 %v1984, %v2376
      %v2447 = vadd.f32 %v1989, %v2381
      %v2448 = vadd.f32 %v1992, %v2384
      %v2449 = vadd.f32 %v1997, %v2389
      %v2450 = vadd.f32 %v2000, %v2392
      %v2451 = vadd.f32 %v2005, %v2397
      %v2452 = vadd.f32 %v2008, %v2400
      %v2453 = vadd.f32 %v2013, %v2405
      %v2454 = vadd.f32 %v2016, %v2408
      %v2455 = vadd.f32 %v2021, %v2413
      %v2456 = vadd.f32 %v2024, %v2416
      %v2457 = vadd.f32 %v2029, %v2421
      %v2458 = vadd.f32 %v2032, %v2424
      %v2459 = vld [vmem:[%s3 + $0x4] sm:$0xc]
      %v2462 = vunpack.c.l.b16 %v1082
      %v2463 = vunpack.c.l.b16 %v1083
      %v2464 = vpack.c.b16 %v2463, %v2462
      %v2466 = vunpack.c.l.b16 %v2459
      %v2467 = vpack.c.b16 %v2466, %v2466
      %v2468 = vrot.slane %v2467, 2
      %v2470 = vsel %vm1529, %v2464, 0
      %v2473 = vsel %vm1578, %v2468, 0
      %2475 = vmatprep.subr.bf16.mxu0 0
      %2476 = vmatpush1.bf16.msra.mxu0 0
      %2477 = vmatprep.subr.bf16.mxu0 0
      %2478 = vmatpush1.bf16.msra.mxu0 0
      %2479 = vmatprep.subr.bf16.mxu0 0
      %2480 = vmatpush1.bf16.msra.mxu0 0
      %2481 = vmatprep.subr.bf16.mxu0 0
      %2482 = vmatpush1.bf16.msra.mxu0 0
      %2483 = vmatprep.subr.bf16.mxu0 0
      %2484 = vmatpush1.bf16.msra.mxu0 0
      %2485 = vmatprep.subr.bf16.mxu0 0
      %2486 = vmatpush1.bf16.msra.mxu0 0
      %2487 = vmatprep.subr.bf16.mxu0 0
      %2488 = vmatpush1.bf16.msra.mxu0 0
      %2489 = vmatprep.subr.bf16.mxu0 0
      %2490 = vmatpush1.bf16.msra.mxu0 %v2473
      %2491 = vmatprep.subr.bf16.mxu0 0
      %2492 = vmatpush2.bf16.msra.mxu0 0
      %2493 = vmatprep.subr.bf16.mxu0 0
      %2494 = vmatpush2.bf16.msra.mxu0 0
      %2495 = vmatprep.subr.bf16.mxu0 0
      %2496 = vmatpush2.bf16.msra.mxu0 0
      %2497 = vmatprep.subr.bf16.mxu0 0
      %2498 = vmatpush2.bf16.msra.mxu0 0
      %2499 = vmatprep.subr.bf16.mxu0 0
      %2500 = vmatpush2.bf16.msra.mxu0 0
      %2501 = vmatprep.subr.bf16.mxu0 0
      %2502 = vmatpush2.bf16.msra.mxu0 0
      %2503 = vmatprep.subr.bf16.mxu0 0
      %2504 = vmatpush2.bf16.msra.mxu0 0
      %2505 = vmatprep.subr.bf16.mxu0 0
      %2506 = vmatpush2.bf16.msra.mxu0 0
      %2507 = vmatprep.mubr.bf16.mxu0 0
      %2508 = vmatmul.mubr.bf16.gmra.mxu0 %v1827
      %v2509 = vpop.f32.mrf.mxu0
      %v2510 = vadd.f32 0.0, %v2509
      %v2511 = vpop.f32.mrf.mxu0
      %v2512 = vpop.f32.mrf.mxu0
      %v2513 = vadd.f32 0.0, %v2512
      %v2514 = vpop.f32.mrf.mxu0
      %2515 = vmatprep.mubr.bf16.mxu0 0
      %2516 = vmatmul.mubr.bf16.gmra.mxu0 %v1830
      %v2517 = vpop.f32.mrf.mxu0
      %v2518 = vadd.f32 0.0, %v2517
      %v2519 = vpop.f32.mrf.mxu0
      %v2520 = vpop.f32.mrf.mxu0
      %v2521 = vadd.f32 0.0, %v2520
      %v2522 = vpop.f32.mrf.mxu0
      %2523 = vmatprep.mubr.bf16.mxu0 0
      %2524 = vmatmul.mubr.bf16.gmra.mxu0 %v1833
      %v2525 = vpop.f32.mrf.mxu0
      %v2526 = vadd.f32 0.0, %v2525
      %v2527 = vpop.f32.mrf.mxu0
      %v2528 = vpop.f32.mrf.mxu0
      %v2529 = vadd.f32 0.0, %v2528
      %v2530 = vpop.f32.mrf.mxu0
      %2531 = vmatprep.mubr.bf16.mxu0 0
      %2532 = vmatmul.mubr.bf16.gmra.mxu0 %v1836
      %v2533 = vpop.f32.mrf.mxu0
      %v2534 = vadd.f32 0.0, %v2533
      %v2535 = vpop.f32.mrf.mxu0
      %v2536 = vpop.f32.mrf.mxu0
      %v2537 = vadd.f32 0.0, %v2536
      %v2538 = vpop.f32.mrf.mxu0
      %2539 = vmatprep.mubr.bf16.mxu0 0
      %2540 = vmatmul.mubr.bf16.gmra.mxu0 %v1839
      %v2541 = vpop.f32.mrf.mxu0
      %v2542 = vadd.f32 0.0, %v2541
      %v2543 = vpop.f32.mrf.mxu0
      %v2544 = vpop.f32.mrf.mxu0
      %v2545 = vadd.f32 0.0, %v2544
      %v2546 = vpop.f32.mrf.mxu0
      %2547 = vmatprep.mubr.bf16.mxu0 0
      %2548 = vmatmul.mubr.bf16.gmra.mxu0 %v1842
      %v2549 = vpop.f32.mrf.mxu0
      %v2550 = vadd.f32 0.0, %v2549
      %v2551 = vpop.f32.mrf.mxu0
      %v2552 = vpop.f32.mrf.mxu0
      %v2553 = vadd.f32 0.0, %v2552
      %v2554 = vpop.f32.mrf.mxu0
      %2555 = vmatprep.mubr.bf16.mxu0 0
      %2556 = vmatmul.mubr.bf16.gmra.mxu0 %v1845
      %v2557 = vpop.f32.mrf.mxu0
      %v2558 = vadd.f32 0.0, %v2557
      %v2559 = vpop.f32.mrf.mxu0
      %v2560 = vpop.f32.mrf.mxu0
      %v2561 = vadd.f32 0.0, %v2560
      %v2562 = vpop.f32.mrf.mxu0
      %2563 = vmatprep.mubr.bf16.mxu0 0
      %2564 = vmatmul.mubr.bf16.gmra.mxu0 %v1848
      %v2565 = vpop.f32.mrf.mxu0
      %v2566 = vadd.f32 0.0, %v2565
      %v2567 = vpop.f32.mrf.mxu0
      %v2568 = vpop.f32.mrf.mxu0
      %v2569 = vadd.f32 0.0, %v2568
      %v2570 = vpop.f32.mrf.mxu0
      %2571 = vmatprep.mubr.bf16.mxu0 0
      %2572 = vmatmul.mubr.bf16.gmra.mxu0 %v1851
      %v2573 = vpop.f32.mrf.mxu0
      %v2574 = vadd.f32 0.0, %v2573
      %v2575 = vpop.f32.mrf.mxu0
      %v2576 = vpop.f32.mrf.mxu0
      %v2577 = vadd.f32 0.0, %v2576
      %v2578 = vpop.f32.mrf.mxu0
      %2579 = vmatprep.mubr.bf16.mxu0 0
      %2580 = vmatmul.mubr.bf16.gmra.mxu0 %v1854
      %v2581 = vpop.f32.mrf.mxu0
      %v2582 = vadd.f32 0.0, %v2581
      %v2583 = vpop.f32.mrf.mxu0
      %v2584 = vpop.f32.mrf.mxu0
      %v2585 = vadd.f32 0.0, %v2584
      %v2586 = vpop.f32.mrf.mxu0
      %2587 = vmatprep.mubr.bf16.mxu0 0
      %2588 = vmatmul.mubr.bf16.gmra.mxu0 %v1857
      %v2589 = vpop.f32.mrf.mxu0
      %v2590 = vadd.f32 0.0, %v2589
      %v2591 = vpop.f32.mrf.mxu0
      %v2592 = vpop.f32.mrf.mxu0
      %v2593 = vadd.f32 0.0, %v2592
      %v2594 = vpop.f32.mrf.mxu0
      %2595 = vmatprep.mubr.bf16.mxu0 0
      %2596 = vmatmul.mubr.bf16.gmra.mxu0 %v1860
      %v2597 = vpop.f32.mrf.mxu0
      %v2598 = vadd.f32 0.0, %v2597
      %v2599 = vpop.f32.mrf.mxu0
      %v2600 = vpop.f32.mrf.mxu0
      %v2601 = vadd.f32 0.0, %v2600
      %v2602 = vpop.f32.mrf.mxu0
      %2603 = vmatprep.mubr.bf16.mxu0 0
      %2604 = vmatmul.mubr.bf16.gmra.mxu0 %v1863
      %v2605 = vpop.f32.mrf.mxu0
      %v2606 = vadd.f32 0.0, %v2605
      %v2607 = vpop.f32.mrf.mxu0
      %v2608 = vpop.f32.mrf.mxu0
      %v2609 = vadd.f32 0.0, %v2608
      %v2610 = vpop.f32.mrf.mxu0
      %2611 = vmatprep.mubr.bf16.mxu0 0
      %2612 = vmatmul.mubr.bf16.gmra.mxu0 %v1866
      %v2613 = vpop.f32.mrf.mxu0
      %v2614 = vadd.f32 0.0, %v2613
      %v2615 = vpop.f32.mrf.mxu0
      %v2616 = vpop.f32.mrf.mxu0
      %v2617 = vadd.f32 0.0, %v2616
      %v2618 = vpop.f32.mrf.mxu0
      %2619 = vmatprep.mubr.bf16.mxu0 0
      %2620 = vmatmul.mubr.bf16.gmra.mxu0 %v1869
      %v2621 = vpop.f32.mrf.mxu0
      %v2622 = vadd.f32 0.0, %v2621
      %v2623 = vpop.f32.mrf.mxu0
      %v2624 = vpop.f32.mrf.mxu0
      %v2625 = vadd.f32 0.0, %v2624
      %v2626 = vpop.f32.mrf.mxu0
      %2627 = vmatprep.mubr.bf16.mxu0 0
      %2628 = vmatmul.mubr.bf16.gmra.mxu0 %v2470
      %v2629 = vpop.f32.mrf.mxu0
      %v2630 = vadd.f32 0.0, %v2629
      %v2631 = vpop.f32.mrf.mxu0
      %v2632 = vpop.f32.mrf.mxu0
      %v2633 = vadd.f32 0.0, %v2632
      %v2634 = vpop.f32.mrf.mxu0
      %2635 = vdwg.mxu0
      %v2636 = vadd.f32 %v2427, %v2510
      %v2637 = vadd.f32 %v2428, %v2513
      %v2638 = vadd.f32 %v2429, %v2518
      %v2639 = vadd.f32 %v2430, %v2521
      %v2640 = vadd.f32 %v2431, %v2526
      %v2641 = vadd.f32 %v2432, %v2529
      %v2642 = vadd.f32 %v2433, %v2534
      %v2643 = vadd.f32 %v2434, %v2537
      %v2644 = vadd.f32 %v2435, %v2542
      %v2645 = vadd.f32 %v2436, %v2545
      %v2646 = vadd.f32 %v2437, %v2550
      %v2647 = vadd.f32 %v2438, %v2553
      %v2648 = vadd.f32 %v2439, %v2558
      %v2649 = vadd.f32 %v2440, %v2561
      %v2650 = vadd.f32 %v2441, %v2566
      %v2651 = vadd.f32 %v2442, %v2569
      %v2652 = vadd.f32 %v2443, %v2574
      %v2653 = vadd.f32 %v2444, %v2577
      %v2654 = vadd.f32 %v2445, %v2582
      %v2655 = vadd.f32 %v2446, %v2585
      %v2656 = vadd.f32 %v2447, %v2590
      %v2657 = vadd.f32 %v2448, %v2593
      %v2658 = vadd.f32 %v2449, %v2598
      %v2659 = vadd.f32 %v2450, %v2601
      %v2660 = vadd.f32 %v2451, %v2606
      %v2661 = vadd.f32 %v2452, %v2609
      %v2662 = vadd.f32 %v2453, %v2614
      %v2663 = vadd.f32 %v2454, %v2617
      %v2664 = vadd.f32 %v2455, %v2622
      %v2665 = vadd.f32 %v2456, %v2625
      %v2666 = vadd.f32 %v2457, %v2630
      %v2667 = vadd.f32 %v2458, %v2633
      %v2669 = vshrl.u32 %v1082, 16
      %v2671 = vrot.slane %v2669, 4
      %v2672 = vshll.u32 %v1082, 16
      %v2674 = vrot.slane %v2672, 5
      %v2675 = vor.u32 %v2671, %v2674
      %v2676 = vrot.slane %v2675, 4
      %v2678 = vshll.u32 %v1083, 16
      %v2680 = vrot.slane %v2678, 5
      %v2681 = vsel %vm1091, %v2676, %v2680
      %v2682 = vshrl.u32 %v1083, 16
      %v2684 = vrot.slane %v2682, 4
      %v2685 = vor.u32 %v2684, %v2680
      %v2686 = vrot.slane %v2685, 4
      %v2688 = vshll.u32 %v1084, 16
      %v2690 = vrot.slane %v2688, 5
      %v2691 = vsel %vm1091, %v2686, %v2690
      %v2692 = vld [vmem:[%s3 + $0x8] sm:$0x3]
      %v2693 = vunpack.c.l.b16 %v2681
      %v2694 = vunpack.c.l.b16 %v2691
      %v2695 = vpack.c.b16 %v2694, %v2693
      %v2697 = vsel %vm1529, %v2695, 0
      %v2700 = vsel %vm1578, %v2692, 0
      %2702 = vmatprep.subr.bf16.mxu0 0
      %2703 = vmatpush1.bf16.msra.mxu0 0
      %2704 = vmatprep.subr.bf16.mxu0 0
      %2705 = vmatpush1.bf16.msra.mxu0 0
      %2706 = vmatprep.subr.bf16.mxu0 0
      %2707 = vmatpush1.bf16.msra.mxu0 0
      %2708 = vmatprep.subr.bf16.mxu0 0
      %2709 = vmatpush1.bf16.msra.mxu0 0
      %2710 = vmatprep.subr.bf16.mxu0 0
      %2711 = vmatpush1.bf16.msra.mxu0 0
      %2712 = vmatprep.subr.bf16.mxu0 0
      %2713 = vmatpush1.bf16.msra.mxu0 0
      %2714 = vmatprep.subr.bf16.mxu0 0
      %2715 = vmatpush1.bf16.msra.mxu0 0
      %2716 = vmatprep.subr.bf16.mxu0 0
      %2717 = vmatpush1.bf16.msra.mxu0 %v2700
      %2718 = vmatprep.subr.bf16.mxu0 0
      %2719 = vmatpush2.bf16.msra.mxu0 0
      %2720 = vmatprep.subr.bf16.mxu0 0
      %2721 = vmatpush2.bf16.msra.mxu0 0
      %2722 = vmatprep.subr.bf16.mxu0 0
      %2723 = vmatpush2.bf16.msra.mxu0 0
      %2724 = vmatprep.subr.bf16.mxu0 0
      %2725 = vmatpush2.bf16.msra.mxu0 0
      %2726 = vmatprep.subr.bf16.mxu0 0
      %2727 = vmatpush2.bf16.msra.mxu0 0
      %2728 = vmatprep.subr.bf16.mxu0 0
      %2729 = vmatpush2.bf16.msra.mxu0 0
      %2730 = vmatprep.subr.bf16.mxu0 0
      %2731 = vmatpush2.bf16.msra.mxu0 0
      %2732 = vmatprep.subr.bf16.mxu0 0
      %2733 = vmatpush2.bf16.msra.mxu0 0
      %2734 = vmatprep.mubr.bf16.mxu0 0
      %2735 = vmatmul.mubr.bf16.gmra.mxu0 %v1534
      %v2736 = vpop.f32.mrf.mxu0
      %v2737 = vadd.f32 0.0, %v2736
      %v2738 = vpop.f32.mrf.mxu0
      %v2739 = vpop.f32.mrf.mxu0
      %v2740 = vadd.f32 0.0, %v2739
      %v2741 = vpop.f32.mrf.mxu0
      %2742 = vmatprep.mubr.bf16.mxu0 0
      %2743 = vmatmul.mubr.bf16.gmra.mxu0 %v1537
      %v2744 = vpop.f32.mrf.mxu0
      %v2745 = vadd.f32 0.0, %v2744
      %v2746 = vpop.f32.mrf.mxu0
      %v2747 = vpop.f32.mrf.mxu0
      %v2748 = vadd.f32 0.0, %v2747
      %v2749 = vpop.f32.mrf.mxu0
      %2750 = vmatprep.mubr.bf16.mxu0 0
      %2751 = vmatmul.mubr.bf16.gmra.mxu0 %v1540
      %v2752 = vpop.f32.mrf.mxu0
      %v2753 = vadd.f32 0.0, %v2752
      %v2754 = vpop.f32.mrf.mxu0
      %v2755 = vpop.f32.mrf.mxu0
      %v2756 = vadd.f32 0.0, %v2755
      %v2757 = vpop.f32.mrf.mxu0
      %2758 = vmatprep.mubr.bf16.mxu0 0
      %2759 = vmatmul.mubr.bf16.gmra.mxu0 %v1543
      %v2760 = vpop.f32.mrf.mxu0
      %v2761 = vadd.f32 0.0, %v2760
      %v2762 = vpop.f32.mrf.mxu0
      %v2763 = vpop.f32.mrf.mxu0
      %v2764 = vadd.f32 0.0, %v2763
      %v2765 = vpop.f32.mrf.mxu0
      %2766 = vmatprep.mubr.bf16.mxu0 0
      %2767 = vmatmul.mubr.bf16.gmra.mxu0 %v1546
      %v2768 = vpop.f32.mrf.mxu0
      %v2769 = vadd.f32 0.0, %v2768
      %v2770 = vpop.f32.mrf.mxu0
      %v2771 = vpop.f32.mrf.mxu0
      %v2772 = vadd.f32 0.0, %v2771
      %v2773 = vpop.f32.mrf.mxu0
      %2774 = vmatprep.mubr.bf16.mxu0 0
      %2775 = vmatmul.mubr.bf16.gmra.mxu0 %v1549
      %v2776 = vpop.f32.mrf.mxu0
      %v2777 = vadd.f32 0.0, %v2776
      %v2778 = vpop.f32.mrf.mxu0
      %v2779 = vpop.f32.mrf.mxu0
      %v2780 = vadd.f32 0.0, %v2779
      %v2781 = vpop.f32.mrf.mxu0
      %2782 = vmatprep.mubr.bf16.mxu0 0
      %2783 = vmatmul.mubr.bf16.gmra.mxu0 %v1552
      %v2784 = vpop.f32.mrf.mxu0
      %v2785 = vadd.f32 0.0, %v2784
      %v2786 = vpop.f32.mrf.mxu0
      %v2787 = vpop.f32.mrf.mxu0
      %v2788 = vadd.f32 0.0, %v2787
      %v2789 = vpop.f32.mrf.mxu0
      %2790 = vmatprep.mubr.bf16.mxu0 0
      %2791 = vmatmul.mubr.bf16.gmra.mxu0 %v1555
      %v2792 = vpop.f32.mrf.mxu0
      %v2793 = vadd.f32 0.0, %v2792
      %v2794 = vpop.f32.mrf.mxu0
      %v2795 = vpop.f32.mrf.mxu0
      %v2796 = vadd.f32 0.0, %v2795
      %v2797 = vpop.f32.mrf.mxu0
      %2798 = vmatprep.mubr.bf16.mxu0 0
      %2799 = vmatmul.mubr.bf16.gmra.mxu0 %v1558
      %v2800 = vpop.f32.mrf.mxu0
      %v2801 = vadd.f32 0.0, %v2800
      %v2802 = vpop.f32.mrf.mxu0
      %v2803 = vpop.f32.mrf.mxu0
      %v2804 = vadd.f32 0.0, %v2803
      %v2805 = vpop.f32.mrf.mxu0
      %2806 = vmatprep.mubr.bf16.mxu0 0
      %2807 = vmatmul.mubr.bf16.gmra.mxu0 %v1561
      %v2808 = vpop.f32.mrf.mxu0
      %v2809 = vadd.f32 0.0, %v2808
      %v2810 = vpop.f32.mrf.mxu0
      %v2811 = vpop.f32.mrf.mxu0
      %v2812 = vadd.f32 0.0, %v2811
      %v2813 = vpop.f32.mrf.mxu0
      %2814 = vmatprep.mubr.bf16.mxu0 0
      %2815 = vmatmul.mubr.bf16.gmra.mxu0 %v1564
      %v2816 = vpop.f32.mrf.mxu0
      %v2817 = vadd.f32 0.0, %v2816
      %v2818 = vpop.f32.mrf.mxu0
      %v2819 = vpop.f32.mrf.mxu0
      %v2820 = vadd.f32 0.0, %v2819
      %v2821 = vpop.f32.mrf.mxu0
      %2822 = vmatprep.mubr.bf16.mxu0 0
      %2823 = vmatmul.mubr.bf16.gmra.mxu0 %v1567
      %v2824 = vpop.f32.mrf.mxu0
      %v2825 = vadd.f32 0.0, %v2824
      %v2826 = vpop.f32.mrf.mxu0
      %v2827 = vpop.f32.mrf.mxu0
      %v2828 = vadd.f32 0.0, %v2827
      %v2829 = vpop.f32.mrf.mxu0
      %2830 = vmatprep.mubr.bf16.mxu0 0
      %2831 = vmatmul.mubr.bf16.gmra.mxu0 %v1570
      %v2832 = vpop.f32.mrf.mxu0
      %v2833 = vadd.f32 0.0, %v2832
      %v2834 = vpop.f32.mrf.mxu0
      %v2835 = vpop.f32.mrf.mxu0
      %v2836 = vadd.f32 0.0, %v2835
      %v2837 = vpop.f32.mrf.mxu0
      %2838 = vmatprep.mubr.bf16.mxu0 0
      %2839 = vmatmul.mubr.bf16.gmra.mxu0 %v1573
      %v2840 = vpop.f32.mrf.mxu0
      %v2841 = vadd.f32 0.0, %v2840
      %v2842 = vpop.f32.mrf.mxu0
      %v2843 = vpop.f32.mrf.mxu0
      %v2844 = vadd.f32 0.0, %v2843
      %v2845 = vpop.f32.mrf.mxu0
      %2846 = vmatprep.mubr.bf16.mxu0 0
      %2847 = vmatmul.mubr.bf16.gmra.mxu0 %v1576
      %v2848 = vpop.f32.mrf.mxu0
      %v2849 = vadd.f32 0.0, %v2848
      %v2850 = vpop.f32.mrf.mxu0
      %v2851 = vpop.f32.mrf.mxu0
      %v2852 = vadd.f32 0.0, %v2851
      %v2853 = vpop.f32.mrf.mxu0
      %2854 = vmatprep.mubr.bf16.mxu0 0
      %2855 = vmatmul.mubr.bf16.gmra.mxu0 %v2697
      %v2856 = vpop.f32.mrf.mxu0
      %v2857 = vadd.f32 0.0, %v2856
      %v2858 = vpop.f32.mrf.mxu0
      %v2859 = vpop.f32.mrf.mxu0
      %v2860 = vadd.f32 0.0, %v2859
      %v2861 = vpop.f32.mrf.mxu0
      %2862 = vdwg.mxu0
      %v2863 = vadd.f32 %v2636, %v2737
      %v2864 = vadd.f32 %v2637, %v2740
      %v2865 = vadd.f32 %v2638, %v2745
      %v2866 = vadd.f32 %v2639, %v2748
      %v2867 = vadd.f32 %v2640, %v2753
      %v2868 = vadd.f32 %v2641, %v2756
      %v2869 = vadd.f32 %v2642, %v2761
      %v2870 = vadd.f32 %v2643, %v2764
      %v2871 = vadd.f32 %v2644, %v2769
      %v2872 = vadd.f32 %v2645, %v2772
      %v2873 = vadd.f32 %v2646, %v2777
      %v2874 = vadd.f32 %v2647, %v2780
      %v2875 = vadd.f32 %v2648, %v2785
      %v2876 = vadd.f32 %v2649, %v2788
      %v2877 = vadd.f32 %v2650, %v2793
      %v2878 = vadd.f32 %v2651, %v2796
      %v2879 = vadd.f32 %v2652, %v2801
      %v2880 = vadd.f32 %v2653, %v2804
      %v2881 = vadd.f32 %v2654, %v2809
      %v2882 = vadd.f32 %v2655, %v2812
      %v2883 = vadd.f32 %v2656, %v2817
      %v2884 = vadd.f32 %v2657, %v2820
      %v2885 = vadd.f32 %v2658, %v2825
      %v2886 = vadd.f32 %v2659, %v2828
      %v2887 = vadd.f32 %v2660, %v2833
      %v2888 = vadd.f32 %v2661, %v2836
      %v2889 = vadd.f32 %v2662, %v2841
      %v2890 = vadd.f32 %v2663, %v2844
      %v2891 = vadd.f32 %v2664, %v2849
      %v2892 = vadd.f32 %v2665, %v2852
      %v2893 = vadd.f32 %v2666, %v2857
      %v2894 = vadd.f32 %v2667, %v2860
      %v2896 = vrot.slane %v1082, 5
      %v2897 = vrot.slane %v2896, 4
      %v2898 = vrot.slane %v1083, 5
      %v2899 = vsel %vm2053, %v2897, %v2898
      %v2900 = vrot.slane %v2898, 4
      %v2901 = vrot.slane %v1084, 5
      %v2902 = vsel %vm2053, %v2900, %v2901
      %v2903 = vld [vmem:[%s3 + $0x8] sm:$0xc]
      %v2904 = vunpack.c.l.b16 %v2899
      %v2905 = vunpack.c.l.b16 %v2902
      %v2906 = vpack.c.b16 %v2905, %v2904
      %v2908 = vunpack.c.l.b16 %v2903
      %v2909 = vpack.c.b16 %v2908, %v2908
      %v2910 = vrot.slane %v2909, 2
      %v2912 = vsel %vm1529, %v2906, 0
      %v2915 = vsel %vm1578, %v2910, 0
      %2917 = vmatprep.subr.bf16.mxu0 0
      %2918 = vmatpush1.bf16.msra.mxu0 0
      %2919 = vmatprep.subr.bf16.mxu0 0
      %2920 = vmatpush1.bf16.msra.mxu0 0
      %2921 = vmatprep.subr.bf16.mxu0 0
      %2922 = vmatpush1.bf16.msra.mxu0 0
      %2923 = vmatprep.subr.bf16.mxu0 0
      %2924 = vmatpush1.bf16.msra.mxu0 0
      %2925 = vmatprep.subr.bf16.mxu0 0
      %2926 = vmatpush1.bf16.msra.mxu0 0
      %2927 = vmatprep.subr.bf16.mxu0 0
      %2928 = vmatpush1.bf16.msra.mxu0 0
      %2929 = vmatprep.subr.bf16.mxu0 0
      %2930 = vmatpush1.bf16.msra.mxu0 0
      %2931 = vmatprep.subr.bf16.mxu0 0
      %2932 = vmatpush1.bf16.msra.mxu0 %v2915
      %2933 = vmatprep.subr.bf16.mxu0 0
      %2934 = vmatpush2.bf16.msra.mxu0 0
      %2935 = vmatprep.subr.bf16.mxu0 0
      %2936 = vmatpush2.bf16.msra.mxu0 0
      %2937 = vmatprep.subr.bf16.mxu0 0
      %2938 = vmatpush2.bf16.msra.mxu0 0
      %2939 = vmatprep.subr.bf16.mxu0 0
      %2940 = vmatpush2.bf16.msra.mxu0 0
      %2941 = vmatprep.subr.bf16.mxu0 0
      %2942 = vmatpush2.bf16.msra.mxu0 0
      %2943 = vmatprep.subr.bf16.mxu0 0
      %2944 = vmatpush2.bf16.msra.mxu0 0
      %2945 = vmatprep.subr.bf16.mxu0 0
      %2946 = vmatpush2.bf16.msra.mxu0 0
      %2947 = vmatprep.subr.bf16.mxu0 0
      %2948 = vmatpush2.bf16.msra.mxu0 0
      %2949 = vmatprep.mubr.bf16.mxu0 0
      %2950 = vmatmul.mubr.bf16.gmra.mxu0 %v2219
      %v2951 = vpop.f32.mrf.mxu0
      %v2952 = vadd.f32 0.0, %v2951
      %v2953 = vpop.f32.mrf.mxu0
      %v2954 = vpop.f32.mrf.mxu0
      %v2955 = vadd.f32 0.0, %v2954
      %v2956 = vpop.f32.mrf.mxu0
      %2957 = vmatprep.mubr.bf16.mxu0 0
      %2958 = vmatmul.mubr.bf16.gmra.mxu0 %v2222
      %v2959 = vpop.f32.mrf.mxu0
      %v2960 = vadd.f32 0.0, %v2959
      %v2961 = vpop.f32.mrf.mxu0
      %v2962 = vpop.f32.mrf.mxu0
      %v2963 = vadd.f32 0.0, %v2962
      %v2964 = vpop.f32.mrf.mxu0
      %2965 = vmatprep.mubr.bf16.mxu0 0
      %2966 = vmatmul.mubr.bf16.gmra.mxu0 %v2225
      %v2967 = vpop.f32.mrf.mxu0
      %v2968 = vadd.f32 0.0, %v2967
      %v2969 = vpop.f32.mrf.mxu0
      %v2970 = vpop.f32.mrf.mxu0
      %v2971 = vadd.f32 0.0, %v2970
      %v2972 = vpop.f32.mrf.mxu0
      %2973 = vmatprep.mubr.bf16.mxu0 0
      %2974 = vmatmul.mubr.bf16.gmra.mxu0 %v2228
      %v2975 = vpop.f32.mrf.mxu0
      %v2976 = vadd.f32 0.0, %v2975
      %v2977 = vpop.f32.mrf.mxu0
      %v2978 = vpop.f32.mrf.mxu0
      %v2979 = vadd.f32 0.0, %v2978
      %v2980 = vpop.f32.mrf.mxu0
      %2981 = vmatprep.mubr.bf16.mxu0 0
      %2982 = vmatmul.mubr.bf16.gmra.mxu0 %v2231
      %v2983 = vpop.f32.mrf.mxu0
      %v2984 = vadd.f32 0.0, %v2983
      %v2985 = vpop.f32.mrf.mxu0
      %v2986 = vpop.f32.mrf.mxu0
      %v2987 = vadd.f32 0.0, %v2986
      %v2988 = vpop.f32.mrf.mxu0
      %2989 = vmatprep.mubr.bf16.mxu0 0
      %2990 = vmatmul.mubr.bf16.gmra.mxu0 %v2234
      %v2991 = vpop.f32.mrf.mxu0
      %v2992 = vadd.f32 0.0, %v2991
      %v2993 = vpop.f32.mrf.mxu0
      %v2994 = vpop.f32.mrf.mxu0
      %v2995 = vadd.f32 0.0, %v2994
      %v2996 = vpop.f32.mrf.mxu0
      %2997 = vmatprep.mubr.bf16.mxu0 0
      %2998 = vmatmul.mubr.bf16.gmra.mxu0 %v2237
      %v2999 = vpop.f32.mrf.mxu0
      %v3000 = vadd.f32 0.0, %v2999
      %v3001 = vpop.f32.mrf.mxu0
      %v3002 = vpop.f32.mrf.mxu0
      %v3003 = vadd.f32 0.0, %v3002
      %v3004 = vpop.f32.mrf.mxu0
      %3005 = vmatprep.mubr.bf16.mxu0 0
      %3006 = vmatmul.mubr.bf16.gmra.mxu0 %v2240
      %v3007 = vpop.f32.mrf.mxu0
      %v3008 = vadd.f32 0.0, %v3007
      %v3009 = vpop.f32.mrf.mxu0
      %v3010 = vpop.f32.mrf.mxu0
      %v3011 = vadd.f32 0.0, %v3010
      %v3012 = vpop.f32.mrf.mxu0
      %3013 = vmatprep.mubr.bf16.mxu0 0
      %3014 = vmatmul.mubr.bf16.gmra.mxu0 %v2243
      %v3015 = vpop.f32.mrf.mxu0
      %v3016 = vadd.f32 0.0, %v3015
      %v3017 = vpop.f32.mrf.mxu0
      %v3018 = vpop.f32.mrf.mxu0
      %v3019 = vadd.f32 0.0, %v3018
      %v3020 = vpop.f32.mrf.mxu0
      %3021 = vmatprep.mubr.bf16.mxu0 0
      %3022 = vmatmul.mubr.bf16.gmra.mxu0 %v2246
      %v3023 = vpop.f32.mrf.mxu0
      %v3024 = vadd.f32 0.0, %v3023
      %v3025 = vpop.f32.mrf.mxu0
      %v3026 = vpop.f32.mrf.mxu0
      %v3027 = vadd.f32 0.0, %v3026
      %v3028 = vpop.f32.mrf.mxu0
      %3029 = vmatprep.mubr.bf16.mxu0 0
      %3030 = vmatmul.mubr.bf16.gmra.mxu0 %v2249
      %v3031 = vpop.f32.mrf.mxu0
      %v3032 = vadd.f32 0.0, %v3031
      %v3033 = vpop.f32.mrf.mxu0
      %v3034 = vpop.f32.mrf.mxu0
      %v3035 = vadd.f32 0.0, %v3034
      %v3036 = vpop.f32.mrf.mxu0
      %3037 = vmatprep.mubr.bf16.mxu0 0
      %3038 = vmatmul.mubr.bf16.gmra.mxu0 %v2252
      %v3039 = vpop.f32.mrf.mxu0
      %v3040 = vadd.f32 0.0, %v3039
      %v3041 = vpop.f32.mrf.mxu0
      %v3042 = vpop.f32.mrf.mxu0
      %v3043 = vadd.f32 0.0, %v3042
      %v3044 = vpop.f32.mrf.mxu0
      %3045 = vmatprep.mubr.bf16.mxu0 0
      %3046 = vmatmul.mubr.bf16.gmra.mxu0 %v2255
      %v3047 = vpop.f32.mrf.mxu0
      %v3048 = vadd.f32 0.0, %v3047
      %v3049 = vpop.f32.mrf.mxu0
      %v3050 = vpop.f32.mrf.mxu0
      %v3051 = vadd.f32 0.0, %v3050
      %v3052 = vpop.f32.mrf.mxu0
      %3053 = vmatprep.mubr.bf16.mxu0 0
      %3054 = vmatmul.mubr.bf16.gmra.mxu0 %v2258
      %v3055 = vpop.f32.mrf.mxu0
      %v3056 = vadd.f32 0.0, %v3055
      %v3057 = vpop.f32.mrf.mxu0
      %v3058 = vpop.f32.mrf.mxu0
      %v3059 = vadd.f32 0.0, %v3058
      %v3060 = vpop.f32.mrf.mxu0
      %3061 = vmatprep.mubr.bf16.mxu0 0
      %3062 = vmatmul.mubr.bf16.gmra.mxu0 %v2261
      %v3063 = vpop.f32.mrf.mxu0
      %v3064 = vadd.f32 0.0, %v3063
      %v3065 = vpop.f32.mrf.mxu0
      %v3066 = vpop.f32.mrf.mxu0
      %v3067 = vadd.f32 0.0, %v3066
      %v3068 = vpop.f32.mrf.mxu0
      %3069 = vmatprep.mubr.bf16.mxu0 0
      %3070 = vmatmul.mubr.bf16.gmra.mxu0 %v2912
      %v3071 = vpop.f32.mrf.mxu0
      %v3072 = vadd.f32 0.0, %v3071
      %v3073 = vpop.f32.mrf.mxu0
      %v3074 = vpop.f32.mrf.mxu0
      %v3075 = vadd.f32 0.0, %v3074
      %v3076 = vpop.f32.mrf.mxu0
      %3077 = vdwg.mxu0
      %v3078 = vadd.f32 %v2863, %v2952
      %v3079 = vadd.f32 %v2864, %v2955
      %v3080 = vadd.f32 %v2865, %v2960
      %v3081 = vadd.f32 %v2866, %v2963
      %v3082 = vadd.f32 %v2867, %v2968
      %v3083 = vadd.f32 %v2868, %v2971
      %v3084 = vadd.f32 %v2869, %v2976
      %v3085 = vadd.f32 %v2870, %v2979
      %v3086 = vadd.f32 %v2871, %v2984
      %v3087 = vadd.f32 %v2872, %v2987
      %v3088 = vadd.f32 %v2873, %v2992
      %v3089 = vadd.f32 %v2874, %v2995
      %v3090 = vadd.f32 %v2875, %v3000
      %v3091 = vadd.f32 %v2876, %v3003
      %v3092 = vadd.f32 %v2877, %v3008
      %v3093 = vadd.f32 %v2878, %v3011
      %v3094 = vadd.f32 %v2879, %v3016
      %v3095 = vadd.f32 %v2880, %v3019
      %v3096 = vadd.f32 %v2881, %v3024
      %v3097 = vadd.f32 %v2882, %v3027
      %v3098 = vadd.f32 %v2883, %v3032
      %v3099 = vadd.f32 %v2884, %v3035
      %v3100 = vadd.f32 %v2885, %v3040
      %v3101 = vadd.f32 %v2886, %v3043
      %v3102 = vadd.f32 %v2887, %v3048
      %v3103 = vadd.f32 %v2888, %v3051
      %v3104 = vadd.f32 %v2889, %v3056
      %v3105 = vadd.f32 %v2890, %v3059
      %v3106 = vadd.f32 %v2891, %v3064
      %v3107 = vadd.f32 %v2892, %v3067
      %v3108 = vadd.f32 %v2893, %v3072
      %v3109 = vadd.f32 %v2894, %v3075
      %v3110 = vld [vmem:[%s3 + $0xc] sm:$0x3]
      %v3113 = vunpack.c.l.b16 %v1085
      %v3114 = vunpack.c.l.b16 %v1086
      %v3115 = vpack.c.b16 %v3114, %v3113
      %v3117 = vsel %vm1529, %v3115, 0
      %v3120 = vsel %vm1578, %v3110, 0
      %3122 = vmatprep.subr.bf16.mxu0 0
      %3123 = vmatpush1.bf16.msra.mxu0 0
      %3124 = vmatprep.subr.bf16.mxu0 0
      %3125 = vmatpush1.bf16.msra.mxu0 0
      %3126 = vmatprep.subr.bf16.mxu0 0
      %3127 = vmatpush1.bf16.msra.mxu0 0
      %3128 = vmatprep.subr.bf16.mxu0 0
      %3129 = vmatpush1.bf16.msra.mxu0 0
      %3130 = vmatprep.subr.bf16.mxu0 0
      %3131 = vmatpush1.bf16.msra.mxu0 0
      %3132 = vmatprep.subr.bf16.mxu0 0
      %3133 = vmatpush1.bf16.msra.mxu0 0
      %3134 = vmatprep.subr.bf16.mxu0 0
      %3135 = vmatpush1.bf16.msra.mxu0 0
      %3136 = vmatprep.subr.bf16.mxu0 0
      %3137 = vmatpush1.bf16.msra.mxu0 %v3120
      %3138 = vmatprep.subr.bf16.mxu0 0
      %3139 = vmatpush2.bf16.msra.mxu0 0
      %3140 = vmatprep.subr.bf16.mxu0 0
      %3141 = vmatpush2.bf16.msra.mxu0 0
      %3142 = vmatprep.subr.bf16.mxu0 0
      %3143 = vmatpush2.bf16.msra.mxu0 0
      %3144 = vmatprep.subr.bf16.mxu0 0
      %3145 = vmatpush2.bf16.msra.mxu0 0
      %3146 = vmatprep.subr.bf16.mxu0 0
      %3147 = vmatpush2.bf16.msra.mxu0 0
      %3148 = vmatprep.subr.bf16.mxu0 0
      %3149 = vmatpush2.bf16.msra.mxu0 0
      %3150 = vmatprep.subr.bf16.mxu0 0
      %3151 = vmatpush2.bf16.msra.mxu0 0
      %3152 = vmatprep.subr.bf16.mxu0 0
      %3153 = vmatpush2.bf16.msra.mxu0 0
      %3154 = vmatprep.mubr.bf16.mxu0 0
      %3155 = vmatmul.mubr.bf16.gmra.mxu0 %v1830
      %v3156 = vpop.f32.mrf.mxu0
      %v3157 = vadd.f32 0.0, %v3156
      %v3158 = vpop.f32.mrf.mxu0
      %v3159 = vpop.f32.mrf.mxu0
      %v3160 = vadd.f32 0.0, %v3159
      %v3161 = vpop.f32.mrf.mxu0
      %3162 = vmatprep.mubr.bf16.mxu0 0
      %3163 = vmatmul.mubr.bf16.gmra.mxu0 %v1833
      %v3164 = vpop.f32.mrf.mxu0
      %v3165 = vadd.f32 0.0, %v3164
      %v3166 = vpop.f32.mrf.mxu0
      %v3167 = vpop.f32.mrf.mxu0
      %v3168 = vadd.f32 0.0, %v3167
      %v3169 = vpop.f32.mrf.mxu0
      %3170 = vmatprep.mubr.bf16.mxu0 0
      %3171 = vmatmul.mubr.bf16.gmra.mxu0 %v1836
      %v3172 = vpop.f32.mrf.mxu0
      %v3173 = vadd.f32 0.0, %v3172
      %v3174 = vpop.f32.mrf.mxu0
      %v3175 = vpop.f32.mrf.mxu0
      %v3176 = vadd.f32 0.0, %v3175
      %v3177 = vpop.f32.mrf.mxu0
      %3178 = vmatprep.mubr.bf16.mxu0 0
      %3179 = vmatmul.mubr.bf16.gmra.mxu0 %v1839
      %v3180 = vpop.f32.mrf.mxu0
      %v3181 = vadd.f32 0.0, %v3180
      %v3182 = vpop.f32.mrf.mxu0
      %v3183 = vpop.f32.mrf.mxu0
      %v3184 = vadd.f32 0.0, %v3183
      %v3185 = vpop.f32.mrf.mxu0
      %3186 = vmatprep.mubr.bf16.mxu0 0
      %3187 = vmatmul.mubr.bf16.gmra.mxu0 %v1842
      %v3188 = vpop.f32.mrf.mxu0
      %v3189 = vadd.f32 0.0, %v3188
      %v3190 = vpop.f32.mrf.mxu0
      %v3191 = vpop.f32.mrf.mxu0
      %v3192 = vadd.f32 0.0, %v3191
      %v3193 = vpop.f32.mrf.mxu0
      %3194 = vmatprep.mubr.bf16.mxu0 0
      %3195 = vmatmul.mubr.bf16.gmra.mxu0 %v1845
      %v3196 = vpop.f32.mrf.mxu0
      %v3197 = vadd.f32 0.0, %v3196
      %v3198 = vpop.f32.mrf.mxu0
      %v3199 = vpop.f32.mrf.mxu0
      %v3200 = vadd.f32 0.0, %v3199
      %v3201 = vpop.f32.mrf.mxu0
      %3202 = vmatprep.mubr.bf16.mxu0 0
      %3203 = vmatmul.mubr.bf16.gmra.mxu0 %v1848
      %v3204 = vpop.f32.mrf.mxu0
      %v3205 = vadd.f32 0.0, %v3204
      %v3206 = vpop.f32.mrf.mxu0
      %v3207 = vpop.f32.mrf.mxu0
      %v3208 = vadd.f32 0.0, %v3207
      %v3209 = vpop.f32.mrf.mxu0
      %3210 = vmatprep.mubr.bf16.mxu0 0
      %3211 = vmatmul.mubr.bf16.gmra.mxu0 %v1851
      %v3212 = vpop.f32.mrf.mxu0
      %v3213 = vadd.f32 0.0, %v3212
      %v3214 = vpop.f32.mrf.mxu0
      %v3215 = vpop.f32.mrf.mxu0
      %v3216 = vadd.f32 0.0, %v3215
      %v3217 = vpop.f32.mrf.mxu0
      %3218 = vmatprep.mubr.bf16.mxu0 0
      %3219 = vmatmul.mubr.bf16.gmra.mxu0 %v1854
      %v3220 = vpop.f32.mrf.mxu0
      %v3221 = vadd.f32 0.0, %v3220
      %v3222 = vpop.f32.mrf.mxu0
      %v3223 = vpop.f32.mrf.mxu0
      %v3224 = vadd.f32 0.0, %v3223
      %v3225 = vpop.f32.mrf.mxu0
      %3226 = vmatprep.mubr.bf16.mxu0 0
      %3227 = vmatmul.mubr.bf16.gmra.mxu0 %v1857
      %v3228 = vpop.f32.mrf.mxu0
      %v3229 = vadd.f32 0.0, %v3228
      %v3230 = vpop.f32.mrf.mxu0
      %v3231 = vpop.f32.mrf.mxu0
      %v3232 = vadd.f32 0.0, %v3231
      %v3233 = vpop.f32.mrf.mxu0
      %3234 = vmatprep.mubr.bf16.mxu0 0
      %3235 = vmatmul.mubr.bf16.gmra.mxu0 %v1860
      %v3236 = vpop.f32.mrf.mxu0
      %v3237 = vadd.f32 0.0, %v3236
      %v3238 = vpop.f32.mrf.mxu0
      %v3239 = vpop.f32.mrf.mxu0
      %v3240 = vadd.f32 0.0, %v3239
      %v3241 = vpop.f32.mrf.mxu0
      %3242 = vmatprep.mubr.bf16.mxu0 0
      %3243 = vmatmul.mubr.bf16.gmra.mxu0 %v1863
      %v3244 = vpop.f32.mrf.mxu0
      %v3245 = vadd.f32 0.0, %v3244
      %v3246 = vpop.f32.mrf.mxu0
      %v3247 = vpop.f32.mrf.mxu0
      %v3248 = vadd.f32 0.0, %v3247
      %v3249 = vpop.f32.mrf.mxu0
      %3250 = vmatprep.mubr.bf16.mxu0 0
      %3251 = vmatmul.mubr.bf16.gmra.mxu0 %v1866
      %v3252 = vpop.f32.mrf.mxu0
      %v3253 = vadd.f32 0.0, %v3252
      %v3254 = vpop.f32.mrf.mxu0
      %v3255 = vpop.f32.mrf.mxu0
      %v3256 = vadd.f32 0.0, %v3255
      %v3257 = vpop.f32.mrf.mxu0
      %3258 = vmatprep.mubr.bf16.mxu0 0
      %3259 = vmatmul.mubr.bf16.gmra.mxu0 %v1869
      %v3260 = vpop.f32.mrf.mxu0
      %v3261 = vadd.f32 0.0, %v3260
      %v3262 = vpop.f32.mrf.mxu0
      %v3263 = vpop.f32.mrf.mxu0
      %v3264 = vadd.f32 0.0, %v3263
      %v3265 = vpop.f32.mrf.mxu0
      %3266 = vmatprep.mubr.bf16.mxu0 0
      %3267 = vmatmul.mubr.bf16.gmra.mxu0 %v2470
      %v3268 = vpop.f32.mrf.mxu0
      %v3269 = vadd.f32 0.0, %v3268
      %v3270 = vpop.f32.mrf.mxu0
      %v3271 = vpop.f32.mrf.mxu0
      %v3272 = vadd.f32 0.0, %v3271
      %v3273 = vpop.f32.mrf.mxu0
      %3274 = vmatprep.mubr.bf16.mxu0 0
      %3275 = vmatmul.mubr.bf16.gmra.mxu0 %v3117
      %v3276 = vpop.f32.mrf.mxu0
      %v3277 = vadd.f32 0.0, %v3276
      %v3278 = vpop.f32.mrf.mxu0
      %v3279 = vpop.f32.mrf.mxu0
      %v3280 = vadd.f32 0.0, %v3279
      %v3281 = vpop.f32.mrf.mxu0
      %3282 = vdwg.mxu0
      %v3283 = vadd.f32 %v3078, %v3157
      %v3284 = vadd.f32 %v3079, %v3160
      %v3285 = vadd.f32 %v3080, %v3165
      %v3286 = vadd.f32 %v3081, %v3168
      %v3287 = vadd.f32 %v3082, %v3173
      %v3288 = vadd.f32 %v3083, %v3176
      %v3289 = vadd.f32 %v3084, %v3181
      %v3290 = vadd.f32 %v3085, %v3184
      %v3291 = vadd.f32 %v3086, %v3189
      %v3292 = vadd.f32 %v3087, %v3192
      %v3293 = vadd.f32 %v3088, %v3197
      %v3294 = vadd.f32 %v3089, %v3200
      %v3295 = vadd.f32 %v3090, %v3205
      %v3296 = vadd.f32 %v3091, %v3208
      %v3297 = vadd.f32 %v3092, %v3213
      %v3298 = vadd.f32 %v3093, %v3216
      %v3299 = vadd.f32 %v3094, %v3221
      %v3300 = vadd.f32 %v3095, %v3224
      %v3301 = vadd.f32 %v3096, %v3229
      %v3302 = vadd.f32 %v3097, %v3232
      %v3303 = vadd.f32 %v3098, %v3237
      %v3304 = vadd.f32 %v3099, %v3240
      %v3305 = vadd.f32 %v3100, %v3245
      %v3306 = vadd.f32 %v3101, %v3248
      %v3307 = vadd.f32 %v3102, %v3253
      %v3308 = vadd.f32 %v3103, %v3256
      %v3309 = vadd.f32 %v3104, %v3261
      %v3310 = vadd.f32 %v3105, %v3264
      %v3311 = vadd.f32 %v3106, %v3269
      %v3312 = vadd.f32 %v3107, %v3272
      %v3313 = vadd.f32 %v3108, %v3277
      %v3314 = vadd.f32 %v3109, %v3280
      %v3316 = vshrl.u32 %v1085, 16
      %v3318 = vrot.slane %v3316, 4
      %v3319 = vshll.u32 %v1085, 16
      %v3321 = vrot.slane %v3319, 5
      %v3322 = vor.u32 %v3318, %v3321
      %v3323 = vrot.slane %v3322, 4
      %v3325 = vshll.u32 %v1086, 16
      %v3327 = vrot.slane %v3325, 5
      %v3328 = vsel %vm1091, %v3323, %v3327
      %v3329 = vshrl.u32 %v1086, 16
      %v3331 = vrot.slane %v3329, 4
      %v3332 = vor.u32 %v3331, %v3327
      %v3333 = vrot.slane %v3332, 4
      %v3335 = vshll.u32 %v1087, 16
      %v3337 = vrot.slane %v3335, 5
      %v3338 = vsel %vm1091, %v3333, %v3337
      %v3339 = vld [vmem:[%s3 + $0xc] sm:$0xc]
      %v3340 = vunpack.c.l.b16 %v3328
      %v3341 = vunpack.c.l.b16 %v3338
      %v3342 = vpack.c.b16 %v3341, %v3340
      %v3344 = vunpack.c.l.b16 %v3339
      %v3345 = vpack.c.b16 %v3344, %v3344
      %v3346 = vrot.slane %v3345, 2
      %v3348 = vsel %vm1529, %v3342, 0
      %v3351 = vsel %vm1578, %v3346, 0
      %3353 = vmatprep.subr.bf16.mxu0 0
      %3354 = vmatpush1.bf16.msra.mxu0 0
      %3355 = vmatprep.subr.bf16.mxu0 0
      %3356 = vmatpush1.bf16.msra.mxu0 0
      %3357 = vmatprep.subr.bf16.mxu0 0
      %3358 = vmatpush1.bf16.msra.mxu0 0
      %3359 = vmatprep.subr.bf16.mxu0 0
      %3360 = vmatpush1.bf16.msra.mxu0 0
      %3361 = vmatprep.subr.bf16.mxu0 0
      %3362 = vmatpush1.bf16.msra.mxu0 0
      %3363 = vmatprep.subr.bf16.mxu0 0
      %3364 = vmatpush1.bf16.msra.mxu0 0
      %3365 = vmatprep.subr.bf16.mxu0 0
      %3366 = vmatpush1.bf16.msra.mxu0 0
      %3367 = vmatprep.subr.bf16.mxu0 0
      %3368 = vmatpush1.bf16.msra.mxu0 %v3351
      %3369 = vmatprep.subr.bf16.mxu0 0
      %3370 = vmatpush2.bf16.msra.mxu0 0
      %3371 = vmatprep.subr.bf16.mxu0 0
      %3372 = vmatpush2.bf16.msra.mxu0 0
      %3373 = vmatprep.subr.bf16.mxu0 0
      %3374 = vmatpush2.bf16.msra.mxu0 0
      %3375 = vmatprep.subr.bf16.mxu0 0
      %3376 = vmatpush2.bf16.msra.mxu0 0
      %3377 = vmatprep.subr.bf16.mxu0 0
      %3378 = vmatpush2.bf16.msra.mxu0 0
      %3379 = vmatprep.subr.bf16.mxu0 0
      %3380 = vmatpush2.bf16.msra.mxu0 0
      %3381 = vmatprep.subr.bf16.mxu0 0
      %3382 = vmatpush2.bf16.msra.mxu0 0
      %3383 = vmatprep.subr.bf16.mxu0 0
      %3384 = vmatpush2.bf16.msra.mxu0 0
      %3385 = vmatprep.mubr.bf16.mxu0 0
      %3386 = vmatmul.mubr.bf16.gmra.mxu0 %v1537
      %v3387 = vpop.f32.mrf.mxu0
      %v3388 = vadd.f32 0.0, %v3387
      %v3389 = vpop.f32.mrf.mxu0
      %v3390 = vpop.f32.mrf.mxu0
      %v3391 = vadd.f32 0.0, %v3390
      %v3392 = vpop.f32.mrf.mxu0
      %3393 = vmatprep.mubr.bf16.mxu0 0
      %3394 = vmatmul.mubr.bf16.gmra.mxu0 %v1540
      %v3395 = vpop.f32.mrf.mxu0
      %v3396 = vadd.f32 0.0, %v3395
      %v3397 = vpop.f32.mrf.mxu0
      %v3398 = vpop.f32.mrf.mxu0
      %v3399 = vadd.f32 0.0, %v3398
      %v3400 = vpop.f32.mrf.mxu0
      %3401 = vmatprep.mubr.bf16.mxu0 0
      %3402 = vmatmul.mubr.bf16.gmra.mxu0 %v1543
      %v3403 = vpop.f32.mrf.mxu0
      %v3404 = vadd.f32 0.0, %v3403
      %v3405 = vpop.f32.mrf.mxu0
      %v3406 = vpop.f32.mrf.mxu0
      %v3407 = vadd.f32 0.0, %v3406
      %v3408 = vpop.f32.mrf.mxu0
      %3409 = vmatprep.mubr.bf16.mxu0 0
      %3410 = vmatmul.mubr.bf16.gmra.mxu0 %v1546
      %v3411 = vpop.f32.mrf.mxu0
      %v3412 = vadd.f32 0.0, %v3411
      %v3413 = vpop.f32.mrf.mxu0
      %v3414 = vpop.f32.mrf.mxu0
      %v3415 = vadd.f32 0.0, %v3414
      %v3416 = vpop.f32.mrf.mxu0
      %3417 = vmatprep.mubr.bf16.mxu0 0
      %3418 = vmatmul.mubr.bf16.gmra.mxu0 %v1549
      %v3419 = vpop.f32.mrf.mxu0
      %v3420 = vadd.f32 0.0, %v3419
      %v3421 = vpop.f32.mrf.mxu0
      %v3422 = vpop.f32.mrf.mxu0
      %v3423 = vadd.f32 0.0, %v3422
      %v3424 = vpop.f32.mrf.mxu0
      %3425 = vmatprep.mubr.bf16.mxu0 0
      %3426 = vmatmul.mubr.bf16.gmra.mxu0 %v1552
      %v3427 = vpop.f32.mrf.mxu0
      %v3428 = vadd.f32 0.0, %v3427
      %v3429 = vpop.f32.mrf.mxu0
      %v3430 = vpop.f32.mrf.mxu0
      %v3431 = vadd.f32 0.0, %v3430
      %v3432 = vpop.f32.mrf.mxu0
      %3433 = vmatprep.mubr.bf16.mxu0 0
      %3434 = vmatmul.mubr.bf16.gmra.mxu0 %v1555
      %v3435 = vpop.f32.mrf.mxu0
      %v3436 = vadd.f32 0.0, %v3435
      %v3437 = vpop.f32.mrf.mxu0
      %v3438 = vpop.f32.mrf.mxu0
      %v3439 = vadd.f32 0.0, %v3438
      %v3440 = vpop.f32.mrf.mxu0
      %3441 = vmatprep.mubr.bf16.mxu0 0
      %3442 = vmatmul.mubr.bf16.gmra.mxu0 %v1558
      %v3443 = vpop.f32.mrf.mxu0
      %v3444 = vadd.f32 0.0, %v3443
      %v3445 = vpop.f32.mrf.mxu0
      %v3446 = vpop.f32.mrf.mxu0
      %v3447 = vadd.f32 0.0, %v3446
      %v3448 = vpop.f32.mrf.mxu0
      %3449 = vmatprep.mubr.bf16.mxu0 0
      %3450 = vmatmul.mubr.bf16.gmra.mxu0 %v1561
      %v3451 = vpop.f32.mrf.mxu0
      %v3452 = vadd.f32 0.0, %v3451
      %v3453 = vpop.f32.mrf.mxu0
      %v3454 = vpop.f32.mrf.mxu0
      %v3455 = vadd.f32 0.0, %v3454
      %v3456 = vpop.f32.mrf.mxu0
      %3457 = vmatprep.mubr.bf16.mxu0 0
      %3458 = vmatmul.mubr.bf16.gmra.mxu0 %v1564
      %v3459 = vpop.f32.mrf.mxu0
      %v3460 = vadd.f32 0.0, %v3459
      %v3461 = vpop.f32.mrf.mxu0
      %v3462 = vpop.f32.mrf.mxu0
      %v3463 = vadd.f32 0.0, %v3462
      %v3464 = vpop.f32.mrf.mxu0
      %3465 = vmatprep.mubr.bf16.mxu0 0
      %3466 = vmatmul.mubr.bf16.gmra.mxu0 %v1567
      %v3467 = vpop.f32.mrf.mxu0
      %v3468 = vadd.f32 0.0, %v3467
      %v3469 = vpop.f32.mrf.mxu0
      %v3470 = vpop.f32.mrf.mxu0
      %v3471 = vadd.f32 0.0, %v3470
      %v3472 = vpop.f32.mrf.mxu0
      %3473 = vmatprep.mubr.bf16.mxu0 0
      %3474 = vmatmul.mubr.bf16.gmra.mxu0 %v1570
      %v3475 = vpop.f32.mrf.mxu0
      %v3476 = vadd.f32 0.0, %v3475
      %v3477 = vpop.f32.mrf.mxu0
      %v3478 = vpop.f32.mrf.mxu0
      %v3479 = vadd.f32 0.0, %v3478
      %v3480 = vpop.f32.mrf.mxu0
      %3481 = vmatprep.mubr.bf16.mxu0 0
      %3482 = vmatmul.mubr.bf16.gmra.mxu0 %v1573
      %v3483 = vpop.f32.mrf.mxu0
      %v3484 = vadd.f32 0.0, %v3483
      %v3485 = vpop.f32.mrf.mxu0
      %v3486 = vpop.f32.mrf.mxu0
      %v3487 = vadd.f32 0.0, %v3486
      %v3488 = vpop.f32.mrf.mxu0
      %3489 = vmatprep.mubr.bf16.mxu0 0
      %3490 = vmatmul.mubr.bf16.gmra.mxu0 %v1576
      %v3491 = vpop.f32.mrf.mxu0
      %v3492 = vadd.f32 0.0, %v3491
      %v3493 = vpop.f32.mrf.mxu0
      %v3494 = vpop.f32.mrf.mxu0
      %v3495 = vadd.f32 0.0, %v3494
      %v3496 = vpop.f32.mrf.mxu0
      %3497 = vmatprep.mubr.bf16.mxu0 0
      %3498 = vmatmul.mubr.bf16.gmra.mxu0 %v2697
      %v3499 = vpop.f32.mrf.mxu0
      %v3500 = vadd.f32 0.0, %v3499
      %v3501 = vpop.f32.mrf.mxu0
      %v3502 = vpop.f32.mrf.mxu0
      %v3503 = vadd.f32 0.0, %v3502
      %v3504 = vpop.f32.mrf.mxu0
      %3505 = vmatprep.mubr.bf16.mxu0 0
      %3506 = vmatmul.mubr.bf16.gmra.mxu0 %v3348
      %v3507 = vpop.f32.mrf.mxu0
      %v3508 = vadd.f32 0.0, %v3507
      %v3509 = vpop.f32.mrf.mxu0
      %v3510 = vpop.f32.mrf.mxu0
      %v3511 = vadd.f32 0.0, %v3510
      %v3512 = vpop.f32.mrf.mxu0
      %3513 = vdwg.mxu0
      %v3514 = vadd.f32 %v3283, %v3388
      %v3515 = vadd.f32 %v3284, %v3391
      %v3516 = vadd.f32 %v3285, %v3396
      %v3517 = vadd.f32 %v3286, %v3399
      %v3518 = vadd.f32 %v3287, %v3404
      %v3519 = vadd.f32 %v3288, %v3407
      %v3520 = vadd.f32 %v3289, %v3412
      %v3521 = vadd.f32 %v3290, %v3415
      %v3522 = vadd.f32 %v3291, %v3420
      %v3523 = vadd.f32 %v3292, %v3423
      %v3524 = vadd.f32 %v3293, %v3428
      %v3525 = vadd.f32 %v3294, %v3431
      %v3526 = vadd.f32 %v3295, %v3436
      %v3527 = vadd.f32 %v3296, %v3439
      %v3528 = vadd.f32 %v3297, %v3444
      %v3529 = vadd.f32 %v3298, %v3447
      %v3530 = vadd.f32 %v3299, %v3452
      %v3531 = vadd.f32 %v3300, %v3455
      %v3532 = vadd.f32 %v3301, %v3460
      %v3533 = vadd.f32 %v3302, %v3463
      %v3534 = vadd.f32 %v3303, %v3468
      %v3535 = vadd.f32 %v3304, %v3471
      %v3536 = vadd.f32 %v3305, %v3476
      %v3537 = vadd.f32 %v3306, %v3479
      %v3538 = vadd.f32 %v3307, %v3484
      %v3539 = vadd.f32 %v3308, %v3487
      %v3540 = vadd.f32 %v3309, %v3492
      %v3541 = vadd.f32 %v3310, %v3495
      %v3542 = vadd.f32 %v3311, %v3500
      %v3543 = vadd.f32 %v3312, %v3503
      %v3544 = vadd.f32 %v3313, %v3508
      %v3545 = vadd.f32 %v3314, %v3511
      %v3547 = vrot.slane %v1085, 5
      %v3548 = vrot.slane %v3547, 4
      %v3549 = vrot.slane %v1086, 5
      %v3550 = vsel %vm2053, %v3548, %v3549
      %v3551 = vrot.slane %v3549, 4
      %v3552 = vrot.slane %v1087, 5
      %v3553 = vsel %vm2053, %v3551, %v3552
      %v3554 = vld [vmem:[%s3 + $0x10] sm:$0x3]
      %v3555 = vunpack.c.l.b16 %v3550
      %v3556 = vunpack.c.l.b16 %v3553
      %v3557 = vpack.c.b16 %v3556, %v3555
      %v3559 = vsel %vm1529, %v3557, 0
      %v3562 = vsel %vm1578, %v3554, 0
      %3564 = vmatprep.subr.bf16.mxu0 0
      %3565 = vmatpush1.bf16.msra.mxu0 0
      %3566 = vmatprep.subr.bf16.mxu0 0
      %3567 = vmatpush1.bf16.msra.mxu0 0
      %3568 = vmatprep.subr.bf16.mxu0 0
      %3569 = vmatpush1.bf16.msra.mxu0 0
      %3570 = vmatprep.subr.bf16.mxu0 0
      %3571 = vmatpush1.bf16.msra.mxu0 0
      %3572 = vmatprep.subr.bf16.mxu0 0
      %3573 = vmatpush1.bf16.msra.mxu0 0
      %3574 = vmatprep.subr.bf16.mxu0 0
      %3575 = vmatpush1.bf16.msra.mxu0 0
      %3576 = vmatprep.subr.bf16.mxu0 0
      %3577 = vmatpush1.bf16.msra.mxu0 0
      %3578 = vmatprep.subr.bf16.mxu0 0
      %3579 = vmatpush1.bf16.msra.mxu0 %v3562
      %3580 = vmatprep.subr.bf16.mxu0 0
      %3581 = vmatpush2.bf16.msra.mxu0 0
      %3582 = vmatprep.subr.bf16.mxu0 0
      %3583 = vmatpush2.bf16.msra.mxu0 0
      %3584 = vmatprep.subr.bf16.mxu0 0
      %3585 = vmatpush2.bf16.msra.mxu0 0
      %3586 = vmatprep.subr.bf16.mxu0 0
      %3587 = vmatpush2.bf16.msra.mxu0 0
      %3588 = vmatprep.subr.bf16.mxu0 0
      %3589 = vmatpush2.bf16.msra.mxu0 0
      %3590 = vmatprep.subr.bf16.mxu0 0
      %3591 = vmatpush2.bf16.msra.mxu0 0
      %3592 = vmatprep.subr.bf16.mxu0 0
      %3593 = vmatpush2.bf16.msra.mxu0 0
      %3594 = vmatprep.subr.bf16.mxu0 0
      %3595 = vmatpush2.bf16.msra.mxu0 0
      %3596 = vmatprep.mubr.bf16.mxu0 0
      %3597 = vmatmul.mubr.bf16.gmra.mxu0 %v2222
      %v3598 = vpop.f32.mrf.mxu0
      %v3599 = vadd.f32 0.0, %v3598
      %v3600 = vpop.f32.mrf.mxu0
      %v3601 = vpop.f32.mrf.mxu0
      %v3602 = vadd.f32 0.0, %v3601
      %v3603 = vpop.f32.mrf.mxu0
      %3604 = vmatprep.mubr.bf16.mxu0 0
      %3605 = vmatmul.mubr.bf16.gmra.mxu0 %v2225
      %v3606 = vpop.f32.mrf.mxu0
      %v3607 = vadd.f32 0.0, %v3606
      %v3608 = vpop.f32.mrf.mxu0
      %v3609 = vpop.f32.mrf.mxu0
      %v3610 = vadd.f32 0.0, %v3609
      %v3611 = vpop.f32.mrf.mxu0
      %3612 = vmatprep.mubr.bf16.mxu0 0
      %3613 = vmatmul.mubr.bf16.gmra.mxu0 %v2228
      %v3614 = vpop.f32.mrf.mxu0
      %v3615 = vadd.f32 0.0, %v3614
      %v3616 = vpop.f32.mrf.mxu0
      %v3617 = vpop.f32.mrf.mxu0
      %v3618 = vadd.f32 0.0, %v3617
      %v3619 = vpop.f32.mrf.mxu0
      %3620 = vmatprep.mubr.bf16.mxu0 0
      %3621 = vmatmul.mubr.bf16.gmra.mxu0 %v2231
      %v3622 = vpop.f32.mrf.mxu0
      %v3623 = vadd.f32 0.0, %v3622
      %v3624 = vpop.f32.mrf.mxu0
      %v3625 = vpop.f32.mrf.mxu0
      %v3626 = vadd.f32 0.0, %v3625
      %v3627 = vpop.f32.mrf.mxu0
      %3628 = vmatprep.mubr.bf16.mxu0 0
      %3629 = vmatmul.mubr.bf16.gmra.mxu0 %v2234
      %v3630 = vpop.f32.mrf.mxu0
      %v3631 = vadd.f32 0.0, %v3630
      %v3632 = vpop.f32.mrf.mxu0
      %v3633 = vpop.f32.mrf.mxu0
      %v3634 = vadd.f32 0.0, %v3633
      %v3635 = vpop.f32.mrf.mxu0
      %3636 = vmatprep.mubr.bf16.mxu0 0
      %3637 = vmatmul.mubr.bf16.gmra.mxu0 %v2237
      %v3638 = vpop.f32.mrf.mxu0
      %v3639 = vadd.f32 0.0, %v3638
      %v3640 = vpop.f32.mrf.mxu0
      %v3641 = vpop.f32.mrf.mxu0
      %v3642 = vadd.f32 0.0, %v3641
      %v3643 = vpop.f32.mrf.mxu0
      %3644 = vmatprep.mubr.bf16.mxu0 0
      %3645 = vmatmul.mubr.bf16.gmra.mxu0 %v2240
      %v3646 = vpop.f32.mrf.mxu0
      %v3647 = vadd.f32 0.0, %v3646
      %v3648 = vpop.f32.mrf.mxu0
      %v3649 = vpop.f32.mrf.mxu0
      %v3650 = vadd.f32 0.0, %v3649
      %v3651 = vpop.f32.mrf.mxu0
      %3652 = vmatprep.mubr.bf16.mxu0 0
      %3653 = vmatmul.mubr.bf16.gmra.mxu0 %v2243
      %v3654 = vpop.f32.mrf.mxu0
      %v3655 = vadd.f32 0.0, %v3654
      %v3656 = vpop.f32.mrf.mxu0
      %v3657 = vpop.f32.mrf.mxu0
      %v3658 = vadd.f32 0.0, %v3657
      %v3659 = vpop.f32.mrf.mxu0
      %3660 = vmatprep.mubr.bf16.mxu0 0
      %3661 = vmatmul.mubr.bf16.gmra.mxu0 %v2246
      %v3662 = vpop.f32.mrf.mxu0
      %v3663 = vadd.f32 0.0, %v3662
      %v3664 = vpop.f32.mrf.mxu0
      %v3665 = vpop.f32.mrf.mxu0
      %v3666 = vadd.f32 0.0, %v3665
      %v3667 = vpop.f32.mrf.mxu0
      %3668 = vmatprep.mubr.bf16.mxu0 0
      %3669 = vmatmul.mubr.bf16.gmra.mxu0 %v2249
      %v3670 = vpop.f32.mrf.mxu0
      %v3671 = vadd.f32 0.0, %v3670
      %v3672 = vpop.f32.mrf.mxu0
      %v3673 = vpop.f32.mrf.mxu0
      %v3674 = vadd.f32 0.0, %v3673
      %v3675 = vpop.f32.mrf.mxu0
      %3676 = vmatprep.mubr.bf16.mxu0 0
      %3677 = vmatmul.mubr.bf16.gmra.mxu0 %v2252
      %v3678 = vpop.f32.mrf.mxu0
      %v3679 = vadd.f32 0.0, %v3678
      %v3680 = vpop.f32.mrf.mxu0
      %v3681 = vpop.f32.mrf.mxu0
      %v3682 = vadd.f32 0.0, %v3681
      %v3683 = vpop.f32.mrf.mxu0
      %3684 = vmatprep.mubr.bf16.mxu0 0
      %3685 = vmatmul.mubr.bf16.gmra.mxu0 %v2255
      %v3686 = vpop.f32.mrf.mxu0
      %v3687 = vadd.f32 0.0, %v3686
      %v3688 = vpop.f32.mrf.mxu0
      %v3689 = vpop.f32.mrf.mxu0
      %v3690 = vadd.f32 0.0, %v3689
      %v3691 = vpop.f32.mrf.mxu0
      %3692 = vmatprep.mubr.bf16.mxu0 0
      %3693 = vmatmul.mubr.bf16.gmra.mxu0 %v2258
      %v3694 = vpop.f32.mrf.mxu0
      %v3695 = vadd.f32 0.0, %v3694
      %v3696 = vpop.f32.mrf.mxu0
      %v3697 = vpop.f32.mrf.mxu0
      %v3698 = vadd.f32 0.0, %v3697
      %v3699 = vpop.f32.mrf.mxu0
      %3700 = vmatprep.mubr.bf16.mxu0 0
      %3701 = vmatmul.mubr.bf16.gmra.mxu0 %v2261
      %v3702 = vpop.f32.mrf.mxu0
      %v3703 = vadd.f32 0.0, %v3702
      %v3704 = vpop.f32.mrf.mxu0
      %v3705 = vpop.f32.mrf.mxu0
      %v3706 = vadd.f32 0.0, %v3705
      %v3707 = vpop.f32.mrf.mxu0
      %3708 = vmatprep.mubr.bf16.mxu0 0
      %3709 = vmatmul.mubr.bf16.gmra.mxu0 %v2912
      %v3710 = vpop.f32.mrf.mxu0
      %v3711 = vadd.f32 0.0, %v3710
      %v3712 = vpop.f32.mrf.mxu0
      %v3713 = vpop.f32.mrf.mxu0
      %v3714 = vadd.f32 0.0, %v3713
      %v3715 = vpop.f32.mrf.mxu0
      %3716 = vmatprep.mubr.bf16.mxu0 0
      %3717 = vmatmul.mubr.bf16.gmra.mxu0 %v3559
      %v3718 = vpop.f32.mrf.mxu0
      %v3719 = vadd.f32 0.0, %v3718
      %v3720 = vpop.f32.mrf.mxu0
      %v3721 = vpop.f32.mrf.mxu0
      %v3722 = vadd.f32 0.0, %v3721
      %v3723 = vpop.f32.mrf.mxu0
      %3724 = vdwg.mxu0
      %v3725 = vadd.f32 %v3514, %v3599
      %v3726 = vadd.f32 %v3515, %v3602
      %v3727 = vadd.f32 %v3516, %v3607
      %v3728 = vadd.f32 %v3517, %v3610
      %v3729 = vadd.f32 %v3518, %v3615
      %v3730 = vadd.f32 %v3519, %v3618
      %v3731 = vadd.f32 %v3520, %v3623
      %v3732 = vadd.f32 %v3521, %v3626
      %v3733 = vadd.f32 %v3522, %v3631
      %v3734 = vadd.f32 %v3523, %v3634
      %v3735 = vadd.f32 %v3524, %v3639
      %v3736 = vadd.f32 %v3525, %v3642
      %v3737 = vadd.f32 %v3526, %v3647
      %v3738 = vadd.f32 %v3527, %v3650
      %v3739 = vadd.f32 %v3528, %v3655
      %v3740 = vadd.f32 %v3529, %v3658
      %v3741 = vadd.f32 %v3530, %v3663
      %v3742 = vadd.f32 %v3531, %v3666
      %v3743 = vadd.f32 %v3532, %v3671
      %v3744 = vadd.f32 %v3533, %v3674
      %v3745 = vadd.f32 %v3534, %v3679
      %v3746 = vadd.f32 %v3535, %v3682
      %v3747 = vadd.f32 %v3536, %v3687
      %v3748 = vadd.f32 %v3537, %v3690
      %v3749 = vadd.f32 %v3538, %v3695
      %v3750 = vadd.f32 %v3539, %v3698
      %v3751 = vadd.f32 %v3540, %v3703
      %v3752 = vadd.f32 %v3541, %v3706
      %v3753 = vadd.f32 %v3542, %v3711
      %v3754 = vadd.f32 %v3543, %v3714
      %v3755 = vadd.f32 %v3544, %v3719
      %v3756 = vadd.f32 %v3545, %v3722
      %v3757 = vpack.c.bf16 %v3726, %v3725
      %v3758 = vpack.c.bf16 %v3728, %v3727
      %v3759 = vpack.c.bf16 %v3730, %v3729
      %v3760 = vpack.c.bf16 %v3732, %v3731
      %v3761 = vpack.c.bf16 %v3734, %v3733
      %v3762 = vpack.c.bf16 %v3736, %v3735
      %v3763 = vpack.c.bf16 %v3738, %v3737
      %v3764 = vpack.c.bf16 %v3740, %v3739
      %v3765 = vpack.c.bf16 %v3742, %v3741
      %v3766 = vpack.c.bf16 %v3744, %v3743
      %v3767 = vpack.c.bf16 %v3746, %v3745
      %v3768 = vpack.c.bf16 %v3748, %v3747
      %v3769 = vpack.c.bf16 %v3750, %v3749
      %v3770 = vpack.c.bf16 %v3752, %v3751
      %v3771 = vpack.c.bf16 %v3754, %v3753
      %v3772 = vpack.c.bf16 %v3756, %v3755
      %v3789 = vunpack.c.l.b16 %v3757
      %v3790 = vunpack.c.h.b16 %v3757
      %v3791 = vunpack.c.l.b16 %v3758
      %v3792 = vunpack.c.h.b16 %v3758
      %v3793 = vunpack.c.l.b16 %v3759
      %v3794 = vunpack.c.h.b16 %v3759
      %v3795 = vunpack.c.l.b16 %v3760
      %v3796 = vunpack.c.h.b16 %v3760
      %v3797 = vunpack.c.l.b16 %v3761
      %v3798 = vunpack.c.h.b16 %v3761
      %v3799 = vunpack.c.l.b16 %v3762
      %v3800 = vunpack.c.h.b16 %v3762
      %v3801 = vunpack.c.l.b16 %v3763
      %v3802 = vunpack.c.h.b16 %v3763
      %v3803 = vunpack.c.l.b16 %v3764
      %v3804 = vunpack.c.h.b16 %v3764
      %v3805 = vunpack.c.l.b16 %v3765
      %v3806 = vunpack.c.h.b16 %v3765
      %v3807 = vunpack.c.l.b16 %v3766
      %v3808 = vunpack.c.h.b16 %v3766
      %v3809 = vunpack.c.l.b16 %v3767
      %v3810 = vunpack.c.h.b16 %v3767
      %v3811 = vunpack.c.l.b16 %v3768
      %v3812 = vunpack.c.h.b16 %v3768
      %v3813 = vunpack.c.l.b16 %v3769
      %v3814 = vunpack.c.h.b16 %v3769
      %v3815 = vunpack.c.l.b16 %v3770
      %v3816 = vunpack.c.h.b16 %v3770
      %v3817 = vunpack.c.l.b16 %v3771
      %v3818 = vunpack.c.h.b16 %v3771
      %v3819 = vunpack.c.l.b16 %v3772
      %v3820 = vunpack.c.h.b16 %v3772
      %v3821 = vpack.c.b16 %v3789, %v3789
      %v3822 = vpack.c.b16 %v3790, %v3790
      %v3823 = vpack.c.b16 %v3791, %v3791
      %v3824 = vpack.c.b16 %v3792, %v3792
      %v3825 = vpack.c.b16 %v3793, %v3793
      %v3826 = vpack.c.b16 %v3794, %v3794
      %v3827 = vpack.c.b16 %v3795, %v3795
      %v3828 = vpack.c.b16 %v3796, %v3796
      %v3829 = vpack.c.b16 %v3797, %v3797
      %v3830 = vpack.c.b16 %v3798, %v3798
      %v3831 = vpack.c.b16 %v3799, %v3799
      %v3832 = vpack.c.b16 %v3800, %v3800
      %v3833 = vpack.c.b16 %v3801, %v3801
      %v3834 = vpack.c.b16 %v3802, %v3802
      %v3835 = vpack.c.b16 %v3803, %v3803
      %v3836 = vpack.c.b16 %v3804, %v3804
      %v3837 = vpack.c.b16 %v3805, %v3805
      %v3838 = vpack.c.b16 %v3806, %v3806
      %v3839 = vpack.c.b16 %v3807, %v3807
      %v3840 = vpack.c.b16 %v3808, %v3808
      %v3841 = vpack.c.b16 %v3809, %v3809
      %v3842 = vpack.c.b16 %v3810, %v3810
      %v3843 = vpack.c.b16 %v3811, %v3811
      %v3844 = vpack.c.b16 %v3812, %v3812
      %v3845 = vpack.c.b16 %v3813, %v3813
      %v3846 = vpack.c.b16 %v3814, %v3814
      %v3847 = vpack.c.b16 %v3815, %v3815
      %v3848 = vpack.c.b16 %v3816, %v3816
      %v3849 = vpack.c.b16 %v3817, %v3817
      %v3850 = vpack.c.b16 %v3818, %v3818
      %v3851 = vpack.c.b16 %v3819, %v3819
      %v3852 = vpack.c.b16 %v3820, %v3820
      %3885 = vst.msk [vmem:[%s254] sm:$0xf] %vm922, %v3821
      %3886 = vst.msk [vmem:[%s254 + $0x4] sm:$0xf] %vm922, %v3822
      %3887 = vst.msk [vmem:[%s254 + $0x8] sm:$0xf] %vm922, %v3823
      %3888 = vst.msk [vmem:[%s254 + $0xc] sm:$0xf] %vm922, %v3824
      %3889 = vst.msk [vmem:[%s254 + $0x10] sm:$0xf] %vm922, %v3825
      %3890 = vst.msk [vmem:[%s254 + $0x14] sm:$0xf] %vm922, %v3826
      %3891 = vst.msk [vmem:[%s254 + $0x18] sm:$0xf] %vm922, %v3827
      %3892 = vst.msk [vmem:[%s254 + $0x1c] sm:$0xf] %vm922, %v3828
      %3893 = vst.msk [vmem:[%s254 + $0x20] sm:$0xf] %vm922, %v3829
      %3894 = vst.msk [vmem:[%s254 + $0x24] sm:$0xf] %vm922, %v3830
      %3895 = vst.msk [vmem:[%s254 + $0x28] sm:$0xf] %vm922, %v3831
      %3896 = vst.msk [vmem:[%s254 + $0x2c] sm:$0xf] %vm922, %v3832
      %3897 = vst.msk [vmem:[%s254 + $0x30] sm:$0xf] %vm922, %v3833
      %3898 = vst.msk [vmem:[%s254 + $0x34] sm:$0xf] %vm922, %v3834
      %3899 = vst.msk [vmem:[%s254 + $0x38] sm:$0xf] %vm922, %v3835
      %3900 = vst.msk [vmem:[%s254 + $0x3c] sm:$0xf] %vm922, %v3836
      %3901 = vst.msk [vmem:[%s254 + $0x40] sm:$0xf] %vm922, %v3837
      %3902 = vst.msk [vmem:[%s254 + $0x44] sm:$0xf] %vm922, %v3838
      %3903 = vst.msk [vmem:[%s254 + $0x48] sm:$0xf] %vm922, %v3839
      %3904 = vst.msk [vmem:[%s254 + $0x4c] sm:$0xf] %vm922, %v3840
      %3905 = vst.msk [vmem:[%s254 + $0x50] sm:$0xf] %vm922, %v3841
      %3906 = vst.msk [vmem:[%s254 + $0x54] sm:$0xf] %vm922, %v3842
      %3907 = vst.msk [vmem:[%s254 + $0x58] sm:$0xf] %vm922, %v3843
      %3908 = vst.msk [vmem:[%s254 + $0x5c] sm:$0xf] %vm922, %v3844
      %3909 = vst.msk [vmem:[%s254 + $0x60] sm:$0xf] %vm922, %v3845
      %3910 = vst.msk [vmem:[%s254 + $0x64] sm:$0xf] %vm922, %v3846
      %3911 = vst.msk [vmem:[%s254 + $0x68] sm:$0xf] %vm922, %v3847
      %3912 = vst.msk [vmem:[%s254 + $0x6c] sm:$0xf] %vm922, %v3848
      %3913 = vst.msk [vmem:[%s254 + $0x70] sm:$0xf] %vm922, %v3849
      %3914 = vst.msk [vmem:[%s254 + $0x74] sm:$0xf] %vm922, %v3850
      %3915 = vst.msk [vmem:[%s254 + $0x78] sm:$0xf] %vm922, %v3851
      %3916 = vst.msk [vmem:[%s254 + $0x7c] sm:$0xf] %vm922, %v3852
      %v3917 = vsel %vm1529, %v3725, 0.0
      %v3918 = vsel %vm1529, %v3726, 0.0
      %v3919 = vadd.f32 %v3917, %v3918
      %v3920 = vsel %vm1529, %v3727, 0.0
      %v3921 = vadd.f32 %v3919, %v3920
      %v3922 = vsel %vm1529, %v3728, 0.0
      %v3923 = vadd.f32 %v3921, %v3922
      %v3924 = vsel %vm1529, %v3729, 0.0
      %v3925 = vadd.f32 %v3923, %v3924
      %v3926 = vsel %vm1529, %v3730, 0.0
      %v3927 = vadd.f32 %v3925, %v3926
      %v3928 = vsel %vm1529, %v3731, 0.0
      %v3929 = vadd.f32 %v3927, %v3928
      %v3930 = vsel %vm1529, %v3732, 0.0
      %v3931 = vadd.f32 %v3929, %v3930
      %v3932 = vsel %vm1529, %v3733, 0.0
      %v3933 = vadd.f32 %v3931, %v3932
      %v3934 = vsel %vm1529, %v3734, 0.0
      %v3935 = vadd.f32 %v3933, %v3934
      %v3936 = vsel %vm1529, %v3735, 0.0
      %v3937 = vadd.f32 %v3935, %v3936
      %v3938 = vsel %vm1529, %v3736, 0.0
      %v3939 = vadd.f32 %v3937, %v3938
      %v3940 = vsel %vm1529, %v3737, 0.0
      %v3941 = vadd.f32 %v3939, %v3940
      %v3942 = vsel %vm1529, %v3738, 0.0
      %v3943 = vadd.f32 %v3941, %v3942
      %v3944 = vsel %vm1529, %v3739, 0.0
      %v3945 = vadd.f32 %v3943, %v3944
      %v3946 = vsel %vm1529, %v3740, 0.0
      %v3947 = vadd.f32 %v3945, %v3946
      %v3948 = vsel %vm1529, %v3741, 0.0
      %v3949 = vadd.f32 %v3947, %v3948
      %v3950 = vsel %vm1529, %v3742, 0.0
      %v3951 = vadd.f32 %v3949, %v3950
      %v3952 = vsel %vm1529, %v3743, 0.0
      %v3953 = vadd.f32 %v3951, %v3952
      %v3954 = vsel %vm1529, %v3744, 0.0
      %v3955 = vadd.f32 %v3953, %v3954
      %v3956 = vsel %vm1529, %v3745, 0.0
      %v3957 = vadd.f32 %v3955, %v3956
      %v3958 = vsel %vm1529, %v3746, 0.0
      %v3959 = vadd.f32 %v3957, %v3958
      %v3960 = vsel %vm1529, %v3747, 0.0
      %v3961 = vadd.f32 %v3959, %v3960
      %v3962 = vsel %vm1529, %v3748, 0.0
      %v3963 = vadd.f32 %v3961, %v3962
      %v3964 = vsel %vm1529, %v3749, 0.0
      %v3965 = vadd.f32 %v3963, %v3964
      %v3966 = vsel %vm1529, %v3750, 0.0
      %v3967 = vadd.f32 %v3965, %v3966
      %v3968 = vsel %vm1529, %v3751, 0.0
      %v3969 = vadd.f32 %v3967, %v3968
      %v3970 = vsel %vm1529, %v3752, 0.0
      %v3971 = vadd.f32 %v3969, %v3970
      %v3972 = vsel %vm1529, %v3753, 0.0
      %v3973 = vadd.f32 %v3971, %v3972
      %v3974 = vsel %vm1529, %v3754, 0.0
      %v3975 = vadd.f32 %v3973, %v3974
      %v3976 = vsel %vm1529, %v3755, 0.0
      %v3977 = vadd.f32 %v3975, %v3976
      %v3978 = vsel %vm1529, %v3756, 0.0
      %v3979 = vadd.f32 %v3977, %v3978
      %v3980 = vrot.slane %v3979, 4
      %v3981 = vadd.f32 %v3979, %v3980
      %v3982 = vrot.slane %v3981, 2
      %v3983 = vadd.f32 %v3981, %v3982
      %v3984 = vrot.slane %v3983, 1
      %v3985 = vadd.f32 %v3983, %v3984
      %v3986 = vadd.f32 %v3985, 0.0
      %v3987 = vmul.f32 %v3725, %v3725
      %v3988 = vmul.f32 %v3726, %v3726
      %v3989 = vmul.f32 %v3727, %v3727
      %v3990 = vmul.f32 %v3728, %v3728
      %v3991 = vmul.f32 %v3729, %v3729
      %v3992 = vmul.f32 %v3730, %v3730
      %v3993 = vmul.f32 %v3731, %v3731
      %v3994 = vmul.f32 %v3732, %v3732
      %v3995 = vmul.f32 %v3733, %v3733
      %v3996 = vmul.f32 %v3734, %v3734
      %v3997 = vmul.f32 %v3735, %v3735
      %v3998 = vmul.f32 %v3736, %v3736
      %v3999 = vmul.f32 %v3737, %v3737
      %v4000 = vmul.f32 %v3738, %v3738
      %v4001 = vmul.f32 %v3739, %v3739
      %v4002 = vmul.f32 %v3740, %v3740
      %v4003 = vmul.f32 %v3741, %v3741
      %v4004 = vmul.f32 %v3742, %v3742
      %v4005 = vmul.f32 %v3743, %v3743
      %v4006 = vmul.f32 %v3744, %v3744
      %v4007 = vmul.f32 %v3745, %v3745
      %v4008 = vmul.f32 %v3746, %v3746
      %v4009 = vmul.f32 %v3747, %v3747
      %v4010 = vmul.f32 %v3748, %v3748
      %v4011 = vmul.f32 %v3749, %v3749
      %v4012 = vmul.f32 %v3750, %v3750
      %v4013 = vmul.f32 %v3751, %v3751
      %v4014 = vmul.f32 %v3752, %v3752
      %v4015 = vmul.f32 %v3753, %v3753
      %v4016 = vmul.f32 %v3754, %v3754
      %v4017 = vmul.f32 %v3755, %v3755
      %v4018 = vmul.f32 %v3756, %v3756
      %v4019 = vsel %vm1529, %v3987, 0.0
      %v4020 = vsel %vm1529, %v3988, 0.0
      %v4021 = vadd.f32 %v4019, %v4020
      %v4022 = vsel %vm1529, %v3989, 0.0
      %v4023 = vadd.f32 %v4021, %v4022
      %v4024 = vsel %vm1529, %v3990, 0.0
      %v4025 = vadd.f32 %v4023, %v4024
      %v4026 = vsel %vm1529, %v3991, 0.0
      %v4027 = vadd.f32 %v4025, %v4026
      %v4028 = vsel %vm1529, %v3992, 0.0
      %v4029 = vadd.f32 %v4027, %v4028
      %v4030 = vsel %vm1529, %v3993, 0.0
      %v4031 = vadd.f32 %v4029, %v4030
      %v4032 = vsel %vm1529, %v3994, 0.0
      %v4033 = vadd.f32 %v4031, %v4032
      %v4034 = vsel %vm1529, %v3995, 0.0
      %v4035 = vadd.f32 %v4033, %v4034
      %v4036 = vsel %vm1529, %v3996, 0.0
      %v4037 = vadd.f32 %v4035, %v4036
      %v4038 = vsel %vm1529, %v3997, 0.0
      %v4039 = vadd.f32 %v4037, %v4038
      %v4040 = vsel %vm1529, %v3998, 0.0
      %v4041 = vadd.f32 %v4039, %v4040
      %v4042 = vsel %vm1529, %v3999, 0.0
      %v4043 = vadd.f32 %v4041, %v4042
      %v4044 = vsel %vm1529, %v4000, 0.0
      %v4045 = vadd.f32 %v4043, %v4044
      %v4046 = vsel %vm1529, %v4001, 0.0
      %v4047 = vadd.f32 %v4045, %v4046
      %v4048 = vsel %vm1529, %v4002, 0.0
      %v4049 = vadd.f32 %v4047, %v4048
      %v4050 = vsel %vm1529, %v4003, 0.0
      %v4051 = vadd.f32 %v4049, %v4050
      %v4052 = vsel %vm1529, %v4004, 0.0
      %v4053 = vadd.f32 %v4051, %v4052
      %v4054 = vsel %vm1529, %v4005, 0.0
      %v4055 = vadd.f32 %v4053, %v4054
      %v4056 = vsel %vm1529, %v4006, 0.0
      %v4057 = vadd.f32 %v4055, %v4056
      %v4058 = vsel %vm1529, %v4007, 0.0
      %v4059 = vadd.f32 %v4057, %v4058
      %v4060 = vsel %vm1529, %v4008, 0.0
      %v4061 = vadd.f32 %v4059, %v4060
      %v4062 = vsel %vm1529, %v4009, 0.0
      %v4063 = vadd.f32 %v4061, %v4062
      %v4064 = vsel %vm1529, %v4010, 0.0
      %v4065 = vadd.f32 %v4063, %v4064
      %v4066 = vsel %vm1529, %v4011, 0.0
      %v4067 = vadd.f32 %v4065, %v4066
      %v4068 = vsel %vm1529, %v4012, 0.0
      %v4069 = vadd.f32 %v4067, %v4068
      %v4070 = vsel %vm1529, %v4013, 0.0
      %v4071 = vadd.f32 %v4069, %v4070
      %v4072 = vsel %vm1529, %v4014, 0.0
      %v4073 = vadd.f32 %v4071, %v4072
      %v4074 = vsel %vm1529, %v4015, 0.0
      %v4075 = vadd.f32 %v4073, %v4074
      %v4076 = vsel %vm1529, %v4016, 0.0
      %v4077 = vadd.f32 %v4075, %v4076
      %v4078 = vsel %vm1529, %v4017, 0.0
      %v4079 = vadd.f32 %v4077, %v4078
      %v4080 = vsel %vm1529, %v4018, 0.0
      %v4081 = vadd.f32 %v4079, %v4080
      %v4082 = vrot.slane %v4081, 4
      %v4083 = vadd.f32 %v4081, %v4082
      %v4084 = vrot.slane %v4083, 2
      %v4085 = vadd.f32 %v4083, %v4084
      %v4086 = vrot.slane %v4085, 1
      %v4087 = vadd.f32 %v4085, %v4086
      %v4088 = vadd.f32 %v4087, 0.0
      %v4089 = vld [vmem:[%s259] sm:$0x3]
      %vm4090 = vcmask 1040384
      %v4091 = vsel %vm4090, %v3986, %v4088
      %v4092 = vadd.f32 %v4089, %v4091
      %vm4093 = vcmask 25600
      %4094 = vst.msk [vmem:[%s259] sm:$0x3] %vm4093, %v4092
      %s4095 = sadd.s32 %s21, %s22
      %p4096 = scmp.lt.s32.totalorder %s4095, 1
      %s4097 = scalar_select %p4096, %s4095, 1
      %s4098 = smul.addr %s4097, 32
      %s4099 = smul.addr %s4098, 4
      %s4100 = scalar_lea.vmem %s4, %s4099
      %p4101 = scmp.lt.s32.totalorder %s21, 1
      %s4102 = scalar_select %p4101, %s21, 1
      %s4103 = smul.addr %s4102, 2
      %s4104 = scalar_lea.vmem %s5, %s4103
      // Predicated region
      $region41: #{basic_block_forward.4} parent=35 // pred_check
        %p4105 = pneg %p140
      $region42: #{basic_block_forward.4} parent=35 // pred_check_branch
        %4107 = sbr.rel (%p4105) target = $region44
      $region43: #{basic_block_forward.4} parent=35 // pred_region
        %s4108 = sadd.s32 %s21, %s22
      $region44: #{basic_block_forward.4} parent=35 // pred_fallthru
        _
      // Predicated region
      $region45: #{basic_block_forward.4} parent=35 // pred_check
        %p4109 = pneg %p166
      $region46: #{basic_block_forward.4} parent=35 // pred_check_branch
        %4111 = sbr.rel (%p4109) target = $region48
      $region47: #{basic_block_forward.4} parent=35 // pred_region
        _
      $region48: #{basic_block_forward.4} parent=35 // pred_fallthru
        _
    $region36: #{basic_block_forward.4} parent=5 // pred_fallthru
      _
    %p4112 = scmp.le.s32.totalorder 2, %s12
    // Predicated region
    $region49: #{basic_block_forward.4} parent=5 // pred_check
      %p4113 = pneg %p4112
    $region50: #{basic_block_forward.4} parent=5 // pred_check_branch
      %4115 = sbr.rel (%p4113) target = $region52
    $region51: #{basic_block_forward.4} parent=5 // pred_region
      %s4116 = ssub.s32 %s12, 2
      // Predicated region
      $region53: #{basic_block_forward.4} parent=51 // pred_check
        %p4117 = pneg %p146
      $region54: #{basic_block_forward.4} parent=51 // pred_check_branch
        %4119 = sbr.rel (%p4117) target = $region56
      $region55: #{basic_block_forward.4} parent=51 // pred_region
        %s4120 = sadd.s32 %s23, %s24
        %p4121 = scmp.lt.s32.totalorder %s4120, 1
        %s4122 = scalar_select %p4121, %s4120, 1
        %s4123 = smul.addr %s4122, 32
        %s4124 = smul.addr %s4123, 4
        %s4125 = scalar_lea.vmem %s4, %s4124
      $region56: #{basic_block_forward.4} parent=51 // pred_fallthru
        _
      // Predicated region
      $region57: #{basic_block_forward.4} parent=51 // pred_check
        %p4126 = pneg %p172
      $region58: #{basic_block_forward.4} parent=51 // pred_check_branch
        %4128 = sbr.rel (%p4126) target = $region60
      $region59: #{basic_block_forward.4} parent=51 // pred_region
        %p4129 = scmp.lt.s32.totalorder %s23, 1
        %s4130 = scalar_select %p4129, %s23, 1
        %s4131 = smul.addr %s4130, 2
        %s4132 = scalar_lea.vmem %s5, %s4131
      $region60: #{basic_block_forward.4} parent=51 // pred_fallthru
        _
    $region52: #{basic_block_forward.4} parent=5 // pred_fallthru
      _
  $region6: #{basic_block_forward.4} parent=0 // loop_footer
    %s16 = sadd.s32 1, %s12
  $region7: #{basic_block_forward.4} parent=0 // loop_footer_branch
    %11 = sbr.rel target = $region3
  $region8: #{basic_block_forward.4} parent=0 // loop_exit
    _

</llo_original>
